<compile_context>
chip_gen: v7x
topology: tpu7x:2x2x1
jax: 0.10.0
libtpu: 0.0.40
codegen_flags: <defaults>
</compile_context>

<pallas_src>
import jax
import jax.numpy as jnp
from jax.experimental import pallas as pl
from jax.experimental.pallas import tpu as pltpu


def _round_up(x, m):
    return ((x + m - 1) // m) * m


def wide_cnn_kernel(x_ref, w1_ref, b1_ref, w2_ref, b2_ref, o_ref):
    """One batch tile of the WideCNN forward.

    x_ref : (S, E*BT)   embedded tokens, lanes ordered (e, b) e-major:
                        x_ref[s, e*BT + b] = emb_table[tokens[b, s], e]
    w1_ref: (2F, S)     conv1 taps stacked row-wise (rows [0,F)=tap0, [F,2F)=tap1)
    b1_ref: (F, 1)
    w2_ref: (2F2, F)    conv2 taps stacked row-wise
    b2_ref: (F2, 1)
    o_ref : (F2, BT)    pooled output features, batch on lanes
    """
    S, EBT = x_ref.shape
    F = b1_ref.shape[0]
    F2 = b2_ref.shape[0]
    BT = o_ref.shape[1]
    E = EBT // BT

    # conv1: both taps of every output channel in a single long-N MXU GEMM.
    x = x_ref[...].astype(jnp.float32)                                  # (S, E*BT)
    r = jnp.dot(w1_ref[...], x, preferred_element_type=jnp.float32)     # (2F, E*BT)
    a = r[:F, :]                                                        # tap k=0 responses
    t1 = r[F:, :]                                                       # tap k=1 responses

    # conv1 (cross-correlation, k=2, padding=1) output positions l = 0..E:
    #   l = 0      -> t1[., 0]              (k=0 tap hits the zero pad)
    #   l = 1..E-1 -> a[., l-1] + t1[., l]
    #   l = E      -> a[., E-1]             (k=1 tap hits the zero pad)
    # Lanes are (e, b) e-major, so position l is the aligned 128-lane chunk
    # [l*BT, (l+1)*BT) and the shift by one position is a whole-chunk shift.
    mid = a[:, : (E - 1) * BT] + t1[:, BT:]                             # (F, (E-1)*BT)

    # AdaptiveMaxPool1d(1): per-batch max over positions = max over BT-lane
    # chunks.  Overlapped halving tree (duplicate chunks are harmless for max);
    # the result lands as (F, BT) with batch on lanes -- no relayout needed.
    n = E - 1
    while n > 1:
        h = (n + 1) // 2
        mid = jnp.maximum(mid[:, : h * BT], mid[:, (n - h) * BT:])
        n = h
    m = jnp.maximum(mid, t1[:, :BT])                                    # l = 0
    m = jnp.maximum(m, a[:, (E - 1) * BT:])                             # l = E

    # bias + ReLU hoisted past the max-pool (bias constant along the pooled
    # axis, ReLU monotone): p1 = relu(max_l(conv1_nobias) + b1)
    p1 = jnp.maximum(m + b1_ref[...], 0.0)                              # (F, BT)

    # conv2 (k=2, padding=1) on a length-1 signal -> exactly 2 output positions,
    # each seeing exactly one tap.  Single stacked GEMM over the whole tile.
    q = jnp.dot(w2_ref[...], p1, preferred_element_type=jnp.float32)    # (2F2, BT)
    y = jnp.maximum(q[:F2, :], q[F2:, :])                               # max over 2 positions
    o_ref[...] = jnp.maximum(y + b2_ref[...], 0.0)                      # + bias, ReLU


def wide_cnn_forward(tokens, emb_table, w1, b1, w2, b2, *, block_b=256,
                     x_dtype=jnp.bfloat16):
    """tokens: (B, S) int32; returns (B, 2*num_filters) float32."""
    B, S = tokens.shape
    E = emb_table.shape[1]
    F = w1.shape[0]
    F2 = w2.shape[0]

    # Batch tiling: BT is a multiple of 128 so every chunk slice in the kernel
    # is lane-tile aligned and the output block is lane-dense.
    BT = max(128, min(_round_up(block_b, 128), _round_up(B, 128)))
    nb = pl.cdiv(B, BT)
    # v7x has 2 TensorCores: a single-step grid leaves one idle.  Splitting one
    # large tile in two costs ~nothing on 1-TC chips (v5e/v6e).  Odd multi-step
    # grids are left alone (padding to even only adds work on 1-TC chips).
    if nb == 1 and BT % 256 == 0:
        BT //= 2
        nb = 2
    B_pad = nb * BT

    if B_pad != B:
        tokens = jnp.pad(tokens, ((0, B_pad - B), (0, 0)))   # token 0 is a valid row

    # Embedding gather (XLA), then rearrange so each batch tile is one
    # (S, E*BT) slab with lanes ordered (e, b) e-major -- the layout the
    # vectorized conv1 GEMM + chunked max-pool consume directly.  Streamed as
    # bf16 by default to halve HBM bytes of the dominant stream; all in-kernel
    # math is f32.
    x = jnp.take(emb_table, tokens, axis=0).astype(x_dtype)   # (B_pad, S, E)
    x = x.reshape(nb, BT, S, E).transpose(0, 2, 3, 1)         # (nb, S, E, BT)
    x = x.reshape(nb, S, E * BT)

    # Stack the two conv taps row-wise so each layer is a single GEMM.
    w1st = jnp.concatenate([w1[:, :, 0], w1[:, :, 1]], axis=0).astype(jnp.float32)   # (2F, S)
    w2st = jnp.concatenate([w2[:, :, 0], w2[:, :, 1]], axis=0).astype(jnp.float32)   # (2F2, F)
    b1c = b1.reshape(F, 1).astype(jnp.float32)
    b2c = b2.reshape(F2, 1).astype(jnp.float32)

    out = pl.pallas_call(
        wide_cnn_kernel,
        out_shape=jax.ShapeDtypeStruct((F2, B_pad), jnp.float32),
        grid_spec=pltpu.PrefetchScalarGridSpec(
            num_scalar_prefetch=0,
            grid=(nb,),
            in_specs=[
                pl.BlockSpec((None, S, E * BT), lambda i: (i, 0, 0)),  # batch tile
                pl.BlockSpec((2 * F, S), lambda i: (0, 0)),            # resident weights
                pl.BlockSpec((F, 1), lambda i: (0, 0)),
                pl.BlockSpec((2 * F2, F), lambda i: (0, 0)),
                pl.BlockSpec((F2, 1), lambda i: (0, 0)),
            ],
            out_specs=pl.BlockSpec((F2, BT), lambda i: (0, i)),        # batch on lanes
        ),
        compiler_params=pltpu.CompilerParams(
            dimension_semantics=("parallel",),
            vmem_limit_bytes=40 * 1024 * 1024,
        ),
    )(x, w1st, b1c, w2st, b2c)

    # The module returns (B, 2F); this tiny transpose could be folded into the
    # consumer if it accepts a features-major (2F, B) layout.
    return out[:, :B].T


def reference_forward(tokens, emb_table, w1, b1, w2, b2):
    """Pure-JAX reference matching PyTorch semantics (XLA conv = cross-correlation)."""
    x = jnp.take(emb_table, tokens, axis=0)                  # (B, S, E)
    y = jax.lax.conv_general_dilated(
        x, w1, window_strides=(1,), padding=((1, 1),),
        dimension_numbers=("NCH", "OIH", "NCH"))
    y = jax.nn.relu(y + b1[None, :, None])
    p = jnp.max(y, axis=-1, keepdims=True)                   # (B, F, 1)
    y2 = jax.lax.conv_general_dilated(
        p, w2, window_strides=(1,), padding=((1, 1),),
        dimension_numbers=("NCH", "OIH", "NCH"))
    y2 = jax.nn.relu(y2 + b2[None, :, None])
    return jnp.max(y2, axis=-1)                              # (B, 2F)


if __name__ == "__main__":
    sequence_length = 8
    num_embeddings = 16
    embedding_dim = 128       # module default
    num_filters = 32          # module default
    kernel_size = 2           # module default

    key = jax.random.PRNGKey(0)
    k_tok, k_emb, k_w1, k_b1, k_w2, k_b2 = jax.random.split(key, 6)

    emb_table = jax.random.normal(
        k_emb, (num_embeddings + 1, embedding_dim), jnp.float32)
    w1 = 0.1 * jax.random.normal(
        k_w1, (num_filters, sequence_length, kernel_size), jnp.float32)
    b1 = 0.1 * jax.random.normal(k_b1, (num_filters,), jnp.float32)
    w2 = 0.1 * jax.random.normal(
        k_w2, (num_filters * 2, num_filters, kernel_size), jnp.float32)
    b2 = 0.1 * jax.random.normal(k_b2, (num_filters * 2,), jnp.float32)

    # B=8: small single-tile case.  B=300: exercises batch blocking (BT=256),
    # padding to a multiple of the tile, and the multi-step lane-dense output.
    for i, B in enumerate((8, 300)):
        k_b = jax.random.fold_in(k_tok, i)
        tokens = jax.random.randint(
            k_b, (B, sequence_length), 0, num_embeddings + 1, dtype=jnp.int32)
        ref = reference_forward(tokens, emb_table, w1, b1, w2, b2)

        # default bf16 activation stream (looser tol), plus an f32 stream run.
        for x_dtype, tol in ((jnp.bfloat16, 2e-2), (jnp.float32, 1e-3)):
            out = jax.block_until_ready(
                wide_cnn_forward(tokens, emb_table, w1, b1, w2, b2,
                                 x_dtype=x_dtype))
            assert out.shape == (B, num_filters * 2), out.shape
            err = float(jnp.max(jnp.abs(out - ref)))
            assert jnp.allclose(out, ref, rtol=tol, atol=tol), (str(x_dtype), err)

    print("KERNEL_OK")
</pallas_src>

<mosaic_0001>
module attributes {stable_mosaic.version = 11 : i64} {
  func.func @wide_cnn_kernel(%arg0: i32, %arg1: memref<1x8x16384xbf16, #tpu.memory_space<vmem>>, %arg2: memref<64x8xf32, #tpu.memory_space<vmem>>, %arg3: memref<32x1xf32, #tpu.memory_space<vmem>>, %arg4: memref<128x32xf32, #tpu.memory_space<vmem>>, %arg5: memref<64x1xf32, #tpu.memory_space<vmem>>, %arg6: memref<64x128xf32, #tpu.memory_space<vmem>>) attributes {dimension_semantics = [#tpu.dimension_semantics<parallel>], iteration_bounds = array<i64: 1>, scalar_prefetch = 0 : i64, scratch_operands = 0 : i64, tpu.core_type = #tpu.core_type<tc>, window_params = [{transform_indices = @transform_0, window_bounds = array<i64: 1, 8, 16384>}, {pipeline_mode = #tpu.pipeline_mode<synchronous>, transform_indices = @transform_1, window_bounds = array<i64: 64, 8>}, {pipeline_mode = #tpu.pipeline_mode<synchronous>, transform_indices = @transform_2, window_bounds = array<i64: 32, 1>}, {pipeline_mode = #tpu.pipeline_mode<synchronous>, transform_indices = @transform_3, window_bounds = array<i64: 128, 32>}, {pipeline_mode = #tpu.pipeline_mode<synchronous>, transform_indices = @transform_4, window_bounds = array<i64: 64, 1>}, {transform_indices = @transform_5, window_bounds = array<i64: 64, 128>}]} {
    %c0 = arith.constant 0 : index
    %c0_0 = arith.constant 0 : index
    %c0_1 = arith.constant 0 : index
    %0 = vector.load %arg1[%c0, %c0_0, %c0_1] : memref<1x8x16384xbf16, #tpu.memory_space<vmem>>, vector<1x8x16384xbf16>
    %1 = vector.shape_cast %0 : vector<1x8x16384xbf16> to vector<8x16384xbf16>
    %2 = arith.extf %1 : vector<8x16384xbf16> to vector<8x16384xf32>
    %c0_2 = arith.constant 0 : index
    %c0_3 = arith.constant 0 : index
    %3 = vector.load %arg2[%c0_2, %c0_3] : memref<64x8xf32, #tpu.memory_space<vmem>>, vector<64x8xf32>
    %cst = arith.constant dense<0.000000e+00> : vector<64x16384xf32>
    %4 = tpu.matmul %3, %2, %cst {dimension_numbers = #tpu.dot_dimension_numbers<[1], [0], [0], [1], [0, 0, 1, 1], [], []>} : vector<64x8xf32>, vector<8x16384xf32>, vector<64x16384xf32> -> vector<64x16384xf32>
    %5 = vector.extract_strided_slice %4 {offsets = [0, 0], sizes = [32, 16384], strides = [1, 1]} : vector<64x16384xf32> to vector<32x16384xf32>
    %6 = vector.extract_strided_slice %4 {offsets = [32, 0], sizes = [32, 16384], strides = [1, 1]} : vector<64x16384xf32> to vector<32x16384xf32>
    %7 = vector.extract_strided_slice %5 {offsets = [0, 0], sizes = [32, 16256], strides = [1, 1]} : vector<32x16384xf32> to vector<32x16256xf32>
    %8 = vector.extract_strided_slice %6 {offsets = [0, 128], sizes = [32, 16256], strides = [1, 1]} : vector<32x16384xf32> to vector<32x16256xf32>
    %9 = arith.addf %7, %8 : vector<32x16256xf32>
    %10 = vector.extract_strided_slice %9 {offsets = [0, 0], sizes = [32, 8192], strides = [1, 1]} : vector<32x16256xf32> to vector<32x8192xf32>
    %11 = vector.extract_strided_slice %9 {offsets = [0, 8064], sizes = [32, 8192], strides = [1, 1]} : vector<32x16256xf32> to vector<32x8192xf32>
    %12 = arith.maximumf %10, %11 : vector<32x8192xf32>
    %13 = vector.extract_strided_slice %12 {offsets = [0, 0], sizes = [32, 4096], strides = [1, 1]} : vector<32x8192xf32> to vector<32x4096xf32>
    %14 = vector.extract_strided_slice %12 {offsets = [0, 4096], sizes = [32, 4096], strides = [1, 1]} : vector<32x8192xf32> to vector<32x4096xf32>
    %15 = arith.maximumf %13, %14 : vector<32x4096xf32>
    %16 = vector.extract_strided_slice %15 {offsets = [0, 0], sizes = [32, 2048], strides = [1, 1]} : vector<32x4096xf32> to vector<32x2048xf32>
    %17 = vector.extract_strided_slice %15 {offsets = [0, 2048], sizes = [32, 2048], strides = [1, 1]} : vector<32x4096xf32> to vector<32x2048xf32>
    %18 = arith.maximumf %16, %17 : vector<32x2048xf32>
    %19 = vector.extract_strided_slice %18 {offsets = [0, 0], sizes = [32, 1024], strides = [1, 1]} : vector<32x2048xf32> to vector<32x1024xf32>
    %20 = vector.extract_strided_slice %18 {offsets = [0, 1024], sizes = [32, 1024], strides = [1, 1]} : vector<32x2048xf32> to vector<32x1024xf32>
    %21 = arith.maximumf %19, %20 : vector<32x1024xf32>
    %22 = vector.extract_strided_slice %21 {offsets = [0, 0], sizes = [32, 512], strides = [1, 1]} : vector<32x1024xf32> to vector<32x512xf32>
    %23 = vector.extract_strided_slice %21 {offsets = [0, 512], sizes = [32, 512], strides = [1, 1]} : vector<32x1024xf32> to vector<32x512xf32>
    %24 = arith.maximumf %22, %23 : vector<32x512xf32>
    %25 = vector.extract_strided_slice %24 {offsets = [0, 0], sizes = [32, 256], strides = [1, 1]} : vector<32x512xf32> to vector<32x256xf32>
    %26 = vector.extract_strided_slice %24 {offsets = [0, 256], sizes = [32, 256], strides = [1, 1]} : vector<32x512xf32> to vector<32x256xf32>
    %27 = arith.maximumf %25, %26 : vector<32x256xf32>
    %28 = vector.extract_strided_slice %27 {offsets = [0, 0], sizes = [32, 128], strides = [1, 1]} : vector<32x256xf32> to vector<32x128xf32>
    %29 = vector.extract_strided_slice %27 {offsets = [0, 128], sizes = [32, 128], strides = [1, 1]} : vector<32x256xf32> to vector<32x128xf32>
    %30 = arith.maximumf %28, %29 : vector<32x128xf32>
    %31 = vector.extract_strided_slice %6 {offsets = [0, 0], sizes = [32, 128], strides = [1, 1]} : vector<32x16384xf32> to vector<32x128xf32>
    %32 = arith.maximumf %30, %31 : vector<32x128xf32>
    %33 = vector.extract_strided_slice %5 {offsets = [0, 16256], sizes = [32, 128], strides = [1, 1]} : vector<32x16384xf32> to vector<32x128xf32>
    %34 = arith.maximumf %32, %33 : vector<32x128xf32>
    %c0_4 = arith.constant 0 : index
    %c0_5 = arith.constant 0 : index
    %35 = vector.load %arg3[%c0_4, %c0_5] : memref<32x1xf32, #tpu.memory_space<vmem>>, vector<32x1xf32>
    %36 = vector.broadcast %35 : vector<32x1xf32> to vector<32x128xf32>
    %37 = arith.addf %34, %36 : vector<32x128xf32>
    %cst_6 = arith.constant 0.000000e+00 : f32
    %38 = vector.broadcast %cst_6 : f32 to vector<32x128xf32>
    %39 = arith.maximumf %37, %38 : vector<32x128xf32>
    %c0_7 = arith.constant 0 : index
    %c0_8 = arith.constant 0 : index
    %40 = vector.load %arg4[%c0_7, %c0_8] : memref<128x32xf32, #tpu.memory_space<vmem>>, vector<128x32xf32>
    %cst_9 = arith.constant dense<0.000000e+00> : vector<128x128xf32>
    %41 = tpu.matmul %40, %39, %cst_9 {dimension_numbers = #tpu.dot_dimension_numbers<[1], [0], [0], [1], [0, 0, 1, 1], [], []>} : vector<128x32xf32>, vector<32x128xf32>, vector<128x128xf32> -> vector<128x128xf32>
    %42 = vector.extract_strided_slice %41 {offsets = [0, 0], sizes = [64, 128], strides = [1, 1]} : vector<128x128xf32> to vector<64x128xf32>
    %43 = vector.extract_strided_slice %41 {offsets = [64, 0], sizes = [64, 128], strides = [1, 1]} : vector<128x128xf32> to vector<64x128xf32>
    %44 = arith.maximumf %42, %43 : vector<64x128xf32>
    %c0_10 = arith.constant 0 : index
    %c0_11 = arith.constant 0 : index
    %45 = vector.load %arg5[%c0_10, %c0_11] : memref<64x1xf32, #tpu.memory_space<vmem>>, vector<64x1xf32>
    %46 = vector.broadcast %45 : vector<64x1xf32> to vector<64x128xf32>
    %47 = arith.addf %44, %46 : vector<64x128xf32>
    %cst_12 = arith.constant 0.000000e+00 : f32
    %48 = vector.broadcast %cst_12 : f32 to vector<64x128xf32>
    %49 = arith.maximumf %47, %48 : vector<64x128xf32>
    %c0_13 = arith.constant 0 : index
    %c0_14 = arith.constant 0 : index
    %50 = vector.load %arg6[%c0_13, %c0_14] : memref<64x128xf32, #tpu.memory_space<vmem>>, vector<64x128xf32>
    tpu.vector_store %arg6[%c0_13, %c0_14], %49 {strides = array<i32>} : memref<64x128xf32, #tpu.memory_space<vmem>>, vector<64x128xf32>,
    return
  }
  func.func @transform_0(%arg0: i32) -> (i32, i32, i32) {
    %c0_i32 = arith.constant 0 : i32
    %c0_i32_0 = arith.constant 0 : i32
    %c0_i32_1 = arith.constant 0 : i32
    return %arg0, %c0_i32, %c0_i32_0 : i32, i32, i32
  }
  func.func @transform_1(%arg0: i32) -> (i32, i32) {
    %c0_i32 = arith.constant 0 : i32
    %c0_i32_0 = arith.constant 0 : i32
    %c0_i32_1 = arith.constant 0 : i32
    return %c0_i32, %c0_i32_0 : i32, i32
  }
  func.func @transform_2(%arg0: i32) -> (i32, i32) {
    %c0_i32 = arith.constant 0 : i32
    %c0_i32_0 = arith.constant 0 : i32
    %c0_i32_1 = arith.constant 0 : i32
    return %c0_i32, %c0_i32_0 : i32, i32
  }
  func.func @transform_3(%arg0: i32) -> (i32, i32) {
    %c0_i32 = arith.constant 0 : i32
    %c0_i32_0 = arith.constant 0 : i32
    %c0_i32_1 = arith.constant 0 : i32
    return %c0_i32, %c0_i32_0 : i32, i32
  }
  func.func @transform_4(%arg0: i32) -> (i32, i32) {
    %c0_i32 = arith.constant 0 : i32
    %c0_i32_0 = arith.constant 0 : i32
    %c0_i32_1 = arith.constant 0 : i32
    return %c0_i32, %c0_i32_0 : i32, i32
  }
  func.func @transform_5(%arg0: i32) -> (i32, i32) {
    %c0_i32 = arith.constant 0 : i32
    %c0_i32_0 = arith.constant 0 : i32
    return %c0_i32, %arg0 : i32, i32
  }
}

</mosaic_0001>

<llo_original>
// kernel: tpu_custom_call.1
$region0: #{tpu_custom_call.1}
  #allocation0 [shape = 'u32[]', space=smem, size = 0x4, offset = 0x4, fixed_abs, tag = 'smem constant byte address 0x4 - core index']
  #allocation1 [shape = 'u32[144,128]{1,0:T(1,128)}', space=vmem, size = 0x12000, scoped, tag = 'internal scratch']
  %s0 = inlined_call_operand.hbm [shape: bf16[1,8,16384], index: 0, kind: input, shape index: {}]
  %s1 = inlined_call_operand.vmem [shape: f32[64,8], index: 1, kind: input, shape index: {}]
  %s2 = inlined_call_operand.vmem [shape: f32[32,1], index: 2, kind: input, shape index: {}]
  %s3 = inlined_call_operand.vmem [shape: f32[128,32], index: 3, kind: input, shape index: {}]
  %s4 = inlined_call_operand.vmem [shape: f32[64,1], index: 4, kind: input, shape index: {}]
  %s5 = inlined_call_operand.hbm [shape: f32[64,128], index: 5, kind: output, shape index: {}]
  %s6 = sld [smem:[#allocation0]]
  $region34: #{tpu_custom_call.1} parent=0
    _
  %s8 = ssub.s32 1, %s6
  %s9 = scalar_select 0, %s8, %s6
  $region1: #{tpu_custom_call.1} parent=0
    #allocation2 [shape = 'u8[262144]{0}', space=vmem, size = 0x40000, scoped, tag = 'input window, operand 0, single buffered']
    #allocation3 [shape = 's32[1]{0}', space=sflag, size = 0x4, scoped, tag = 'scoped memory for tpu_custom_call.1']
    #allocation4 [shape = 's32[1]{0}', space=sflag, size = 0x4, scoped, tag = 'scoped memory for tpu_custom_call.1']
    #allocation5 [shape = 'u8[32768]{0}', space=vmem, size = 0x8000, scoped, tag = 'output window, operand 0, single buffered']
    %10 = vsyncpa [#allocation3], 0
    %11 = vsyncpa [#allocation4], 0
    // Predicated region
    $region2: #{tpu_custom_call.1} parent=1 // pred_check
      _
    $region3: #{tpu_custom_call.1} parent=1 // pred_check_branch
      %13 = sbr.rel (0) target = $region5
    $region4: #{tpu_custom_call.1} parent=1 // pred_region
      %s15 = ssub.s32 8192, 8192
      %16 = vsyncadd [#allocation3], %s15
      %s18 = sshll.u32 [#allocation2], 4
      %s19 = int_to_ptr.vmem [resolvable:$true] %s18
      %21 = dma.hbm_to_vmem [thread:$0]  %s0, 8192, %s19, [#allocation3]
    $region5: #{tpu_custom_call.1} parent=1 // pred_fallthru
      _
    // Predicated region
    $region6: #{tpu_custom_call.1} parent=1 // pred_check
      _
    $region7: #{tpu_custom_call.1} parent=1 // pred_check_branch
      %23 = sbr.rel (0) target = $region9
    $region8: #{tpu_custom_call.1} parent=1 // pred_region
      _
    $region9: #{tpu_custom_call.1} parent=1 // pred_fallthru
      _
    // Predicated region
    $region10: #{tpu_custom_call.1} parent=1 // pred_check
      _
    $region11: #{tpu_custom_call.1} parent=1 // pred_check_branch
      %25 = sbr.rel (0) target = $region13
    $region12: #{tpu_custom_call.1} parent=1 // pred_region
      _
    $region13: #{tpu_custom_call.1} parent=1 // pred_fallthru
      _
    // Predicated region
    $region14: #{tpu_custom_call.1} parent=1 // pred_check
      _
    $region15: #{tpu_custom_call.1} parent=1 // pred_check_branch
      %27 = sbr.rel (0) target = $region17
    $region16: #{tpu_custom_call.1} parent=1 // pred_region
      _
    $region17: #{tpu_custom_call.1} parent=1 // pred_fallthru
      _
    // Predicated region
    $region18: #{tpu_custom_call.1} parent=1 // pred_check
      _
    $region19: #{tpu_custom_call.1} parent=1 // pred_check_branch
      %29 = sbr.rel (0) target = $region21
    $region20: #{tpu_custom_call.1} parent=1 // pred_region
      _
    $region21: #{tpu_custom_call.1} parent=1 // pred_fallthru
      _
    // Predicated region
    $region22: #{tpu_custom_call.1} parent=1 // pred_check
      _
    $region23: #{tpu_custom_call.1} parent=1 // pred_check_branch
      %31 = sbr.rel (0) target = $region25
    $region24: #{tpu_custom_call.1} parent=1 // pred_region
      %32 = dma.done [#allocation3], 8192
    $region25: #{tpu_custom_call.1} parent=1 // pred_fallthru
      _
    %v33 = vld [vmem:[#allocation2] sm:$0xff]
    %v34 = vld [vmem:[#allocation2 + $0x8] sm:$0xff]
    %v35 = vld [vmem:[#allocation2 + $0x10] sm:$0xff]
    %v36 = vld [vmem:[#allocation2 + $0x18] sm:$0xff]
    %v37 = vld [vmem:[#allocation2 + $0x20] sm:$0xff]
    %v38 = vld [vmem:[#allocation2 + $0x28] sm:$0xff]
    %v39 = vld [vmem:[#allocation2 + $0x30] sm:$0xff]
    %v40 = vld [vmem:[#allocation2 + $0x38] sm:$0xff]
    %v41 = vld [vmem:[#allocation2 + $0x40] sm:$0xff]
    %v42 = vld [vmem:[#allocation2 + $0x48] sm:$0xff]
    %v43 = vld [vmem:[#allocation2 + $0x50] sm:$0xff]
    %v44 = vld [vmem:[#allocation2 + $0x58] sm:$0xff]
    %v45 = vld [vmem:[#allocation2 + $0x60] sm:$0xff]
    %v46 = vld [vmem:[#allocation2 + $0x68] sm:$0xff]
    %v47 = vld [vmem:[#allocation2 + $0x70] sm:$0xff]
    %v48 = vld [vmem:[#allocation2 + $0x78] sm:$0xff]
    %v49 = vld [vmem:[#allocation2 + $0x80] sm:$0xff]
    %v50 = vld [vmem:[#allocation2 + $0x88] sm:$0xff]
    %v51 = vld [vmem:[#allocation2 + $0x90] sm:$0xff]
    %v52 = vld [vmem:[#allocation2 + $0x98] sm:$0xff]
    %v53 = vld [vmem:[#allocation2 + $0xa0] sm:$0xff]
    %v54 = vld [vmem:[#allocation2 + $0xa8] sm:$0xff]
    %v55 = vld [vmem:[#allocation2 + $0xb0] sm:$0xff]
    %v56 = vld [vmem:[#allocation2 + $0xb8] sm:$0xff]
    %v57 = vld [vmem:[#allocation2 + $0xc0] sm:$0xff]
    %v58 = vld [vmem:[#allocation2 + $0xc8] sm:$0xff]
    %v59 = vld [vmem:[#allocation2 + $0xd0] sm:$0xff]
    %v60 = vld [vmem:[#allocation2 + $0xd8] sm:$0xff]
    %v61 = vld [vmem:[#allocation2 + $0xe0] sm:$0xff]
    %v62 = vld [vmem:[#allocation2 + $0xe8] sm:$0xff]
    %v63 = vld [vmem:[#allocation2 + $0xf0] sm:$0xff]
    %v64 = vld [vmem:[#allocation2 + $0xf8] sm:$0xff]
    %v65 = vld [vmem:[#allocation2 + $0x100] sm:$0xff]
    %v66 = vld [vmem:[#allocation2 + $0x108] sm:$0xff]
    %v67 = vld [vmem:[#allocation2 + $0x110] sm:$0xff]
    %v68 = vld [vmem:[#allocation2 + $0x118] sm:$0xff]
    %v69 = vld [vmem:[#allocation2 + $0x120] sm:$0xff]
    %v70 = vld [vmem:[#allocation2 + $0x128] sm:$0xff]
    %v71 = vld [vmem:[#allocation2 + $0x130] sm:$0xff]
    %v72 = vld [vmem:[#allocation2 + $0x138] sm:$0xff]
    %v73 = vld [vmem:[#allocation2 + $0x140] sm:$0xff]
    %v74 = vld [vmem:[#allocation2 + $0x148] sm:$0xff]
    %v75 = vld [vmem:[#allocation2 + $0x150] sm:$0xff]
    %v76 = vld [vmem:[#allocation2 + $0x158] sm:$0xff]
    %v77 = vld [vmem:[#allocation2 + $0x160] sm:$0xff]
    %v78 = vld [vmem:[#allocation2 + $0x168] sm:$0xff]
    %v79 = vld [vmem:[#allocation2 + $0x170] sm:$0xff]
    %v80 = vld [vmem:[#allocation2 + $0x178] sm:$0xff]
    %v81 = vld [vmem:[#allocation2 + $0x180] sm:$0xff]
    %v82 = vld [vmem:[#allocation2 + $0x188] sm:$0xff]
    %v83 = vld [vmem:[#allocation2 + $0x190] sm:$0xff]
    %v84 = vld [vmem:[#allocation2 + $0x198] sm:$0xff]
    %v85 = vld [vmem:[#allocation2 + $0x1a0] sm:$0xff]
    %v86 = vld [vmem:[#allocation2 + $0x1a8] sm:$0xff]
    %v87 = vld [vmem:[#allocation2 + $0x1b0] sm:$0xff]
    %v88 = vld [vmem:[#allocation2 + $0x1b8] sm:$0xff]
    %v89 = vld [vmem:[#allocation2 + $0x1c0] sm:$0xff]
    %v90 = vld [vmem:[#allocation2 + $0x1c8] sm:$0xff]
    %v91 = vld [vmem:[#allocation2 + $0x1d0] sm:$0xff]
    %v92 = vld [vmem:[#allocation2 + $0x1d8] sm:$0xff]
    %v93 = vld [vmem:[#allocation2 + $0x1e0] sm:$0xff]
    %v94 = vld [vmem:[#allocation2 + $0x1e8] sm:$0xff]
    %v95 = vld [vmem:[#allocation2 + $0x1f0] sm:$0xff]
    %v96 = vld [vmem:[#allocation2 + $0x1f8] sm:$0xff]
    %v97 = vunpack.c.l.bf16 %v33
    %v98 = vunpack.c.h.bf16 %v33
    %v99 = vunpack.c.l.bf16 %v34
    %v100 = vunpack.c.h.bf16 %v34
    %v101 = vunpack.c.l.bf16 %v35
    %v102 = vunpack.c.h.bf16 %v35
    %v103 = vunpack.c.l.bf16 %v36
    %v104 = vunpack.c.h.bf16 %v36
    %v105 = vunpack.c.l.bf16 %v37
    %v106 = vunpack.c.h.bf16 %v37
    %v107 = vunpack.c.l.bf16 %v38
    %v108 = vunpack.c.h.bf16 %v38
    %v109 = vunpack.c.l.bf16 %v39
    %v110 = vunpack.c.h.bf16 %v39
    %v111 = vunpack.c.l.bf16 %v40
    %v112 = vunpack.c.h.bf16 %v40
    %v113 = vunpack.c.l.bf16 %v41
    %v114 = vunpack.c.h.bf16 %v41
    %v115 = vunpack.c.l.bf16 %v42
    %v116 = vunpack.c.h.bf16 %v42
    %v117 = vunpack.c.l.bf16 %v43
    %v118 = vunpack.c.h.bf16 %v43
    %v119 = vunpack.c.l.bf16 %v44
    %v120 = vunpack.c.h.bf16 %v44
    %v121 = vunpack.c.l.bf16 %v45
    %v122 = vunpack.c.h.bf16 %v45
    %v123 = vunpack.c.l.bf16 %v46
    %v124 = vunpack.c.h.bf16 %v46
    %v125 = vunpack.c.l.bf16 %v47
    %v126 = vunpack.c.h.bf16 %v47
    %v127 = vunpack.c.l.bf16 %v48
    %v128 = vunpack.c.h.bf16 %v48
    %v129 = vunpack.c.l.bf16 %v49
    %v130 = vunpack.c.h.bf16 %v49
    %v131 = vunpack.c.l.bf16 %v50
    %v132 = vunpack.c.h.bf16 %v50
    %v133 = vunpack.c.l.bf16 %v51
    %v134 = vunpack.c.h.bf16 %v51
    %v135 = vunpack.c.l.bf16 %v52
    %v136 = vunpack.c.h.bf16 %v52
    %v137 = vunpack.c.l.bf16 %v53
    %v138 = vunpack.c.h.bf16 %v53
    %v139 = vunpack.c.l.bf16 %v54
    %v140 = vunpack.c.h.bf16 %v54
    %v141 = vunpack.c.l.bf16 %v55
    %v142 = vunpack.c.h.bf16 %v55
    %v143 = vunpack.c.l.bf16 %v56
    %v144 = vunpack.c.h.bf16 %v56
    %v145 = vunpack.c.l.bf16 %v57
    %v146 = vunpack.c.h.bf16 %v57
    %v147 = vunpack.c.l.bf16 %v58
    %v148 = vunpack.c.h.bf16 %v58
    %v149 = vunpack.c.l.bf16 %v59
    %v150 = vunpack.c.h.bf16 %v59
    %v151 = vunpack.c.l.bf16 %v60
    %v152 = vunpack.c.h.bf16 %v60
    %v153 = vunpack.c.l.bf16 %v61
    %v154 = vunpack.c.h.bf16 %v61
    %v155 = vunpack.c.l.bf16 %v62
    %v156 = vunpack.c.h.bf16 %v62
    %v157 = vunpack.c.l.bf16 %v63
    %v158 = vunpack.c.h.bf16 %v63
    %v159 = vunpack.c.l.bf16 %v64
    %v160 = vunpack.c.h.bf16 %v64
    %v161 = vunpack.c.l.bf16 %v65
    %v162 = vunpack.c.h.bf16 %v65
    %v163 = vunpack.c.l.bf16 %v66
    %v164 = vunpack.c.h.bf16 %v66
    %v165 = vunpack.c.l.bf16 %v67
    %v166 = vunpack.c.h.bf16 %v67
    %v167 = vunpack.c.l.bf16 %v68
    %v168 = vunpack.c.h.bf16 %v68
    %v169 = vunpack.c.l.bf16 %v69
    %v170 = vunpack.c.h.bf16 %v69
    %v171 = vunpack.c.l.bf16 %v70
    %v172 = vunpack.c.h.bf16 %v70
    %v173 = vunpack.c.l.bf16 %v71
    %v174 = vunpack.c.h.bf16 %v71
    %v175 = vunpack.c.l.bf16 %v72
    %v176 = vunpack.c.h.bf16 %v72
    %v177 = vunpack.c.l.bf16 %v73
    %v178 = vunpack.c.h.bf16 %v73
    %v179 = vunpack.c.l.bf16 %v74
    %v180 = vunpack.c.h.bf16 %v74
    %v181 = vunpack.c.l.bf16 %v75
    %v182 = vunpack.c.h.bf16 %v75
    %v183 = vunpack.c.l.bf16 %v76
    %v184 = vunpack.c.h.bf16 %v76
    %v185 = vunpack.c.l.bf16 %v77
    %v186 = vunpack.c.h.bf16 %v77
    %v187 = vunpack.c.l.bf16 %v78
    %v188 = vunpack.c.h.bf16 %v78
    %v189 = vunpack.c.l.bf16 %v79
    %v190 = vunpack.c.h.bf16 %v79
    %v191 = vunpack.c.l.bf16 %v80
    %v192 = vunpack.c.h.bf16 %v80
    %v193 = vunpack.c.l.bf16 %v81
    %v194 = vunpack.c.h.bf16 %v81
    %v195 = vunpack.c.l.bf16 %v82
    %v196 = vunpack.c.h.bf16 %v82
    %v197 = vunpack.c.l.bf16 %v83
    %v198 = vunpack.c.h.bf16 %v83
    %v199 = vunpack.c.l.bf16 %v84
    %v200 = vunpack.c.h.bf16 %v84
    %v201 = vunpack.c.l.bf16 %v85
    %v202 = vunpack.c.h.bf16 %v85
    %v203 = vunpack.c.l.bf16 %v86
    %v204 = vunpack.c.h.bf16 %v86
    %v205 = vunpack.c.l.bf16 %v87
    %v206 = vunpack.c.h.bf16 %v87
    %v207 = vunpack.c.l.bf16 %v88
    %v208 = vunpack.c.h.bf16 %v88
    %v209 = vunpack.c.l.bf16 %v89
    %v210 = vunpack.c.h.bf16 %v89
    %v211 = vunpack.c.l.bf16 %v90
    %v212 = vunpack.c.h.bf16 %v90
    %v213 = vunpack.c.l.bf16 %v91
    %v214 = vunpack.c.h.bf16 %v91
    %v215 = vunpack.c.l.bf16 %v92
    %v216 = vunpack.c.h.bf16 %v92
    %v217 = vunpack.c.l.bf16 %v93
    %v218 = vunpack.c.h.bf16 %v93
    %v219 = vunpack.c.l.bf16 %v94
    %v220 = vunpack.c.h.bf16 %v94
    %v221 = vunpack.c.l.bf16 %v95
    %v222 = vunpack.c.h.bf16 %v95
    %v223 = vunpack.c.l.bf16 %v96
    %v224 = vunpack.c.h.bf16 %v96
    %v225 = vld [vmem:[%s1] sm:$0xff]
    %v226 = vld [vmem:[%s1 + $0x8] sm:$0xff]
    %v227 = vld [vmem:[%s1 + $0x10] sm:$0xff]
    %v228 = vld [vmem:[%s1 + $0x18] sm:$0xff]
    %v229 = vld [vmem:[%s1 + $0x20] sm:$0xff]
    %v230 = vld [vmem:[%s1 + $0x28] sm:$0xff]
    %v231 = vld [vmem:[%s1 + $0x30] sm:$0xff]
    %v232 = vld [vmem:[%s1 + $0x38] sm:$0xff]
    %vm233 = vcmask 64512
    %v235 = vsel %vm233, %v225, 0
    %v238 = vsel %vm233, %v226, 0
    %v241 = vsel %vm233, %v227, 0
    %v244 = vsel %vm233, %v228, 0
    %v247 = vsel %vm233, %v229, 0
    %v250 = vsel %vm233, %v230, 0
    %v253 = vsel %vm233, %v231, 0
    %v256 = vsel %vm233, %v232, 0
    %258 = vmatprep.subr.mxu0 %v98
    %259 = vmatpush1.msra.mxu0 %v97
    %260 = vmatprep.subr.mxu0 0.0
    %261 = vmatpush1.msra.mxu0 0.0
    %262 = vmatprep.subr.mxu0 0.0
    %263 = vmatpush1.msra.mxu0 0.0
    %264 = vmatprep.subr.mxu0 0.0
    %265 = vmatpush1.msra.mxu0 0.0
    %266 = vmatprep.subr.mxu0 0.0
    %267 = vmatpush1.msra.mxu0 0.0
    %268 = vmatprep.subr.mxu0 0.0
    %269 = vmatpush1.msra.mxu0 0.0
    %270 = vmatprep.subr.mxu0 0.0
    %271 = vmatpush1.msra.mxu0 0.0
    %272 = vmatprep.subr.mxu0 0.0
    %273 = vmatpush1.msra.mxu0 0.0
    %274 = vmatprep.subr.mxu0 0.0
    %275 = vmatpush1.msra.mxu0 0.0
    %276 = vmatprep.subr.mxu0 0.0
    %277 = vmatpush1.msra.mxu0 0.0
    %278 = vmatprep.subr.mxu0 0.0
    %279 = vmatpush1.msra.mxu0 0.0
    %280 = vmatprep.subr.mxu0 0.0
    %281 = vmatpush1.msra.mxu0 0.0
    %282 = vmatprep.subr.mxu0 0.0
    %283 = vmatpush1.msra.mxu0 0.0
    %284 = vmatprep.subr.mxu0 0.0
    %285 = vmatpush1.msra.mxu0 0.0
    %286 = vmatprep.subr.mxu0 0.0
    %287 = vmatpush1.msra.mxu0 0.0
    %288 = vmatprep.subr.mxu0 0.0
    %289 = vmatpush1.msra.mxu0 0.0
    %290 = vmatprep.subr.mxu0 0.0
    %291 = vmatpush1.msra.mxu0 0.0
    %292 = vmatprep.subr.mxu0 0.0
    %293 = vmatpush1.msra.mxu0 0.0
    %294 = vmatprep.subr.mxu0 0.0
    %295 = vmatpush1.msra.mxu0 0.0
    %296 = vmatprep.subr.mxu0 0.0
    %297 = vmatpush1.msra.mxu0 0.0
    %298 = vmatprep.subr.mxu0 0.0
    %299 = vmatpush1.msra.mxu0 0.0
    %300 = vmatprep.subr.mxu0 0.0
    %301 = vmatpush1.msra.mxu0 0.0
    %302 = vmatprep.subr.mxu0 0.0
    %303 = vmatpush1.msra.mxu0 0.0
    %304 = vmatprep.subr.mxu0 0.0
    %305 = vmatpush1.msra.mxu0 0.0
    %306 = vmatprep.subr.mxu0 0.0
    %307 = vmatpush1.msra.mxu0 0.0
    %308 = vmatprep.subr.mxu0 0.0
    %309 = vmatpush1.msra.mxu0 0.0
    %310 = vmatprep.subr.mxu0 0.0
    %311 = vmatpush1.msra.mxu0 0.0
    %312 = vmatprep.subr.mxu0 0.0
    %313 = vmatpush1.msra.mxu0 0.0
    %314 = vmatprep.subr.mxu0 0.0
    %315 = vmatpush1.msra.mxu0 0.0
    %316 = vmatprep.subr.mxu0 0.0
    %317 = vmatpush1.msra.mxu0 0.0
    %318 = vmatprep.subr.mxu0 0.0
    %319 = vmatpush1.msra.mxu0 0.0
    %320 = vmatprep.subr.mxu0 0.0
    %321 = vmatpush1.msra.mxu0 0.0
    %322 = vmatprep.mubr.f32.mxu0 0.0
    %323 = vmatmul.mubr.f32.gmra.mrb[0].mxu0 %v235
    %v324 = vpop.f32.mrb[0].mxu0
    %v325 = vadd.f32 0.0, %v324
    %v326 = vpop.f32.mrb[0].mxu0
    %v327 = vadd.f32 0.0, %v326
    %328 = vmatprep.mubr.f32.mxu0 0.0
    %329 = vmatmul.mubr.f32.gmra.mrb[0].mxu0 %v238
    %v330 = vpop.f32.mrb[0].mxu0
    %v331 = vadd.f32 0.0, %v330
    %v332 = vpop.f32.mrb[0].mxu0
    %v333 = vadd.f32 0.0, %v332
    %334 = vmatprep.mubr.f32.mxu0 0.0
    %335 = vmatmul.mubr.f32.gmra.mrb[0].mxu0 %v241
    %v336 = vpop.f32.mrb[0].mxu0
    %v337 = vadd.f32 0.0, %v336
    %v338 = vpop.f32.mrb[0].mxu0
    %v339 = vadd.f32 0.0, %v338
    %340 = vmatprep.mubr.f32.mxu0 0.0
    %341 = vmatmul.mubr.f32.gmra.mrb[0].mxu0 %v244
    %v342 = vpop.f32.mrb[0].mxu0
    %v343 = vadd.f32 0.0, %v342
    %v344 = vpop.f32.mrb[0].mxu0
    %v345 = vadd.f32 0.0, %v344
    %346 = vmatprep.mubr.f32.mxu0 0.0
    %347 = vmatmul.mubr.f32.gmra.mrb[0].mxu0 %v247
    %v348 = vpop.f32.mrb[0].mxu0
    %v349 = vadd.f32 0.0, %v348
    %v350 = vpop.f32.mrb[0].mxu0
    %v351 = vadd.f32 0.0, %v350
    %352 = vmatprep.mubr.f32.mxu0 0.0
    %353 = vmatmul.mubr.f32.gmra.mrb[0].mxu0 %v250
    %v354 = vpop.f32.mrb[0].mxu0
    %v355 = vadd.f32 0.0, %v354
    %v356 = vpop.f32.mrb[0].mxu0
    %v357 = vadd.f32 0.0, %v356
    %358 = vmatprep.mubr.f32.mxu0 0.0
    %359 = vmatmul.mubr.f32.gmra.mrb[0].mxu0 %v253
    %v360 = vpop.f32.mrb[0].mxu0
    %v361 = vadd.f32 0.0, %v360
    %v362 = vpop.f32.mrb[0].mxu0
    %v363 = vadd.f32 0.0, %v362
    %364 = vmatprep.mubr.f32.mxu0 0.0
    %365 = vmatmul.mubr.f32.gmra.mrb[0].mxu0 %v256
    %v366 = vpop.f32.mrb[0].mxu0
    %v367 = vadd.f32 0.0, %v366
    %v368 = vpop.f32.mrb[0].mxu0
    %v369 = vadd.f32 0.0, %v368
    %370 = vdwg.mxu0
    %371 = vmatprep.subr.mxu0 %v100
    %372 = vmatpush1.msra.mxu0 %v99
    %373 = vmatprep.subr.mxu0 0.0
    %374 = vmatpush1.msra.mxu0 0.0
    %375 = vmatprep.subr.mxu0 0.0
    %376 = vmatpush1.msra.mxu0 0.0
    %377 = vmatprep.subr.mxu0 0.0
    %378 = vmatpush1.msra.mxu0 0.0
    %379 = vmatprep.subr.mxu0 0.0
    %380 = vmatpush1.msra.mxu0 0.0
    %381 = vmatprep.subr.mxu0 0.0
    %382 = vmatpush1.msra.mxu0 0.0
    %383 = vmatprep.subr.mxu0 0.0
    %384 = vmatpush1.msra.mxu0 0.0
    %385 = vmatprep.subr.mxu0 0.0
    %386 = vmatpush1.msra.mxu0 0.0
    %387 = vmatprep.subr.mxu0 0.0
    %388 = vmatpush1.msra.mxu0 0.0
    %389 = vmatprep.subr.mxu0 0.0
    %390 = vmatpush1.msra.mxu0 0.0
    %391 = vmatprep.subr.mxu0 0.0
    %392 = vmatpush1.msra.mxu0 0.0
    %393 = vmatprep.subr.mxu0 0.0
    %394 = vmatpush1.msra.mxu0 0.0
    %395 = vmatprep.subr.mxu0 0.0
    %396 = vmatpush1.msra.mxu0 0.0
    %397 = vmatprep.subr.mxu0 0.0
    %398 = vmatpush1.msra.mxu0 0.0
    %399 = vmatprep.subr.mxu0 0.0
    %400 = vmatpush1.msra.mxu0 0.0
    %401 = vmatprep.subr.mxu0 0.0
    %402 = vmatpush1.msra.mxu0 0.0
    %403 = vmatprep.subr.mxu0 0.0
    %404 = vmatpush1.msra.mxu0 0.0
    %405 = vmatprep.subr.mxu0 0.0
    %406 = vmatpush1.msra.mxu0 0.0
    %407 = vmatprep.subr.mxu0 0.0
    %408 = vmatpush1.msra.mxu0 0.0
    %409 = vmatprep.subr.mxu0 0.0
    %410 = vmatpush1.msra.mxu0 0.0
    %411 = vmatprep.subr.mxu0 0.0
    %412 = vmatpush1.msra.mxu0 0.0
    %413 = vmatprep.subr.mxu0 0.0
    %414 = vmatpush1.msra.mxu0 0.0
    %415 = vmatprep.subr.mxu0 0.0
    %416 = vmatpush1.msra.mxu0 0.0
    %417 = vmatprep.subr.mxu0 0.0
    %418 = vmatpush1.msra.mxu0 0.0
    %419 = vmatprep.subr.mxu0 0.0
    %420 = vmatpush1.msra.mxu0 0.0
    %421 = vmatprep.subr.mxu0 0.0
    %422 = vmatpush1.msra.mxu0 0.0
    %423 = vmatprep.subr.mxu0 0.0
    %424 = vmatpush1.msra.mxu0 0.0
    %425 = vmatprep.subr.mxu0 0.0
    %426 = vmatpush1.msra.mxu0 0.0
    %427 = vmatprep.subr.mxu0 0.0
    %428 = vmatpush1.msra.mxu0 0.0
    %429 = vmatprep.subr.mxu0 0.0
    %430 = vmatpush1.msra.mxu0 0.0
    %431 = vmatprep.subr.mxu0 0.0
    %432 = vmatpush1.msra.mxu0 0.0
    %433 = vmatprep.subr.mxu0 0.0
    %434 = vmatpush1.msra.mxu0 0.0
    %435 = vmatprep.mubr.f32.mxu0 0.0
    %436 = vmatmul.mubr.f32.gmra.mrb[0].mxu0 %v235
    %v437 = vpop.f32.mrb[0].mxu0
    %v438 = vadd.f32 0.0, %v437
    %v439 = vpop.f32.mrb[0].mxu0
    %v440 = vadd.f32 0.0, %v439
    %441 = vmatprep.mubr.f32.mxu0 0.0
    %442 = vmatmul.mubr.f32.gmra.mrb[0].mxu0 %v238
    %v443 = vpop.f32.mrb[0].mxu0
    %v444 = vadd.f32 0.0, %v443
    %v445 = vpop.f32.mrb[0].mxu0
    %v446 = vadd.f32 0.0, %v445
    %447 = vmatprep.mubr.f32.mxu0 0.0
    %448 = vmatmul.mubr.f32.gmra.mrb[0].mxu0 %v241
    %v449 = vpop.f32.mrb[0].mxu0
    %v450 = vadd.f32 0.0, %v449
    %v451 = vpop.f32.mrb[0].mxu0
    %v452 = vadd.f32 0.0, %v451
    %453 = vmatprep.mubr.f32.mxu0 0.0
    %454 = vmatmul.mubr.f32.gmra.mrb[0].mxu0 %v244
    %v455 = vpop.f32.mrb[0].mxu0
    %v456 = vadd.f32 0.0, %v455
    %v457 = vpop.f32.mrb[0].mxu0
    %v458 = vadd.f32 0.0, %v457
    %459 = vmatprep.mubr.f32.mxu0 0.0
    %460 = vmatmul.mubr.f32.gmra.mrb[0].mxu0 %v247
    %v461 = vpop.f32.mrb[0].mxu0
    %v462 = vadd.f32 0.0, %v461
    %v463 = vpop.f32.mrb[0].mxu0
    %v464 = vadd.f32 0.0, %v463
    %465 = vmatprep.mubr.f32.mxu0 0.0
    %466 = vmatmul.mubr.f32.gmra.mrb[0].mxu0 %v250
    %v467 = vpop.f32.mrb[0].mxu0
    %v468 = vadd.f32 0.0, %v467
    %v469 = vpop.f32.mrb[0].mxu0
    %v470 = vadd.f32 0.0, %v469
    %471 = vmatprep.mubr.f32.mxu0 0.0
    %472 = vmatmul.mubr.f32.gmra.mrb[0].mxu0 %v253
    %v473 = vpop.f32.mrb[0].mxu0
    %v474 = vadd.f32 0.0, %v473
    %v475 = vpop.f32.mrb[0].mxu0
    %v476 = vadd.f32 0.0, %v475
    %477 = vmatprep.mubr.f32.mxu0 0.0
    %478 = vmatmul.mubr.f32.gmra.mrb[0].mxu0 %v256
    %v479 = vpop.f32.mrb[0].mxu0
    %v480 = vadd.f32 0.0, %v479
    %v481 = vpop.f32.mrb[0].mxu0
    %v482 = vadd.f32 0.0, %v481
    %483 = vdwg.mxu0
    %484 = vmatprep.subr.mxu0 %v102
    %485 = vmatpush1.msra.mxu0 %v101
    %486 = vmatprep.subr.mxu0 0.0
    %487 = vmatpush1.msra.mxu0 0.0
    %488 = vmatprep.subr.mxu0 0.0
    %489 = vmatpush1.msra.mxu0 0.0
    %490 = vmatprep.subr.mxu0 0.0
    %491 = vmatpush1.msra.mxu0 0.0
    %492 = vmatprep.subr.mxu0 0.0
    %493 = vmatpush1.msra.mxu0 0.0
    %494 = vmatprep.subr.mxu0 0.0
    %495 = vmatpush1.msra.mxu0 0.0
    %496 = vmatprep.subr.mxu0 0.0
    %497 = vmatpush1.msra.mxu0 0.0
    %498 = vmatprep.subr.mxu0 0.0
    %499 = vmatpush1.msra.mxu0 0.0
    %500 = vmatprep.subr.mxu0 0.0
    %501 = vmatpush1.msra.mxu0 0.0
    %502 = vmatprep.subr.mxu0 0.0
    %503 = vmatpush1.msra.mxu0 0.0
    %504 = vmatprep.subr.mxu0 0.0
    %505 = vmatpush1.msra.mxu0 0.0
    %506 = vmatprep.subr.mxu0 0.0
    %507 = vmatpush1.msra.mxu0 0.0
    %508 = vmatprep.subr.mxu0 0.0
    %509 = vmatpush1.msra.mxu0 0.0
    %510 = vmatprep.subr.mxu0 0.0
    %511 = vmatpush1.msra.mxu0 0.0
    %512 = vmatprep.subr.mxu0 0.0
    %513 = vmatpush1.msra.mxu0 0.0
    %514 = vmatprep.subr.mxu0 0.0
    %515 = vmatpush1.msra.mxu0 0.0
    %516 = vmatprep.subr.mxu0 0.0
    %517 = vmatpush1.msra.mxu0 0.0
    %518 = vmatprep.subr.mxu0 0.0
    %519 = vmatpush1.msra.mxu0 0.0
    %520 = vmatprep.subr.mxu0 0.0
    %521 = vmatpush1.msra.mxu0 0.0
    %522 = vmatprep.subr.mxu0 0.0
    %523 = vmatpush1.msra.mxu0 0.0
    %524 = vmatprep.subr.mxu0 0.0
    %525 = vmatpush1.msra.mxu0 0.0
    %526 = vmatprep.subr.mxu0 0.0
    %527 = vmatpush1.msra.mxu0 0.0
    %528 = vmatprep.subr.mxu0 0.0
    %529 = vmatpush1.msra.mxu0 0.0
    %530 = vmatprep.subr.mxu0 0.0
    %531 = vmatpush1.msra.mxu0 0.0
    %532 = vmatprep.subr.mxu0 0.0
    %533 = vmatpush1.msra.mxu0 0.0
    %534 = vmatprep.subr.mxu0 0.0
    %535 = vmatpush1.msra.mxu0 0.0
    %536 = vmatprep.subr.mxu0 0.0
    %537 = vmatpush1.msra.mxu0 0.0
    %538 = vmatprep.subr.mxu0 0.0
    %539 = vmatpush1.msra.mxu0 0.0
    %540 = vmatprep.subr.mxu0 0.0
    %541 = vmatpush1.msra.mxu0 0.0
    %542 = vmatprep.subr.mxu0 0.0
    %543 = vmatpush1.msra.mxu0 0.0
    %544 = vmatprep.subr.mxu0 0.0
    %545 = vmatpush1.msra.mxu0 0.0
    %546 = vmatprep.subr.mxu0 0.0
    %547 = vmatpush1.msra.mxu0 0.0
    %548 = vmatprep.mubr.f32.mxu0 0.0
    %549 = vmatmul.mubr.f32.gmra.mrb[0].mxu0 %v235
    %v550 = vpop.f32.mrb[0].mxu0
    %v551 = vadd.f32 0.0, %v550
    %v552 = vpop.f32.mrb[0].mxu0
    %v553 = vadd.f32 0.0, %v552
    %554 = vmatprep.mubr.f32.mxu0 0.0
    %555 = vmatmul.mubr.f32.gmra.mrb[0].mxu0 %v238
    %v556 = vpop.f32.mrb[0].mxu0
    %v557 = vadd.f32 0.0, %v556
    %v558 = vpop.f32.mrb[0].mxu0
    %v559 = vadd.f32 0.0, %v558
    %560 = vmatprep.mubr.f32.mxu0 0.0
    %561 = vmatmul.mubr.f32.gmra.mrb[0].mxu0 %v241
    %v562 = vpop.f32.mrb[0].mxu0
    %v563 = vadd.f32 0.0, %v562
    %v564 = vpop.f32.mrb[0].mxu0
    %v565 = vadd.f32 0.0, %v564
    %566 = vmatprep.mubr.f32.mxu0 0.0
    %567 = vmatmul.mubr.f32.gmra.mrb[0].mxu0 %v244
    %v568 = vpop.f32.mrb[0].mxu0
    %v569 = vadd.f32 0.0, %v568
    %v570 = vpop.f32.mrb[0].mxu0
    %v571 = vadd.f32 0.0, %v570
    %572 = vmatprep.mubr.f32.mxu0 0.0
    %573 = vmatmul.mubr.f32.gmra.mrb[0].mxu0 %v247
    %v574 = vpop.f32.mrb[0].mxu0
    %v575 = vadd.f32 0.0, %v574
    %v576 = vpop.f32.mrb[0].mxu0
    %v577 = vadd.f32 0.0, %v576
    %578 = vmatprep.mubr.f32.mxu0 0.0
    %579 = vmatmul.mubr.f32.gmra.mrb[0].mxu0 %v250
    %v580 = vpop.f32.mrb[0].mxu0
    %v581 = vadd.f32 0.0, %v580
    %v582 = vpop.f32.mrb[0].mxu0
    %v583 = vadd.f32 0.0, %v582
    %584 = vmatprep.mubr.f32.mxu0 0.0
    %585 = vmatmul.mubr.f32.gmra.mrb[0].mxu0 %v253
    %v586 = vpop.f32.mrb[0].mxu0
    %v587 = vadd.f32 0.0, %v586
    %v588 = vpop.f32.mrb[0].mxu0
    %v589 = vadd.f32 0.0, %v588
    %590 = vmatprep.mubr.f32.mxu0 0.0
    %591 = vmatmul.mubr.f32.gmra.mrb[0].mxu0 %v256
    %v592 = vpop.f32.mrb[0].mxu0
    %v593 = vadd.f32 0.0, %v592
    %v594 = vpop.f32.mrb[0].mxu0
    %v595 = vadd.f32 0.0, %v594
    %596 = vdwg.mxu0
    %597 = vmatprep.subr.mxu0 %v104
    %598 = vmatpush1.msra.mxu0 %v103
    %599 = vmatprep.subr.mxu0 0.0
    %600 = vmatpush1.msra.mxu0 0.0
    %601 = vmatprep.subr.mxu0 0.0
    %602 = vmatpush1.msra.mxu0 0.0
    %603 = vmatprep.subr.mxu0 0.0
    %604 = vmatpush1.msra.mxu0 0.0
    %605 = vmatprep.subr.mxu0 0.0
    %606 = vmatpush1.msra.mxu0 0.0
    %607 = vmatprep.subr.mxu0 0.0
    %608 = vmatpush1.msra.mxu0 0.0
    %609 = vmatprep.subr.mxu0 0.0
    %610 = vmatpush1.msra.mxu0 0.0
    %611 = vmatprep.subr.mxu0 0.0
    %612 = vmatpush1.msra.mxu0 0.0
    %613 = vmatprep.subr.mxu0 0.0
    %614 = vmatpush1.msra.mxu0 0.0
    %615 = vmatprep.subr.mxu0 0.0
    %616 = vmatpush1.msra.mxu0 0.0
    %617 = vmatprep.subr.mxu0 0.0
    %618 = vmatpush1.msra.mxu0 0.0
    %619 = vmatprep.subr.mxu0 0.0
    %620 = vmatpush1.msra.mxu0 0.0
    %621 = vmatprep.subr.mxu0 0.0
    %622 = vmatpush1.msra.mxu0 0.0
    %623 = vmatprep.subr.mxu0 0.0
    %624 = vmatpush1.msra.mxu0 0.0
    %625 = vmatprep.subr.mxu0 0.0
    %626 = vmatpush1.msra.mxu0 0.0
    %627 = vmatprep.subr.mxu0 0.0
    %628 = vmatpush1.msra.mxu0 0.0
    %629 = vmatprep.subr.mxu0 0.0
    %630 = vmatpush1.msra.mxu0 0.0
    %631 = vmatprep.subr.mxu0 0.0
    %632 = vmatpush1.msra.mxu0 0.0
    %633 = vmatprep.subr.mxu0 0.0
    %634 = vmatpush1.msra.mxu0 0.0
    %635 = vmatprep.subr.mxu0 0.0
    %636 = vmatpush1.msra.mxu0 0.0
    %637 = vmatprep.subr.mxu0 0.0
    %638 = vmatpush1.msra.mxu0 0.0
    %639 = vmatprep.subr.mxu0 0.0
    %640 = vmatpush1.msra.mxu0 0.0
    %641 = vmatprep.subr.mxu0 0.0
    %642 = vmatpush1.msra.mxu0 0.0
    %643 = vmatprep.subr.mxu0 0.0
    %644 = vmatpush1.msra.mxu0 0.0
    %645 = vmatprep.subr.mxu0 0.0
    %646 = vmatpush1.msra.mxu0 0.0
    %647 = vmatprep.subr.mxu0 0.0
    %648 = vmatpush1.msra.mxu0 0.0
    %649 = vmatprep.subr.mxu0 0.0
    %650 = vmatpush1.msra.mxu0 0.0
    %651 = vmatprep.subr.mxu0 0.0
    %652 = vmatpush1.msra.mxu0 0.0
    %653 = vmatprep.subr.mxu0 0.0
    %654 = vmatpush1.msra.mxu0 0.0
    %655 = vmatprep.subr.mxu0 0.0
    %656 = vmatpush1.msra.mxu0 0.0
    %657 = vmatprep.subr.mxu0 0.0
    %658 = vmatpush1.msra.mxu0 0.0
    %659 = vmatprep.subr.mxu0 0.0
    %660 = vmatpush1.msra.mxu0 0.0
    %661 = vmatprep.mubr.f32.mxu0 0.0
    %662 = vmatmul.mubr.f32.gmra.mrb[0].mxu0 %v235
    %v663 = vpop.f32.mrb[0].mxu0
    %v664 = vadd.f32 0.0, %v663
    %v665 = vpop.f32.mrb[0].mxu0
    %v666 = vadd.f32 0.0, %v665
    %667 = vmatprep.mubr.f32.mxu0 0.0
    %668 = vmatmul.mubr.f32.gmra.mrb[0].mxu0 %v238
    %v669 = vpop.f32.mrb[0].mxu0
    %v670 = vadd.f32 0.0, %v669
    %v671 = vpop.f32.mrb[0].mxu0
    %v672 = vadd.f32 0.0, %v671
    %673 = vmatprep.mubr.f32.mxu0 0.0
    %674 = vmatmul.mubr.f32.gmra.mrb[0].mxu0 %v241
    %v675 = vpop.f32.mrb[0].mxu0
    %v676 = vadd.f32 0.0, %v675
    %v677 = vpop.f32.mrb[0].mxu0
    %v678 = vadd.f32 0.0, %v677
    %679 = vmatprep.mubr.f32.mxu0 0.0
    %680 = vmatmul.mubr.f32.gmra.mrb[0].mxu0 %v244
    %v681 = vpop.f32.mrb[0].mxu0
    %v682 = vadd.f32 0.0, %v681
    %v683 = vpop.f32.mrb[0].mxu0
    %v684 = vadd.f32 0.0, %v683
    %685 = vmatprep.mubr.f32.mxu0 0.0
    %686 = vmatmul.mubr.f32.gmra.mrb[0].mxu0 %v247
    %v687 = vpop.f32.mrb[0].mxu0
    %v688 = vadd.f32 0.0, %v687
    %v689 = vpop.f32.mrb[0].mxu0
    %v690 = vadd.f32 0.0, %v689
    %691 = vmatprep.mubr.f32.mxu0 0.0
    %692 = vmatmul.mubr.f32.gmra.mrb[0].mxu0 %v250
    %v693 = vpop.f32.mrb[0].mxu0
    %v694 = vadd.f32 0.0, %v693
    %v695 = vpop.f32.mrb[0].mxu0
    %v696 = vadd.f32 0.0, %v695
    %697 = vmatprep.mubr.f32.mxu0 0.0
    %698 = vmatmul.mubr.f32.gmra.mrb[0].mxu0 %v253
    %v699 = vpop.f32.mrb[0].mxu0
    %v700 = vadd.f32 0.0, %v699
    %v701 = vpop.f32.mrb[0].mxu0
    %v702 = vadd.f32 0.0, %v701
    %703 = vmatprep.mubr.f32.mxu0 0.0
    %704 = vmatmul.mubr.f32.gmra.mrb[0].mxu0 %v256
    %v705 = vpop.f32.mrb[0].mxu0
    %v706 = vadd.f32 0.0, %v705
    %v707 = vpop.f32.mrb[0].mxu0
    %v708 = vadd.f32 0.0, %v707
    %709 = vdwg.mxu0
    %710 = vmatprep.subr.mxu0 %v106
    %711 = vmatpush1.msra.mxu0 %v105
    %712 = vmatprep.subr.mxu0 0.0
    %713 = vmatpush1.msra.mxu0 0.0
    %714 = vmatprep.subr.mxu0 0.0
    %715 = vmatpush1.msra.mxu0 0.0
    %716 = vmatprep.subr.mxu0 0.0
    %717 = vmatpush1.msra.mxu0 0.0
    %718 = vmatprep.subr.mxu0 0.0
    %719 = vmatpush1.msra.mxu0 0.0
    %720 = vmatprep.subr.mxu0 0.0
    %721 = vmatpush1.msra.mxu0 0.0
    %722 = vmatprep.subr.mxu0 0.0
    %723 = vmatpush1.msra.mxu0 0.0
    %724 = vmatprep.subr.mxu0 0.0
    %725 = vmatpush1.msra.mxu0 0.0
    %726 = vmatprep.subr.mxu0 0.0
    %727 = vmatpush1.msra.mxu0 0.0
    %728 = vmatprep.subr.mxu0 0.0
    %729 = vmatpush1.msra.mxu0 0.0
    %730 = vmatprep.subr.mxu0 0.0
    %731 = vmatpush1.msra.mxu0 0.0
    %732 = vmatprep.subr.mxu0 0.0
    %733 = vmatpush1.msra.mxu0 0.0
    %734 = vmatprep.subr.mxu0 0.0
    %735 = vmatpush1.msra.mxu0 0.0
    %736 = vmatprep.subr.mxu0 0.0
    %737 = vmatpush1.msra.mxu0 0.0
    %738 = vmatprep.subr.mxu0 0.0
    %739 = vmatpush1.msra.mxu0 0.0
    %740 = vmatprep.subr.mxu0 0.0
    %741 = vmatpush1.msra.mxu0 0.0
    %742 = vmatprep.subr.mxu0 0.0
    %743 = vmatpush1.msra.mxu0 0.0
    %744 = vmatprep.subr.mxu0 0.0
    %745 = vmatpush1.msra.mxu0 0.0
    %746 = vmatprep.subr.mxu0 0.0
    %747 = vmatpush1.msra.mxu0 0.0
    %748 = vmatprep.subr.mxu0 0.0
    %749 = vmatpush1.msra.mxu0 0.0
    %750 = vmatprep.subr.mxu0 0.0
    %751 = vmatpush1.msra.mxu0 0.0
    %752 = vmatprep.subr.mxu0 0.0
    %753 = vmatpush1.msra.mxu0 0.0
    %754 = vmatprep.subr.mxu0 0.0
    %755 = vmatpush1.msra.mxu0 0.0
    %756 = vmatprep.subr.mxu0 0.0
    %757 = vmatpush1.msra.mxu0 0.0
    %758 = vmatprep.subr.mxu0 0.0
    %759 = vmatpush1.msra.mxu0 0.0
    %760 = vmatprep.subr.mxu0 0.0
    %761 = vmatpush1.msra.mxu0 0.0
    %762 = vmatprep.subr.mxu0 0.0
    %763 = vmatpush1.msra.mxu0 0.0
    %764 = vmatprep.subr.mxu0 0.0
    %765 = vmatpush1.msra.mxu0 0.0
    %766 = vmatprep.subr.mxu0 0.0
    %767 = vmatpush1.msra.mxu0 0.0
    %768 = vmatprep.subr.mxu0 0.0
    %769 = vmatpush1.msra.mxu0 0.0
    %770 = vmatprep.subr.mxu0 0.0
    %771 = vmatpush1.msra.mxu0 0.0
    %772 = vmatprep.subr.mxu0 0.0
    %773 = vmatpush1.msra.mxu0 0.0
    %774 = vmatprep.mubr.f32.mxu0 0.0
    %775 = vmatmul.mubr.f32.gmra.mrb[0].mxu0 %v235
    %v776 = vpop.f32.mrb[0].mxu0
    %v777 = vadd.f32 0.0, %v776
    %v778 = vpop.f32.mrb[0].mxu0
    %v779 = vadd.f32 0.0, %v778
    %780 = vmatprep.mubr.f32.mxu0 0.0
    %781 = vmatmul.mubr.f32.gmra.mrb[0].mxu0 %v238
    %v782 = vpop.f32.mrb[0].mxu0
    %v783 = vadd.f32 0.0, %v782
    %v784 = vpop.f32.mrb[0].mxu0
    %v785 = vadd.f32 0.0, %v784
    %786 = vmatprep.mubr.f32.mxu0 0.0
    %787 = vmatmul.mubr.f32.gmra.mrb[0].mxu0 %v241
    %v788 = vpop.f32.mrb[0].mxu0
    %v789 = vadd.f32 0.0, %v788
    %v790 = vpop.f32.mrb[0].mxu0
    %v791 = vadd.f32 0.0, %v790
    %792 = vmatprep.mubr.f32.mxu0 0.0
    %793 = vmatmul.mubr.f32.gmra.mrb[0].mxu0 %v244
    %v794 = vpop.f32.mrb[0].mxu0
    %v795 = vadd.f32 0.0, %v794
    %v796 = vpop.f32.mrb[0].mxu0
    %v797 = vadd.f32 0.0, %v796
    %798 = vmatprep.mubr.f32.mxu0 0.0
    %799 = vmatmul.mubr.f32.gmra.mrb[0].mxu0 %v247
    %v800 = vpop.f32.mrb[0].mxu0
    %v801 = vadd.f32 0.0, %v800
    %v802 = vpop.f32.mrb[0].mxu0
    %v803 = vadd.f32 0.0, %v802
    %804 = vmatprep.mubr.f32.mxu0 0.0
    %805 = vmatmul.mubr.f32.gmra.mrb[0].mxu0 %v250
    %v806 = vpop.f32.mrb[0].mxu0
    %v807 = vadd.f32 0.0, %v806
    %v808 = vpop.f32.mrb[0].mxu0
    %v809 = vadd.f32 0.0, %v808
    %810 = vmatprep.mubr.f32.mxu0 0.0
    %811 = vmatmul.mubr.f32.gmra.mrb[0].mxu0 %v253
    %v812 = vpop.f32.mrb[0].mxu0
    %v813 = vadd.f32 0.0, %v812
    %v814 = vpop.f32.mrb[0].mxu0
    %v815 = vadd.f32 0.0, %v814
    %816 = vmatprep.mubr.f32.mxu0 0.0
    %817 = vmatmul.mubr.f32.gmra.mrb[0].mxu0 %v256
    %v818 = vpop.f32.mrb[0].mxu0
    %v819 = vadd.f32 0.0, %v818
    %v820 = vpop.f32.mrb[0].mxu0
    %v821 = vadd.f32 0.0, %v820
    %822 = vdwg.mxu0
    %823 = vmatprep.subr.mxu0 %v108
    %824 = vmatpush1.msra.mxu0 %v107
    %825 = vmatprep.subr.mxu0 0.0
    %826 = vmatpush1.msra.mxu0 0.0
    %827 = vmatprep.subr.mxu0 0.0
    %828 = vmatpush1.msra.mxu0 0.0
    %829 = vmatprep.subr.mxu0 0.0
    %830 = vmatpush1.msra.mxu0 0.0
    %831 = vmatprep.subr.mxu0 0.0
    %832 = vmatpush1.msra.mxu0 0.0
    %833 = vmatprep.subr.mxu0 0.0
    %834 = vmatpush1.msra.mxu0 0.0
    %835 = vmatprep.subr.mxu0 0.0
    %836 = vmatpush1.msra.mxu0 0.0
    %837 = vmatprep.subr.mxu0 0.0
    %838 = vmatpush1.msra.mxu0 0.0
    %839 = vmatprep.subr.mxu0 0.0
    %840 = vmatpush1.msra.mxu0 0.0
    %841 = vmatprep.subr.mxu0 0.0
    %842 = vmatpush1.msra.mxu0 0.0
    %843 = vmatprep.subr.mxu0 0.0
    %844 = vmatpush1.msra.mxu0 0.0
    %845 = vmatprep.subr.mxu0 0.0
    %846 = vmatpush1.msra.mxu0 0.0
    %847 = vmatprep.subr.mxu0 0.0
    %848 = vmatpush1.msra.mxu0 0.0
    %849 = vmatprep.subr.mxu0 0.0
    %850 = vmatpush1.msra.mxu0 0.0
    %851 = vmatprep.subr.mxu0 0.0
    %852 = vmatpush1.msra.mxu0 0.0
    %853 = vmatprep.subr.mxu0 0.0
    %854 = vmatpush1.msra.mxu0 0.0
    %855 = vmatprep.subr.mxu0 0.0
    %856 = vmatpush1.msra.mxu0 0.0
    %857 = vmatprep.subr.mxu0 0.0
    %858 = vmatpush1.msra.mxu0 0.0
    %859 = vmatprep.subr.mxu0 0.0
    %860 = vmatpush1.msra.mxu0 0.0
    %861 = vmatprep.subr.mxu0 0.0
    %862 = vmatpush1.msra.mxu0 0.0
    %863 = vmatprep.subr.mxu0 0.0
    %864 = vmatpush1.msra.mxu0 0.0
    %865 = vmatprep.subr.mxu0 0.0
    %866 = vmatpush1.msra.mxu0 0.0
    %867 = vmatprep.subr.mxu0 0.0
    %868 = vmatpush1.msra.mxu0 0.0
    %869 = vmatprep.subr.mxu0 0.0
    %870 = vmatpush1.msra.mxu0 0.0
    %871 = vmatprep.subr.mxu0 0.0
    %872 = vmatpush1.msra.mxu0 0.0
    %873 = vmatprep.subr.mxu0 0.0
    %874 = vmatpush1.msra.mxu0 0.0
    %875 = vmatprep.subr.mxu0 0.0
    %876 = vmatpush1.msra.mxu0 0.0
    %877 = vmatprep.subr.mxu0 0.0
    %878 = vmatpush1.msra.mxu0 0.0
    %879 = vmatprep.subr.mxu0 0.0
    %880 = vmatpush1.msra.mxu0 0.0
    %881 = vmatprep.subr.mxu0 0.0
    %882 = vmatpush1.msra.mxu0 0.0
    %883 = vmatprep.subr.mxu0 0.0
    %884 = vmatpush1.msra.mxu0 0.0
    %885 = vmatprep.subr.mxu0 0.0
    %886 = vmatpush1.msra.mxu0 0.0
    %887 = vmatprep.mubr.f32.mxu0 0.0
    %888 = vmatmul.mubr.f32.gmra.mrb[0].mxu0 %v235
    %v889 = vpop.f32.mrb[0].mxu0
    %v890 = vadd.f32 0.0, %v889
    %v891 = vpop.f32.mrb[0].mxu0
    %v892 = vadd.f32 0.0, %v891
    %893 = vmatprep.mubr.f32.mxu0 0.0
    %894 = vmatmul.mubr.f32.gmra.mrb[0].mxu0 %v238
    %v895 = vpop.f32.mrb[0].mxu0
    %v896 = vadd.f32 0.0, %v895
    %v897 = vpop.f32.mrb[0].mxu0
    %v898 = vadd.f32 0.0, %v897
    %899 = vmatprep.mubr.f32.mxu0 0.0
    %900 = vmatmul.mubr.f32.gmra.mrb[0].mxu0 %v241
    %v901 = vpop.f32.mrb[0].mxu0
    %v902 = vadd.f32 0.0, %v901
    %v903 = vpop.f32.mrb[0].mxu0
    %v904 = vadd.f32 0.0, %v903
    %905 = vmatprep.mubr.f32.mxu0 0.0
    %906 = vmatmul.mubr.f32.gmra.mrb[0].mxu0 %v244
    %v907 = vpop.f32.mrb[0].mxu0
    %v908 = vadd.f32 0.0, %v907
    %v909 = vpop.f32.mrb[0].mxu0
    %v910 = vadd.f32 0.0, %v909
    %911 = vmatprep.mubr.f32.mxu0 0.0
    %912 = vmatmul.mubr.f32.gmra.mrb[0].mxu0 %v247
    %v913 = vpop.f32.mrb[0].mxu0
    %v914 = vadd.f32 0.0, %v913
    %v915 = vpop.f32.mrb[0].mxu0
    %v916 = vadd.f32 0.0, %v915
    %917 = vmatprep.mubr.f32.mxu0 0.0
    %918 = vmatmul.mubr.f32.gmra.mrb[0].mxu0 %v250
    %v919 = vpop.f32.mrb[0].mxu0
    %v920 = vadd.f32 0.0, %v919
    %v921 = vpop.f32.mrb[0].mxu0
    %v922 = vadd.f32 0.0, %v921
    %923 = vmatprep.mubr.f32.mxu0 0.0
    %924 = vmatmul.mubr.f32.gmra.mrb[0].mxu0 %v253
    %v925 = vpop.f32.mrb[0].mxu0
    %v926 = vadd.f32 0.0, %v925
    %v927 = vpop.f32.mrb[0].mxu0
    %v928 = vadd.f32 0.0, %v927
    %929 = vmatprep.mubr.f32.mxu0 0.0
    %930 = vmatmul.mubr.f32.gmra.mrb[0].mxu0 %v256
    %v931 = vpop.f32.mrb[0].mxu0
    %v932 = vadd.f32 0.0, %v931
    %v933 = vpop.f32.mrb[0].mxu0
    %v934 = vadd.f32 0.0, %v933
    %935 = vdwg.mxu0
    %936 = vmatprep.subr.mxu0 %v110
    %937 = vmatpush1.msra.mxu0 %v109
    %938 = vmatprep.subr.mxu0 0.0
    %939 = vmatpush1.msra.mxu0 0.0
    %940 = vmatprep.subr.mxu0 0.0
    %941 = vmatpush1.msra.mxu0 0.0
    %942 = vmatprep.subr.mxu0 0.0
    %943 = vmatpush1.msra.mxu0 0.0
    %944 = vmatprep.subr.mxu0 0.0
    %945 = vmatpush1.msra.mxu0 0.0
    %946 = vmatprep.subr.mxu0 0.0
    %947 = vmatpush1.msra.mxu0 0.0
    %948 = vmatprep.subr.mxu0 0.0
    %949 = vmatpush1.msra.mxu0 0.0
    %950 = vmatprep.subr.mxu0 0.0
    %951 = vmatpush1.msra.mxu0 0.0
    %952 = vmatprep.subr.mxu0 0.0
    %953 = vmatpush1.msra.mxu0 0.0
    %954 = vmatprep.subr.mxu0 0.0
    %955 = vmatpush1.msra.mxu0 0.0
    %956 = vmatprep.subr.mxu0 0.0
    %957 = vmatpush1.msra.mxu0 0.0
    %958 = vmatprep.subr.mxu0 0.0
    %959 = vmatpush1.msra.mxu0 0.0
    %960 = vmatprep.subr.mxu0 0.0
    %961 = vmatpush1.msra.mxu0 0.0
    %962 = vmatprep.subr.mxu0 0.0
    %963 = vmatpush1.msra.mxu0 0.0
    %964 = vmatprep.subr.mxu0 0.0
    %965 = vmatpush1.msra.mxu0 0.0
    %966 = vmatprep.subr.mxu0 0.0
    %967 = vmatpush1.msra.mxu0 0.0
    %968 = vmatprep.subr.mxu0 0.0
    %969 = vmatpush1.msra.mxu0 0.0
    %970 = vmatprep.subr.mxu0 0.0
    %971 = vmatpush1.msra.mxu0 0.0
    %972 = vmatprep.subr.mxu0 0.0
    %973 = vmatpush1.msra.mxu0 0.0
    %974 = vmatprep.subr.mxu0 0.0
    %975 = vmatpush1.msra.mxu0 0.0
    %976 = vmatprep.subr.mxu0 0.0
    %977 = vmatpush1.msra.mxu0 0.0
    %978 = vmatprep.subr.mxu0 0.0
    %979 = vmatpush1.msra.mxu0 0.0
    %980 = vmatprep.subr.mxu0 0.0
    %981 = vmatpush1.msra.mxu0 0.0
    %982 = vmatprep.subr.mxu0 0.0
    %983 = vmatpush1.msra.mxu0 0.0
    %984 = vmatprep.subr.mxu0 0.0
    %985 = vmatpush1.msra.mxu0 0.0
    %986 = vmatprep.subr.mxu0 0.0
    %987 = vmatpush1.msra.mxu0 0.0
    %988 = vmatprep.subr.mxu0 0.0
    %989 = vmatpush1.msra.mxu0 0.0
    %990 = vmatprep.subr.mxu0 0.0
    %991 = vmatpush1.msra.mxu0 0.0
    %992 = vmatprep.subr.mxu0 0.0
    %993 = vmatpush1.msra.mxu0 0.0
    %994 = vmatprep.subr.mxu0 0.0
    %995 = vmatpush1.msra.mxu0 0.0
    %996 = vmatprep.subr.mxu0 0.0
    %997 = vmatpush1.msra.mxu0 0.0
    %998 = vmatprep.subr.mxu0 0.0
    %999 = vmatpush1.msra.mxu0 0.0
    %1000 = vmatprep.mubr.f32.mxu0 0.0
    %1001 = vmatmul.mubr.f32.gmra.mrb[0].mxu0 %v235
    %v1002 = vpop.f32.mrb[0].mxu0
    %v1003 = vadd.f32 0.0, %v1002
    %v1004 = vpop.f32.mrb[0].mxu0
    %v1005 = vadd.f32 0.0, %v1004
    %1006 = vmatprep.mubr.f32.mxu0 0.0
    %1007 = vmatmul.mubr.f32.gmra.mrb[0].mxu0 %v238
    %v1008 = vpop.f32.mrb[0].mxu0
    %v1009 = vadd.f32 0.0, %v1008
    %v1010 = vpop.f32.mrb[0].mxu0
    %v1011 = vadd.f32 0.0, %v1010
    %1012 = vmatprep.mubr.f32.mxu0 0.0
    %1013 = vmatmul.mubr.f32.gmra.mrb[0].mxu0 %v241
    %v1014 = vpop.f32.mrb[0].mxu0
    %v1015 = vadd.f32 0.0, %v1014
    %v1016 = vpop.f32.mrb[0].mxu0
    %v1017 = vadd.f32 0.0, %v1016
    %1018 = vmatprep.mubr.f32.mxu0 0.0
    %1019 = vmatmul.mubr.f32.gmra.mrb[0].mxu0 %v244
    %v1020 = vpop.f32.mrb[0].mxu0
    %v1021 = vadd.f32 0.0, %v1020
    %v1022 = vpop.f32.mrb[0].mxu0
    %v1023 = vadd.f32 0.0, %v1022
    %1024 = vmatprep.mubr.f32.mxu0 0.0
    %1025 = vmatmul.mubr.f32.gmra.mrb[0].mxu0 %v247
    %v1026 = vpop.f32.mrb[0].mxu0
    %v1027 = vadd.f32 0.0, %v1026
    %v1028 = vpop.f32.mrb[0].mxu0
    %v1029 = vadd.f32 0.0, %v1028
    %1030 = vmatprep.mubr.f32.mxu0 0.0
    %1031 = vmatmul.mubr.f32.gmra.mrb[0].mxu0 %v250
    %v1032 = vpop.f32.mrb[0].mxu0
    %v1033 = vadd.f32 0.0, %v1032
    %v1034 = vpop.f32.mrb[0].mxu0
    %v1035 = vadd.f32 0.0, %v1034
    %1036 = vmatprep.mubr.f32.mxu0 0.0
    %1037 = vmatmul.mubr.f32.gmra.mrb[0].mxu0 %v253
    %v1038 = vpop.f32.mrb[0].mxu0
    %v1039 = vadd.f32 0.0, %v1038
    %v1040 = vpop.f32.mrb[0].mxu0
    %v1041 = vadd.f32 0.0, %v1040
    %1042 = vmatprep.mubr.f32.mxu0 0.0
    %1043 = vmatmul.mubr.f32.gmra.mrb[0].mxu0 %v256
    %v1044 = vpop.f32.mrb[0].mxu0
    %v1045 = vadd.f32 0.0, %v1044
    %v1046 = vpop.f32.mrb[0].mxu0
    %v1047 = vadd.f32 0.0, %v1046
    %1048 = vdwg.mxu0
    %1049 = vmatprep.subr.mxu0 %v112
    %1050 = vmatpush1.msra.mxu0 %v111
    %1051 = vmatprep.subr.mxu0 0.0
    %1052 = vmatpush1.msra.mxu0 0.0
    %1053 = vmatprep.subr.mxu0 0.0
    %1054 = vmatpush1.msra.mxu0 0.0
    %1055 = vmatprep.subr.mxu0 0.0
    %1056 = vmatpush1.msra.mxu0 0.0
    %1057 = vmatprep.subr.mxu0 0.0
    %1058 = vmatpush1.msra.mxu0 0.0
    %1059 = vmatprep.subr.mxu0 0.0
    %1060 = vmatpush1.msra.mxu0 0.0
    %1061 = vmatprep.subr.mxu0 0.0
    %1062 = vmatpush1.msra.mxu0 0.0
    %1063 = vmatprep.subr.mxu0 0.0
    %1064 = vmatpush1.msra.mxu0 0.0
    %1065 = vmatprep.subr.mxu0 0.0
    %1066 = vmatpush1.msra.mxu0 0.0
    %1067 = vmatprep.subr.mxu0 0.0
    %1068 = vmatpush1.msra.mxu0 0.0
    %1069 = vmatprep.subr.mxu0 0.0
    %1070 = vmatpush1.msra.mxu0 0.0
    %1071 = vmatprep.subr.mxu0 0.0
    %1072 = vmatpush1.msra.mxu0 0.0
    %1073 = vmatprep.subr.mxu0 0.0
    %1074 = vmatpush1.msra.mxu0 0.0
    %1075 = vmatprep.subr.mxu0 0.0
    %1076 = vmatpush1.msra.mxu0 0.0
    %1077 = vmatprep.subr.mxu0 0.0
    %1078 = vmatpush1.msra.mxu0 0.0
    %1079 = vmatprep.subr.mxu0 0.0
    %1080 = vmatpush1.msra.mxu0 0.0
    %1081 = vmatprep.subr.mxu0 0.0
    %1082 = vmatpush1.msra.mxu0 0.0
    %1083 = vmatprep.subr.mxu0 0.0
    %1084 = vmatpush1.msra.mxu0 0.0
    %1085 = vmatprep.subr.mxu0 0.0
    %1086 = vmatpush1.msra.mxu0 0.0
    %1087 = vmatprep.subr.mxu0 0.0
    %1088 = vmatpush1.msra.mxu0 0.0
    %1089 = vmatprep.subr.mxu0 0.0
    %1090 = vmatpush1.msra.mxu0 0.0
    %1091 = vmatprep.subr.mxu0 0.0
    %1092 = vmatpush1.msra.mxu0 0.0
    %1093 = vmatprep.subr.mxu0 0.0
    %1094 = vmatpush1.msra.mxu0 0.0
    %1095 = vmatprep.subr.mxu0 0.0
    %1096 = vmatpush1.msra.mxu0 0.0
    %1097 = vmatprep.subr.mxu0 0.0
    %1098 = vmatpush1.msra.mxu0 0.0
    %1099 = vmatprep.subr.mxu0 0.0
    %1100 = vmatpush1.msra.mxu0 0.0
    %1101 = vmatprep.subr.mxu0 0.0
    %1102 = vmatpush1.msra.mxu0 0.0
    %1103 = vmatprep.subr.mxu0 0.0
    %1104 = vmatpush1.msra.mxu0 0.0
    %1105 = vmatprep.subr.mxu0 0.0
    %1106 = vmatpush1.msra.mxu0 0.0
    %1107 = vmatprep.subr.mxu0 0.0
    %1108 = vmatpush1.msra.mxu0 0.0
    %1109 = vmatprep.subr.mxu0 0.0
    %1110 = vmatpush1.msra.mxu0 0.0
    %1111 = vmatprep.subr.mxu0 0.0
    %1112 = vmatpush1.msra.mxu0 0.0
    %1113 = vmatprep.mubr.f32.mxu0 0.0
    %1114 = vmatmul.mubr.f32.gmra.mrb[0].mxu0 %v235
    %v1115 = vpop.f32.mrb[0].mxu0
    %v1116 = vadd.f32 0.0, %v1115
    %v1117 = vpop.f32.mrb[0].mxu0
    %v1118 = vadd.f32 0.0, %v1117
    %1119 = vmatprep.mubr.f32.mxu0 0.0
    %1120 = vmatmul.mubr.f32.gmra.mrb[0].mxu0 %v238
    %v1121 = vpop.f32.mrb[0].mxu0
    %v1122 = vadd.f32 0.0, %v1121
    %v1123 = vpop.f32.mrb[0].mxu0
    %v1124 = vadd.f32 0.0, %v1123
    %1125 = vmatprep.mubr.f32.mxu0 0.0
    %1126 = vmatmul.mubr.f32.gmra.mrb[0].mxu0 %v241
    %v1127 = vpop.f32.mrb[0].mxu0
    %v1128 = vadd.f32 0.0, %v1127
    %v1129 = vpop.f32.mrb[0].mxu0
    %v1130 = vadd.f32 0.0, %v1129
    %1131 = vmatprep.mubr.f32.mxu0 0.0
    %1132 = vmatmul.mubr.f32.gmra.mrb[0].mxu0 %v244
    %v1133 = vpop.f32.mrb[0].mxu0
    %v1134 = vadd.f32 0.0, %v1133
    %v1135 = vpop.f32.mrb[0].mxu0
    %v1136 = vadd.f32 0.0, %v1135
    %1137 = vmatprep.mubr.f32.mxu0 0.0
    %1138 = vmatmul.mubr.f32.gmra.mrb[0].mxu0 %v247
    %v1139 = vpop.f32.mrb[0].mxu0
    %v1140 = vadd.f32 0.0, %v1139
    %v1141 = vpop.f32.mrb[0].mxu0
    %v1142 = vadd.f32 0.0, %v1141
    %1143 = vmatprep.mubr.f32.mxu0 0.0
    %1144 = vmatmul.mubr.f32.gmra.mrb[0].mxu0 %v250
    %v1145 = vpop.f32.mrb[0].mxu0
    %v1146 = vadd.f32 0.0, %v1145
    %v1147 = vpop.f32.mrb[0].mxu0
    %v1148 = vadd.f32 0.0, %v1147
    %1149 = vmatprep.mubr.f32.mxu0 0.0
    %1150 = vmatmul.mubr.f32.gmra.mrb[0].mxu0 %v253
    %v1151 = vpop.f32.mrb[0].mxu0
    %v1152 = vadd.f32 0.0, %v1151
    %v1153 = vpop.f32.mrb[0].mxu0
    %v1154 = vadd.f32 0.0, %v1153
    %1155 = vmatprep.mubr.f32.mxu0 0.0
    %1156 = vmatmul.mubr.f32.gmra.mrb[0].mxu0 %v256
    %v1157 = vpop.f32.mrb[0].mxu0
    %v1158 = vadd.f32 0.0, %v1157
    %v1159 = vpop.f32.mrb[0].mxu0
    %v1160 = vadd.f32 0.0, %v1159
    %1161 = vdwg.mxu0
    %1162 = vmatprep.subr.mxu0 %v114
    %1163 = vmatpush1.msra.mxu0 %v113
    %1164 = vmatprep.subr.mxu0 0.0
    %1165 = vmatpush1.msra.mxu0 0.0
    %1166 = vmatprep.subr.mxu0 0.0
    %1167 = vmatpush1.msra.mxu0 0.0
    %1168 = vmatprep.subr.mxu0 0.0
    %1169 = vmatpush1.msra.mxu0 0.0
    %1170 = vmatprep.subr.mxu0 0.0
    %1171 = vmatpush1.msra.mxu0 0.0
    %1172 = vmatprep.subr.mxu0 0.0
    %1173 = vmatpush1.msra.mxu0 0.0
    %1174 = vmatprep.subr.mxu0 0.0
    %1175 = vmatpush1.msra.mxu0 0.0
    %1176 = vmatprep.subr.mxu0 0.0
    %1177 = vmatpush1.msra.mxu0 0.0
    %1178 = vmatprep.subr.mxu0 0.0
    %1179 = vmatpush1.msra.mxu0 0.0
    %1180 = vmatprep.subr.mxu0 0.0
    %1181 = vmatpush1.msra.mxu0 0.0
    %1182 = vmatprep.subr.mxu0 0.0
    %1183 = vmatpush1.msra.mxu0 0.0
    %1184 = vmatprep.subr.mxu0 0.0
    %1185 = vmatpush1.msra.mxu0 0.0
    %1186 = vmatprep.subr.mxu0 0.0
    %1187 = vmatpush1.msra.mxu0 0.0
    %1188 = vmatprep.subr.mxu0 0.0
    %1189 = vmatpush1.msra.mxu0 0.0
    %1190 = vmatprep.subr.mxu0 0.0
    %1191 = vmatpush1.msra.mxu0 0.0
    %1192 = vmatprep.subr.mxu0 0.0
    %1193 = vmatpush1.msra.mxu0 0.0
    %1194 = vmatprep.subr.mxu0 0.0
    %1195 = vmatpush1.msra.mxu0 0.0
    %1196 = vmatprep.subr.mxu0 0.0
    %1197 = vmatpush1.msra.mxu0 0.0
    %1198 = vmatprep.subr.mxu0 0.0
    %1199 = vmatpush1.msra.mxu0 0.0
    %1200 = vmatprep.subr.mxu0 0.0
    %1201 = vmatpush1.msra.mxu0 0.0
    %1202 = vmatprep.subr.mxu0 0.0
    %1203 = vmatpush1.msra.mxu0 0.0
    %1204 = vmatprep.subr.mxu0 0.0
    %1205 = vmatpush1.msra.mxu0 0.0
    %1206 = vmatprep.subr.mxu0 0.0
    %1207 = vmatpush1.msra.mxu0 0.0
    %1208 = vmatprep.subr.mxu0 0.0
    %1209 = vmatpush1.msra.mxu0 0.0
    %1210 = vmatprep.subr.mxu0 0.0
    %1211 = vmatpush1.msra.mxu0 0.0
    %1212 = vmatprep.subr.mxu0 0.0
    %1213 = vmatpush1.msra.mxu0 0.0
    %1214 = vmatprep.subr.mxu0 0.0
    %1215 = vmatpush1.msra.mxu0 0.0
    %1216 = vmatprep.subr.mxu0 0.0
    %1217 = vmatpush1.msra.mxu0 0.0
    %1218 = vmatprep.subr.mxu0 0.0
    %1219 = vmatpush1.msra.mxu0 0.0
    %1220 = vmatprep.subr.mxu0 0.0
    %1221 = vmatpush1.msra.mxu0 0.0
    %1222 = vmatprep.subr.mxu0 0.0
    %1223 = vmatpush1.msra.mxu0 0.0
    %1224 = vmatprep.subr.mxu0 0.0
    %1225 = vmatpush1.msra.mxu0 0.0
    %1226 = vmatprep.mubr.f32.mxu0 0.0
    %1227 = vmatmul.mubr.f32.gmra.mrb[0].mxu0 %v235
    %v1228 = vpop.f32.mrb[0].mxu0
    %v1229 = vadd.f32 0.0, %v1228
    %v1230 = vpop.f32.mrb[0].mxu0
    %v1231 = vadd.f32 0.0, %v1230
    %1232 = vmatprep.mubr.f32.mxu0 0.0
    %1233 = vmatmul.mubr.f32.gmra.mrb[0].mxu0 %v238
    %v1234 = vpop.f32.mrb[0].mxu0
    %v1235 = vadd.f32 0.0, %v1234
    %v1236 = vpop.f32.mrb[0].mxu0
    %v1237 = vadd.f32 0.0, %v1236
    %1238 = vmatprep.mubr.f32.mxu0 0.0
    %1239 = vmatmul.mubr.f32.gmra.mrb[0].mxu0 %v241
    %v1240 = vpop.f32.mrb[0].mxu0
    %v1241 = vadd.f32 0.0, %v1240
    %v1242 = vpop.f32.mrb[0].mxu0
    %v1243 = vadd.f32 0.0, %v1242
    %1244 = vmatprep.mubr.f32.mxu0 0.0
    %1245 = vmatmul.mubr.f32.gmra.mrb[0].mxu0 %v244
    %v1246 = vpop.f32.mrb[0].mxu0
    %v1247 = vadd.f32 0.0, %v1246
    %v1248 = vpop.f32.mrb[0].mxu0
    %v1249 = vadd.f32 0.0, %v1248
    %1250 = vmatprep.mubr.f32.mxu0 0.0
    %1251 = vmatmul.mubr.f32.gmra.mrb[0].mxu0 %v247
    %v1252 = vpop.f32.mrb[0].mxu0
    %v1253 = vadd.f32 0.0, %v1252
    %v1254 = vpop.f32.mrb[0].mxu0
    %v1255 = vadd.f32 0.0, %v1254
    %1256 = vmatprep.mubr.f32.mxu0 0.0
    %1257 = vmatmul.mubr.f32.gmra.mrb[0].mxu0 %v250
    %v1258 = vpop.f32.mrb[0].mxu0
    %v1259 = vadd.f32 0.0, %v1258
    %v1260 = vpop.f32.mrb[0].mxu0
    %v1261 = vadd.f32 0.0, %v1260
    %1262 = vmatprep.mubr.f32.mxu0 0.0
    %1263 = vmatmul.mubr.f32.gmra.mrb[0].mxu0 %v253
    %v1264 = vpop.f32.mrb[0].mxu0
    %v1265 = vadd.f32 0.0, %v1264
    %v1266 = vpop.f32.mrb[0].mxu0
    %v1267 = vadd.f32 0.0, %v1266
    %1268 = vmatprep.mubr.f32.mxu0 0.0
    %1269 = vmatmul.mubr.f32.gmra.mrb[0].mxu0 %v256
    %v1270 = vpop.f32.mrb[0].mxu0
    %v1271 = vadd.f32 0.0, %v1270
    %v1272 = vpop.f32.mrb[0].mxu0
    %v1273 = vadd.f32 0.0, %v1272
    %1274 = vdwg.mxu0
    %1275 = vmatprep.subr.mxu0 %v116
    %1276 = vmatpush1.msra.mxu0 %v115
    %1277 = vmatprep.subr.mxu0 0.0
    %1278 = vmatpush1.msra.mxu0 0.0
    %1279 = vmatprep.subr.mxu0 0.0
    %1280 = vmatpush1.msra.mxu0 0.0
    %1281 = vmatprep.subr.mxu0 0.0
    %1282 = vmatpush1.msra.mxu0 0.0
    %1283 = vmatprep.subr.mxu0 0.0
    %1284 = vmatpush1.msra.mxu0 0.0
    %1285 = vmatprep.subr.mxu0 0.0
    %1286 = vmatpush1.msra.mxu0 0.0
    %1287 = vmatprep.subr.mxu0 0.0
    %1288 = vmatpush1.msra.mxu0 0.0
    %1289 = vmatprep.subr.mxu0 0.0
    %1290 = vmatpush1.msra.mxu0 0.0
    %1291 = vmatprep.subr.mxu0 0.0
    %1292 = vmatpush1.msra.mxu0 0.0
    %1293 = vmatprep.subr.mxu0 0.0
    %1294 = vmatpush1.msra.mxu0 0.0
    %1295 = vmatprep.subr.mxu0 0.0
    %1296 = vmatpush1.msra.mxu0 0.0
    %1297 = vmatprep.subr.mxu0 0.0
    %1298 = vmatpush1.msra.mxu0 0.0
    %1299 = vmatprep.subr.mxu0 0.0
    %1300 = vmatpush1.msra.mxu0 0.0
    %1301 = vmatprep.subr.mxu0 0.0
    %1302 = vmatpush1.msra.mxu0 0.0
    %1303 = vmatprep.subr.mxu0 0.0
    %1304 = vmatpush1.msra.mxu0 0.0
    %1305 = vmatprep.subr.mxu0 0.0
    %1306 = vmatpush1.msra.mxu0 0.0
    %1307 = vmatprep.subr.mxu0 0.0
    %1308 = vmatpush1.msra.mxu0 0.0
    %1309 = vmatprep.subr.mxu0 0.0
    %1310 = vmatpush1.msra.mxu0 0.0
    %1311 = vmatprep.subr.mxu0 0.0
    %1312 = vmatpush1.msra.mxu0 0.0
    %1313 = vmatprep.subr.mxu0 0.0
    %1314 = vmatpush1.msra.mxu0 0.0
    %1315 = vmatprep.subr.mxu0 0.0
    %1316 = vmatpush1.msra.mxu0 0.0
    %1317 = vmatprep.subr.mxu0 0.0
    %1318 = vmatpush1.msra.mxu0 0.0
    %1319 = vmatprep.subr.mxu0 0.0
    %1320 = vmatpush1.msra.mxu0 0.0
    %1321 = vmatprep.subr.mxu0 0.0
    %1322 = vmatpush1.msra.mxu0 0.0
    %1323 = vmatprep.subr.mxu0 0.0
    %1324 = vmatpush1.msra.mxu0 0.0
    %1325 = vmatprep.subr.mxu0 0.0
    %1326 = vmatpush1.msra.mxu0 0.0
    %1327 = vmatprep.subr.mxu0 0.0
    %1328 = vmatpush1.msra.mxu0 0.0
    %1329 = vmatprep.subr.mxu0 0.0
    %1330 = vmatpush1.msra.mxu0 0.0
    %1331 = vmatprep.subr.mxu0 0.0
    %1332 = vmatpush1.msra.mxu0 0.0
    %1333 = vmatprep.subr.mxu0 0.0
    %1334 = vmatpush1.msra.mxu0 0.0
    %1335 = vmatprep.subr.mxu0 0.0
    %1336 = vmatpush1.msra.mxu0 0.0
    %1337 = vmatprep.subr.mxu0 0.0
    %1338 = vmatpush1.msra.mxu0 0.0
    %1339 = vmatprep.mubr.f32.mxu0 0.0
    %1340 = vmatmul.mubr.f32.gmra.mrb[0].mxu0 %v235
    %v1341 = vpop.f32.mrb[0].mxu0
    %v1342 = vadd.f32 0.0, %v1341
    %v1343 = vpop.f32.mrb[0].mxu0
    %v1344 = vadd.f32 0.0, %v1343
    %1345 = vmatprep.mubr.f32.mxu0 0.0
    %1346 = vmatmul.mubr.f32.gmra.mrb[0].mxu0 %v238
    %v1347 = vpop.f32.mrb[0].mxu0
    %v1348 = vadd.f32 0.0, %v1347
    %v1349 = vpop.f32.mrb[0].mxu0
    %v1350 = vadd.f32 0.0, %v1349
    %1351 = vmatprep.mubr.f32.mxu0 0.0
    %1352 = vmatmul.mubr.f32.gmra.mrb[0].mxu0 %v241
    %v1353 = vpop.f32.mrb[0].mxu0
    %v1354 = vadd.f32 0.0, %v1353
    %v1355 = vpop.f32.mrb[0].mxu0
    %v1356 = vadd.f32 0.0, %v1355
    %1357 = vmatprep.mubr.f32.mxu0 0.0
    %1358 = vmatmul.mubr.f32.gmra.mrb[0].mxu0 %v244
    %v1359 = vpop.f32.mrb[0].mxu0
    %v1360 = vadd.f32 0.0, %v1359
    %v1361 = vpop.f32.mrb[0].mxu0
    %v1362 = vadd.f32 0.0, %v1361
    %1363 = vmatprep.mubr.f32.mxu0 0.0
    %1364 = vmatmul.mubr.f32.gmra.mrb[0].mxu0 %v247
    %v1365 = vpop.f32.mrb[0].mxu0
    %v1366 = vadd.f32 0.0, %v1365
    %v1367 = vpop.f32.mrb[0].mxu0
    %v1368 = vadd.f32 0.0, %v1367
    %1369 = vmatprep.mubr.f32.mxu0 0.0
    %1370 = vmatmul.mubr.f32.gmra.mrb[0].mxu0 %v250
    %v1371 = vpop.f32.mrb[0].mxu0
    %v1372 = vadd.f32 0.0, %v1371
    %v1373 = vpop.f32.mrb[0].mxu0
    %v1374 = vadd.f32 0.0, %v1373
    %1375 = vmatprep.mubr.f32.mxu0 0.0
    %1376 = vmatmul.mubr.f32.gmra.mrb[0].mxu0 %v253
    %v1377 = vpop.f32.mrb[0].mxu0
    %v1378 = vadd.f32 0.0, %v1377
    %v1379 = vpop.f32.mrb[0].mxu0
    %v1380 = vadd.f32 0.0, %v1379
    %1381 = vmatprep.mubr.f32.mxu0 0.0
    %1382 = vmatmul.mubr.f32.gmra.mrb[0].mxu0 %v256
    %v1383 = vpop.f32.mrb[0].mxu0
    %v1384 = vadd.f32 0.0, %v1383
    %v1385 = vpop.f32.mrb[0].mxu0
    %v1386 = vadd.f32 0.0, %v1385
    %1387 = vdwg.mxu0
    %1388 = vmatprep.subr.mxu0 %v118
    %1389 = vmatpush1.msra.mxu0 %v117
    %1390 = vmatprep.subr.mxu0 0.0
    %1391 = vmatpush1.msra.mxu0 0.0
    %1392 = vmatprep.subr.mxu0 0.0
    %1393 = vmatpush1.msra.mxu0 0.0
    %1394 = vmatprep.subr.mxu0 0.0
    %1395 = vmatpush1.msra.mxu0 0.0
    %1396 = vmatprep.subr.mxu0 0.0
    %1397 = vmatpush1.msra.mxu0 0.0
    %1398 = vmatprep.subr.mxu0 0.0
    %1399 = vmatpush1.msra.mxu0 0.0
    %1400 = vmatprep.subr.mxu0 0.0
    %1401 = vmatpush1.msra.mxu0 0.0
    %1402 = vmatprep.subr.mxu0 0.0
    %1403 = vmatpush1.msra.mxu0 0.0
    %1404 = vmatprep.subr.mxu0 0.0
    %1405 = vmatpush1.msra.mxu0 0.0
    %1406 = vmatprep.subr.mxu0 0.0
    %1407 = vmatpush1.msra.mxu0 0.0
    %1408 = vmatprep.subr.mxu0 0.0
    %1409 = vmatpush1.msra.mxu0 0.0
    %1410 = vmatprep.subr.mxu0 0.0
    %1411 = vmatpush1.msra.mxu0 0.0
    %1412 = vmatprep.subr.mxu0 0.0
    %1413 = vmatpush1.msra.mxu0 0.0
    %1414 = vmatprep.subr.mxu0 0.0
    %1415 = vmatpush1.msra.mxu0 0.0
    %1416 = vmatprep.subr.mxu0 0.0
    %1417 = vmatpush1.msra.mxu0 0.0
    %1418 = vmatprep.subr.mxu0 0.0
    %1419 = vmatpush1.msra.mxu0 0.0
    %1420 = vmatprep.subr.mxu0 0.0
    %1421 = vmatpush1.msra.mxu0 0.0
    %1422 = vmatprep.subr.mxu0 0.0
    %1423 = vmatpush1.msra.mxu0 0.0
    %1424 = vmatprep.subr.mxu0 0.0
    %1425 = vmatpush1.msra.mxu0 0.0
    %1426 = vmatprep.subr.mxu0 0.0
    %1427 = vmatpush1.msra.mxu0 0.0
    %1428 = vmatprep.subr.mxu0 0.0
    %1429 = vmatpush1.msra.mxu0 0.0
    %1430 = vmatprep.subr.mxu0 0.0
    %1431 = vmatpush1.msra.mxu0 0.0
    %1432 = vmatprep.subr.mxu0 0.0
    %1433 = vmatpush1.msra.mxu0 0.0
    %1434 = vmatprep.subr.mxu0 0.0
    %1435 = vmatpush1.msra.mxu0 0.0
    %1436 = vmatprep.subr.mxu0 0.0
    %1437 = vmatpush1.msra.mxu0 0.0
    %1438 = vmatprep.subr.mxu0 0.0
    %1439 = vmatpush1.msra.mxu0 0.0
    %1440 = vmatprep.subr.mxu0 0.0
    %1441 = vmatpush1.msra.mxu0 0.0
    %1442 = vmatprep.subr.mxu0 0.0
    %1443 = vmatpush1.msra.mxu0 0.0
    %1444 = vmatprep.subr.mxu0 0.0
    %1445 = vmatpush1.msra.mxu0 0.0
    %1446 = vmatprep.subr.mxu0 0.0
    %1447 = vmatpush1.msra.mxu0 0.0
    %1448 = vmatprep.subr.mxu0 0.0
    %1449 = vmatpush1.msra.mxu0 0.0
    %1450 = vmatprep.subr.mxu0 0.0
    %1451 = vmatpush1.msra.mxu0 0.0
    %1452 = vmatprep.mubr.f32.mxu0 0.0
    %1453 = vmatmul.mubr.f32.gmra.mrb[0].mxu0 %v235
    %v1454 = vpop.f32.mrb[0].mxu0
    %v1455 = vadd.f32 0.0, %v1454
    %v1456 = vpop.f32.mrb[0].mxu0
    %v1457 = vadd.f32 0.0, %v1456
    %1458 = vmatprep.mubr.f32.mxu0 0.0
    %1459 = vmatmul.mubr.f32.gmra.mrb[0].mxu0 %v238
    %v1460 = vpop.f32.mrb[0].mxu0
    %v1461 = vadd.f32 0.0, %v1460
    %v1462 = vpop.f32.mrb[0].mxu0
    %v1463 = vadd.f32 0.0, %v1462
    %1464 = vmatprep.mubr.f32.mxu0 0.0
    %1465 = vmatmul.mubr.f32.gmra.mrb[0].mxu0 %v241
    %v1466 = vpop.f32.mrb[0].mxu0
    %v1467 = vadd.f32 0.0, %v1466
    %v1468 = vpop.f32.mrb[0].mxu0
    %v1469 = vadd.f32 0.0, %v1468
    %1470 = vmatprep.mubr.f32.mxu0 0.0
    %1471 = vmatmul.mubr.f32.gmra.mrb[0].mxu0 %v244
    %v1472 = vpop.f32.mrb[0].mxu0
    %v1473 = vadd.f32 0.0, %v1472
    %v1474 = vpop.f32.mrb[0].mxu0
    %v1475 = vadd.f32 0.0, %v1474
    %1476 = vmatprep.mubr.f32.mxu0 0.0
    %1477 = vmatmul.mubr.f32.gmra.mrb[0].mxu0 %v247
    %v1478 = vpop.f32.mrb[0].mxu0
    %v1479 = vadd.f32 0.0, %v1478
    %v1480 = vpop.f32.mrb[0].mxu0
    %v1481 = vadd.f32 0.0, %v1480
    %1482 = vmatprep.mubr.f32.mxu0 0.0
    %1483 = vmatmul.mubr.f32.gmra.mrb[0].mxu0 %v250
    %v1484 = vpop.f32.mrb[0].mxu0
    %v1485 = vadd.f32 0.0, %v1484
    %v1486 = vpop.f32.mrb[0].mxu0
    %v1487 = vadd.f32 0.0, %v1486
    %1488 = vmatprep.mubr.f32.mxu0 0.0
    %1489 = vmatmul.mubr.f32.gmra.mrb[0].mxu0 %v253
    %v1490 = vpop.f32.mrb[0].mxu0
    %v1491 = vadd.f32 0.0, %v1490
    %v1492 = vpop.f32.mrb[0].mxu0
    %v1493 = vadd.f32 0.0, %v1492
    %1494 = vmatprep.mubr.f32.mxu0 0.0
    %1495 = vmatmul.mubr.f32.gmra.mrb[0].mxu0 %v256
    %v1496 = vpop.f32.mrb[0].mxu0
    %v1497 = vadd.f32 0.0, %v1496
    %v1498 = vpop.f32.mrb[0].mxu0
    %v1499 = vadd.f32 0.0, %v1498
    %1500 = vdwg.mxu0
    %1501 = vmatprep.subr.mxu0 %v120
    %1502 = vmatpush1.msra.mxu0 %v119
    %1503 = vmatprep.subr.mxu0 0.0
    %1504 = vmatpush1.msra.mxu0 0.0
    %1505 = vmatprep.subr.mxu0 0.0
    %1506 = vmatpush1.msra.mxu0 0.0
    %1507 = vmatprep.subr.mxu0 0.0
    %1508 = vmatpush1.msra.mxu0 0.0
    %1509 = vmatprep.subr.mxu0 0.0
    %1510 = vmatpush1.msra.mxu0 0.0
    %1511 = vmatprep.subr.mxu0 0.0
    %1512 = vmatpush1.msra.mxu0 0.0
    %1513 = vmatprep.subr.mxu0 0.0
    %1514 = vmatpush1.msra.mxu0 0.0
    %1515 = vmatprep.subr.mxu0 0.0
    %1516 = vmatpush1.msra.mxu0 0.0
    %1517 = vmatprep.subr.mxu0 0.0
    %1518 = vmatpush1.msra.mxu0 0.0
    %1519 = vmatprep.subr.mxu0 0.0
    %1520 = vmatpush1.msra.mxu0 0.0
    %1521 = vmatprep.subr.mxu0 0.0
    %1522 = vmatpush1.msra.mxu0 0.0
    %1523 = vmatprep.subr.mxu0 0.0
    %1524 = vmatpush1.msra.mxu0 0.0
    %1525 = vmatprep.subr.mxu0 0.0
    %1526 = vmatpush1.msra.mxu0 0.0
    %1527 = vmatprep.subr.mxu0 0.0
    %1528 = vmatpush1.msra.mxu0 0.0
    %1529 = vmatprep.subr.mxu0 0.0
    %1530 = vmatpush1.msra.mxu0 0.0
    %1531 = vmatprep.subr.mxu0 0.0
    %1532 = vmatpush1.msra.mxu0 0.0
    %1533 = vmatprep.subr.mxu0 0.0
    %1534 = vmatpush1.msra.mxu0 0.0
    %1535 = vmatprep.subr.mxu0 0.0
    %1536 = vmatpush1.msra.mxu0 0.0
    %1537 = vmatprep.subr.mxu0 0.0
    %1538 = vmatpush1.msra.mxu0 0.0
    %1539 = vmatprep.subr.mxu0 0.0
    %1540 = vmatpush1.msra.mxu0 0.0
    %1541 = vmatprep.subr.mxu0 0.0
    %1542 = vmatpush1.msra.mxu0 0.0
    %1543 = vmatprep.subr.mxu0 0.0
    %1544 = vmatpush1.msra.mxu0 0.0
    %1545 = vmatprep.subr.mxu0 0.0
    %1546 = vmatpush1.msra.mxu0 0.0
    %1547 = vmatprep.subr.mxu0 0.0
    %1548 = vmatpush1.msra.mxu0 0.0
    %1549 = vmatprep.subr.mxu0 0.0
    %1550 = vmatpush1.msra.mxu0 0.0
    %1551 = vmatprep.subr.mxu0 0.0
    %1552 = vmatpush1.msra.mxu0 0.0
    %1553 = vmatprep.subr.mxu0 0.0
    %1554 = vmatpush1.msra.mxu0 0.0
    %1555 = vmatprep.subr.mxu0 0.0
    %1556 = vmatpush1.msra.mxu0 0.0
    %1557 = vmatprep.subr.mxu0 0.0
    %1558 = vmatpush1.msra.mxu0 0.0
    %1559 = vmatprep.subr.mxu0 0.0
    %1560 = vmatpush1.msra.mxu0 0.0
    %1561 = vmatprep.subr.mxu0 0.0
    %1562 = vmatpush1.msra.mxu0 0.0
    %1563 = vmatprep.subr.mxu0 0.0
    %1564 = vmatpush1.msra.mxu0 0.0
    %1565 = vmatprep.mubr.f32.mxu0 0.0
    %1566 = vmatmul.mubr.f32.gmra.mrb[0].mxu0 %v235
    %v1567 = vpop.f32.mrb[0].mxu0
    %v1568 = vadd.f32 0.0, %v1567
    %v1569 = vpop.f32.mrb[0].mxu0
    %v1570 = vadd.f32 0.0, %v1569
    %1571 = vmatprep.mubr.f32.mxu0 0.0
    %1572 = vmatmul.mubr.f32.gmra.mrb[0].mxu0 %v238
    %v1573 = vpop.f32.mrb[0].mxu0
    %v1574 = vadd.f32 0.0, %v1573
    %v1575 = vpop.f32.mrb[0].mxu0
    %v1576 = vadd.f32 0.0, %v1575
    %1577 = vmatprep.mubr.f32.mxu0 0.0
    %1578 = vmatmul.mubr.f32.gmra.mrb[0].mxu0 %v241
    %v1579 = vpop.f32.mrb[0].mxu0
    %v1580 = vadd.f32 0.0, %v1579
    %v1581 = vpop.f32.mrb[0].mxu0
    %v1582 = vadd.f32 0.0, %v1581
    %1583 = vmatprep.mubr.f32.mxu0 0.0
    %1584 = vmatmul.mubr.f32.gmra.mrb[0].mxu0 %v244
    %v1585 = vpop.f32.mrb[0].mxu0
    %v1586 = vadd.f32 0.0, %v1585
    %v1587 = vpop.f32.mrb[0].mxu0
    %v1588 = vadd.f32 0.0, %v1587
    %1589 = vmatprep.mubr.f32.mxu0 0.0
    %1590 = vmatmul.mubr.f32.gmra.mrb[0].mxu0 %v247
    %v1591 = vpop.f32.mrb[0].mxu0
    %v1592 = vadd.f32 0.0, %v1591
    %v1593 = vpop.f32.mrb[0].mxu0
    %v1594 = vadd.f32 0.0, %v1593
    %1595 = vmatprep.mubr.f32.mxu0 0.0
    %1596 = vmatmul.mubr.f32.gmra.mrb[0].mxu0 %v250
    %v1597 = vpop.f32.mrb[0].mxu0
    %v1598 = vadd.f32 0.0, %v1597
    %v1599 = vpop.f32.mrb[0].mxu0
    %v1600 = vadd.f32 0.0, %v1599
    %1601 = vmatprep.mubr.f32.mxu0 0.0
    %1602 = vmatmul.mubr.f32.gmra.mrb[0].mxu0 %v253
    %v1603 = vpop.f32.mrb[0].mxu0
    %v1604 = vadd.f32 0.0, %v1603
    %v1605 = vpop.f32.mrb[0].mxu0
    %v1606 = vadd.f32 0.0, %v1605
    %1607 = vmatprep.mubr.f32.mxu0 0.0
    %1608 = vmatmul.mubr.f32.gmra.mrb[0].mxu0 %v256
    %v1609 = vpop.f32.mrb[0].mxu0
    %v1610 = vadd.f32 0.0, %v1609
    %v1611 = vpop.f32.mrb[0].mxu0
    %v1612 = vadd.f32 0.0, %v1611
    %1613 = vdwg.mxu0
    %1614 = vmatprep.subr.mxu0 %v122
    %1615 = vmatpush1.msra.mxu0 %v121
    %1616 = vmatprep.subr.mxu0 0.0
    %1617 = vmatpush1.msra.mxu0 0.0
    %1618 = vmatprep.subr.mxu0 0.0
    %1619 = vmatpush1.msra.mxu0 0.0
    %1620 = vmatprep.subr.mxu0 0.0
    %1621 = vmatpush1.msra.mxu0 0.0
    %1622 = vmatprep.subr.mxu0 0.0
    %1623 = vmatpush1.msra.mxu0 0.0
    %1624 = vmatprep.subr.mxu0 0.0
    %1625 = vmatpush1.msra.mxu0 0.0
    %1626 = vmatprep.subr.mxu0 0.0
    %1627 = vmatpush1.msra.mxu0 0.0
    %1628 = vmatprep.subr.mxu0 0.0
    %1629 = vmatpush1.msra.mxu0 0.0
    %1630 = vmatprep.subr.mxu0 0.0
    %1631 = vmatpush1.msra.mxu0 0.0
    %1632 = vmatprep.subr.mxu0 0.0
    %1633 = vmatpush1.msra.mxu0 0.0
    %1634 = vmatprep.subr.mxu0 0.0
    %1635 = vmatpush1.msra.mxu0 0.0
    %1636 = vmatprep.subr.mxu0 0.0
    %1637 = vmatpush1.msra.mxu0 0.0
    %1638 = vmatprep.subr.mxu0 0.0
    %1639 = vmatpush1.msra.mxu0 0.0
    %1640 = vmatprep.subr.mxu0 0.0
    %1641 = vmatpush1.msra.mxu0 0.0
    %1642 = vmatprep.subr.mxu0 0.0
    %1643 = vmatpush1.msra.mxu0 0.0
    %1644 = vmatprep.subr.mxu0 0.0
    %1645 = vmatpush1.msra.mxu0 0.0
    %1646 = vmatprep.subr.mxu0 0.0
    %1647 = vmatpush1.msra.mxu0 0.0
    %1648 = vmatprep.subr.mxu0 0.0
    %1649 = vmatpush1.msra.mxu0 0.0
    %1650 = vmatprep.subr.mxu0 0.0
    %1651 = vmatpush1.msra.mxu0 0.0
    %1652 = vmatprep.subr.mxu0 0.0
    %1653 = vmatpush1.msra.mxu0 0.0
    %1654 = vmatprep.subr.mxu0 0.0
    %1655 = vmatpush1.msra.mxu0 0.0
    %1656 = vmatprep.subr.mxu0 0.0
    %1657 = vmatpush1.msra.mxu0 0.0
    %1658 = vmatprep.subr.mxu0 0.0
    %1659 = vmatpush1.msra.mxu0 0.0
    %1660 = vmatprep.subr.mxu0 0.0
    %1661 = vmatpush1.msra.mxu0 0.0
    %1662 = vmatprep.subr.mxu0 0.0
    %1663 = vmatpush1.msra.mxu0 0.0
    %1664 = vmatprep.subr.mxu0 0.0
    %1665 = vmatpush1.msra.mxu0 0.0
    %1666 = vmatprep.subr.mxu0 0.0
    %1667 = vmatpush1.msra.mxu0 0.0
    %1668 = vmatprep.subr.mxu0 0.0
    %1669 = vmatpush1.msra.mxu0 0.0
    %1670 = vmatprep.subr.mxu0 0.0
    %1671 = vmatpush1.msra.mxu0 0.0
    %1672 = vmatprep.subr.mxu0 0.0
    %1673 = vmatpush1.msra.mxu0 0.0
    %1674 = vmatprep.subr.mxu0 0.0
    %1675 = vmatpush1.msra.mxu0 0.0
    %1676 = vmatprep.subr.mxu0 0.0
    %1677 = vmatpush1.msra.mxu0 0.0
    %1678 = vmatprep.mubr.f32.mxu0 0.0
    %1679 = vmatmul.mubr.f32.gmra.mrb[0].mxu0 %v235
    %v1680 = vpop.f32.mrb[0].mxu0
    %v1681 = vadd.f32 0.0, %v1680
    %v1682 = vpop.f32.mrb[0].mxu0
    %v1683 = vadd.f32 0.0, %v1682
    %1684 = vmatprep.mubr.f32.mxu0 0.0
    %1685 = vmatmul.mubr.f32.gmra.mrb[0].mxu0 %v238
    %v1686 = vpop.f32.mrb[0].mxu0
    %v1687 = vadd.f32 0.0, %v1686
    %v1688 = vpop.f32.mrb[0].mxu0
    %v1689 = vadd.f32 0.0, %v1688
    %1690 = vmatprep.mubr.f32.mxu0 0.0
    %1691 = vmatmul.mubr.f32.gmra.mrb[0].mxu0 %v241
    %v1692 = vpop.f32.mrb[0].mxu0
    %v1693 = vadd.f32 0.0, %v1692
    %v1694 = vpop.f32.mrb[0].mxu0
    %v1695 = vadd.f32 0.0, %v1694
    %1696 = vmatprep.mubr.f32.mxu0 0.0
    %1697 = vmatmul.mubr.f32.gmra.mrb[0].mxu0 %v244
    %v1698 = vpop.f32.mrb[0].mxu0
    %v1699 = vadd.f32 0.0, %v1698
    %v1700 = vpop.f32.mrb[0].mxu0
    %v1701 = vadd.f32 0.0, %v1700
    %1702 = vmatprep.mubr.f32.mxu0 0.0
    %1703 = vmatmul.mubr.f32.gmra.mrb[0].mxu0 %v247
    %v1704 = vpop.f32.mrb[0].mxu0
    %v1705 = vadd.f32 0.0, %v1704
    %v1706 = vpop.f32.mrb[0].mxu0
    %v1707 = vadd.f32 0.0, %v1706
    %1708 = vmatprep.mubr.f32.mxu0 0.0
    %1709 = vmatmul.mubr.f32.gmra.mrb[0].mxu0 %v250
    %v1710 = vpop.f32.mrb[0].mxu0
    %v1711 = vadd.f32 0.0, %v1710
    %v1712 = vpop.f32.mrb[0].mxu0
    %v1713 = vadd.f32 0.0, %v1712
    %1714 = vmatprep.mubr.f32.mxu0 0.0
    %1715 = vmatmul.mubr.f32.gmra.mrb[0].mxu0 %v253
    %v1716 = vpop.f32.mrb[0].mxu0
    %v1717 = vadd.f32 0.0, %v1716
    %v1718 = vpop.f32.mrb[0].mxu0
    %v1719 = vadd.f32 0.0, %v1718
    %1720 = vmatprep.mubr.f32.mxu0 0.0
    %1721 = vmatmul.mubr.f32.gmra.mrb[0].mxu0 %v256
    %v1722 = vpop.f32.mrb[0].mxu0
    %v1723 = vadd.f32 0.0, %v1722
    %v1724 = vpop.f32.mrb[0].mxu0
    %v1725 = vadd.f32 0.0, %v1724
    %1726 = vdwg.mxu0
    %1727 = vmatprep.subr.mxu0 %v124
    %1728 = vmatpush1.msra.mxu0 %v123
    %1729 = vmatprep.subr.mxu0 0.0
    %1730 = vmatpush1.msra.mxu0 0.0
    %1731 = vmatprep.subr.mxu0 0.0
    %1732 = vmatpush1.msra.mxu0 0.0
    %1733 = vmatprep.subr.mxu0 0.0
    %1734 = vmatpush1.msra.mxu0 0.0
    %1735 = vmatprep.subr.mxu0 0.0
    %1736 = vmatpush1.msra.mxu0 0.0
    %1737 = vmatprep.subr.mxu0 0.0
    %1738 = vmatpush1.msra.mxu0 0.0
    %1739 = vmatprep.subr.mxu0 0.0
    %1740 = vmatpush1.msra.mxu0 0.0
    %1741 = vmatprep.subr.mxu0 0.0
    %1742 = vmatpush1.msra.mxu0 0.0
    %1743 = vmatprep.subr.mxu0 0.0
    %1744 = vmatpush1.msra.mxu0 0.0
    %1745 = vmatprep.subr.mxu0 0.0
    %1746 = vmatpush1.msra.mxu0 0.0
    %1747 = vmatprep.subr.mxu0 0.0
    %1748 = vmatpush1.msra.mxu0 0.0
    %1749 = vmatprep.subr.mxu0 0.0
    %1750 = vmatpush1.msra.mxu0 0.0
    %1751 = vmatprep.subr.mxu0 0.0
    %1752 = vmatpush1.msra.mxu0 0.0
    %1753 = vmatprep.subr.mxu0 0.0
    %1754 = vmatpush1.msra.mxu0 0.0
    %1755 = vmatprep.subr.mxu0 0.0
    %1756 = vmatpush1.msra.mxu0 0.0
    %1757 = vmatprep.subr.mxu0 0.0
    %1758 = vmatpush1.msra.mxu0 0.0
    %1759 = vmatprep.subr.mxu0 0.0
    %1760 = vmatpush1.msra.mxu0 0.0
    %1761 = vmatprep.subr.mxu0 0.0
    %1762 = vmatpush1.msra.mxu0 0.0
    %1763 = vmatprep.subr.mxu0 0.0
    %1764 = vmatpush1.msra.mxu0 0.0
    %1765 = vmatprep.subr.mxu0 0.0
    %1766 = vmatpush1.msra.mxu0 0.0
    %1767 = vmatprep.subr.mxu0 0.0
    %1768 = vmatpush1.msra.mxu0 0.0
    %1769 = vmatprep.subr.mxu0 0.0
    %1770 = vmatpush1.msra.mxu0 0.0
    %1771 = vmatprep.subr.mxu0 0.0
    %1772 = vmatpush1.msra.mxu0 0.0
    %1773 = vmatprep.subr.mxu0 0.0
    %1774 = vmatpush1.msra.mxu0 0.0
    %1775 = vmatprep.subr.mxu0 0.0
    %1776 = vmatpush1.msra.mxu0 0.0
    %1777 = vmatprep.subr.mxu0 0.0
    %1778 = vmatpush1.msra.mxu0 0.0
    %1779 = vmatprep.subr.mxu0 0.0
    %1780 = vmatpush1.msra.mxu0 0.0
    %1781 = vmatprep.subr.mxu0 0.0
    %1782 = vmatpush1.msra.mxu0 0.0
    %1783 = vmatprep.subr.mxu0 0.0
    %1784 = vmatpush1.msra.mxu0 0.0
    %1785 = vmatprep.subr.mxu0 0.0
    %1786 = vmatpush1.msra.mxu0 0.0
    %1787 = vmatprep.subr.mxu0 0.0
    %1788 = vmatpush1.msra.mxu0 0.0
    %1789 = vmatprep.subr.mxu0 0.0
    %1790 = vmatpush1.msra.mxu0 0.0
    %1791 = vmatprep.mubr.f32.mxu0 0.0
    %1792 = vmatmul.mubr.f32.gmra.mrb[0].mxu0 %v235
    %v1793 = vpop.f32.mrb[0].mxu0
    %v1794 = vadd.f32 0.0, %v1793
    %v1795 = vpop.f32.mrb[0].mxu0
    %v1796 = vadd.f32 0.0, %v1795
    %1797 = vmatprep.mubr.f32.mxu0 0.0
    %1798 = vmatmul.mubr.f32.gmra.mrb[0].mxu0 %v238
    %v1799 = vpop.f32.mrb[0].mxu0
    %v1800 = vadd.f32 0.0, %v1799
    %v1801 = vpop.f32.mrb[0].mxu0
    %v1802 = vadd.f32 0.0, %v1801
    %1803 = vmatprep.mubr.f32.mxu0 0.0
    %1804 = vmatmul.mubr.f32.gmra.mrb[0].mxu0 %v241
    %v1805 = vpop.f32.mrb[0].mxu0
    %v1806 = vadd.f32 0.0, %v1805
    %v1807 = vpop.f32.mrb[0].mxu0
    %v1808 = vadd.f32 0.0, %v1807
    %1809 = vmatprep.mubr.f32.mxu0 0.0
    %1810 = vmatmul.mubr.f32.gmra.mrb[0].mxu0 %v244
    %v1811 = vpop.f32.mrb[0].mxu0
    %v1812 = vadd.f32 0.0, %v1811
    %v1813 = vpop.f32.mrb[0].mxu0
    %v1814 = vadd.f32 0.0, %v1813
    %1815 = vmatprep.mubr.f32.mxu0 0.0
    %1816 = vmatmul.mubr.f32.gmra.mrb[0].mxu0 %v247
    %v1817 = vpop.f32.mrb[0].mxu0
    %v1818 = vadd.f32 0.0, %v1817
    %v1819 = vpop.f32.mrb[0].mxu0
    %v1820 = vadd.f32 0.0, %v1819
    %1821 = vmatprep.mubr.f32.mxu0 0.0
    %1822 = vmatmul.mubr.f32.gmra.mrb[0].mxu0 %v250
    %v1823 = vpop.f32.mrb[0].mxu0
    %v1824 = vadd.f32 0.0, %v1823
    %v1825 = vpop.f32.mrb[0].mxu0
    %v1826 = vadd.f32 0.0, %v1825
    %1827 = vmatprep.mubr.f32.mxu0 0.0
    %1828 = vmatmul.mubr.f32.gmra.mrb[0].mxu0 %v253
    %v1829 = vpop.f32.mrb[0].mxu0
    %v1830 = vadd.f32 0.0, %v1829
    %v1831 = vpop.f32.mrb[0].mxu0
    %v1832 = vadd.f32 0.0, %v1831
    %1833 = vmatprep.mubr.f32.mxu0 0.0
    %1834 = vmatmul.mubr.f32.gmra.mrb[0].mxu0 %v256
    %v1835 = vpop.f32.mrb[0].mxu0
    %v1836 = vadd.f32 0.0, %v1835
    %v1837 = vpop.f32.mrb[0].mxu0
    %v1838 = vadd.f32 0.0, %v1837
    %1839 = vdwg.mxu0
    %1840 = vmatprep.subr.mxu0 %v126
    %1841 = vmatpush1.msra.mxu0 %v125
    %1842 = vmatprep.subr.mxu0 0.0
    %1843 = vmatpush1.msra.mxu0 0.0
    %1844 = vmatprep.subr.mxu0 0.0
    %1845 = vmatpush1.msra.mxu0 0.0
    %1846 = vmatprep.subr.mxu0 0.0
    %1847 = vmatpush1.msra.mxu0 0.0
    %1848 = vmatprep.subr.mxu0 0.0
    %1849 = vmatpush1.msra.mxu0 0.0
    %1850 = vmatprep.subr.mxu0 0.0
    %1851 = vmatpush1.msra.mxu0 0.0
    %1852 = vmatprep.subr.mxu0 0.0
    %1853 = vmatpush1.msra.mxu0 0.0
    %1854 = vmatprep.subr.mxu0 0.0
    %1855 = vmatpush1.msra.mxu0 0.0
    %1856 = vmatprep.subr.mxu0 0.0
    %1857 = vmatpush1.msra.mxu0 0.0
    %1858 = vmatprep.subr.mxu0 0.0
    %1859 = vmatpush1.msra.mxu0 0.0
    %1860 = vmatprep.subr.mxu0 0.0
    %1861 = vmatpush1.msra.mxu0 0.0
    %1862 = vmatprep.subr.mxu0 0.0
    %1863 = vmatpush1.msra.mxu0 0.0
    %1864 = vmatprep.subr.mxu0 0.0
    %1865 = vmatpush1.msra.mxu0 0.0
    %1866 = vmatprep.subr.mxu0 0.0
    %1867 = vmatpush1.msra.mxu0 0.0
    %1868 = vmatprep.subr.mxu0 0.0
    %1869 = vmatpush1.msra.mxu0 0.0
    %1870 = vmatprep.subr.mxu0 0.0
    %1871 = vmatpush1.msra.mxu0 0.0
    %1872 = vmatprep.subr.mxu0 0.0
    %1873 = vmatpush1.msra.mxu0 0.0
    %1874 = vmatprep.subr.mxu0 0.0
    %1875 = vmatpush1.msra.mxu0 0.0
    %1876 = vmatprep.subr.mxu0 0.0
    %1877 = vmatpush1.msra.mxu0 0.0
    %1878 = vmatprep.subr.mxu0 0.0
    %1879 = vmatpush1.msra.mxu0 0.0
    %1880 = vmatprep.subr.mxu0 0.0
    %1881 = vmatpush1.msra.mxu0 0.0
    %1882 = vmatprep.subr.mxu0 0.0
    %1883 = vmatpush1.msra.mxu0 0.0
    %1884 = vmatprep.subr.mxu0 0.0
    %1885 = vmatpush1.msra.mxu0 0.0
    %1886 = vmatprep.subr.mxu0 0.0
    %1887 = vmatpush1.msra.mxu0 0.0
    %1888 = vmatprep.subr.mxu0 0.0
    %1889 = vmatpush1.msra.mxu0 0.0
    %1890 = vmatprep.subr.mxu0 0.0
    %1891 = vmatpush1.msra.mxu0 0.0
    %1892 = vmatprep.subr.mxu0 0.0
    %1893 = vmatpush1.msra.mxu0 0.0
    %1894 = vmatprep.subr.mxu0 0.0
    %1895 = vmatpush1.msra.mxu0 0.0
    %1896 = vmatprep.subr.mxu0 0.0
    %1897 = vmatpush1.msra.mxu0 0.0
    %1898 = vmatprep.subr.mxu0 0.0
    %1899 = vmatpush1.msra.mxu0 0.0
    %1900 = vmatprep.subr.mxu0 0.0
    %1901 = vmatpush1.msra.mxu0 0.0
    %1902 = vmatprep.subr.mxu0 0.0
    %1903 = vmatpush1.msra.mxu0 0.0
    %1904 = vmatprep.mubr.f32.mxu0 0.0
    %1905 = vmatmul.mubr.f32.gmra.mrb[0].mxu0 %v235
    %v1906 = vpop.f32.mrb[0].mxu0
    %v1907 = vadd.f32 0.0, %v1906
    %v1908 = vpop.f32.mrb[0].mxu0
    %v1909 = vadd.f32 0.0, %v1908
    %1910 = vmatprep.mubr.f32.mxu0 0.0
    %1911 = vmatmul.mubr.f32.gmra.mrb[0].mxu0 %v238
    %v1912 = vpop.f32.mrb[0].mxu0
    %v1913 = vadd.f32 0.0, %v1912
    %v1914 = vpop.f32.mrb[0].mxu0
    %v1915 = vadd.f32 0.0, %v1914
    %1916 = vmatprep.mubr.f32.mxu0 0.0
    %1917 = vmatmul.mubr.f32.gmra.mrb[0].mxu0 %v241
    %v1918 = vpop.f32.mrb[0].mxu0
    %v1919 = vadd.f32 0.0, %v1918
    %v1920 = vpop.f32.mrb[0].mxu0
    %v1921 = vadd.f32 0.0, %v1920
    %1922 = vmatprep.mubr.f32.mxu0 0.0
    %1923 = vmatmul.mubr.f32.gmra.mrb[0].mxu0 %v244
    %v1924 = vpop.f32.mrb[0].mxu0
    %v1925 = vadd.f32 0.0, %v1924
    %v1926 = vpop.f32.mrb[0].mxu0
    %v1927 = vadd.f32 0.0, %v1926
    %1928 = vmatprep.mubr.f32.mxu0 0.0
    %1929 = vmatmul.mubr.f32.gmra.mrb[0].mxu0 %v247
    %v1930 = vpop.f32.mrb[0].mxu0
    %v1931 = vadd.f32 0.0, %v1930
    %v1932 = vpop.f32.mrb[0].mxu0
    %v1933 = vadd.f32 0.0, %v1932
    %1934 = vmatprep.mubr.f32.mxu0 0.0
    %1935 = vmatmul.mubr.f32.gmra.mrb[0].mxu0 %v250
    %v1936 = vpop.f32.mrb[0].mxu0
    %v1937 = vadd.f32 0.0, %v1936
    %v1938 = vpop.f32.mrb[0].mxu0
    %v1939 = vadd.f32 0.0, %v1938
    %1940 = vmatprep.mubr.f32.mxu0 0.0
    %1941 = vmatmul.mubr.f32.gmra.mrb[0].mxu0 %v253
    %v1942 = vpop.f32.mrb[0].mxu0
    %v1943 = vadd.f32 0.0, %v1942
    %v1944 = vpop.f32.mrb[0].mxu0
    %v1945 = vadd.f32 0.0, %v1944
    %1946 = vmatprep.mubr.f32.mxu0 0.0
    %1947 = vmatmul.mubr.f32.gmra.mrb[0].mxu0 %v256
    %v1948 = vpop.f32.mrb[0].mxu0
    %v1949 = vadd.f32 0.0, %v1948
    %v1950 = vpop.f32.mrb[0].mxu0
    %v1951 = vadd.f32 0.0, %v1950
    %1952 = vdwg.mxu0
    %1953 = vmatprep.subr.mxu0 %v128
    %1954 = vmatpush1.msra.mxu0 %v127
    %1955 = vmatprep.subr.mxu0 0.0
    %1956 = vmatpush1.msra.mxu0 0.0
    %1957 = vmatprep.subr.mxu0 0.0
    %1958 = vmatpush1.msra.mxu0 0.0
    %1959 = vmatprep.subr.mxu0 0.0
    %1960 = vmatpush1.msra.mxu0 0.0
    %1961 = vmatprep.subr.mxu0 0.0
    %1962 = vmatpush1.msra.mxu0 0.0
    %1963 = vmatprep.subr.mxu0 0.0
    %1964 = vmatpush1.msra.mxu0 0.0
    %1965 = vmatprep.subr.mxu0 0.0
    %1966 = vmatpush1.msra.mxu0 0.0
    %1967 = vmatprep.subr.mxu0 0.0
    %1968 = vmatpush1.msra.mxu0 0.0
    %1969 = vmatprep.subr.mxu0 0.0
    %1970 = vmatpush1.msra.mxu0 0.0
    %1971 = vmatprep.subr.mxu0 0.0
    %1972 = vmatpush1.msra.mxu0 0.0
    %1973 = vmatprep.subr.mxu0 0.0
    %1974 = vmatpush1.msra.mxu0 0.0
    %1975 = vmatprep.subr.mxu0 0.0
    %1976 = vmatpush1.msra.mxu0 0.0
    %1977 = vmatprep.subr.mxu0 0.0
    %1978 = vmatpush1.msra.mxu0 0.0
    %1979 = vmatprep.subr.mxu0 0.0
    %1980 = vmatpush1.msra.mxu0 0.0
    %1981 = vmatprep.subr.mxu0 0.0
    %1982 = vmatpush1.msra.mxu0 0.0
    %1983 = vmatprep.subr.mxu0 0.0
    %1984 = vmatpush1.msra.mxu0 0.0
    %1985 = vmatprep.subr.mxu0 0.0
    %1986 = vmatpush1.msra.mxu0 0.0
    %1987 = vmatprep.subr.mxu0 0.0
    %1988 = vmatpush1.msra.mxu0 0.0
    %1989 = vmatprep.subr.mxu0 0.0
    %1990 = vmatpush1.msra.mxu0 0.0
    %1991 = vmatprep.subr.mxu0 0.0
    %1992 = vmatpush1.msra.mxu0 0.0
    %1993 = vmatprep.subr.mxu0 0.0
    %1994 = vmatpush1.msra.mxu0 0.0
    %1995 = vmatprep.subr.mxu0 0.0
    %1996 = vmatpush1.msra.mxu0 0.0
    %1997 = vmatprep.subr.mxu0 0.0
    %1998 = vmatpush1.msra.mxu0 0.0
    %1999 = vmatprep.subr.mxu0 0.0
    %2000 = vmatpush1.msra.mxu0 0.0
    %2001 = vmatprep.subr.mxu0 0.0
    %2002 = vmatpush1.msra.mxu0 0.0
    %2003 = vmatprep.subr.mxu0 0.0
    %2004 = vmatpush1.msra.mxu0 0.0
    %2005 = vmatprep.subr.mxu0 0.0
    %2006 = vmatpush1.msra.mxu0 0.0
    %2007 = vmatprep.subr.mxu0 0.0
    %2008 = vmatpush1.msra.mxu0 0.0
    %2009 = vmatprep.subr.mxu0 0.0
    %2010 = vmatpush1.msra.mxu0 0.0
    %2011 = vmatprep.subr.mxu0 0.0
    %2012 = vmatpush1.msra.mxu0 0.0
    %2013 = vmatprep.subr.mxu0 0.0
    %2014 = vmatpush1.msra.mxu0 0.0
    %2015 = vmatprep.subr.mxu0 0.0
    %2016 = vmatpush1.msra.mxu0 0.0
    %2017 = vmatprep.mubr.f32.mxu0 0.0
    %2018 = vmatmul.mubr.f32.gmra.mrb[0].mxu0 %v235
    %v2019 = vpop.f32.mrb[0].mxu0
    %v2020 = vadd.f32 0.0, %v2019
    %v2021 = vpop.f32.mrb[0].mxu0
    %v2022 = vadd.f32 0.0, %v2021
    %2023 = vmatprep.mubr.f32.mxu0 0.0
    %2024 = vmatmul.mubr.f32.gmra.mrb[0].mxu0 %v238
    %v2025 = vpop.f32.mrb[0].mxu0
    %v2026 = vadd.f32 0.0, %v2025
    %v2027 = vpop.f32.mrb[0].mxu0
    %v2028 = vadd.f32 0.0, %v2027
    %2029 = vmatprep.mubr.f32.mxu0 0.0
    %2030 = vmatmul.mubr.f32.gmra.mrb[0].mxu0 %v241
    %v2031 = vpop.f32.mrb[0].mxu0
    %v2032 = vadd.f32 0.0, %v2031
    %v2033 = vpop.f32.mrb[0].mxu0
    %v2034 = vadd.f32 0.0, %v2033
    %2035 = vmatprep.mubr.f32.mxu0 0.0
    %2036 = vmatmul.mubr.f32.gmra.mrb[0].mxu0 %v244
    %v2037 = vpop.f32.mrb[0].mxu0
    %v2038 = vadd.f32 0.0, %v2037
    %v2039 = vpop.f32.mrb[0].mxu0
    %v2040 = vadd.f32 0.0, %v2039
    %2041 = vmatprep.mubr.f32.mxu0 0.0
    %2042 = vmatmul.mubr.f32.gmra.mrb[0].mxu0 %v247
    %v2043 = vpop.f32.mrb[0].mxu0
    %v2044 = vadd.f32 0.0, %v2043
    %v2045 = vpop.f32.mrb[0].mxu0
    %v2046 = vadd.f32 0.0, %v2045
    %2047 = vmatprep.mubr.f32.mxu0 0.0
    %2048 = vmatmul.mubr.f32.gmra.mrb[0].mxu0 %v250
    %v2049 = vpop.f32.mrb[0].mxu0
    %v2050 = vadd.f32 0.0, %v2049
    %v2051 = vpop.f32.mrb[0].mxu0
    %v2052 = vadd.f32 0.0, %v2051
    %2053 = vmatprep.mubr.f32.mxu0 0.0
    %2054 = vmatmul.mubr.f32.gmra.mrb[0].mxu0 %v253
    %v2055 = vpop.f32.mrb[0].mxu0
    %v2056 = vadd.f32 0.0, %v2055
    %v2057 = vpop.f32.mrb[0].mxu0
    %v2058 = vadd.f32 0.0, %v2057
    %2059 = vmatprep.mubr.f32.mxu0 0.0
    %2060 = vmatmul.mubr.f32.gmra.mrb[0].mxu0 %v256
    %v2061 = vpop.f32.mrb[0].mxu0
    %v2062 = vadd.f32 0.0, %v2061
    %v2063 = vpop.f32.mrb[0].mxu0
    %v2064 = vadd.f32 0.0, %v2063
    %2065 = vdwg.mxu0
    %2066 = vmatprep.subr.mxu0 %v130
    %2067 = vmatpush1.msra.mxu0 %v129
    %2068 = vmatprep.subr.mxu0 0.0
    %2069 = vmatpush1.msra.mxu0 0.0
    %2070 = vmatprep.subr.mxu0 0.0
    %2071 = vmatpush1.msra.mxu0 0.0
    %2072 = vmatprep.subr.mxu0 0.0
    %2073 = vmatpush1.msra.mxu0 0.0
    %2074 = vmatprep.subr.mxu0 0.0
    %2075 = vmatpush1.msra.mxu0 0.0
    %2076 = vmatprep.subr.mxu0 0.0
    %2077 = vmatpush1.msra.mxu0 0.0
    %2078 = vmatprep.subr.mxu0 0.0
    %2079 = vmatpush1.msra.mxu0 0.0
    %2080 = vmatprep.subr.mxu0 0.0
    %2081 = vmatpush1.msra.mxu0 0.0
    %2082 = vmatprep.subr.mxu0 0.0
    %2083 = vmatpush1.msra.mxu0 0.0
    %2084 = vmatprep.subr.mxu0 0.0
    %2085 = vmatpush1.msra.mxu0 0.0
    %2086 = vmatprep.subr.mxu0 0.0
    %2087 = vmatpush1.msra.mxu0 0.0
    %2088 = vmatprep.subr.mxu0 0.0
    %2089 = vmatpush1.msra.mxu0 0.0
    %2090 = vmatprep.subr.mxu0 0.0
    %2091 = vmatpush1.msra.mxu0 0.0
    %2092 = vmatprep.subr.mxu0 0.0
    %2093 = vmatpush1.msra.mxu0 0.0
    %2094 = vmatprep.subr.mxu0 0.0
    %2095 = vmatpush1.msra.mxu0 0.0
    %2096 = vmatprep.subr.mxu0 0.0
    %2097 = vmatpush1.msra.mxu0 0.0
    %2098 = vmatprep.subr.mxu0 0.0
    %2099 = vmatpush1.msra.mxu0 0.0
    %2100 = vmatprep.subr.mxu0 0.0
    %2101 = vmatpush1.msra.mxu0 0.0
    %2102 = vmatprep.subr.mxu0 0.0
    %2103 = vmatpush1.msra.mxu0 0.0
    %2104 = vmatprep.subr.mxu0 0.0
    %2105 = vmatpush1.msra.mxu0 0.0
    %2106 = vmatprep.subr.mxu0 0.0
    %2107 = vmatpush1.msra.mxu0 0.0
    %2108 = vmatprep.subr.mxu0 0.0
    %2109 = vmatpush1.msra.mxu0 0.0
    %2110 = vmatprep.subr.mxu0 0.0
    %2111 = vmatpush1.msra.mxu0 0.0
    %2112 = vmatprep.subr.mxu0 0.0
    %2113 = vmatpush1.msra.mxu0 0.0
    %2114 = vmatprep.subr.mxu0 0.0
    %2115 = vmatpush1.msra.mxu0 0.0
    %2116 = vmatprep.subr.mxu0 0.0
    %2117 = vmatpush1.msra.mxu0 0.0
    %2118 = vmatprep.subr.mxu0 0.0
    %2119 = vmatpush1.msra.mxu0 0.0
    %2120 = vmatprep.subr.mxu0 0.0
    %2121 = vmatpush1.msra.mxu0 0.0
    %2122 = vmatprep.subr.mxu0 0.0
    %2123 = vmatpush1.msra.mxu0 0.0
    %2124 = vmatprep.subr.mxu0 0.0
    %2125 = vmatpush1.msra.mxu0 0.0
    %2126 = vmatprep.subr.mxu0 0.0
    %2127 = vmatpush1.msra.mxu0 0.0
    %2128 = vmatprep.subr.mxu0 0.0
    %2129 = vmatpush1.msra.mxu0 0.0
    %2130 = vmatprep.mubr.f32.mxu0 0.0
    %2131 = vmatmul.mubr.f32.gmra.mrb[0].mxu0 %v235
    %v2132 = vpop.f32.mrb[0].mxu0
    %v2133 = vadd.f32 0.0, %v2132
    %v2134 = vpop.f32.mrb[0].mxu0
    %v2135 = vadd.f32 0.0, %v2134
    %2136 = vmatprep.mubr.f32.mxu0 0.0
    %2137 = vmatmul.mubr.f32.gmra.mrb[0].mxu0 %v238
    %v2138 = vpop.f32.mrb[0].mxu0
    %v2139 = vadd.f32 0.0, %v2138
    %v2140 = vpop.f32.mrb[0].mxu0
    %v2141 = vadd.f32 0.0, %v2140
    %2142 = vmatprep.mubr.f32.mxu0 0.0
    %2143 = vmatmul.mubr.f32.gmra.mrb[0].mxu0 %v241
    %v2144 = vpop.f32.mrb[0].mxu0
    %v2145 = vadd.f32 0.0, %v2144
    %v2146 = vpop.f32.mrb[0].mxu0
    %v2147 = vadd.f32 0.0, %v2146
    %2148 = vmatprep.mubr.f32.mxu0 0.0
    %2149 = vmatmul.mubr.f32.gmra.mrb[0].mxu0 %v244
    %v2150 = vpop.f32.mrb[0].mxu0
    %v2151 = vadd.f32 0.0, %v2150
    %v2152 = vpop.f32.mrb[0].mxu0
    %v2153 = vadd.f32 0.0, %v2152
    %2154 = vmatprep.mubr.f32.mxu0 0.0
    %2155 = vmatmul.mubr.f32.gmra.mrb[0].mxu0 %v247
    %v2156 = vpop.f32.mrb[0].mxu0
    %v2157 = vadd.f32 0.0, %v2156
    %v2158 = vpop.f32.mrb[0].mxu0
    %v2159 = vadd.f32 0.0, %v2158
    %2160 = vmatprep.mubr.f32.mxu0 0.0
    %2161 = vmatmul.mubr.f32.gmra.mrb[0].mxu0 %v250
    %v2162 = vpop.f32.mrb[0].mxu0
    %v2163 = vadd.f32 0.0, %v2162
    %v2164 = vpop.f32.mrb[0].mxu0
    %v2165 = vadd.f32 0.0, %v2164
    %2166 = vmatprep.mubr.f32.mxu0 0.0
    %2167 = vmatmul.mubr.f32.gmra.mrb[0].mxu0 %v253
    %v2168 = vpop.f32.mrb[0].mxu0
    %v2169 = vadd.f32 0.0, %v2168
    %v2170 = vpop.f32.mrb[0].mxu0
    %v2171 = vadd.f32 0.0, %v2170
    %2172 = vmatprep.mubr.f32.mxu0 0.0
    %2173 = vmatmul.mubr.f32.gmra.mrb[0].mxu0 %v256
    %v2174 = vpop.f32.mrb[0].mxu0
    %v2175 = vadd.f32 0.0, %v2174
    %v2176 = vpop.f32.mrb[0].mxu0
    %v2177 = vadd.f32 0.0, %v2176
    %2178 = vdwg.mxu0
    %2179 = vmatprep.subr.mxu0 %v132
    %2180 = vmatpush1.msra.mxu0 %v131
    %2181 = vmatprep.subr.mxu0 0.0
    %2182 = vmatpush1.msra.mxu0 0.0
    %2183 = vmatprep.subr.mxu0 0.0
    %2184 = vmatpush1.msra.mxu0 0.0
    %2185 = vmatprep.subr.mxu0 0.0
    %2186 = vmatpush1.msra.mxu0 0.0
    %2187 = vmatprep.subr.mxu0 0.0
    %2188 = vmatpush1.msra.mxu0 0.0
    %2189 = vmatprep.subr.mxu0 0.0
    %2190 = vmatpush1.msra.mxu0 0.0
    %2191 = vmatprep.subr.mxu0 0.0
    %2192 = vmatpush1.msra.mxu0 0.0
    %2193 = vmatprep.subr.mxu0 0.0
    %2194 = vmatpush1.msra.mxu0 0.0
    %2195 = vmatprep.subr.mxu0 0.0
    %2196 = vmatpush1.msra.mxu0 0.0
    %2197 = vmatprep.subr.mxu0 0.0
    %2198 = vmatpush1.msra.mxu0 0.0
    %2199 = vmatprep.subr.mxu0 0.0
    %2200 = vmatpush1.msra.mxu0 0.0
    %2201 = vmatprep.subr.mxu0 0.0
    %2202 = vmatpush1.msra.mxu0 0.0
    %2203 = vmatprep.subr.mxu0 0.0
    %2204 = vmatpush1.msra.mxu0 0.0
    %2205 = vmatprep.subr.mxu0 0.0
    %2206 = vmatpush1.msra.mxu0 0.0
    %2207 = vmatprep.subr.mxu0 0.0
    %2208 = vmatpush1.msra.mxu0 0.0
    %2209 = vmatprep.subr.mxu0 0.0
    %2210 = vmatpush1.msra.mxu0 0.0
    %2211 = vmatprep.subr.mxu0 0.0
    %2212 = vmatpush1.msra.mxu0 0.0
    %2213 = vmatprep.subr.mxu0 0.0
    %2214 = vmatpush1.msra.mxu0 0.0
    %2215 = vmatprep.subr.mxu0 0.0
    %2216 = vmatpush1.msra.mxu0 0.0
    %2217 = vmatprep.subr.mxu0 0.0
    %2218 = vmatpush1.msra.mxu0 0.0
    %2219 = vmatprep.subr.mxu0 0.0
    %2220 = vmatpush1.msra.mxu0 0.0
    %2221 = vmatprep.subr.mxu0 0.0
    %2222 = vmatpush1.msra.mxu0 0.0
    %2223 = vmatprep.subr.mxu0 0.0
    %2224 = vmatpush1.msra.mxu0 0.0
    %2225 = vmatprep.subr.mxu0 0.0
    %2226 = vmatpush1.msra.mxu0 0.0
    %2227 = vmatprep.subr.mxu0 0.0
    %2228 = vmatpush1.msra.mxu0 0.0
    %2229 = vmatprep.subr.mxu0 0.0
    %2230 = vmatpush1.msra.mxu0 0.0
    %2231 = vmatprep.subr.mxu0 0.0
    %2232 = vmatpush1.msra.mxu0 0.0
    %2233 = vmatprep.subr.mxu0 0.0
    %2234 = vmatpush1.msra.mxu0 0.0
    %2235 = vmatprep.subr.mxu0 0.0
    %2236 = vmatpush1.msra.mxu0 0.0
    %2237 = vmatprep.subr.mxu0 0.0
    %2238 = vmatpush1.msra.mxu0 0.0
    %2239 = vmatprep.subr.mxu0 0.0
    %2240 = vmatpush1.msra.mxu0 0.0
    %2241 = vmatprep.subr.mxu0 0.0
    %2242 = vmatpush1.msra.mxu0 0.0
    %2243 = vmatprep.mubr.f32.mxu0 0.0
    %2244 = vmatmul.mubr.f32.gmra.mrb[0].mxu0 %v235
    %v2245 = vpop.f32.mrb[0].mxu0
    %v2246 = vadd.f32 0.0, %v2245
    %v2247 = vpop.f32.mrb[0].mxu0
    %v2248 = vadd.f32 0.0, %v2247
    %2249 = vmatprep.mubr.f32.mxu0 0.0
    %2250 = vmatmul.mubr.f32.gmra.mrb[0].mxu0 %v238
    %v2251 = vpop.f32.mrb[0].mxu0
    %v2252 = vadd.f32 0.0, %v2251
    %v2253 = vpop.f32.mrb[0].mxu0
    %v2254 = vadd.f32 0.0, %v2253
    %2255 = vmatprep.mubr.f32.mxu0 0.0
    %2256 = vmatmul.mubr.f32.gmra.mrb[0].mxu0 %v241
    %v2257 = vpop.f32.mrb[0].mxu0
    %v2258 = vadd.f32 0.0, %v2257
    %v2259 = vpop.f32.mrb[0].mxu0
    %v2260 = vadd.f32 0.0, %v2259
    %2261 = vmatprep.mubr.f32.mxu0 0.0
    %2262 = vmatmul.mubr.f32.gmra.mrb[0].mxu0 %v244
    %v2263 = vpop.f32.mrb[0].mxu0
    %v2264 = vadd.f32 0.0, %v2263
    %v2265 = vpop.f32.mrb[0].mxu0
    %v2266 = vadd.f32 0.0, %v2265
    %2267 = vmatprep.mubr.f32.mxu0 0.0
    %2268 = vmatmul.mubr.f32.gmra.mrb[0].mxu0 %v247
    %v2269 = vpop.f32.mrb[0].mxu0
    %v2270 = vadd.f32 0.0, %v2269
    %v2271 = vpop.f32.mrb[0].mxu0
    %v2272 = vadd.f32 0.0, %v2271
    %2273 = vmatprep.mubr.f32.mxu0 0.0
    %2274 = vmatmul.mubr.f32.gmra.mrb[0].mxu0 %v250
    %v2275 = vpop.f32.mrb[0].mxu0
    %v2276 = vadd.f32 0.0, %v2275
    %v2277 = vpop.f32.mrb[0].mxu0
    %v2278 = vadd.f32 0.0, %v2277
    %2279 = vmatprep.mubr.f32.mxu0 0.0
    %2280 = vmatmul.mubr.f32.gmra.mrb[0].mxu0 %v253
    %v2281 = vpop.f32.mrb[0].mxu0
    %v2282 = vadd.f32 0.0, %v2281
    %v2283 = vpop.f32.mrb[0].mxu0
    %v2284 = vadd.f32 0.0, %v2283
    %2285 = vmatprep.mubr.f32.mxu0 0.0
    %2286 = vmatmul.mubr.f32.gmra.mrb[0].mxu0 %v256
    %v2287 = vpop.f32.mrb[0].mxu0
    %v2288 = vadd.f32 0.0, %v2287
    %v2289 = vpop.f32.mrb[0].mxu0
    %v2290 = vadd.f32 0.0, %v2289
    %2291 = vdwg.mxu0
    %2292 = vmatprep.subr.mxu0 %v134
    %2293 = vmatpush1.msra.mxu0 %v133
    %2294 = vmatprep.subr.mxu0 0.0
    %2295 = vmatpush1.msra.mxu0 0.0
    %2296 = vmatprep.subr.mxu0 0.0
    %2297 = vmatpush1.msra.mxu0 0.0
    %2298 = vmatprep.subr.mxu0 0.0
    %2299 = vmatpush1.msra.mxu0 0.0
    %2300 = vmatprep.subr.mxu0 0.0
    %2301 = vmatpush1.msra.mxu0 0.0
    %2302 = vmatprep.subr.mxu0 0.0
    %2303 = vmatpush1.msra.mxu0 0.0
    %2304 = vmatprep.subr.mxu0 0.0
    %2305 = vmatpush1.msra.mxu0 0.0
    %2306 = vmatprep.subr.mxu0 0.0
    %2307 = vmatpush1.msra.mxu0 0.0
    %2308 = vmatprep.subr.mxu0 0.0
    %2309 = vmatpush1.msra.mxu0 0.0
    %2310 = vmatprep.subr.mxu0 0.0
    %2311 = vmatpush1.msra.mxu0 0.0
    %2312 = vmatprep.subr.mxu0 0.0
    %2313 = vmatpush1.msra.mxu0 0.0
    %2314 = vmatprep.subr.mxu0 0.0
    %2315 = vmatpush1.msra.mxu0 0.0
    %2316 = vmatprep.subr.mxu0 0.0
    %2317 = vmatpush1.msra.mxu0 0.0
    %2318 = vmatprep.subr.mxu0 0.0
    %2319 = vmatpush1.msra.mxu0 0.0
    %2320 = vmatprep.subr.mxu0 0.0
    %2321 = vmatpush1.msra.mxu0 0.0
    %2322 = vmatprep.subr.mxu0 0.0
    %2323 = vmatpush1.msra.mxu0 0.0
    %2324 = vmatprep.subr.mxu0 0.0
    %2325 = vmatpush1.msra.mxu0 0.0
    %2326 = vmatprep.subr.mxu0 0.0
    %2327 = vmatpush1.msra.mxu0 0.0
    %2328 = vmatprep.subr.mxu0 0.0
    %2329 = vmatpush1.msra.mxu0 0.0
    %2330 = vmatprep.subr.mxu0 0.0
    %2331 = vmatpush1.msra.mxu0 0.0
    %2332 = vmatprep.subr.mxu0 0.0
    %2333 = vmatpush1.msra.mxu0 0.0
    %2334 = vmatprep.subr.mxu0 0.0
    %2335 = vmatpush1.msra.mxu0 0.0
    %2336 = vmatprep.subr.mxu0 0.0
    %2337 = vmatpush1.msra.mxu0 0.0
    %2338 = vmatprep.subr.mxu0 0.0
    %2339 = vmatpush1.msra.mxu0 0.0
    %2340 = vmatprep.subr.mxu0 0.0
    %2341 = vmatpush1.msra.mxu0 0.0
    %2342 = vmatprep.subr.mxu0 0.0
    %2343 = vmatpush1.msra.mxu0 0.0
    %2344 = vmatprep.subr.mxu0 0.0
    %2345 = vmatpush1.msra.mxu0 0.0
    %2346 = vmatprep.subr.mxu0 0.0
    %2347 = vmatpush1.msra.mxu0 0.0
    %2348 = vmatprep.subr.mxu0 0.0
    %2349 = vmatpush1.msra.mxu0 0.0
    %2350 = vmatprep.subr.mxu0 0.0
    %2351 = vmatpush1.msra.mxu0 0.0
    %2352 = vmatprep.subr.mxu0 0.0
    %2353 = vmatpush1.msra.mxu0 0.0
    %2354 = vmatprep.subr.mxu0 0.0
    %2355 = vmatpush1.msra.mxu0 0.0
    %2356 = vmatprep.mubr.f32.mxu0 0.0
    %2357 = vmatmul.mubr.f32.gmra.mrb[0].mxu0 %v235
    %v2358 = vpop.f32.mrb[0].mxu0
    %v2359 = vadd.f32 0.0, %v2358
    %v2360 = vpop.f32.mrb[0].mxu0
    %v2361 = vadd.f32 0.0, %v2360
    %2362 = vmatprep.mubr.f32.mxu0 0.0
    %2363 = vmatmul.mubr.f32.gmra.mrb[0].mxu0 %v238
    %v2364 = vpop.f32.mrb[0].mxu0
    %v2365 = vadd.f32 0.0, %v2364
    %v2366 = vpop.f32.mrb[0].mxu0
    %v2367 = vadd.f32 0.0, %v2366
    %2368 = vmatprep.mubr.f32.mxu0 0.0
    %2369 = vmatmul.mubr.f32.gmra.mrb[0].mxu0 %v241
    %v2370 = vpop.f32.mrb[0].mxu0
    %v2371 = vadd.f32 0.0, %v2370
    %v2372 = vpop.f32.mrb[0].mxu0
    %v2373 = vadd.f32 0.0, %v2372
    %2374 = vmatprep.mubr.f32.mxu0 0.0
    %2375 = vmatmul.mubr.f32.gmra.mrb[0].mxu0 %v244
    %v2376 = vpop.f32.mrb[0].mxu0
    %v2377 = vadd.f32 0.0, %v2376
    %v2378 = vpop.f32.mrb[0].mxu0
    %v2379 = vadd.f32 0.0, %v2378
    %2380 = vmatprep.mubr.f32.mxu0 0.0
    %2381 = vmatmul.mubr.f32.gmra.mrb[0].mxu0 %v247
    %v2382 = vpop.f32.mrb[0].mxu0
    %v2383 = vadd.f32 0.0, %v2382
    %v2384 = vpop.f32.mrb[0].mxu0
    %v2385 = vadd.f32 0.0, %v2384
    %2386 = vmatprep.mubr.f32.mxu0 0.0
    %2387 = vmatmul.mubr.f32.gmra.mrb[0].mxu0 %v250
    %v2388 = vpop.f32.mrb[0].mxu0
    %v2389 = vadd.f32 0.0, %v2388
    %v2390 = vpop.f32.mrb[0].mxu0
    %v2391 = vadd.f32 0.0, %v2390
    %2392 = vmatprep.mubr.f32.mxu0 0.0
    %2393 = vmatmul.mubr.f32.gmra.mrb[0].mxu0 %v253
    %v2394 = vpop.f32.mrb[0].mxu0
    %v2395 = vadd.f32 0.0, %v2394
    %v2396 = vpop.f32.mrb[0].mxu0
    %v2397 = vadd.f32 0.0, %v2396
    %2398 = vmatprep.mubr.f32.mxu0 0.0
    %2399 = vmatmul.mubr.f32.gmra.mrb[0].mxu0 %v256
    %v2400 = vpop.f32.mrb[0].mxu0
    %v2401 = vadd.f32 0.0, %v2400
    %v2402 = vpop.f32.mrb[0].mxu0
    %v2403 = vadd.f32 0.0, %v2402
    %2404 = vdwg.mxu0
    %2405 = vmatprep.subr.mxu0 %v136
    %2406 = vmatpush1.msra.mxu0 %v135
    %2407 = vmatprep.subr.mxu0 0.0
    %2408 = vmatpush1.msra.mxu0 0.0
    %2409 = vmatprep.subr.mxu0 0.0
    %2410 = vmatpush1.msra.mxu0 0.0
    %2411 = vmatprep.subr.mxu0 0.0
    %2412 = vmatpush1.msra.mxu0 0.0
    %2413 = vmatprep.subr.mxu0 0.0
    %2414 = vmatpush1.msra.mxu0 0.0
    %2415 = vmatprep.subr.mxu0 0.0
    %2416 = vmatpush1.msra.mxu0 0.0
    %2417 = vmatprep.subr.mxu0 0.0
    %2418 = vmatpush1.msra.mxu0 0.0
    %2419 = vmatprep.subr.mxu0 0.0
    %2420 = vmatpush1.msra.mxu0 0.0
    %2421 = vmatprep.subr.mxu0 0.0
    %2422 = vmatpush1.msra.mxu0 0.0
    %2423 = vmatprep.subr.mxu0 0.0
    %2424 = vmatpush1.msra.mxu0 0.0
    %2425 = vmatprep.subr.mxu0 0.0
    %2426 = vmatpush1.msra.mxu0 0.0
    %2427 = vmatprep.subr.mxu0 0.0
    %2428 = vmatpush1.msra.mxu0 0.0
    %2429 = vmatprep.subr.mxu0 0.0
    %2430 = vmatpush1.msra.mxu0 0.0
    %2431 = vmatprep.subr.mxu0 0.0
    %2432 = vmatpush1.msra.mxu0 0.0
    %2433 = vmatprep.subr.mxu0 0.0
    %2434 = vmatpush1.msra.mxu0 0.0
    %2435 = vmatprep.subr.mxu0 0.0
    %2436 = vmatpush1.msra.mxu0 0.0
    %2437 = vmatprep.subr.mxu0 0.0
    %2438 = vmatpush1.msra.mxu0 0.0
    %2439 = vmatprep.subr.mxu0 0.0
    %2440 = vmatpush1.msra.mxu0 0.0
    %2441 = vmatprep.subr.mxu0 0.0
    %2442 = vmatpush1.msra.mxu0 0.0
    %2443 = vmatprep.subr.mxu0 0.0
    %2444 = vmatpush1.msra.mxu0 0.0
    %2445 = vmatprep.subr.mxu0 0.0
    %2446 = vmatpush1.msra.mxu0 0.0
    %2447 = vmatprep.subr.mxu0 0.0
    %2448 = vmatpush1.msra.mxu0 0.0
    %2449 = vmatprep.subr.mxu0 0.0
    %2450 = vmatpush1.msra.mxu0 0.0
    %2451 = vmatprep.subr.mxu0 0.0
    %2452 = vmatpush1.msra.mxu0 0.0
    %2453 = vmatprep.subr.mxu0 0.0
    %2454 = vmatpush1.msra.mxu0 0.0
    %2455 = vmatprep.subr.mxu0 0.0
    %2456 = vmatpush1.msra.mxu0 0.0
    %2457 = vmatprep.subr.mxu0 0.0
    %2458 = vmatpush1.msra.mxu0 0.0
    %2459 = vmatprep.subr.mxu0 0.0
    %2460 = vmatpush1.msra.mxu0 0.0
    %2461 = vmatprep.subr.mxu0 0.0
    %2462 = vmatpush1.msra.mxu0 0.0
    %2463 = vmatprep.subr.mxu0 0.0
    %2464 = vmatpush1.msra.mxu0 0.0
    %2465 = vmatprep.subr.mxu0 0.0
    %2466 = vmatpush1.msra.mxu0 0.0
    %2467 = vmatprep.subr.mxu0 0.0
    %2468 = vmatpush1.msra.mxu0 0.0
    %2469 = vmatprep.mubr.f32.mxu0 0.0
    %2470 = vmatmul.mubr.f32.gmra.mrb[0].mxu0 %v235
    %v2471 = vpop.f32.mrb[0].mxu0
    %v2472 = vadd.f32 0.0, %v2471
    %v2473 = vpop.f32.mrb[0].mxu0
    %v2474 = vadd.f32 0.0, %v2473
    %2475 = vmatprep.mubr.f32.mxu0 0.0
    %2476 = vmatmul.mubr.f32.gmra.mrb[0].mxu0 %v238
    %v2477 = vpop.f32.mrb[0].mxu0
    %v2478 = vadd.f32 0.0, %v2477
    %v2479 = vpop.f32.mrb[0].mxu0
    %v2480 = vadd.f32 0.0, %v2479
    %2481 = vmatprep.mubr.f32.mxu0 0.0
    %2482 = vmatmul.mubr.f32.gmra.mrb[0].mxu0 %v241
    %v2483 = vpop.f32.mrb[0].mxu0
    %v2484 = vadd.f32 0.0, %v2483
    %v2485 = vpop.f32.mrb[0].mxu0
    %v2486 = vadd.f32 0.0, %v2485
    %2487 = vmatprep.mubr.f32.mxu0 0.0
    %2488 = vmatmul.mubr.f32.gmra.mrb[0].mxu0 %v244
    %v2489 = vpop.f32.mrb[0].mxu0
    %v2490 = vadd.f32 0.0, %v2489
    %v2491 = vpop.f32.mrb[0].mxu0
    %v2492 = vadd.f32 0.0, %v2491
    %2493 = vmatprep.mubr.f32.mxu0 0.0
    %2494 = vmatmul.mubr.f32.gmra.mrb[0].mxu0 %v247
    %v2495 = vpop.f32.mrb[0].mxu0
    %v2496 = vadd.f32 0.0, %v2495
    %v2497 = vpop.f32.mrb[0].mxu0
    %v2498 = vadd.f32 0.0, %v2497
    %2499 = vmatprep.mubr.f32.mxu0 0.0
    %2500 = vmatmul.mubr.f32.gmra.mrb[0].mxu0 %v250
    %v2501 = vpop.f32.mrb[0].mxu0
    %v2502 = vadd.f32 0.0, %v2501
    %v2503 = vpop.f32.mrb[0].mxu0
    %v2504 = vadd.f32 0.0, %v2503
    %2505 = vmatprep.mubr.f32.mxu0 0.0
    %2506 = vmatmul.mubr.f32.gmra.mrb[0].mxu0 %v253
    %v2507 = vpop.f32.mrb[0].mxu0
    %v2508 = vadd.f32 0.0, %v2507
    %v2509 = vpop.f32.mrb[0].mxu0
    %v2510 = vadd.f32 0.0, %v2509
    %2511 = vmatprep.mubr.f32.mxu0 0.0
    %2512 = vmatmul.mubr.f32.gmra.mrb[0].mxu0 %v256
    %v2513 = vpop.f32.mrb[0].mxu0
    %v2514 = vadd.f32 0.0, %v2513
    %v2515 = vpop.f32.mrb[0].mxu0
    %v2516 = vadd.f32 0.0, %v2515
    %2517 = vdwg.mxu0
    %2518 = vmatprep.subr.mxu0 %v138
    %2519 = vmatpush1.msra.mxu0 %v137
    %2520 = vmatprep.subr.mxu0 0.0
    %2521 = vmatpush1.msra.mxu0 0.0
    %2522 = vmatprep.subr.mxu0 0.0
    %2523 = vmatpush1.msra.mxu0 0.0
    %2524 = vmatprep.subr.mxu0 0.0
    %2525 = vmatpush1.msra.mxu0 0.0
    %2526 = vmatprep.subr.mxu0 0.0
    %2527 = vmatpush1.msra.mxu0 0.0
    %2528 = vmatprep.subr.mxu0 0.0
    %2529 = vmatpush1.msra.mxu0 0.0
    %2530 = vmatprep.subr.mxu0 0.0
    %2531 = vmatpush1.msra.mxu0 0.0
    %2532 = vmatprep.subr.mxu0 0.0
    %2533 = vmatpush1.msra.mxu0 0.0
    %2534 = vmatprep.subr.mxu0 0.0
    %2535 = vmatpush1.msra.mxu0 0.0
    %2536 = vmatprep.subr.mxu0 0.0
    %2537 = vmatpush1.msra.mxu0 0.0
    %2538 = vmatprep.subr.mxu0 0.0
    %2539 = vmatpush1.msra.mxu0 0.0
    %2540 = vmatprep.subr.mxu0 0.0
    %2541 = vmatpush1.msra.mxu0 0.0
    %2542 = vmatprep.subr.mxu0 0.0
    %2543 = vmatpush1.msra.mxu0 0.0
    %2544 = vmatprep.subr.mxu0 0.0
    %2545 = vmatpush1.msra.mxu0 0.0
    %2546 = vmatprep.subr.mxu0 0.0
    %2547 = vmatpush1.msra.mxu0 0.0
    %2548 = vmatprep.subr.mxu0 0.0
    %2549 = vmatpush1.msra.mxu0 0.0
    %2550 = vmatprep.subr.mxu0 0.0
    %2551 = vmatpush1.msra.mxu0 0.0
    %2552 = vmatprep.subr.mxu0 0.0
    %2553 = vmatpush1.msra.mxu0 0.0
    %2554 = vmatprep.subr.mxu0 0.0
    %2555 = vmatpush1.msra.mxu0 0.0
    %2556 = vmatprep.subr.mxu0 0.0
    %2557 = vmatpush1.msra.mxu0 0.0
    %2558 = vmatprep.subr.mxu0 0.0
    %2559 = vmatpush1.msra.mxu0 0.0
    %2560 = vmatprep.subr.mxu0 0.0
    %2561 = vmatpush1.msra.mxu0 0.0
    %2562 = vmatprep.subr.mxu0 0.0
    %2563 = vmatpush1.msra.mxu0 0.0
    %2564 = vmatprep.subr.mxu0 0.0
    %2565 = vmatpush1.msra.mxu0 0.0
    %2566 = vmatprep.subr.mxu0 0.0
    %2567 = vmatpush1.msra.mxu0 0.0
    %2568 = vmatprep.subr.mxu0 0.0
    %2569 = vmatpush1.msra.mxu0 0.0
    %2570 = vmatprep.subr.mxu0 0.0
    %2571 = vmatpush1.msra.mxu0 0.0
    %2572 = vmatprep.subr.mxu0 0.0
    %2573 = vmatpush1.msra.mxu0 0.0
    %2574 = vmatprep.subr.mxu0 0.0
    %2575 = vmatpush1.msra.mxu0 0.0
    %2576 = vmatprep.subr.mxu0 0.0
    %2577 = vmatpush1.msra.mxu0 0.0
    %2578 = vmatprep.subr.mxu0 0.0
    %2579 = vmatpush1.msra.mxu0 0.0
    %2580 = vmatprep.subr.mxu0 0.0
    %2581 = vmatpush1.msra.mxu0 0.0
    %2582 = vmatprep.mubr.f32.mxu0 0.0
    %2583 = vmatmul.mubr.f32.gmra.mrb[0].mxu0 %v235
    %v2584 = vpop.f32.mrb[0].mxu0
    %v2585 = vadd.f32 0.0, %v2584
    %v2586 = vpop.f32.mrb[0].mxu0
    %v2587 = vadd.f32 0.0, %v2586
    %2588 = vmatprep.mubr.f32.mxu0 0.0
    %2589 = vmatmul.mubr.f32.gmra.mrb[0].mxu0 %v238
    %v2590 = vpop.f32.mrb[0].mxu0
    %v2591 = vadd.f32 0.0, %v2590
    %v2592 = vpop.f32.mrb[0].mxu0
    %v2593 = vadd.f32 0.0, %v2592
    %2594 = vmatprep.mubr.f32.mxu0 0.0
    %2595 = vmatmul.mubr.f32.gmra.mrb[0].mxu0 %v241
    %v2596 = vpop.f32.mrb[0].mxu0
    %v2597 = vadd.f32 0.0, %v2596
    %v2598 = vpop.f32.mrb[0].mxu0
    %v2599 = vadd.f32 0.0, %v2598
    %2600 = vmatprep.mubr.f32.mxu0 0.0
    %2601 = vmatmul.mubr.f32.gmra.mrb[0].mxu0 %v244
    %v2602 = vpop.f32.mrb[0].mxu0
    %v2603 = vadd.f32 0.0, %v2602
    %v2604 = vpop.f32.mrb[0].mxu0
    %v2605 = vadd.f32 0.0, %v2604
    %2606 = vmatprep.mubr.f32.mxu0 0.0
    %2607 = vmatmul.mubr.f32.gmra.mrb[0].mxu0 %v247
    %v2608 = vpop.f32.mrb[0].mxu0
    %v2609 = vadd.f32 0.0, %v2608
    %v2610 = vpop.f32.mrb[0].mxu0
    %v2611 = vadd.f32 0.0, %v2610
    %2612 = vmatprep.mubr.f32.mxu0 0.0
    %2613 = vmatmul.mubr.f32.gmra.mrb[0].mxu0 %v250
    %v2614 = vpop.f32.mrb[0].mxu0
    %v2615 = vadd.f32 0.0, %v2614
    %v2616 = vpop.f32.mrb[0].mxu0
    %v2617 = vadd.f32 0.0, %v2616
    %2618 = vmatprep.mubr.f32.mxu0 0.0
    %2619 = vmatmul.mubr.f32.gmra.mrb[0].mxu0 %v253
    %v2620 = vpop.f32.mrb[0].mxu0
    %v2621 = vadd.f32 0.0, %v2620
    %v2622 = vpop.f32.mrb[0].mxu0
    %v2623 = vadd.f32 0.0, %v2622
    %2624 = vmatprep.mubr.f32.mxu0 0.0
    %2625 = vmatmul.mubr.f32.gmra.mrb[0].mxu0 %v256
    %v2626 = vpop.f32.mrb[0].mxu0
    %v2627 = vadd.f32 0.0, %v2626
    %v2628 = vpop.f32.mrb[0].mxu0
    %v2629 = vadd.f32 0.0, %v2628
    %2630 = vdwg.mxu0
    %2631 = vmatprep.subr.mxu0 %v140
    %2632 = vmatpush1.msra.mxu0 %v139
    %2633 = vmatprep.subr.mxu0 0.0
    %2634 = vmatpush1.msra.mxu0 0.0
    %2635 = vmatprep.subr.mxu0 0.0
    %2636 = vmatpush1.msra.mxu0 0.0
    %2637 = vmatprep.subr.mxu0 0.0
    %2638 = vmatpush1.msra.mxu0 0.0
    %2639 = vmatprep.subr.mxu0 0.0
    %2640 = vmatpush1.msra.mxu0 0.0
    %2641 = vmatprep.subr.mxu0 0.0
    %2642 = vmatpush1.msra.mxu0 0.0
    %2643 = vmatprep.subr.mxu0 0.0
    %2644 = vmatpush1.msra.mxu0 0.0
    %2645 = vmatprep.subr.mxu0 0.0
    %2646 = vmatpush1.msra.mxu0 0.0
    %2647 = vmatprep.subr.mxu0 0.0
    %2648 = vmatpush1.msra.mxu0 0.0
    %2649 = vmatprep.subr.mxu0 0.0
    %2650 = vmatpush1.msra.mxu0 0.0
    %2651 = vmatprep.subr.mxu0 0.0
    %2652 = vmatpush1.msra.mxu0 0.0
    %2653 = vmatprep.subr.mxu0 0.0
    %2654 = vmatpush1.msra.mxu0 0.0
    %2655 = vmatprep.subr.mxu0 0.0
    %2656 = vmatpush1.msra.mxu0 0.0
    %2657 = vmatprep.subr.mxu0 0.0
    %2658 = vmatpush1.msra.mxu0 0.0
    %2659 = vmatprep.subr.mxu0 0.0
    %2660 = vmatpush1.msra.mxu0 0.0
    %2661 = vmatprep.subr.mxu0 0.0
    %2662 = vmatpush1.msra.mxu0 0.0
    %2663 = vmatprep.subr.mxu0 0.0
    %2664 = vmatpush1.msra.mxu0 0.0
    %2665 = vmatprep.subr.mxu0 0.0
    %2666 = vmatpush1.msra.mxu0 0.0
    %2667 = vmatprep.subr.mxu0 0.0
    %2668 = vmatpush1.msra.mxu0 0.0
    %2669 = vmatprep.subr.mxu0 0.0
    %2670 = vmatpush1.msra.mxu0 0.0
    %2671 = vmatprep.subr.mxu0 0.0
    %2672 = vmatpush1.msra.mxu0 0.0
    %2673 = vmatprep.subr.mxu0 0.0
    %2674 = vmatpush1.msra.mxu0 0.0
    %2675 = vmatprep.subr.mxu0 0.0
    %2676 = vmatpush1.msra.mxu0 0.0
    %2677 = vmatprep.subr.mxu0 0.0
    %2678 = vmatpush1.msra.mxu0 0.0
    %2679 = vmatprep.subr.mxu0 0.0
    %2680 = vmatpush1.msra.mxu0 0.0
    %2681 = vmatprep.subr.mxu0 0.0
    %2682 = vmatpush1.msra.mxu0 0.0
    %2683 = vmatprep.subr.mxu0 0.0
    %2684 = vmatpush1.msra.mxu0 0.0
    %2685 = vmatprep.subr.mxu0 0.0
    %2686 = vmatpush1.msra.mxu0 0.0
    %2687 = vmatprep.subr.mxu0 0.0
    %2688 = vmatpush1.msra.mxu0 0.0
    %2689 = vmatprep.subr.mxu0 0.0
    %2690 = vmatpush1.msra.mxu0 0.0
    %2691 = vmatprep.subr.mxu0 0.0
    %2692 = vmatpush1.msra.mxu0 0.0
    %2693 = vmatprep.subr.mxu0 0.0
    %2694 = vmatpush1.msra.mxu0 0.0
    %2695 = vmatprep.mubr.f32.mxu0 0.0
    %2696 = vmatmul.mubr.f32.gmra.mrb[0].mxu0 %v235
    %v2697 = vpop.f32.mrb[0].mxu0
    %v2698 = vadd.f32 0.0, %v2697
    %v2699 = vpop.f32.mrb[0].mxu0
    %v2700 = vadd.f32 0.0, %v2699
    %2701 = vmatprep.mubr.f32.mxu0 0.0
    %2702 = vmatmul.mubr.f32.gmra.mrb[0].mxu0 %v238
    %v2703 = vpop.f32.mrb[0].mxu0
    %v2704 = vadd.f32 0.0, %v2703
    %v2705 = vpop.f32.mrb[0].mxu0
    %v2706 = vadd.f32 0.0, %v2705
    %2707 = vmatprep.mubr.f32.mxu0 0.0
    %2708 = vmatmul.mubr.f32.gmra.mrb[0].mxu0 %v241
    %v2709 = vpop.f32.mrb[0].mxu0
    %v2710 = vadd.f32 0.0, %v2709
    %v2711 = vpop.f32.mrb[0].mxu0
    %v2712 = vadd.f32 0.0, %v2711
    %2713 = vmatprep.mubr.f32.mxu0 0.0
    %2714 = vmatmul.mubr.f32.gmra.mrb[0].mxu0 %v244
    %v2715 = vpop.f32.mrb[0].mxu0
    %v2716 = vadd.f32 0.0, %v2715
    %v2717 = vpop.f32.mrb[0].mxu0
    %v2718 = vadd.f32 0.0, %v2717
    %2719 = vmatprep.mubr.f32.mxu0 0.0
    %2720 = vmatmul.mubr.f32.gmra.mrb[0].mxu0 %v247
    %v2721 = vpop.f32.mrb[0].mxu0
    %v2722 = vadd.f32 0.0, %v2721
    %v2723 = vpop.f32.mrb[0].mxu0
    %v2724 = vadd.f32 0.0, %v2723
    %2725 = vmatprep.mubr.f32.mxu0 0.0
    %2726 = vmatmul.mubr.f32.gmra.mrb[0].mxu0 %v250
    %v2727 = vpop.f32.mrb[0].mxu0
    %v2728 = vadd.f32 0.0, %v2727
    %v2729 = vpop.f32.mrb[0].mxu0
    %v2730 = vadd.f32 0.0, %v2729
    %2731 = vmatprep.mubr.f32.mxu0 0.0
    %2732 = vmatmul.mubr.f32.gmra.mrb[0].mxu0 %v253
    %v2733 = vpop.f32.mrb[0].mxu0
    %v2734 = vadd.f32 0.0, %v2733
    %v2735 = vpop.f32.mrb[0].mxu0
    %v2736 = vadd.f32 0.0, %v2735
    %2737 = vmatprep.mubr.f32.mxu0 0.0
    %2738 = vmatmul.mubr.f32.gmra.mrb[0].mxu0 %v256
    %v2739 = vpop.f32.mrb[0].mxu0
    %v2740 = vadd.f32 0.0, %v2739
    %v2741 = vpop.f32.mrb[0].mxu0
    %v2742 = vadd.f32 0.0, %v2741
    %2743 = vdwg.mxu0
    %2744 = vmatprep.subr.mxu0 %v142
    %2745 = vmatpush1.msra.mxu0 %v141
    %2746 = vmatprep.subr.mxu0 0.0
    %2747 = vmatpush1.msra.mxu0 0.0
    %2748 = vmatprep.subr.mxu0 0.0
    %2749 = vmatpush1.msra.mxu0 0.0
    %2750 = vmatprep.subr.mxu0 0.0
    %2751 = vmatpush1.msra.mxu0 0.0
    %2752 = vmatprep.subr.mxu0 0.0
    %2753 = vmatpush1.msra.mxu0 0.0
    %2754 = vmatprep.subr.mxu0 0.0
    %2755 = vmatpush1.msra.mxu0 0.0
    %2756 = vmatprep.subr.mxu0 0.0
    %2757 = vmatpush1.msra.mxu0 0.0
    %2758 = vmatprep.subr.mxu0 0.0
    %2759 = vmatpush1.msra.mxu0 0.0
    %2760 = vmatprep.subr.mxu0 0.0
    %2761 = vmatpush1.msra.mxu0 0.0
    %2762 = vmatprep.subr.mxu0 0.0
    %2763 = vmatpush1.msra.mxu0 0.0
    %2764 = vmatprep.subr.mxu0 0.0
    %2765 = vmatpush1.msra.mxu0 0.0
    %2766 = vmatprep.subr.mxu0 0.0
    %2767 = vmatpush1.msra.mxu0 0.0
    %2768 = vmatprep.subr.mxu0 0.0
    %2769 = vmatpush1.msra.mxu0 0.0
    %2770 = vmatprep.subr.mxu0 0.0
    %2771 = vmatpush1.msra.mxu0 0.0
    %2772 = vmatprep.subr.mxu0 0.0
    %2773 = vmatpush1.msra.mxu0 0.0
    %2774 = vmatprep.subr.mxu0 0.0
    %2775 = vmatpush1.msra.mxu0 0.0
    %2776 = vmatprep.subr.mxu0 0.0
    %2777 = vmatpush1.msra.mxu0 0.0
    %2778 = vmatprep.subr.mxu0 0.0
    %2779 = vmatpush1.msra.mxu0 0.0
    %2780 = vmatprep.subr.mxu0 0.0
    %2781 = vmatpush1.msra.mxu0 0.0
    %2782 = vmatprep.subr.mxu0 0.0
    %2783 = vmatpush1.msra.mxu0 0.0
    %2784 = vmatprep.subr.mxu0 0.0
    %2785 = vmatpush1.msra.mxu0 0.0
    %2786 = vmatprep.subr.mxu0 0.0
    %2787 = vmatpush1.msra.mxu0 0.0
    %2788 = vmatprep.subr.mxu0 0.0
    %2789 = vmatpush1.msra.mxu0 0.0
    %2790 = vmatprep.subr.mxu0 0.0
    %2791 = vmatpush1.msra.mxu0 0.0
    %2792 = vmatprep.subr.mxu0 0.0
    %2793 = vmatpush1.msra.mxu0 0.0
    %2794 = vmatprep.subr.mxu0 0.0
    %2795 = vmatpush1.msra.mxu0 0.0
    %2796 = vmatprep.subr.mxu0 0.0
    %2797 = vmatpush1.msra.mxu0 0.0
    %2798 = vmatprep.subr.mxu0 0.0
    %2799 = vmatpush1.msra.mxu0 0.0
    %2800 = vmatprep.subr.mxu0 0.0
    %2801 = vmatpush1.msra.mxu0 0.0
    %2802 = vmatprep.subr.mxu0 0.0
    %2803 = vmatpush1.msra.mxu0 0.0
    %2804 = vmatprep.subr.mxu0 0.0
    %2805 = vmatpush1.msra.mxu0 0.0
    %2806 = vmatprep.subr.mxu0 0.0
    %2807 = vmatpush1.msra.mxu0 0.0
    %2808 = vmatprep.mubr.f32.mxu0 0.0
    %2809 = vmatmul.mubr.f32.gmra.mrb[0].mxu0 %v235
    %v2810 = vpop.f32.mrb[0].mxu0
    %v2811 = vadd.f32 0.0, %v2810
    %v2812 = vpop.f32.mrb[0].mxu0
    %v2813 = vadd.f32 0.0, %v2812
    %2814 = vmatprep.mubr.f32.mxu0 0.0
    %2815 = vmatmul.mubr.f32.gmra.mrb[0].mxu0 %v238
    %v2816 = vpop.f32.mrb[0].mxu0
    %v2817 = vadd.f32 0.0, %v2816
    %v2818 = vpop.f32.mrb[0].mxu0
    %v2819 = vadd.f32 0.0, %v2818
    %2820 = vmatprep.mubr.f32.mxu0 0.0
    %2821 = vmatmul.mubr.f32.gmra.mrb[0].mxu0 %v241
    %v2822 = vpop.f32.mrb[0].mxu0
    %v2823 = vadd.f32 0.0, %v2822
    %v2824 = vpop.f32.mrb[0].mxu0
    %v2825 = vadd.f32 0.0, %v2824
    %2826 = vmatprep.mubr.f32.mxu0 0.0
    %2827 = vmatmul.mubr.f32.gmra.mrb[0].mxu0 %v244
    %v2828 = vpop.f32.mrb[0].mxu0
    %v2829 = vadd.f32 0.0, %v2828
    %v2830 = vpop.f32.mrb[0].mxu0
    %v2831 = vadd.f32 0.0, %v2830
    %2832 = vmatprep.mubr.f32.mxu0 0.0
    %2833 = vmatmul.mubr.f32.gmra.mrb[0].mxu0 %v247
    %v2834 = vpop.f32.mrb[0].mxu0
    %v2835 = vadd.f32 0.0, %v2834
    %v2836 = vpop.f32.mrb[0].mxu0
    %v2837 = vadd.f32 0.0, %v2836
    %2838 = vmatprep.mubr.f32.mxu0 0.0
    %2839 = vmatmul.mubr.f32.gmra.mrb[0].mxu0 %v250
    %v2840 = vpop.f32.mrb[0].mxu0
    %v2841 = vadd.f32 0.0, %v2840
    %v2842 = vpop.f32.mrb[0].mxu0
    %v2843 = vadd.f32 0.0, %v2842
    %2844 = vmatprep.mubr.f32.mxu0 0.0
    %2845 = vmatmul.mubr.f32.gmra.mrb[0].mxu0 %v253
    %v2846 = vpop.f32.mrb[0].mxu0
    %v2847 = vadd.f32 0.0, %v2846
    %v2848 = vpop.f32.mrb[0].mxu0
    %v2849 = vadd.f32 0.0, %v2848
    %2850 = vmatprep.mubr.f32.mxu0 0.0
    %2851 = vmatmul.mubr.f32.gmra.mrb[0].mxu0 %v256
    %v2852 = vpop.f32.mrb[0].mxu0
    %v2853 = vadd.f32 0.0, %v2852
    %v2854 = vpop.f32.mrb[0].mxu0
    %v2855 = vadd.f32 0.0, %v2854
    %2856 = vdwg.mxu0
    %2857 = vmatprep.subr.mxu0 %v144
    %2858 = vmatpush1.msra.mxu0 %v143
    %2859 = vmatprep.subr.mxu0 0.0
    %2860 = vmatpush1.msra.mxu0 0.0
    %2861 = vmatprep.subr.mxu0 0.0
    %2862 = vmatpush1.msra.mxu0 0.0
    %2863 = vmatprep.subr.mxu0 0.0
    %2864 = vmatpush1.msra.mxu0 0.0
    %2865 = vmatprep.subr.mxu0 0.0
    %2866 = vmatpush1.msra.mxu0 0.0
    %2867 = vmatprep.subr.mxu0 0.0
    %2868 = vmatpush1.msra.mxu0 0.0
    %2869 = vmatprep.subr.mxu0 0.0
    %2870 = vmatpush1.msra.mxu0 0.0
    %2871 = vmatprep.subr.mxu0 0.0
    %2872 = vmatpush1.msra.mxu0 0.0
    %2873 = vmatprep.subr.mxu0 0.0
    %2874 = vmatpush1.msra.mxu0 0.0
    %2875 = vmatprep.subr.mxu0 0.0
    %2876 = vmatpush1.msra.mxu0 0.0
    %2877 = vmatprep.subr.mxu0 0.0
    %2878 = vmatpush1.msra.mxu0 0.0
    %2879 = vmatprep.subr.mxu0 0.0
    %2880 = vmatpush1.msra.mxu0 0.0
    %2881 = vmatprep.subr.mxu0 0.0
    %2882 = vmatpush1.msra.mxu0 0.0
    %2883 = vmatprep.subr.mxu0 0.0
    %2884 = vmatpush1.msra.mxu0 0.0
    %2885 = vmatprep.subr.mxu0 0.0
    %2886 = vmatpush1.msra.mxu0 0.0
    %2887 = vmatprep.subr.mxu0 0.0
    %2888 = vmatpush1.msra.mxu0 0.0
    %2889 = vmatprep.subr.mxu0 0.0
    %2890 = vmatpush1.msra.mxu0 0.0
    %2891 = vmatprep.subr.mxu0 0.0
    %2892 = vmatpush1.msra.mxu0 0.0
    %2893 = vmatprep.subr.mxu0 0.0
    %2894 = vmatpush1.msra.mxu0 0.0
    %2895 = vmatprep.subr.mxu0 0.0
    %2896 = vmatpush1.msra.mxu0 0.0
    %2897 = vmatprep.subr.mxu0 0.0
    %2898 = vmatpush1.msra.mxu0 0.0
    %2899 = vmatprep.subr.mxu0 0.0
    %2900 = vmatpush1.msra.mxu0 0.0
    %2901 = vmatprep.subr.mxu0 0.0
    %2902 = vmatpush1.msra.mxu0 0.0
    %2903 = vmatprep.subr.mxu0 0.0
    %2904 = vmatpush1.msra.mxu0 0.0
    %2905 = vmatprep.subr.mxu0 0.0
    %2906 = vmatpush1.msra.mxu0 0.0
    %2907 = vmatprep.subr.mxu0 0.0
    %2908 = vmatpush1.msra.mxu0 0.0
    %2909 = vmatprep.subr.mxu0 0.0
    %2910 = vmatpush1.msra.mxu0 0.0
    %2911 = vmatprep.subr.mxu0 0.0
    %2912 = vmatpush1.msra.mxu0 0.0
    %2913 = vmatprep.subr.mxu0 0.0
    %2914 = vmatpush1.msra.mxu0 0.0
    %2915 = vmatprep.subr.mxu0 0.0
    %2916 = vmatpush1.msra.mxu0 0.0
    %2917 = vmatprep.subr.mxu0 0.0
    %2918 = vmatpush1.msra.mxu0 0.0
    %2919 = vmatprep.subr.mxu0 0.0
    %2920 = vmatpush1.msra.mxu0 0.0
    %2921 = vmatprep.mubr.f32.mxu0 0.0
    %2922 = vmatmul.mubr.f32.gmra.mrb[0].mxu0 %v235
    %v2923 = vpop.f32.mrb[0].mxu0
    %v2924 = vadd.f32 0.0, %v2923
    %v2925 = vpop.f32.mrb[0].mxu0
    %v2926 = vadd.f32 0.0, %v2925
    %2927 = vmatprep.mubr.f32.mxu0 0.0
    %2928 = vmatmul.mubr.f32.gmra.mrb[0].mxu0 %v238
    %v2929 = vpop.f32.mrb[0].mxu0
    %v2930 = vadd.f32 0.0, %v2929
    %v2931 = vpop.f32.mrb[0].mxu0
    %v2932 = vadd.f32 0.0, %v2931
    %2933 = vmatprep.mubr.f32.mxu0 0.0
    %2934 = vmatmul.mubr.f32.gmra.mrb[0].mxu0 %v241
    %v2935 = vpop.f32.mrb[0].mxu0
    %v2936 = vadd.f32 0.0, %v2935
    %v2937 = vpop.f32.mrb[0].mxu0
    %v2938 = vadd.f32 0.0, %v2937
    %2939 = vmatprep.mubr.f32.mxu0 0.0
    %2940 = vmatmul.mubr.f32.gmra.mrb[0].mxu0 %v244
    %v2941 = vpop.f32.mrb[0].mxu0
    %v2942 = vadd.f32 0.0, %v2941
    %v2943 = vpop.f32.mrb[0].mxu0
    %v2944 = vadd.f32 0.0, %v2943
    %2945 = vmatprep.mubr.f32.mxu0 0.0
    %2946 = vmatmul.mubr.f32.gmra.mrb[0].mxu0 %v247
    %v2947 = vpop.f32.mrb[0].mxu0
    %v2948 = vadd.f32 0.0, %v2947
    %v2949 = vpop.f32.mrb[0].mxu0
    %v2950 = vadd.f32 0.0, %v2949
    %2951 = vmatprep.mubr.f32.mxu0 0.0
    %2952 = vmatmul.mubr.f32.gmra.mrb[0].mxu0 %v250
    %v2953 = vpop.f32.mrb[0].mxu0
    %v2954 = vadd.f32 0.0, %v2953
    %v2955 = vpop.f32.mrb[0].mxu0
    %v2956 = vadd.f32 0.0, %v2955
    %2957 = vmatprep.mubr.f32.mxu0 0.0
    %2958 = vmatmul.mubr.f32.gmra.mrb[0].mxu0 %v253
    %v2959 = vpop.f32.mrb[0].mxu0
    %v2960 = vadd.f32 0.0, %v2959
    %v2961 = vpop.f32.mrb[0].mxu0
    %v2962 = vadd.f32 0.0, %v2961
    %2963 = vmatprep.mubr.f32.mxu0 0.0
    %2964 = vmatmul.mubr.f32.gmra.mrb[0].mxu0 %v256
    %v2965 = vpop.f32.mrb[0].mxu0
    %v2966 = vadd.f32 0.0, %v2965
    %v2967 = vpop.f32.mrb[0].mxu0
    %v2968 = vadd.f32 0.0, %v2967
    %2969 = vdwg.mxu0
    %2970 = vmatprep.subr.mxu0 %v146
    %2971 = vmatpush1.msra.mxu0 %v145
    %2972 = vmatprep.subr.mxu0 0.0
    %2973 = vmatpush1.msra.mxu0 0.0
    %2974 = vmatprep.subr.mxu0 0.0
    %2975 = vmatpush1.msra.mxu0 0.0
    %2976 = vmatprep.subr.mxu0 0.0
    %2977 = vmatpush1.msra.mxu0 0.0
    %2978 = vmatprep.subr.mxu0 0.0
    %2979 = vmatpush1.msra.mxu0 0.0
    %2980 = vmatprep.subr.mxu0 0.0
    %2981 = vmatpush1.msra.mxu0 0.0
    %2982 = vmatprep.subr.mxu0 0.0
    %2983 = vmatpush1.msra.mxu0 0.0
    %2984 = vmatprep.subr.mxu0 0.0
    %2985 = vmatpush1.msra.mxu0 0.0
    %2986 = vmatprep.subr.mxu0 0.0
    %2987 = vmatpush1.msra.mxu0 0.0
    %2988 = vmatprep.subr.mxu0 0.0
    %2989 = vmatpush1.msra.mxu0 0.0
    %2990 = vmatprep.subr.mxu0 0.0
    %2991 = vmatpush1.msra.mxu0 0.0
    %2992 = vmatprep.subr.mxu0 0.0
    %2993 = vmatpush1.msra.mxu0 0.0
    %2994 = vmatprep.subr.mxu0 0.0
    %2995 = vmatpush1.msra.mxu0 0.0
    %2996 = vmatprep.subr.mxu0 0.0
    %2997 = vmatpush1.msra.mxu0 0.0
    %2998 = vmatprep.subr.mxu0 0.0
    %2999 = vmatpush1.msra.mxu0 0.0
    %3000 = vmatprep.subr.mxu0 0.0
    %3001 = vmatpush1.msra.mxu0 0.0
    %3002 = vmatprep.subr.mxu0 0.0
    %3003 = vmatpush1.msra.mxu0 0.0
    %3004 = vmatprep.subr.mxu0 0.0
    %3005 = vmatpush1.msra.mxu0 0.0
    %3006 = vmatprep.subr.mxu0 0.0
    %3007 = vmatpush1.msra.mxu0 0.0
    %3008 = vmatprep.subr.mxu0 0.0
    %3009 = vmatpush1.msra.mxu0 0.0
    %3010 = vmatprep.subr.mxu0 0.0
    %3011 = vmatpush1.msra.mxu0 0.0
    %3012 = vmatprep.subr.mxu0 0.0
    %3013 = vmatpush1.msra.mxu0 0.0
    %3014 = vmatprep.subr.mxu0 0.0
    %3015 = vmatpush1.msra.mxu0 0.0
    %3016 = vmatprep.subr.mxu0 0.0
    %3017 = vmatpush1.msra.mxu0 0.0
    %3018 = vmatprep.subr.mxu0 0.0
    %3019 = vmatpush1.msra.mxu0 0.0
    %3020 = vmatprep.subr.mxu0 0.0
    %3021 = vmatpush1.msra.mxu0 0.0
    %3022 = vmatprep.subr.mxu0 0.0
    %3023 = vmatpush1.msra.mxu0 0.0
    %3024 = vmatprep.subr.mxu0 0.0
    %3025 = vmatpush1.msra.mxu0 0.0
    %3026 = vmatprep.subr.mxu0 0.0
    %3027 = vmatpush1.msra.mxu0 0.0
    %3028 = vmatprep.subr.mxu0 0.0
    %3029 = vmatpush1.msra.mxu0 0.0
    %3030 = vmatprep.subr.mxu0 0.0
    %3031 = vmatpush1.msra.mxu0 0.0
    %3032 = vmatprep.subr.mxu0 0.0
    %3033 = vmatpush1.msra.mxu0 0.0
    %3034 = vmatprep.mubr.f32.mxu0 0.0
    %3035 = vmatmul.mubr.f32.gmra.mrb[0].mxu0 %v235
    %v3036 = vpop.f32.mrb[0].mxu0
    %v3037 = vadd.f32 0.0, %v3036
    %v3038 = vpop.f32.mrb[0].mxu0
    %v3039 = vadd.f32 0.0, %v3038
    %3040 = vmatprep.mubr.f32.mxu0 0.0
    %3041 = vmatmul.mubr.f32.gmra.mrb[0].mxu0 %v238
    %v3042 = vpop.f32.mrb[0].mxu0
    %v3043 = vadd.f32 0.0, %v3042
    %v3044 = vpop.f32.mrb[0].mxu0
    %v3045 = vadd.f32 0.0, %v3044
    %3046 = vmatprep.mubr.f32.mxu0 0.0
    %3047 = vmatmul.mubr.f32.gmra.mrb[0].mxu0 %v241
    %v3048 = vpop.f32.mrb[0].mxu0
    %v3049 = vadd.f32 0.0, %v3048
    %v3050 = vpop.f32.mrb[0].mxu0
    %v3051 = vadd.f32 0.0, %v3050
    %3052 = vmatprep.mubr.f32.mxu0 0.0
    %3053 = vmatmul.mubr.f32.gmra.mrb[0].mxu0 %v244
    %v3054 = vpop.f32.mrb[0].mxu0
    %v3055 = vadd.f32 0.0, %v3054
    %v3056 = vpop.f32.mrb[0].mxu0
    %v3057 = vadd.f32 0.0, %v3056
    %3058 = vmatprep.mubr.f32.mxu0 0.0
    %3059 = vmatmul.mubr.f32.gmra.mrb[0].mxu0 %v247
    %v3060 = vpop.f32.mrb[0].mxu0
    %v3061 = vadd.f32 0.0, %v3060
    %v3062 = vpop.f32.mrb[0].mxu0
    %v3063 = vadd.f32 0.0, %v3062
    %3064 = vmatprep.mubr.f32.mxu0 0.0
    %3065 = vmatmul.mubr.f32.gmra.mrb[0].mxu0 %v250
    %v3066 = vpop.f32.mrb[0].mxu0
    %v3067 = vadd.f32 0.0, %v3066
    %v3068 = vpop.f32.mrb[0].mxu0
    %v3069 = vadd.f32 0.0, %v3068
    %3070 = vmatprep.mubr.f32.mxu0 0.0
    %3071 = vmatmul.mubr.f32.gmra.mrb[0].mxu0 %v253
    %v3072 = vpop.f32.mrb[0].mxu0
    %v3073 = vadd.f32 0.0, %v3072
    %v3074 = vpop.f32.mrb[0].mxu0
    %v3075 = vadd.f32 0.0, %v3074
    %3076 = vmatprep.mubr.f32.mxu0 0.0
    %3077 = vmatmul.mubr.f32.gmra.mrb[0].mxu0 %v256
    %v3078 = vpop.f32.mrb[0].mxu0
    %v3079 = vadd.f32 0.0, %v3078
    %v3080 = vpop.f32.mrb[0].mxu0
    %v3081 = vadd.f32 0.0, %v3080
    %3082 = vdwg.mxu0
    %3083 = vmatprep.subr.mxu0 %v148
    %3084 = vmatpush1.msra.mxu0 %v147
    %3085 = vmatprep.subr.mxu0 0.0
    %3086 = vmatpush1.msra.mxu0 0.0
    %3087 = vmatprep.subr.mxu0 0.0
    %3088 = vmatpush1.msra.mxu0 0.0
    %3089 = vmatprep.subr.mxu0 0.0
    %3090 = vmatpush1.msra.mxu0 0.0
    %3091 = vmatprep.subr.mxu0 0.0
    %3092 = vmatpush1.msra.mxu0 0.0
    %3093 = vmatprep.subr.mxu0 0.0
    %3094 = vmatpush1.msra.mxu0 0.0
    %3095 = vmatprep.subr.mxu0 0.0
    %3096 = vmatpush1.msra.mxu0 0.0
    %3097 = vmatprep.subr.mxu0 0.0
    %3098 = vmatpush1.msra.mxu0 0.0
    %3099 = vmatprep.subr.mxu0 0.0
    %3100 = vmatpush1.msra.mxu0 0.0
    %3101 = vmatprep.subr.mxu0 0.0
    %3102 = vmatpush1.msra.mxu0 0.0
    %3103 = vmatprep.subr.mxu0 0.0
    %3104 = vmatpush1.msra.mxu0 0.0
    %3105 = vmatprep.subr.mxu0 0.0
    %3106 = vmatpush1.msra.mxu0 0.0
    %3107 = vmatprep.subr.mxu0 0.0
    %3108 = vmatpush1.msra.mxu0 0.0
    %3109 = vmatprep.subr.mxu0 0.0
    %3110 = vmatpush1.msra.mxu0 0.0
    %3111 = vmatprep.subr.mxu0 0.0
    %3112 = vmatpush1.msra.mxu0 0.0
    %3113 = vmatprep.subr.mxu0 0.0
    %3114 = vmatpush1.msra.mxu0 0.0
    %3115 = vmatprep.subr.mxu0 0.0
    %3116 = vmatpush1.msra.mxu0 0.0
    %3117 = vmatprep.subr.mxu0 0.0
    %3118 = vmatpush1.msra.mxu0 0.0
    %3119 = vmatprep.subr.mxu0 0.0
    %3120 = vmatpush1.msra.mxu0 0.0
    %3121 = vmatprep.subr.mxu0 0.0
    %3122 = vmatpush1.msra.mxu0 0.0
    %3123 = vmatprep.subr.mxu0 0.0
    %3124 = vmatpush1.msra.mxu0 0.0
    %3125 = vmatprep.subr.mxu0 0.0
    %3126 = vmatpush1.msra.mxu0 0.0
    %3127 = vmatprep.subr.mxu0 0.0
    %3128 = vmatpush1.msra.mxu0 0.0
    %3129 = vmatprep.subr.mxu0 0.0
    %3130 = vmatpush1.msra.mxu0 0.0
    %3131 = vmatprep.subr.mxu0 0.0
    %3132 = vmatpush1.msra.mxu0 0.0
    %3133 = vmatprep.subr.mxu0 0.0
    %3134 = vmatpush1.msra.mxu0 0.0
    %3135 = vmatprep.subr.mxu0 0.0
    %3136 = vmatpush1.msra.mxu0 0.0
    %3137 = vmatprep.subr.mxu0 0.0
    %3138 = vmatpush1.msra.mxu0 0.0
    %3139 = vmatprep.subr.mxu0 0.0
    %3140 = vmatpush1.msra.mxu0 0.0
    %3141 = vmatprep.subr.mxu0 0.0
    %3142 = vmatpush1.msra.mxu0 0.0
    %3143 = vmatprep.subr.mxu0 0.0
    %3144 = vmatpush1.msra.mxu0 0.0
    %3145 = vmatprep.subr.mxu0 0.0
    %3146 = vmatpush1.msra.mxu0 0.0
    %3147 = vmatprep.mubr.f32.mxu0 0.0
    %3148 = vmatmul.mubr.f32.gmra.mrb[0].mxu0 %v235
    %v3149 = vpop.f32.mrb[0].mxu0
    %v3150 = vadd.f32 0.0, %v3149
    %v3151 = vpop.f32.mrb[0].mxu0
    %v3152 = vadd.f32 0.0, %v3151
    %3153 = vmatprep.mubr.f32.mxu0 0.0
    %3154 = vmatmul.mubr.f32.gmra.mrb[0].mxu0 %v238
    %v3155 = vpop.f32.mrb[0].mxu0
    %v3156 = vadd.f32 0.0, %v3155
    %v3157 = vpop.f32.mrb[0].mxu0
    %v3158 = vadd.f32 0.0, %v3157
    %3159 = vmatprep.mubr.f32.mxu0 0.0
    %3160 = vmatmul.mubr.f32.gmra.mrb[0].mxu0 %v241
    %v3161 = vpop.f32.mrb[0].mxu0
    %v3162 = vadd.f32 0.0, %v3161
    %v3163 = vpop.f32.mrb[0].mxu0
    %v3164 = vadd.f32 0.0, %v3163
    %3165 = vmatprep.mubr.f32.mxu0 0.0
    %3166 = vmatmul.mubr.f32.gmra.mrb[0].mxu0 %v244
    %v3167 = vpop.f32.mrb[0].mxu0
    %v3168 = vadd.f32 0.0, %v3167
    %v3169 = vpop.f32.mrb[0].mxu0
    %v3170 = vadd.f32 0.0, %v3169
    %3171 = vmatprep.mubr.f32.mxu0 0.0
    %3172 = vmatmul.mubr.f32.gmra.mrb[0].mxu0 %v247
    %v3173 = vpop.f32.mrb[0].mxu0
    %v3174 = vadd.f32 0.0, %v3173
    %v3175 = vpop.f32.mrb[0].mxu0
    %v3176 = vadd.f32 0.0, %v3175
    %3177 = vmatprep.mubr.f32.mxu0 0.0
    %3178 = vmatmul.mubr.f32.gmra.mrb[0].mxu0 %v250
    %v3179 = vpop.f32.mrb[0].mxu0
    %v3180 = vadd.f32 0.0, %v3179
    %v3181 = vpop.f32.mrb[0].mxu0
    %v3182 = vadd.f32 0.0, %v3181
    %3183 = vmatprep.mubr.f32.mxu0 0.0
    %3184 = vmatmul.mubr.f32.gmra.mrb[0].mxu0 %v253
    %v3185 = vpop.f32.mrb[0].mxu0
    %v3186 = vadd.f32 0.0, %v3185
    %v3187 = vpop.f32.mrb[0].mxu0
    %v3188 = vadd.f32 0.0, %v3187
    %3189 = vmatprep.mubr.f32.mxu0 0.0
    %3190 = vmatmul.mubr.f32.gmra.mrb[0].mxu0 %v256
    %v3191 = vpop.f32.mrb[0].mxu0
    %v3192 = vadd.f32 0.0, %v3191
    %v3193 = vpop.f32.mrb[0].mxu0
    %v3194 = vadd.f32 0.0, %v3193
    %3195 = vdwg.mxu0
    %3196 = vmatprep.subr.mxu0 %v150
    %3197 = vmatpush1.msra.mxu0 %v149
    %3198 = vmatprep.subr.mxu0 0.0
    %3199 = vmatpush1.msra.mxu0 0.0
    %3200 = vmatprep.subr.mxu0 0.0
    %3201 = vmatpush1.msra.mxu0 0.0
    %3202 = vmatprep.subr.mxu0 0.0
    %3203 = vmatpush1.msra.mxu0 0.0
    %3204 = vmatprep.subr.mxu0 0.0
    %3205 = vmatpush1.msra.mxu0 0.0
    %3206 = vmatprep.subr.mxu0 0.0
    %3207 = vmatpush1.msra.mxu0 0.0
    %3208 = vmatprep.subr.mxu0 0.0
    %3209 = vmatpush1.msra.mxu0 0.0
    %3210 = vmatprep.subr.mxu0 0.0
    %3211 = vmatpush1.msra.mxu0 0.0
    %3212 = vmatprep.subr.mxu0 0.0
    %3213 = vmatpush1.msra.mxu0 0.0
    %3214 = vmatprep.subr.mxu0 0.0
    %3215 = vmatpush1.msra.mxu0 0.0
    %3216 = vmatprep.subr.mxu0 0.0
    %3217 = vmatpush1.msra.mxu0 0.0
    %3218 = vmatprep.subr.mxu0 0.0
    %3219 = vmatpush1.msra.mxu0 0.0
    %3220 = vmatprep.subr.mxu0 0.0
    %3221 = vmatpush1.msra.mxu0 0.0
    %3222 = vmatprep.subr.mxu0 0.0
    %3223 = vmatpush1.msra.mxu0 0.0
    %3224 = vmatprep.subr.mxu0 0.0
    %3225 = vmatpush1.msra.mxu0 0.0
    %3226 = vmatprep.subr.mxu0 0.0
    %3227 = vmatpush1.msra.mxu0 0.0
    %3228 = vmatprep.subr.mxu0 0.0
    %3229 = vmatpush1.msra.mxu0 0.0
    %3230 = vmatprep.subr.mxu0 0.0
    %3231 = vmatpush1.msra.mxu0 0.0
    %3232 = vmatprep.subr.mxu0 0.0
    %3233 = vmatpush1.msra.mxu0 0.0
    %3234 = vmatprep.subr.mxu0 0.0
    %3235 = vmatpush1.msra.mxu0 0.0
    %3236 = vmatprep.subr.mxu0 0.0
    %3237 = vmatpush1.msra.mxu0 0.0
    %3238 = vmatprep.subr.mxu0 0.0
    %3239 = vmatpush1.msra.mxu0 0.0
    %3240 = vmatprep.subr.mxu0 0.0
    %3241 = vmatpush1.msra.mxu0 0.0
    %3242 = vmatprep.subr.mxu0 0.0
    %3243 = vmatpush1.msra.mxu0 0.0
    %3244 = vmatprep.subr.mxu0 0.0
    %3245 = vmatpush1.msra.mxu0 0.0
    %3246 = vmatprep.subr.mxu0 0.0
    %3247 = vmatpush1.msra.mxu0 0.0
    %3248 = vmatprep.subr.mxu0 0.0
    %3249 = vmatpush1.msra.mxu0 0.0
    %3250 = vmatprep.subr.mxu0 0.0
    %3251 = vmatpush1.msra.mxu0 0.0
    %3252 = vmatprep.subr.mxu0 0.0
    %3253 = vmatpush1.msra.mxu0 0.0
    %3254 = vmatprep.subr.mxu0 0.0
    %3255 = vmatpush1.msra.mxu0 0.0
    %3256 = vmatprep.subr.mxu0 0.0
    %3257 = vmatpush1.msra.mxu0 0.0
    %3258 = vmatprep.subr.mxu0 0.0
    %3259 = vmatpush1.msra.mxu0 0.0
    %3260 = vmatprep.mubr.f32.mxu0 0.0
    %3261 = vmatmul.mubr.f32.gmra.mrb[0].mxu0 %v235
    %v3262 = vpop.f32.mrb[0].mxu0
    %v3263 = vadd.f32 0.0, %v3262
    %v3264 = vpop.f32.mrb[0].mxu0
    %v3265 = vadd.f32 0.0, %v3264
    %3266 = vmatprep.mubr.f32.mxu0 0.0
    %3267 = vmatmul.mubr.f32.gmra.mrb[0].mxu0 %v238
    %v3268 = vpop.f32.mrb[0].mxu0
    %v3269 = vadd.f32 0.0, %v3268
    %v3270 = vpop.f32.mrb[0].mxu0
    %v3271 = vadd.f32 0.0, %v3270
    %3272 = vmatprep.mubr.f32.mxu0 0.0
    %3273 = vmatmul.mubr.f32.gmra.mrb[0].mxu0 %v241
    %v3274 = vpop.f32.mrb[0].mxu0
    %v3275 = vadd.f32 0.0, %v3274
    %v3276 = vpop.f32.mrb[0].mxu0
    %v3277 = vadd.f32 0.0, %v3276
    %3278 = vmatprep.mubr.f32.mxu0 0.0
    %3279 = vmatmul.mubr.f32.gmra.mrb[0].mxu0 %v244
    %v3280 = vpop.f32.mrb[0].mxu0
    %v3281 = vadd.f32 0.0, %v3280
    %v3282 = vpop.f32.mrb[0].mxu0
    %v3283 = vadd.f32 0.0, %v3282
    %3284 = vmatprep.mubr.f32.mxu0 0.0
    %3285 = vmatmul.mubr.f32.gmra.mrb[0].mxu0 %v247
    %v3286 = vpop.f32.mrb[0].mxu0
    %v3287 = vadd.f32 0.0, %v3286
    %v3288 = vpop.f32.mrb[0].mxu0
    %v3289 = vadd.f32 0.0, %v3288
    %3290 = vmatprep.mubr.f32.mxu0 0.0
    %3291 = vmatmul.mubr.f32.gmra.mrb[0].mxu0 %v250
    %v3292 = vpop.f32.mrb[0].mxu0
    %v3293 = vadd.f32 0.0, %v3292
    %v3294 = vpop.f32.mrb[0].mxu0
    %v3295 = vadd.f32 0.0, %v3294
    %3296 = vmatprep.mubr.f32.mxu0 0.0
    %3297 = vmatmul.mubr.f32.gmra.mrb[0].mxu0 %v253
    %v3298 = vpop.f32.mrb[0].mxu0
    %v3299 = vadd.f32 0.0, %v3298
    %v3300 = vpop.f32.mrb[0].mxu0
    %v3301 = vadd.f32 0.0, %v3300
    %3302 = vmatprep.mubr.f32.mxu0 0.0
    %3303 = vmatmul.mubr.f32.gmra.mrb[0].mxu0 %v256
    %v3304 = vpop.f32.mrb[0].mxu0
    %v3305 = vadd.f32 0.0, %v3304
    %v3306 = vpop.f32.mrb[0].mxu0
    %v3307 = vadd.f32 0.0, %v3306
    %3308 = vdwg.mxu0
    %3309 = vmatprep.subr.mxu0 %v152
    %3310 = vmatpush1.msra.mxu0 %v151
    %3311 = vmatprep.subr.mxu0 0.0
    %3312 = vmatpush1.msra.mxu0 0.0
    %3313 = vmatprep.subr.mxu0 0.0
    %3314 = vmatpush1.msra.mxu0 0.0
    %3315 = vmatprep.subr.mxu0 0.0
    %3316 = vmatpush1.msra.mxu0 0.0
    %3317 = vmatprep.subr.mxu0 0.0
    %3318 = vmatpush1.msra.mxu0 0.0
    %3319 = vmatprep.subr.mxu0 0.0
    %3320 = vmatpush1.msra.mxu0 0.0
    %3321 = vmatprep.subr.mxu0 0.0
    %3322 = vmatpush1.msra.mxu0 0.0
    %3323 = vmatprep.subr.mxu0 0.0
    %3324 = vmatpush1.msra.mxu0 0.0
    %3325 = vmatprep.subr.mxu0 0.0
    %3326 = vmatpush1.msra.mxu0 0.0
    %3327 = vmatprep.subr.mxu0 0.0
    %3328 = vmatpush1.msra.mxu0 0.0
    %3329 = vmatprep.subr.mxu0 0.0
    %3330 = vmatpush1.msra.mxu0 0.0
    %3331 = vmatprep.subr.mxu0 0.0
    %3332 = vmatpush1.msra.mxu0 0.0
    %3333 = vmatprep.subr.mxu0 0.0
    %3334 = vmatpush1.msra.mxu0 0.0
    %3335 = vmatprep.subr.mxu0 0.0
    %3336 = vmatpush1.msra.mxu0 0.0
    %3337 = vmatprep.subr.mxu0 0.0
    %3338 = vmatpush1.msra.mxu0 0.0
    %3339 = vmatprep.subr.mxu0 0.0
    %3340 = vmatpush1.msra.mxu0 0.0
    %3341 = vmatprep.subr.mxu0 0.0
    %3342 = vmatpush1.msra.mxu0 0.0
    %3343 = vmatprep.subr.mxu0 0.0
    %3344 = vmatpush1.msra.mxu0 0.0
    %3345 = vmatprep.subr.mxu0 0.0
    %3346 = vmatpush1.msra.mxu0 0.0
    %3347 = vmatprep.subr.mxu0 0.0
    %3348 = vmatpush1.msra.mxu0 0.0
    %3349 = vmatprep.subr.mxu0 0.0
    %3350 = vmatpush1.msra.mxu0 0.0
    %3351 = vmatprep.subr.mxu0 0.0
    %3352 = vmatpush1.msra.mxu0 0.0
    %3353 = vmatprep.subr.mxu0 0.0
    %3354 = vmatpush1.msra.mxu0 0.0
    %3355 = vmatprep.subr.mxu0 0.0
    %3356 = vmatpush1.msra.mxu0 0.0
    %3357 = vmatprep.subr.mxu0 0.0
    %3358 = vmatpush1.msra.mxu0 0.0
    %3359 = vmatprep.subr.mxu0 0.0
    %3360 = vmatpush1.msra.mxu0 0.0
    %3361 = vmatprep.subr.mxu0 0.0
    %3362 = vmatpush1.msra.mxu0 0.0
    %3363 = vmatprep.subr.mxu0 0.0
    %3364 = vmatpush1.msra.mxu0 0.0
    %3365 = vmatprep.subr.mxu0 0.0
    %3366 = vmatpush1.msra.mxu0 0.0
    %3367 = vmatprep.subr.mxu0 0.0
    %3368 = vmatpush1.msra.mxu0 0.0
    %3369 = vmatprep.subr.mxu0 0.0
    %3370 = vmatpush1.msra.mxu0 0.0
    %3371 = vmatprep.subr.mxu0 0.0
    %3372 = vmatpush1.msra.mxu0 0.0
    %3373 = vmatprep.mubr.f32.mxu0 0.0
    %3374 = vmatmul.mubr.f32.gmra.mrb[0].mxu0 %v235
    %v3375 = vpop.f32.mrb[0].mxu0
    %v3376 = vadd.f32 0.0, %v3375
    %v3377 = vpop.f32.mrb[0].mxu0
    %v3378 = vadd.f32 0.0, %v3377
    %3379 = vmatprep.mubr.f32.mxu0 0.0
    %3380 = vmatmul.mubr.f32.gmra.mrb[0].mxu0 %v238
    %v3381 = vpop.f32.mrb[0].mxu0
    %v3382 = vadd.f32 0.0, %v3381
    %v3383 = vpop.f32.mrb[0].mxu0
    %v3384 = vadd.f32 0.0, %v3383
    %3385 = vmatprep.mubr.f32.mxu0 0.0
    %3386 = vmatmul.mubr.f32.gmra.mrb[0].mxu0 %v241
    %v3387 = vpop.f32.mrb[0].mxu0
    %v3388 = vadd.f32 0.0, %v3387
    %v3389 = vpop.f32.mrb[0].mxu0
    %v3390 = vadd.f32 0.0, %v3389
    %3391 = vmatprep.mubr.f32.mxu0 0.0
    %3392 = vmatmul.mubr.f32.gmra.mrb[0].mxu0 %v244
    %v3393 = vpop.f32.mrb[0].mxu0
    %v3394 = vadd.f32 0.0, %v3393
    %v3395 = vpop.f32.mrb[0].mxu0
    %v3396 = vadd.f32 0.0, %v3395
    %3397 = vmatprep.mubr.f32.mxu0 0.0
    %3398 = vmatmul.mubr.f32.gmra.mrb[0].mxu0 %v247
    %v3399 = vpop.f32.mrb[0].mxu0
    %v3400 = vadd.f32 0.0, %v3399
    %v3401 = vpop.f32.mrb[0].mxu0
    %v3402 = vadd.f32 0.0, %v3401
    %3403 = vmatprep.mubr.f32.mxu0 0.0
    %3404 = vmatmul.mubr.f32.gmra.mrb[0].mxu0 %v250
    %v3405 = vpop.f32.mrb[0].mxu0
    %v3406 = vadd.f32 0.0, %v3405
    %v3407 = vpop.f32.mrb[0].mxu0
    %v3408 = vadd.f32 0.0, %v3407
    %3409 = vmatprep.mubr.f32.mxu0 0.0
    %3410 = vmatmul.mubr.f32.gmra.mrb[0].mxu0 %v253
    %v3411 = vpop.f32.mrb[0].mxu0
    %v3412 = vadd.f32 0.0, %v3411
    %v3413 = vpop.f32.mrb[0].mxu0
    %v3414 = vadd.f32 0.0, %v3413
    %3415 = vmatprep.mubr.f32.mxu0 0.0
    %3416 = vmatmul.mubr.f32.gmra.mrb[0].mxu0 %v256
    %v3417 = vpop.f32.mrb[0].mxu0
    %v3418 = vadd.f32 0.0, %v3417
    %v3419 = vpop.f32.mrb[0].mxu0
    %v3420 = vadd.f32 0.0, %v3419
    %3421 = vdwg.mxu0
    %3422 = vmatprep.subr.mxu0 %v154
    %3423 = vmatpush1.msra.mxu0 %v153
    %3424 = vmatprep.subr.mxu0 0.0
    %3425 = vmatpush1.msra.mxu0 0.0
    %3426 = vmatprep.subr.mxu0 0.0
    %3427 = vmatpush1.msra.mxu0 0.0
    %3428 = vmatprep.subr.mxu0 0.0
    %3429 = vmatpush1.msra.mxu0 0.0
    %3430 = vmatprep.subr.mxu0 0.0
    %3431 = vmatpush1.msra.mxu0 0.0
    %3432 = vmatprep.subr.mxu0 0.0
    %3433 = vmatpush1.msra.mxu0 0.0
    %3434 = vmatprep.subr.mxu0 0.0
    %3435 = vmatpush1.msra.mxu0 0.0
    %3436 = vmatprep.subr.mxu0 0.0
    %3437 = vmatpush1.msra.mxu0 0.0
    %3438 = vmatprep.subr.mxu0 0.0
    %3439 = vmatpush1.msra.mxu0 0.0
    %3440 = vmatprep.subr.mxu0 0.0
    %3441 = vmatpush1.msra.mxu0 0.0
    %3442 = vmatprep.subr.mxu0 0.0
    %3443 = vmatpush1.msra.mxu0 0.0
    %3444 = vmatprep.subr.mxu0 0.0
    %3445 = vmatpush1.msra.mxu0 0.0
    %3446 = vmatprep.subr.mxu0 0.0
    %3447 = vmatpush1.msra.mxu0 0.0
    %3448 = vmatprep.subr.mxu0 0.0
    %3449 = vmatpush1.msra.mxu0 0.0
    %3450 = vmatprep.subr.mxu0 0.0
    %3451 = vmatpush1.msra.mxu0 0.0
    %3452 = vmatprep.subr.mxu0 0.0
    %3453 = vmatpush1.msra.mxu0 0.0
    %3454 = vmatprep.subr.mxu0 0.0
    %3455 = vmatpush1.msra.mxu0 0.0
    %3456 = vmatprep.subr.mxu0 0.0
    %3457 = vmatpush1.msra.mxu0 0.0
    %3458 = vmatprep.subr.mxu0 0.0
    %3459 = vmatpush1.msra.mxu0 0.0
    %3460 = vmatprep.subr.mxu0 0.0
    %3461 = vmatpush1.msra.mxu0 0.0
    %3462 = vmatprep.subr.mxu0 0.0
    %3463 = vmatpush1.msra.mxu0 0.0
    %3464 = vmatprep.subr.mxu0 0.0
    %3465 = vmatpush1.msra.mxu0 0.0
    %3466 = vmatprep.subr.mxu0 0.0
    %3467 = vmatpush1.msra.mxu0 0.0
    %3468 = vmatprep.subr.mxu0 0.0
    %3469 = vmatpush1.msra.mxu0 0.0
    %3470 = vmatprep.subr.mxu0 0.0
    %3471 = vmatpush1.msra.mxu0 0.0
    %3472 = vmatprep.subr.mxu0 0.0
    %3473 = vmatpush1.msra.mxu0 0.0
    %3474 = vmatprep.subr.mxu0 0.0
    %3475 = vmatpush1.msra.mxu0 0.0
    %3476 = vmatprep.subr.mxu0 0.0
    %3477 = vmatpush1.msra.mxu0 0.0
    %3478 = vmatprep.subr.mxu0 0.0
    %3479 = vmatpush1.msra.mxu0 0.0
    %3480 = vmatprep.subr.mxu0 0.0
    %3481 = vmatpush1.msra.mxu0 0.0
    %3482 = vmatprep.subr.mxu0 0.0
    %3483 = vmatpush1.msra.mxu0 0.0
    %3484 = vmatprep.subr.mxu0 0.0
    %3485 = vmatpush1.msra.mxu0 0.0
    %3486 = vmatprep.mubr.f32.mxu0 0.0
    %3487 = vmatmul.mubr.f32.gmra.mrb[0].mxu0 %v235
    %v3488 = vpop.f32.mrb[0].mxu0
    %v3489 = vadd.f32 0.0, %v3488
    %v3490 = vpop.f32.mrb[0].mxu0
    %v3491 = vadd.f32 0.0, %v3490
    %3492 = vmatprep.mubr.f32.mxu0 0.0
    %3493 = vmatmul.mubr.f32.gmra.mrb[0].mxu0 %v238
    %v3494 = vpop.f32.mrb[0].mxu0
    %v3495 = vadd.f32 0.0, %v3494
    %v3496 = vpop.f32.mrb[0].mxu0
    %v3497 = vadd.f32 0.0, %v3496
    %3498 = vmatprep.mubr.f32.mxu0 0.0
    %3499 = vmatmul.mubr.f32.gmra.mrb[0].mxu0 %v241
    %v3500 = vpop.f32.mrb[0].mxu0
    %v3501 = vadd.f32 0.0, %v3500
    %v3502 = vpop.f32.mrb[0].mxu0
    %v3503 = vadd.f32 0.0, %v3502
    %3504 = vmatprep.mubr.f32.mxu0 0.0
    %3505 = vmatmul.mubr.f32.gmra.mrb[0].mxu0 %v244
    %v3506 = vpop.f32.mrb[0].mxu0
    %v3507 = vadd.f32 0.0, %v3506
    %v3508 = vpop.f32.mrb[0].mxu0
    %v3509 = vadd.f32 0.0, %v3508
    %3510 = vmatprep.mubr.f32.mxu0 0.0
    %3511 = vmatmul.mubr.f32.gmra.mrb[0].mxu0 %v247
    %v3512 = vpop.f32.mrb[0].mxu0
    %v3513 = vadd.f32 0.0, %v3512
    %v3514 = vpop.f32.mrb[0].mxu0
    %v3515 = vadd.f32 0.0, %v3514
    %3516 = vmatprep.mubr.f32.mxu0 0.0
    %3517 = vmatmul.mubr.f32.gmra.mrb[0].mxu0 %v250
    %v3518 = vpop.f32.mrb[0].mxu0
    %v3519 = vadd.f32 0.0, %v3518
    %v3520 = vpop.f32.mrb[0].mxu0
    %v3521 = vadd.f32 0.0, %v3520
    %3522 = vmatprep.mubr.f32.mxu0 0.0
    %3523 = vmatmul.mubr.f32.gmra.mrb[0].mxu0 %v253
    %v3524 = vpop.f32.mrb[0].mxu0
    %v3525 = vadd.f32 0.0, %v3524
    %v3526 = vpop.f32.mrb[0].mxu0
    %v3527 = vadd.f32 0.0, %v3526
    %3528 = vmatprep.mubr.f32.mxu0 0.0
    %3529 = vmatmul.mubr.f32.gmra.mrb[0].mxu0 %v256
    %v3530 = vpop.f32.mrb[0].mxu0
    %v3531 = vadd.f32 0.0, %v3530
    %v3532 = vpop.f32.mrb[0].mxu0
    %v3533 = vadd.f32 0.0, %v3532
    %3534 = vdwg.mxu0
    %3535 = vmatprep.subr.mxu0 %v156
    %3536 = vmatpush1.msra.mxu0 %v155
    %3537 = vmatprep.subr.mxu0 0.0
    %3538 = vmatpush1.msra.mxu0 0.0
    %3539 = vmatprep.subr.mxu0 0.0
    %3540 = vmatpush1.msra.mxu0 0.0
    %3541 = vmatprep.subr.mxu0 0.0
    %3542 = vmatpush1.msra.mxu0 0.0
    %3543 = vmatprep.subr.mxu0 0.0
    %3544 = vmatpush1.msra.mxu0 0.0
    %3545 = vmatprep.subr.mxu0 0.0
    %3546 = vmatpush1.msra.mxu0 0.0
    %3547 = vmatprep.subr.mxu0 0.0
    %3548 = vmatpush1.msra.mxu0 0.0
    %3549 = vmatprep.subr.mxu0 0.0
    %3550 = vmatpush1.msra.mxu0 0.0
    %3551 = vmatprep.subr.mxu0 0.0
    %3552 = vmatpush1.msra.mxu0 0.0
    %3553 = vmatprep.subr.mxu0 0.0
    %3554 = vmatpush1.msra.mxu0 0.0
    %3555 = vmatprep.subr.mxu0 0.0
    %3556 = vmatpush1.msra.mxu0 0.0
    %3557 = vmatprep.subr.mxu0 0.0
    %3558 = vmatpush1.msra.mxu0 0.0
    %3559 = vmatprep.subr.mxu0 0.0
    %3560 = vmatpush1.msra.mxu0 0.0
    %3561 = vmatprep.subr.mxu0 0.0
    %3562 = vmatpush1.msra.mxu0 0.0
    %3563 = vmatprep.subr.mxu0 0.0
    %3564 = vmatpush1.msra.mxu0 0.0
    %3565 = vmatprep.subr.mxu0 0.0
    %3566 = vmatpush1.msra.mxu0 0.0
    %3567 = vmatprep.subr.mxu0 0.0
    %3568 = vmatpush1.msra.mxu0 0.0
    %3569 = vmatprep.subr.mxu0 0.0
    %3570 = vmatpush1.msra.mxu0 0.0
    %3571 = vmatprep.subr.mxu0 0.0
    %3572 = vmatpush1.msra.mxu0 0.0
    %3573 = vmatprep.subr.mxu0 0.0
    %3574 = vmatpush1.msra.mxu0 0.0
    %3575 = vmatprep.subr.mxu0 0.0
    %3576 = vmatpush1.msra.mxu0 0.0
    %3577 = vmatprep.subr.mxu0 0.0
    %3578 = vmatpush1.msra.mxu0 0.0
    %3579 = vmatprep.subr.mxu0 0.0
    %3580 = vmatpush1.msra.mxu0 0.0
    %3581 = vmatprep.subr.mxu0 0.0
    %3582 = vmatpush1.msra.mxu0 0.0
    %3583 = vmatprep.subr.mxu0 0.0
    %3584 = vmatpush1.msra.mxu0 0.0
    %3585 = vmatprep.subr.mxu0 0.0
    %3586 = vmatpush1.msra.mxu0 0.0
    %3587 = vmatprep.subr.mxu0 0.0
    %3588 = vmatpush1.msra.mxu0 0.0
    %3589 = vmatprep.subr.mxu0 0.0
    %3590 = vmatpush1.msra.mxu0 0.0
    %3591 = vmatprep.subr.mxu0 0.0
    %3592 = vmatpush1.msra.mxu0 0.0
    %3593 = vmatprep.subr.mxu0 0.0
    %3594 = vmatpush1.msra.mxu0 0.0
    %3595 = vmatprep.subr.mxu0 0.0
    %3596 = vmatpush1.msra.mxu0 0.0
    %3597 = vmatprep.subr.mxu0 0.0
    %3598 = vmatpush1.msra.mxu0 0.0
    %3599 = vmatprep.mubr.f32.mxu0 0.0
    %3600 = vmatmul.mubr.f32.gmra.mrb[0].mxu0 %v235
    %v3601 = vpop.f32.mrb[0].mxu0
    %v3602 = vadd.f32 0.0, %v3601
    %v3603 = vpop.f32.mrb[0].mxu0
    %v3604 = vadd.f32 0.0, %v3603
    %3605 = vmatprep.mubr.f32.mxu0 0.0
    %3606 = vmatmul.mubr.f32.gmra.mrb[0].mxu0 %v238
    %v3607 = vpop.f32.mrb[0].mxu0
    %v3608 = vadd.f32 0.0, %v3607
    %v3609 = vpop.f32.mrb[0].mxu0
    %v3610 = vadd.f32 0.0, %v3609
    %3611 = vmatprep.mubr.f32.mxu0 0.0
    %3612 = vmatmul.mubr.f32.gmra.mrb[0].mxu0 %v241
    %v3613 = vpop.f32.mrb[0].mxu0
    %v3614 = vadd.f32 0.0, %v3613
    %v3615 = vpop.f32.mrb[0].mxu0
    %v3616 = vadd.f32 0.0, %v3615
    %3617 = vmatprep.mubr.f32.mxu0 0.0
    %3618 = vmatmul.mubr.f32.gmra.mrb[0].mxu0 %v244
    %v3619 = vpop.f32.mrb[0].mxu0
    %v3620 = vadd.f32 0.0, %v3619
    %v3621 = vpop.f32.mrb[0].mxu0
    %v3622 = vadd.f32 0.0, %v3621
    %3623 = vmatprep.mubr.f32.mxu0 0.0
    %3624 = vmatmul.mubr.f32.gmra.mrb[0].mxu0 %v247
    %v3625 = vpop.f32.mrb[0].mxu0
    %v3626 = vadd.f32 0.0, %v3625
    %v3627 = vpop.f32.mrb[0].mxu0
    %v3628 = vadd.f32 0.0, %v3627
    %3629 = vmatprep.mubr.f32.mxu0 0.0
    %3630 = vmatmul.mubr.f32.gmra.mrb[0].mxu0 %v250
    %v3631 = vpop.f32.mrb[0].mxu0
    %v3632 = vadd.f32 0.0, %v3631
    %v3633 = vpop.f32.mrb[0].mxu0
    %v3634 = vadd.f32 0.0, %v3633
    %3635 = vmatprep.mubr.f32.mxu0 0.0
    %3636 = vmatmul.mubr.f32.gmra.mrb[0].mxu0 %v253
    %v3637 = vpop.f32.mrb[0].mxu0
    %v3638 = vadd.f32 0.0, %v3637
    %v3639 = vpop.f32.mrb[0].mxu0
    %v3640 = vadd.f32 0.0, %v3639
    %3641 = vmatprep.mubr.f32.mxu0 0.0
    %3642 = vmatmul.mubr.f32.gmra.mrb[0].mxu0 %v256
    %v3643 = vpop.f32.mrb[0].mxu0
    %v3644 = vadd.f32 0.0, %v3643
    %v3645 = vpop.f32.mrb[0].mxu0
    %v3646 = vadd.f32 0.0, %v3645
    %3647 = vdwg.mxu0
    %3648 = vmatprep.subr.mxu0 %v158
    %3649 = vmatpush1.msra.mxu0 %v157
    %3650 = vmatprep.subr.mxu0 0.0
    %3651 = vmatpush1.msra.mxu0 0.0
    %3652 = vmatprep.subr.mxu0 0.0
    %3653 = vmatpush1.msra.mxu0 0.0
    %3654 = vmatprep.subr.mxu0 0.0
    %3655 = vmatpush1.msra.mxu0 0.0
    %3656 = vmatprep.subr.mxu0 0.0
    %3657 = vmatpush1.msra.mxu0 0.0
    %3658 = vmatprep.subr.mxu0 0.0
    %3659 = vmatpush1.msra.mxu0 0.0
    %3660 = vmatprep.subr.mxu0 0.0
    %3661 = vmatpush1.msra.mxu0 0.0
    %3662 = vmatprep.subr.mxu0 0.0
    %3663 = vmatpush1.msra.mxu0 0.0
    %3664 = vmatprep.subr.mxu0 0.0
    %3665 = vmatpush1.msra.mxu0 0.0
    %3666 = vmatprep.subr.mxu0 0.0
    %3667 = vmatpush1.msra.mxu0 0.0
    %3668 = vmatprep.subr.mxu0 0.0
    %3669 = vmatpush1.msra.mxu0 0.0
    %3670 = vmatprep.subr.mxu0 0.0
    %3671 = vmatpush1.msra.mxu0 0.0
    %3672 = vmatprep.subr.mxu0 0.0
    %3673 = vmatpush1.msra.mxu0 0.0
    %3674 = vmatprep.subr.mxu0 0.0
    %3675 = vmatpush1.msra.mxu0 0.0
    %3676 = vmatprep.subr.mxu0 0.0
    %3677 = vmatpush1.msra.mxu0 0.0
    %3678 = vmatprep.subr.mxu0 0.0
    %3679 = vmatpush1.msra.mxu0 0.0
    %3680 = vmatprep.subr.mxu0 0.0
    %3681 = vmatpush1.msra.mxu0 0.0
    %3682 = vmatprep.subr.mxu0 0.0
    %3683 = vmatpush1.msra.mxu0 0.0
    %3684 = vmatprep.subr.mxu0 0.0
    %3685 = vmatpush1.msra.mxu0 0.0
    %3686 = vmatprep.subr.mxu0 0.0
    %3687 = vmatpush1.msra.mxu0 0.0
    %3688 = vmatprep.subr.mxu0 0.0
    %3689 = vmatpush1.msra.mxu0 0.0
    %3690 = vmatprep.subr.mxu0 0.0
    %3691 = vmatpush1.msra.mxu0 0.0
    %3692 = vmatprep.subr.mxu0 0.0
    %3693 = vmatpush1.msra.mxu0 0.0
    %3694 = vmatprep.subr.mxu0 0.0
    %3695 = vmatpush1.msra.mxu0 0.0
    %3696 = vmatprep.subr.mxu0 0.0
    %3697 = vmatpush1.msra.mxu0 0.0
    %3698 = vmatprep.subr.mxu0 0.0
    %3699 = vmatpush1.msra.mxu0 0.0
    %3700 = vmatprep.subr.mxu0 0.0
    %3701 = vmatpush1.msra.mxu0 0.0
    %3702 = vmatprep.subr.mxu0 0.0
    %3703 = vmatpush1.msra.mxu0 0.0
    %3704 = vmatprep.subr.mxu0 0.0
    %3705 = vmatpush1.msra.mxu0 0.0
    %3706 = vmatprep.subr.mxu0 0.0
    %3707 = vmatpush1.msra.mxu0 0.0
    %3708 = vmatprep.subr.mxu0 0.0
    %3709 = vmatpush1.msra.mxu0 0.0
    %3710 = vmatprep.subr.mxu0 0.0
    %3711 = vmatpush1.msra.mxu0 0.0
    %3712 = vmatprep.mubr.f32.mxu0 0.0
    %3713 = vmatmul.mubr.f32.gmra.mrb[0].mxu0 %v235
    %v3714 = vpop.f32.mrb[0].mxu0
    %v3715 = vadd.f32 0.0, %v3714
    %v3716 = vpop.f32.mrb[0].mxu0
    %v3717 = vadd.f32 0.0, %v3716
    %3718 = vmatprep.mubr.f32.mxu0 0.0
    %3719 = vmatmul.mubr.f32.gmra.mrb[0].mxu0 %v238
    %v3720 = vpop.f32.mrb[0].mxu0
    %v3721 = vadd.f32 0.0, %v3720
    %v3722 = vpop.f32.mrb[0].mxu0
    %v3723 = vadd.f32 0.0, %v3722
    %3724 = vmatprep.mubr.f32.mxu0 0.0
    %3725 = vmatmul.mubr.f32.gmra.mrb[0].mxu0 %v241
    %v3726 = vpop.f32.mrb[0].mxu0
    %v3727 = vadd.f32 0.0, %v3726
    %v3728 = vpop.f32.mrb[0].mxu0
    %v3729 = vadd.f32 0.0, %v3728
    %3730 = vmatprep.mubr.f32.mxu0 0.0
    %3731 = vmatmul.mubr.f32.gmra.mrb[0].mxu0 %v244
    %v3732 = vpop.f32.mrb[0].mxu0
    %v3733 = vadd.f32 0.0, %v3732
    %v3734 = vpop.f32.mrb[0].mxu0
    %v3735 = vadd.f32 0.0, %v3734
    %3736 = vmatprep.mubr.f32.mxu0 0.0
    %3737 = vmatmul.mubr.f32.gmra.mrb[0].mxu0 %v247
    %v3738 = vpop.f32.mrb[0].mxu0
    %v3739 = vadd.f32 0.0, %v3738
    %v3740 = vpop.f32.mrb[0].mxu0
    %v3741 = vadd.f32 0.0, %v3740
    %3742 = vmatprep.mubr.f32.mxu0 0.0
    %3743 = vmatmul.mubr.f32.gmra.mrb[0].mxu0 %v250
    %v3744 = vpop.f32.mrb[0].mxu0
    %v3745 = vadd.f32 0.0, %v3744
    %v3746 = vpop.f32.mrb[0].mxu0
    %v3747 = vadd.f32 0.0, %v3746
    %3748 = vmatprep.mubr.f32.mxu0 0.0
    %3749 = vmatmul.mubr.f32.gmra.mrb[0].mxu0 %v253
    %v3750 = vpop.f32.mrb[0].mxu0
    %v3751 = vadd.f32 0.0, %v3750
    %v3752 = vpop.f32.mrb[0].mxu0
    %v3753 = vadd.f32 0.0, %v3752
    %3754 = vmatprep.mubr.f32.mxu0 0.0
    %3755 = vmatmul.mubr.f32.gmra.mrb[0].mxu0 %v256
    %v3756 = vpop.f32.mrb[0].mxu0
    %v3757 = vadd.f32 0.0, %v3756
    %v3758 = vpop.f32.mrb[0].mxu0
    %v3759 = vadd.f32 0.0, %v3758
    %3760 = vdwg.mxu0
    %3761 = vmatprep.subr.mxu0 %v160
    %3762 = vmatpush1.msra.mxu0 %v159
    %3763 = vmatprep.subr.mxu0 0.0
    %3764 = vmatpush1.msra.mxu0 0.0
    %3765 = vmatprep.subr.mxu0 0.0
    %3766 = vmatpush1.msra.mxu0 0.0
    %3767 = vmatprep.subr.mxu0 0.0
    %3768 = vmatpush1.msra.mxu0 0.0
    %3769 = vmatprep.subr.mxu0 0.0
    %3770 = vmatpush1.msra.mxu0 0.0
    %3771 = vmatprep.subr.mxu0 0.0
    %3772 = vmatpush1.msra.mxu0 0.0
    %3773 = vmatprep.subr.mxu0 0.0
    %3774 = vmatpush1.msra.mxu0 0.0
    %3775 = vmatprep.subr.mxu0 0.0
    %3776 = vmatpush1.msra.mxu0 0.0
    %3777 = vmatprep.subr.mxu0 0.0
    %3778 = vmatpush1.msra.mxu0 0.0
    %3779 = vmatprep.subr.mxu0 0.0
    %3780 = vmatpush1.msra.mxu0 0.0
    %3781 = vmatprep.subr.mxu0 0.0
    %3782 = vmatpush1.msra.mxu0 0.0
    %3783 = vmatprep.subr.mxu0 0.0
    %3784 = vmatpush1.msra.mxu0 0.0
    %3785 = vmatprep.subr.mxu0 0.0
    %3786 = vmatpush1.msra.mxu0 0.0
    %3787 = vmatprep.subr.mxu0 0.0
    %3788 = vmatpush1.msra.mxu0 0.0
    %3789 = vmatprep.subr.mxu0 0.0
    %3790 = vmatpush1.msra.mxu0 0.0
    %3791 = vmatprep.subr.mxu0 0.0
    %3792 = vmatpush1.msra.mxu0 0.0
    %3793 = vmatprep.subr.mxu0 0.0
    %3794 = vmatpush1.msra.mxu0 0.0
    %3795 = vmatprep.subr.mxu0 0.0
    %3796 = vmatpush1.msra.mxu0 0.0
    %3797 = vmatprep.subr.mxu0 0.0
    %3798 = vmatpush1.msra.mxu0 0.0
    %3799 = vmatprep.subr.mxu0 0.0
    %3800 = vmatpush1.msra.mxu0 0.0
    %3801 = vmatprep.subr.mxu0 0.0
    %3802 = vmatpush1.msra.mxu0 0.0
    %3803 = vmatprep.subr.mxu0 0.0
    %3804 = vmatpush1.msra.mxu0 0.0
    %3805 = vmatprep.subr.mxu0 0.0
    %3806 = vmatpush1.msra.mxu0 0.0
    %3807 = vmatprep.subr.mxu0 0.0
    %3808 = vmatpush1.msra.mxu0 0.0
    %3809 = vmatprep.subr.mxu0 0.0
    %3810 = vmatpush1.msra.mxu0 0.0
    %3811 = vmatprep.subr.mxu0 0.0
    %3812 = vmatpush1.msra.mxu0 0.0
    %3813 = vmatprep.subr.mxu0 0.0
    %3814 = vmatpush1.msra.mxu0 0.0
    %3815 = vmatprep.subr.mxu0 0.0
    %3816 = vmatpush1.msra.mxu0 0.0
    %3817 = vmatprep.subr.mxu0 0.0
    %3818 = vmatpush1.msra.mxu0 0.0
    %3819 = vmatprep.subr.mxu0 0.0
    %3820 = vmatpush1.msra.mxu0 0.0
    %3821 = vmatprep.subr.mxu0 0.0
    %3822 = vmatpush1.msra.mxu0 0.0
    %3823 = vmatprep.subr.mxu0 0.0
    %3824 = vmatpush1.msra.mxu0 0.0
    %3825 = vmatprep.mubr.f32.mxu0 0.0
    %3826 = vmatmul.mubr.f32.gmra.mrb[0].mxu0 %v235
    %v3827 = vpop.f32.mrb[0].mxu0
    %v3828 = vadd.f32 0.0, %v3827
    %v3829 = vpop.f32.mrb[0].mxu0
    %v3830 = vadd.f32 0.0, %v3829
    %3831 = vmatprep.mubr.f32.mxu0 0.0
    %3832 = vmatmul.mubr.f32.gmra.mrb[0].mxu0 %v238
    %v3833 = vpop.f32.mrb[0].mxu0
    %v3834 = vadd.f32 0.0, %v3833
    %v3835 = vpop.f32.mrb[0].mxu0
    %v3836 = vadd.f32 0.0, %v3835
    %3837 = vmatprep.mubr.f32.mxu0 0.0
    %3838 = vmatmul.mubr.f32.gmra.mrb[0].mxu0 %v241
    %v3839 = vpop.f32.mrb[0].mxu0
    %v3840 = vadd.f32 0.0, %v3839
    %v3841 = vpop.f32.mrb[0].mxu0
    %v3842 = vadd.f32 0.0, %v3841
    %3843 = vmatprep.mubr.f32.mxu0 0.0
    %3844 = vmatmul.mubr.f32.gmra.mrb[0].mxu0 %v244
    %v3845 = vpop.f32.mrb[0].mxu0
    %v3846 = vadd.f32 0.0, %v3845
    %v3847 = vpop.f32.mrb[0].mxu0
    %v3848 = vadd.f32 0.0, %v3847
    %3849 = vmatprep.mubr.f32.mxu0 0.0
    %3850 = vmatmul.mubr.f32.gmra.mrb[0].mxu0 %v247
    %v3851 = vpop.f32.mrb[0].mxu0
    %v3852 = vadd.f32 0.0, %v3851
    %v3853 = vpop.f32.mrb[0].mxu0
    %v3854 = vadd.f32 0.0, %v3853
    %3855 = vmatprep.mubr.f32.mxu0 0.0
    %3856 = vmatmul.mubr.f32.gmra.mrb[0].mxu0 %v250
    %v3857 = vpop.f32.mrb[0].mxu0
    %v3858 = vadd.f32 0.0, %v3857
    %v3859 = vpop.f32.mrb[0].mxu0
    %v3860 = vadd.f32 0.0, %v3859
    %3861 = vmatprep.mubr.f32.mxu0 0.0
    %3862 = vmatmul.mubr.f32.gmra.mrb[0].mxu0 %v253
    %v3863 = vpop.f32.mrb[0].mxu0
    %v3864 = vadd.f32 0.0, %v3863
    %v3865 = vpop.f32.mrb[0].mxu0
    %v3866 = vadd.f32 0.0, %v3865
    %3867 = vmatprep.mubr.f32.mxu0 0.0
    %3868 = vmatmul.mubr.f32.gmra.mrb[0].mxu0 %v256
    %v3869 = vpop.f32.mrb[0].mxu0
    %v3870 = vadd.f32 0.0, %v3869
    %v3871 = vpop.f32.mrb[0].mxu0
    %v3872 = vadd.f32 0.0, %v3871
    %3873 = vdwg.mxu0
    %3874 = vmatprep.subr.mxu0 %v162
    %3875 = vmatpush1.msra.mxu0 %v161
    %3876 = vmatprep.subr.mxu0 0.0
    %3877 = vmatpush1.msra.mxu0 0.0
    %3878 = vmatprep.subr.mxu0 0.0
    %3879 = vmatpush1.msra.mxu0 0.0
    %3880 = vmatprep.subr.mxu0 0.0
    %3881 = vmatpush1.msra.mxu0 0.0
    %3882 = vmatprep.subr.mxu0 0.0
    %3883 = vmatpush1.msra.mxu0 0.0
    %3884 = vmatprep.subr.mxu0 0.0
    %3885 = vmatpush1.msra.mxu0 0.0
    %3886 = vmatprep.subr.mxu0 0.0
    %3887 = vmatpush1.msra.mxu0 0.0
    %3888 = vmatprep.subr.mxu0 0.0
    %3889 = vmatpush1.msra.mxu0 0.0
    %3890 = vmatprep.subr.mxu0 0.0
    %3891 = vmatpush1.msra.mxu0 0.0
    %3892 = vmatprep.subr.mxu0 0.0
    %3893 = vmatpush1.msra.mxu0 0.0
    %3894 = vmatprep.subr.mxu0 0.0
    %3895 = vmatpush1.msra.mxu0 0.0
    %3896 = vmatprep.subr.mxu0 0.0
    %3897 = vmatpush1.msra.mxu0 0.0
    %3898 = vmatprep.subr.mxu0 0.0
    %3899 = vmatpush1.msra.mxu0 0.0
    %3900 = vmatprep.subr.mxu0 0.0
    %3901 = vmatpush1.msra.mxu0 0.0
    %3902 = vmatprep.subr.mxu0 0.0
    %3903 = vmatpush1.msra.mxu0 0.0
    %3904 = vmatprep.subr.mxu0 0.0
    %3905 = vmatpush1.msra.mxu0 0.0
    %3906 = vmatprep.subr.mxu0 0.0
    %3907 = vmatpush1.msra.mxu0 0.0
    %3908 = vmatprep.subr.mxu0 0.0
    %3909 = vmatpush1.msra.mxu0 0.0
    %3910 = vmatprep.subr.mxu0 0.0
    %3911 = vmatpush1.msra.mxu0 0.0
    %3912 = vmatprep.subr.mxu0 0.0
    %3913 = vmatpush1.msra.mxu0 0.0
    %3914 = vmatprep.subr.mxu0 0.0
    %3915 = vmatpush1.msra.mxu0 0.0
    %3916 = vmatprep.subr.mxu0 0.0
    %3917 = vmatpush1.msra.mxu0 0.0
    %3918 = vmatprep.subr.mxu0 0.0
    %3919 = vmatpush1.msra.mxu0 0.0
    %3920 = vmatprep.subr.mxu0 0.0
    %3921 = vmatpush1.msra.mxu0 0.0
    %3922 = vmatprep.subr.mxu0 0.0
    %3923 = vmatpush1.msra.mxu0 0.0
    %3924 = vmatprep.subr.mxu0 0.0
    %3925 = vmatpush1.msra.mxu0 0.0
    %3926 = vmatprep.subr.mxu0 0.0
    %3927 = vmatpush1.msra.mxu0 0.0
    %3928 = vmatprep.subr.mxu0 0.0
    %3929 = vmatpush1.msra.mxu0 0.0
    %3930 = vmatprep.subr.mxu0 0.0
    %3931 = vmatpush1.msra.mxu0 0.0
    %3932 = vmatprep.subr.mxu0 0.0
    %3933 = vmatpush1.msra.mxu0 0.0
    %3934 = vmatprep.subr.mxu0 0.0
    %3935 = vmatpush1.msra.mxu0 0.0
    %3936 = vmatprep.subr.mxu0 0.0
    %3937 = vmatpush1.msra.mxu0 0.0
    %3938 = vmatprep.mubr.f32.mxu0 0.0
    %3939 = vmatmul.mubr.f32.gmra.mrb[0].mxu0 %v235
    %v3940 = vpop.f32.mrb[0].mxu0
    %v3941 = vadd.f32 0.0, %v3940
    %v3942 = vpop.f32.mrb[0].mxu0
    %v3943 = vadd.f32 0.0, %v3942
    %3944 = vmatprep.mubr.f32.mxu0 0.0
    %3945 = vmatmul.mubr.f32.gmra.mrb[0].mxu0 %v238
    %v3946 = vpop.f32.mrb[0].mxu0
    %v3947 = vadd.f32 0.0, %v3946
    %v3948 = vpop.f32.mrb[0].mxu0
    %v3949 = vadd.f32 0.0, %v3948
    %3950 = vmatprep.mubr.f32.mxu0 0.0
    %3951 = vmatmul.mubr.f32.gmra.mrb[0].mxu0 %v241
    %v3952 = vpop.f32.mrb[0].mxu0
    %v3953 = vadd.f32 0.0, %v3952
    %v3954 = vpop.f32.mrb[0].mxu0
    %v3955 = vadd.f32 0.0, %v3954
    %3956 = vmatprep.mubr.f32.mxu0 0.0
    %3957 = vmatmul.mubr.f32.gmra.mrb[0].mxu0 %v244
    %v3958 = vpop.f32.mrb[0].mxu0
    %v3959 = vadd.f32 0.0, %v3958
    %v3960 = vpop.f32.mrb[0].mxu0
    %v3961 = vadd.f32 0.0, %v3960
    %3962 = vmatprep.mubr.f32.mxu0 0.0
    %3963 = vmatmul.mubr.f32.gmra.mrb[0].mxu0 %v247
    %v3964 = vpop.f32.mrb[0].mxu0
    %v3965 = vadd.f32 0.0, %v3964
    %v3966 = vpop.f32.mrb[0].mxu0
    %v3967 = vadd.f32 0.0, %v3966
    %3968 = vmatprep.mubr.f32.mxu0 0.0
    %3969 = vmatmul.mubr.f32.gmra.mrb[0].mxu0 %v250
    %v3970 = vpop.f32.mrb[0].mxu0
    %v3971 = vadd.f32 0.0, %v3970
    %v3972 = vpop.f32.mrb[0].mxu0
    %v3973 = vadd.f32 0.0, %v3972
    %3974 = vmatprep.mubr.f32.mxu0 0.0
    %3975 = vmatmul.mubr.f32.gmra.mrb[0].mxu0 %v253
    %v3976 = vpop.f32.mrb[0].mxu0
    %v3977 = vadd.f32 0.0, %v3976
    %v3978 = vpop.f32.mrb[0].mxu0
    %v3979 = vadd.f32 0.0, %v3978
    %3980 = vmatprep.mubr.f32.mxu0 0.0
    %3981 = vmatmul.mubr.f32.gmra.mrb[0].mxu0 %v256
    %v3982 = vpop.f32.mrb[0].mxu0
    %v3983 = vadd.f32 0.0, %v3982
    %v3984 = vpop.f32.mrb[0].mxu0
    %v3985 = vadd.f32 0.0, %v3984
    %3986 = vdwg.mxu0
    %3987 = vmatprep.subr.mxu0 %v164
    %3988 = vmatpush1.msra.mxu0 %v163
    %3989 = vmatprep.subr.mxu0 0.0
    %3990 = vmatpush1.msra.mxu0 0.0
    %3991 = vmatprep.subr.mxu0 0.0
    %3992 = vmatpush1.msra.mxu0 0.0
    %3993 = vmatprep.subr.mxu0 0.0
    %3994 = vmatpush1.msra.mxu0 0.0
    %3995 = vmatprep.subr.mxu0 0.0
    %3996 = vmatpush1.msra.mxu0 0.0
    %3997 = vmatprep.subr.mxu0 0.0
    %3998 = vmatpush1.msra.mxu0 0.0
    %3999 = vmatprep.subr.mxu0 0.0
    %4000 = vmatpush1.msra.mxu0 0.0
    %4001 = vmatprep.subr.mxu0 0.0
    %4002 = vmatpush1.msra.mxu0 0.0
    %4003 = vmatprep.subr.mxu0 0.0
    %4004 = vmatpush1.msra.mxu0 0.0
    %4005 = vmatprep.subr.mxu0 0.0
    %4006 = vmatpush1.msra.mxu0 0.0
    %4007 = vmatprep.subr.mxu0 0.0
    %4008 = vmatpush1.msra.mxu0 0.0
    %4009 = vmatprep.subr.mxu0 0.0
    %4010 = vmatpush1.msra.mxu0 0.0
    %4011 = vmatprep.subr.mxu0 0.0
    %4012 = vmatpush1.msra.mxu0 0.0
    %4013 = vmatprep.subr.mxu0 0.0
    %4014 = vmatpush1.msra.mxu0 0.0
    %4015 = vmatprep.subr.mxu0 0.0
    %4016 = vmatpush1.msra.mxu0 0.0
    %4017 = vmatprep.subr.mxu0 0.0
    %4018 = vmatpush1.msra.mxu0 0.0
    %4019 = vmatprep.subr.mxu0 0.0
    %4020 = vmatpush1.msra.mxu0 0.0
    %4021 = vmatprep.subr.mxu0 0.0
    %4022 = vmatpush1.msra.mxu0 0.0
    %4023 = vmatprep.subr.mxu0 0.0
    %4024 = vmatpush1.msra.mxu0 0.0
    %4025 = vmatprep.subr.mxu0 0.0
    %4026 = vmatpush1.msra.mxu0 0.0
    %4027 = vmatprep.subr.mxu0 0.0
    %4028 = vmatpush1.msra.mxu0 0.0
    %4029 = vmatprep.subr.mxu0 0.0
    %4030 = vmatpush1.msra.mxu0 0.0
    %4031 = vmatprep.subr.mxu0 0.0
    %4032 = vmatpush1.msra.mxu0 0.0
    %4033 = vmatprep.subr.mxu0 0.0
    %4034 = vmatpush1.msra.mxu0 0.0
    %4035 = vmatprep.subr.mxu0 0.0
    %4036 = vmatpush1.msra.mxu0 0.0
    %4037 = vmatprep.subr.mxu0 0.0
    %4038 = vmatpush1.msra.mxu0 0.0
    %4039 = vmatprep.subr.mxu0 0.0
    %4040 = vmatpush1.msra.mxu0 0.0
    %4041 = vmatprep.subr.mxu0 0.0
    %4042 = vmatpush1.msra.mxu0 0.0
    %4043 = vmatprep.subr.mxu0 0.0
    %4044 = vmatpush1.msra.mxu0 0.0
    %4045 = vmatprep.subr.mxu0 0.0
    %4046 = vmatpush1.msra.mxu0 0.0
    %4047 = vmatprep.subr.mxu0 0.0
    %4048 = vmatpush1.msra.mxu0 0.0
    %4049 = vmatprep.subr.mxu0 0.0
    %4050 = vmatpush1.msra.mxu0 0.0
    %4051 = vmatprep.mubr.f32.mxu0 0.0
    %4052 = vmatmul.mubr.f32.gmra.mrb[0].mxu0 %v235
    %v4053 = vpop.f32.mrb[0].mxu0
    %v4054 = vadd.f32 0.0, %v4053
    %v4055 = vpop.f32.mrb[0].mxu0
    %v4056 = vadd.f32 0.0, %v4055
    %4057 = vmatprep.mubr.f32.mxu0 0.0
    %4058 = vmatmul.mubr.f32.gmra.mrb[0].mxu0 %v238
    %v4059 = vpop.f32.mrb[0].mxu0
    %v4060 = vadd.f32 0.0, %v4059
    %v4061 = vpop.f32.mrb[0].mxu0
    %v4062 = vadd.f32 0.0, %v4061
    %4063 = vmatprep.mubr.f32.mxu0 0.0
    %4064 = vmatmul.mubr.f32.gmra.mrb[0].mxu0 %v241
    %v4065 = vpop.f32.mrb[0].mxu0
    %v4066 = vadd.f32 0.0, %v4065
    %v4067 = vpop.f32.mrb[0].mxu0
    %v4068 = vadd.f32 0.0, %v4067
    %4069 = vmatprep.mubr.f32.mxu0 0.0
    %4070 = vmatmul.mubr.f32.gmra.mrb[0].mxu0 %v244
    %v4071 = vpop.f32.mrb[0].mxu0
    %v4072 = vadd.f32 0.0, %v4071
    %v4073 = vpop.f32.mrb[0].mxu0
    %v4074 = vadd.f32 0.0, %v4073
    %4075 = vmatprep.mubr.f32.mxu0 0.0
    %4076 = vmatmul.mubr.f32.gmra.mrb[0].mxu0 %v247
    %v4077 = vpop.f32.mrb[0].mxu0
    %v4078 = vadd.f32 0.0, %v4077
    %v4079 = vpop.f32.mrb[0].mxu0
    %v4080 = vadd.f32 0.0, %v4079
    %4081 = vmatprep.mubr.f32.mxu0 0.0
    %4082 = vmatmul.mubr.f32.gmra.mrb[0].mxu0 %v250
    %v4083 = vpop.f32.mrb[0].mxu0
    %v4084 = vadd.f32 0.0, %v4083
    %v4085 = vpop.f32.mrb[0].mxu0
    %v4086 = vadd.f32 0.0, %v4085
    %4087 = vmatprep.mubr.f32.mxu0 0.0
    %4088 = vmatmul.mubr.f32.gmra.mrb[0].mxu0 %v253
    %v4089 = vpop.f32.mrb[0].mxu0
    %v4090 = vadd.f32 0.0, %v4089
    %v4091 = vpop.f32.mrb[0].mxu0
    %v4092 = vadd.f32 0.0, %v4091
    %4093 = vmatprep.mubr.f32.mxu0 0.0
    %4094 = vmatmul.mubr.f32.gmra.mrb[0].mxu0 %v256
    %v4095 = vpop.f32.mrb[0].mxu0
    %v4096 = vadd.f32 0.0, %v4095
    %v4097 = vpop.f32.mrb[0].mxu0
    %v4098 = vadd.f32 0.0, %v4097
    %4099 = vdwg.mxu0
    %4100 = vmatprep.subr.mxu0 %v166
    %4101 = vmatpush1.msra.mxu0 %v165
    %4102 = vmatprep.subr.mxu0 0.0
    %4103 = vmatpush1.msra.mxu0 0.0
    %4104 = vmatprep.subr.mxu0 0.0
    %4105 = vmatpush1.msra.mxu0 0.0
    %4106 = vmatprep.subr.mxu0 0.0
    %4107 = vmatpush1.msra.mxu0 0.0
    %4108 = vmatprep.subr.mxu0 0.0
    %4109 = vmatpush1.msra.mxu0 0.0
    %4110 = vmatprep.subr.mxu0 0.0
    %4111 = vmatpush1.msra.mxu0 0.0
    %4112 = vmatprep.subr.mxu0 0.0
    %4113 = vmatpush1.msra.mxu0 0.0
    %4114 = vmatprep.subr.mxu0 0.0
    %4115 = vmatpush1.msra.mxu0 0.0
    %4116 = vmatprep.subr.mxu0 0.0
    %4117 = vmatpush1.msra.mxu0 0.0
    %4118 = vmatprep.subr.mxu0 0.0
    %4119 = vmatpush1.msra.mxu0 0.0
    %4120 = vmatprep.subr.mxu0 0.0
    %4121 = vmatpush1.msra.mxu0 0.0
    %4122 = vmatprep.subr.mxu0 0.0
    %4123 = vmatpush1.msra.mxu0 0.0
    %4124 = vmatprep.subr.mxu0 0.0
    %4125 = vmatpush1.msra.mxu0 0.0
    %4126 = vmatprep.subr.mxu0 0.0
    %4127 = vmatpush1.msra.mxu0 0.0
    %4128 = vmatprep.subr.mxu0 0.0
    %4129 = vmatpush1.msra.mxu0 0.0
    %4130 = vmatprep.subr.mxu0 0.0
    %4131 = vmatpush1.msra.mxu0 0.0
    %4132 = vmatprep.subr.mxu0 0.0
    %4133 = vmatpush1.msra.mxu0 0.0
    %4134 = vmatprep.subr.mxu0 0.0
    %4135 = vmatpush1.msra.mxu0 0.0
    %4136 = vmatprep.subr.mxu0 0.0
    %4137 = vmatpush1.msra.mxu0 0.0
    %4138 = vmatprep.subr.mxu0 0.0
    %4139 = vmatpush1.msra.mxu0 0.0
    %4140 = vmatprep.subr.mxu0 0.0
    %4141 = vmatpush1.msra.mxu0 0.0
    %4142 = vmatprep.subr.mxu0 0.0
    %4143 = vmatpush1.msra.mxu0 0.0
    %4144 = vmatprep.subr.mxu0 0.0
    %4145 = vmatpush1.msra.mxu0 0.0
    %4146 = vmatprep.subr.mxu0 0.0
    %4147 = vmatpush1.msra.mxu0 0.0
    %4148 = vmatprep.subr.mxu0 0.0
    %4149 = vmatpush1.msra.mxu0 0.0
    %4150 = vmatprep.subr.mxu0 0.0
    %4151 = vmatpush1.msra.mxu0 0.0
    %4152 = vmatprep.subr.mxu0 0.0
    %4153 = vmatpush1.msra.mxu0 0.0
    %4154 = vmatprep.subr.mxu0 0.0
    %4155 = vmatpush1.msra.mxu0 0.0
    %4156 = vmatprep.subr.mxu0 0.0
    %4157 = vmatpush1.msra.mxu0 0.0
    %4158 = vmatprep.subr.mxu0 0.0
    %4159 = vmatpush1.msra.mxu0 0.0
    %4160 = vmatprep.subr.mxu0 0.0
    %4161 = vmatpush1.msra.mxu0 0.0
    %4162 = vmatprep.subr.mxu0 0.0
    %4163 = vmatpush1.msra.mxu0 0.0
    %4164 = vmatprep.mubr.f32.mxu0 0.0
    %4165 = vmatmul.mubr.f32.gmra.mrb[0].mxu0 %v235
    %v4166 = vpop.f32.mrb[0].mxu0
    %v4167 = vadd.f32 0.0, %v4166
    %v4168 = vpop.f32.mrb[0].mxu0
    %v4169 = vadd.f32 0.0, %v4168
    %4170 = vmatprep.mubr.f32.mxu0 0.0
    %4171 = vmatmul.mubr.f32.gmra.mrb[0].mxu0 %v238
    %v4172 = vpop.f32.mrb[0].mxu0
    %v4173 = vadd.f32 0.0, %v4172
    %v4174 = vpop.f32.mrb[0].mxu0
    %v4175 = vadd.f32 0.0, %v4174
    %4176 = vmatprep.mubr.f32.mxu0 0.0
    %4177 = vmatmul.mubr.f32.gmra.mrb[0].mxu0 %v241
    %v4178 = vpop.f32.mrb[0].mxu0
    %v4179 = vadd.f32 0.0, %v4178
    %v4180 = vpop.f32.mrb[0].mxu0
    %v4181 = vadd.f32 0.0, %v4180
    %4182 = vmatprep.mubr.f32.mxu0 0.0
    %4183 = vmatmul.mubr.f32.gmra.mrb[0].mxu0 %v244
    %v4184 = vpop.f32.mrb[0].mxu0
    %v4185 = vadd.f32 0.0, %v4184
    %v4186 = vpop.f32.mrb[0].mxu0
    %v4187 = vadd.f32 0.0, %v4186
    %4188 = vmatprep.mubr.f32.mxu0 0.0
    %4189 = vmatmul.mubr.f32.gmra.mrb[0].mxu0 %v247
    %v4190 = vpop.f32.mrb[0].mxu0
    %v4191 = vadd.f32 0.0, %v4190
    %v4192 = vpop.f32.mrb[0].mxu0
    %v4193 = vadd.f32 0.0, %v4192
    %4194 = vmatprep.mubr.f32.mxu0 0.0
    %4195 = vmatmul.mubr.f32.gmra.mrb[0].mxu0 %v250
    %v4196 = vpop.f32.mrb[0].mxu0
    %v4197 = vadd.f32 0.0, %v4196
    %v4198 = vpop.f32.mrb[0].mxu0
    %v4199 = vadd.f32 0.0, %v4198
    %4200 = vmatprep.mubr.f32.mxu0 0.0
    %4201 = vmatmul.mubr.f32.gmra.mrb[0].mxu0 %v253
    %v4202 = vpop.f32.mrb[0].mxu0
    %v4203 = vadd.f32 0.0, %v4202
    %v4204 = vpop.f32.mrb[0].mxu0
    %v4205 = vadd.f32 0.0, %v4204
    %4206 = vmatprep.mubr.f32.mxu0 0.0
    %4207 = vmatmul.mubr.f32.gmra.mrb[0].mxu0 %v256
    %v4208 = vpop.f32.mrb[0].mxu0
    %v4209 = vadd.f32 0.0, %v4208
    %v4210 = vpop.f32.mrb[0].mxu0
    %v4211 = vadd.f32 0.0, %v4210
    %4212 = vdwg.mxu0
    %4213 = vmatprep.subr.mxu0 %v168
    %4214 = vmatpush1.msra.mxu0 %v167
    %4215 = vmatprep.subr.mxu0 0.0
    %4216 = vmatpush1.msra.mxu0 0.0
    %4217 = vmatprep.subr.mxu0 0.0
    %4218 = vmatpush1.msra.mxu0 0.0
    %4219 = vmatprep.subr.mxu0 0.0
    %4220 = vmatpush1.msra.mxu0 0.0
    %4221 = vmatprep.subr.mxu0 0.0
    %4222 = vmatpush1.msra.mxu0 0.0
    %4223 = vmatprep.subr.mxu0 0.0
    %4224 = vmatpush1.msra.mxu0 0.0
    %4225 = vmatprep.subr.mxu0 0.0
    %4226 = vmatpush1.msra.mxu0 0.0
    %4227 = vmatprep.subr.mxu0 0.0
    %4228 = vmatpush1.msra.mxu0 0.0
    %4229 = vmatprep.subr.mxu0 0.0
    %4230 = vmatpush1.msra.mxu0 0.0
    %4231 = vmatprep.subr.mxu0 0.0
    %4232 = vmatpush1.msra.mxu0 0.0
    %4233 = vmatprep.subr.mxu0 0.0
    %4234 = vmatpush1.msra.mxu0 0.0
    %4235 = vmatprep.subr.mxu0 0.0
    %4236 = vmatpush1.msra.mxu0 0.0
    %4237 = vmatprep.subr.mxu0 0.0
    %4238 = vmatpush1.msra.mxu0 0.0
    %4239 = vmatprep.subr.mxu0 0.0
    %4240 = vmatpush1.msra.mxu0 0.0
    %4241 = vmatprep.subr.mxu0 0.0
    %4242 = vmatpush1.msra.mxu0 0.0
    %4243 = vmatprep.subr.mxu0 0.0
    %4244 = vmatpush1.msra.mxu0 0.0
    %4245 = vmatprep.subr.mxu0 0.0
    %4246 = vmatpush1.msra.mxu0 0.0
    %4247 = vmatprep.subr.mxu0 0.0
    %4248 = vmatpush1.msra.mxu0 0.0
    %4249 = vmatprep.subr.mxu0 0.0
    %4250 = vmatpush1.msra.mxu0 0.0
    %4251 = vmatprep.subr.mxu0 0.0
    %4252 = vmatpush1.msra.mxu0 0.0
    %4253 = vmatprep.subr.mxu0 0.0
    %4254 = vmatpush1.msra.mxu0 0.0
    %4255 = vmatprep.subr.mxu0 0.0
    %4256 = vmatpush1.msra.mxu0 0.0
    %4257 = vmatprep.subr.mxu0 0.0
    %4258 = vmatpush1.msra.mxu0 0.0
    %4259 = vmatprep.subr.mxu0 0.0
    %4260 = vmatpush1.msra.mxu0 0.0
    %4261 = vmatprep.subr.mxu0 0.0
    %4262 = vmatpush1.msra.mxu0 0.0
    %4263 = vmatprep.subr.mxu0 0.0
    %4264 = vmatpush1.msra.mxu0 0.0
    %4265 = vmatprep.subr.mxu0 0.0
    %4266 = vmatpush1.msra.mxu0 0.0
    %4267 = vmatprep.subr.mxu0 0.0
    %4268 = vmatpush1.msra.mxu0 0.0
    %4269 = vmatprep.subr.mxu0 0.0
    %4270 = vmatpush1.msra.mxu0 0.0
    %4271 = vmatprep.subr.mxu0 0.0
    %4272 = vmatpush1.msra.mxu0 0.0
    %4273 = vmatprep.subr.mxu0 0.0
    %4274 = vmatpush1.msra.mxu0 0.0
    %4275 = vmatprep.subr.mxu0 0.0
    %4276 = vmatpush1.msra.mxu0 0.0
    %4277 = vmatprep.mubr.f32.mxu0 0.0
    %4278 = vmatmul.mubr.f32.gmra.mrb[0].mxu0 %v235
    %v4279 = vpop.f32.mrb[0].mxu0
    %v4280 = vadd.f32 0.0, %v4279
    %v4281 = vpop.f32.mrb[0].mxu0
    %v4282 = vadd.f32 0.0, %v4281
    %4283 = vmatprep.mubr.f32.mxu0 0.0
    %4284 = vmatmul.mubr.f32.gmra.mrb[0].mxu0 %v238
    %v4285 = vpop.f32.mrb[0].mxu0
    %v4286 = vadd.f32 0.0, %v4285
    %v4287 = vpop.f32.mrb[0].mxu0
    %v4288 = vadd.f32 0.0, %v4287
    %4289 = vmatprep.mubr.f32.mxu0 0.0
    %4290 = vmatmul.mubr.f32.gmra.mrb[0].mxu0 %v241
    %v4291 = vpop.f32.mrb[0].mxu0
    %v4292 = vadd.f32 0.0, %v4291
    %v4293 = vpop.f32.mrb[0].mxu0
    %v4294 = vadd.f32 0.0, %v4293
    %4295 = vmatprep.mubr.f32.mxu0 0.0
    %4296 = vmatmul.mubr.f32.gmra.mrb[0].mxu0 %v244
    %v4297 = vpop.f32.mrb[0].mxu0
    %v4298 = vadd.f32 0.0, %v4297
    %v4299 = vpop.f32.mrb[0].mxu0
    %v4300 = vadd.f32 0.0, %v4299
    %4301 = vmatprep.mubr.f32.mxu0 0.0
    %4302 = vmatmul.mubr.f32.gmra.mrb[0].mxu0 %v247
    %v4303 = vpop.f32.mrb[0].mxu0
    %v4304 = vadd.f32 0.0, %v4303
    %v4305 = vpop.f32.mrb[0].mxu0
    %v4306 = vadd.f32 0.0, %v4305
    %4307 = vmatprep.mubr.f32.mxu0 0.0
    %4308 = vmatmul.mubr.f32.gmra.mrb[0].mxu0 %v250
    %v4309 = vpop.f32.mrb[0].mxu0
    %v4310 = vadd.f32 0.0, %v4309
    %v4311 = vpop.f32.mrb[0].mxu0
    %v4312 = vadd.f32 0.0, %v4311
    %4313 = vmatprep.mubr.f32.mxu0 0.0
    %4314 = vmatmul.mubr.f32.gmra.mrb[0].mxu0 %v253
    %v4315 = vpop.f32.mrb[0].mxu0
    %v4316 = vadd.f32 0.0, %v4315
    %v4317 = vpop.f32.mrb[0].mxu0
    %v4318 = vadd.f32 0.0, %v4317
    %4319 = vmatprep.mubr.f32.mxu0 0.0
    %4320 = vmatmul.mubr.f32.gmra.mrb[0].mxu0 %v256
    %v4321 = vpop.f32.mrb[0].mxu0
    %v4322 = vadd.f32 0.0, %v4321
    %v4323 = vpop.f32.mrb[0].mxu0
    %v4324 = vadd.f32 0.0, %v4323
    %4325 = vdwg.mxu0
    %4326 = vmatprep.subr.mxu0 %v170
    %4327 = vmatpush1.msra.mxu0 %v169
    %4328 = vmatprep.subr.mxu0 0.0
    %4329 = vmatpush1.msra.mxu0 0.0
    %4330 = vmatprep.subr.mxu0 0.0
    %4331 = vmatpush1.msra.mxu0 0.0
    %4332 = vmatprep.subr.mxu0 0.0
    %4333 = vmatpush1.msra.mxu0 0.0
    %4334 = vmatprep.subr.mxu0 0.0
    %4335 = vmatpush1.msra.mxu0 0.0
    %4336 = vmatprep.subr.mxu0 0.0
    %4337 = vmatpush1.msra.mxu0 0.0
    %4338 = vmatprep.subr.mxu0 0.0
    %4339 = vmatpush1.msra.mxu0 0.0
    %4340 = vmatprep.subr.mxu0 0.0
    %4341 = vmatpush1.msra.mxu0 0.0
    %4342 = vmatprep.subr.mxu0 0.0
    %4343 = vmatpush1.msra.mxu0 0.0
    %4344 = vmatprep.subr.mxu0 0.0
    %4345 = vmatpush1.msra.mxu0 0.0
    %4346 = vmatprep.subr.mxu0 0.0
    %4347 = vmatpush1.msra.mxu0 0.0
    %4348 = vmatprep.subr.mxu0 0.0
    %4349 = vmatpush1.msra.mxu0 0.0
    %4350 = vmatprep.subr.mxu0 0.0
    %4351 = vmatpush1.msra.mxu0 0.0
    %4352 = vmatprep.subr.mxu0 0.0
    %4353 = vmatpush1.msra.mxu0 0.0
    %4354 = vmatprep.subr.mxu0 0.0
    %4355 = vmatpush1.msra.mxu0 0.0
    %4356 = vmatprep.subr.mxu0 0.0
    %4357 = vmatpush1.msra.mxu0 0.0
    %4358 = vmatprep.subr.mxu0 0.0
    %4359 = vmatpush1.msra.mxu0 0.0
    %4360 = vmatprep.subr.mxu0 0.0
    %4361 = vmatpush1.msra.mxu0 0.0
    %4362 = vmatprep.subr.mxu0 0.0
    %4363 = vmatpush1.msra.mxu0 0.0
    %4364 = vmatprep.subr.mxu0 0.0
    %4365 = vmatpush1.msra.mxu0 0.0
    %4366 = vmatprep.subr.mxu0 0.0
    %4367 = vmatpush1.msra.mxu0 0.0
    %4368 = vmatprep.subr.mxu0 0.0
    %4369 = vmatpush1.msra.mxu0 0.0
    %4370 = vmatprep.subr.mxu0 0.0
    %4371 = vmatpush1.msra.mxu0 0.0
    %4372 = vmatprep.subr.mxu0 0.0
    %4373 = vmatpush1.msra.mxu0 0.0
    %4374 = vmatprep.subr.mxu0 0.0
    %4375 = vmatpush1.msra.mxu0 0.0
    %4376 = vmatprep.subr.mxu0 0.0
    %4377 = vmatpush1.msra.mxu0 0.0
    %4378 = vmatprep.subr.mxu0 0.0
    %4379 = vmatpush1.msra.mxu0 0.0
    %4380 = vmatprep.subr.mxu0 0.0
    %4381 = vmatpush1.msra.mxu0 0.0
    %4382 = vmatprep.subr.mxu0 0.0
    %4383 = vmatpush1.msra.mxu0 0.0
    %4384 = vmatprep.subr.mxu0 0.0
    %4385 = vmatpush1.msra.mxu0 0.0
    %4386 = vmatprep.subr.mxu0 0.0
    %4387 = vmatpush1.msra.mxu0 0.0
    %4388 = vmatprep.subr.mxu0 0.0
    %4389 = vmatpush1.msra.mxu0 0.0
    %4390 = vmatprep.mubr.f32.mxu0 0.0
    %4391 = vmatmul.mubr.f32.gmra.mrb[0].mxu0 %v235
    %v4392 = vpop.f32.mrb[0].mxu0
    %v4393 = vadd.f32 0.0, %v4392
    %v4394 = vpop.f32.mrb[0].mxu0
    %v4395 = vadd.f32 0.0, %v4394
    %4396 = vmatprep.mubr.f32.mxu0 0.0
    %4397 = vmatmul.mubr.f32.gmra.mrb[0].mxu0 %v238
    %v4398 = vpop.f32.mrb[0].mxu0
    %v4399 = vadd.f32 0.0, %v4398
    %v4400 = vpop.f32.mrb[0].mxu0
    %v4401 = vadd.f32 0.0, %v4400
    %4402 = vmatprep.mubr.f32.mxu0 0.0
    %4403 = vmatmul.mubr.f32.gmra.mrb[0].mxu0 %v241
    %v4404 = vpop.f32.mrb[0].mxu0
    %v4405 = vadd.f32 0.0, %v4404
    %v4406 = vpop.f32.mrb[0].mxu0
    %v4407 = vadd.f32 0.0, %v4406
    %4408 = vmatprep.mubr.f32.mxu0 0.0
    %4409 = vmatmul.mubr.f32.gmra.mrb[0].mxu0 %v244
    %v4410 = vpop.f32.mrb[0].mxu0
    %v4411 = vadd.f32 0.0, %v4410
    %v4412 = vpop.f32.mrb[0].mxu0
    %v4413 = vadd.f32 0.0, %v4412
    %4414 = vmatprep.mubr.f32.mxu0 0.0
    %4415 = vmatmul.mubr.f32.gmra.mrb[0].mxu0 %v247
    %v4416 = vpop.f32.mrb[0].mxu0
    %v4417 = vadd.f32 0.0, %v4416
    %v4418 = vpop.f32.mrb[0].mxu0
    %v4419 = vadd.f32 0.0, %v4418
    %4420 = vmatprep.mubr.f32.mxu0 0.0
    %4421 = vmatmul.mubr.f32.gmra.mrb[0].mxu0 %v250
    %v4422 = vpop.f32.mrb[0].mxu0
    %v4423 = vadd.f32 0.0, %v4422
    %v4424 = vpop.f32.mrb[0].mxu0
    %v4425 = vadd.f32 0.0, %v4424
    %4426 = vmatprep.mubr.f32.mxu0 0.0
    %4427 = vmatmul.mubr.f32.gmra.mrb[0].mxu0 %v253
    %v4428 = vpop.f32.mrb[0].mxu0
    %v4429 = vadd.f32 0.0, %v4428
    %v4430 = vpop.f32.mrb[0].mxu0
    %v4431 = vadd.f32 0.0, %v4430
    %4432 = vmatprep.mubr.f32.mxu0 0.0
    %4433 = vmatmul.mubr.f32.gmra.mrb[0].mxu0 %v256
    %v4434 = vpop.f32.mrb[0].mxu0
    %v4435 = vadd.f32 0.0, %v4434
    %v4436 = vpop.f32.mrb[0].mxu0
    %v4437 = vadd.f32 0.0, %v4436
    %4438 = vdwg.mxu0
    %4439 = vmatprep.subr.mxu0 %v172
    %4440 = vmatpush1.msra.mxu0 %v171
    %4441 = vmatprep.subr.mxu0 0.0
    %4442 = vmatpush1.msra.mxu0 0.0
    %4443 = vmatprep.subr.mxu0 0.0
    %4444 = vmatpush1.msra.mxu0 0.0
    %4445 = vmatprep.subr.mxu0 0.0
    %4446 = vmatpush1.msra.mxu0 0.0
    %4447 = vmatprep.subr.mxu0 0.0
    %4448 = vmatpush1.msra.mxu0 0.0
    %4449 = vmatprep.subr.mxu0 0.0
    %4450 = vmatpush1.msra.mxu0 0.0
    %4451 = vmatprep.subr.mxu0 0.0
    %4452 = vmatpush1.msra.mxu0 0.0
    %4453 = vmatprep.subr.mxu0 0.0
    %4454 = vmatpush1.msra.mxu0 0.0
    %4455 = vmatprep.subr.mxu0 0.0
    %4456 = vmatpush1.msra.mxu0 0.0
    %4457 = vmatprep.subr.mxu0 0.0
    %4458 = vmatpush1.msra.mxu0 0.0
    %4459 = vmatprep.subr.mxu0 0.0
    %4460 = vmatpush1.msra.mxu0 0.0
    %4461 = vmatprep.subr.mxu0 0.0
    %4462 = vmatpush1.msra.mxu0 0.0
    %4463 = vmatprep.subr.mxu0 0.0
    %4464 = vmatpush1.msra.mxu0 0.0
    %4465 = vmatprep.subr.mxu0 0.0
    %4466 = vmatpush1.msra.mxu0 0.0
    %4467 = vmatprep.subr.mxu0 0.0
    %4468 = vmatpush1.msra.mxu0 0.0
    %4469 = vmatprep.subr.mxu0 0.0
    %4470 = vmatpush1.msra.mxu0 0.0
    %4471 = vmatprep.subr.mxu0 0.0
    %4472 = vmatpush1.msra.mxu0 0.0
    %4473 = vmatprep.subr.mxu0 0.0
    %4474 = vmatpush1.msra.mxu0 0.0
    %4475 = vmatprep.subr.mxu0 0.0
    %4476 = vmatpush1.msra.mxu0 0.0
    %4477 = vmatprep.subr.mxu0 0.0
    %4478 = vmatpush1.msra.mxu0 0.0
    %4479 = vmatprep.subr.mxu0 0.0
    %4480 = vmatpush1.msra.mxu0 0.0
    %4481 = vmatprep.subr.mxu0 0.0
    %4482 = vmatpush1.msra.mxu0 0.0
    %4483 = vmatprep.subr.mxu0 0.0
    %4484 = vmatpush1.msra.mxu0 0.0
    %4485 = vmatprep.subr.mxu0 0.0
    %4486 = vmatpush1.msra.mxu0 0.0
    %4487 = vmatprep.subr.mxu0 0.0
    %4488 = vmatpush1.msra.mxu0 0.0
    %4489 = vmatprep.subr.mxu0 0.0
    %4490 = vmatpush1.msra.mxu0 0.0
    %4491 = vmatprep.subr.mxu0 0.0
    %4492 = vmatpush1.msra.mxu0 0.0
    %4493 = vmatprep.subr.mxu0 0.0
    %4494 = vmatpush1.msra.mxu0 0.0
    %4495 = vmatprep.subr.mxu0 0.0
    %4496 = vmatpush1.msra.mxu0 0.0
    %4497 = vmatprep.subr.mxu0 0.0
    %4498 = vmatpush1.msra.mxu0 0.0
    %4499 = vmatprep.subr.mxu0 0.0
    %4500 = vmatpush1.msra.mxu0 0.0
    %4501 = vmatprep.subr.mxu0 0.0
    %4502 = vmatpush1.msra.mxu0 0.0
    %4503 = vmatprep.mubr.f32.mxu0 0.0
    %4504 = vmatmul.mubr.f32.gmra.mrb[0].mxu0 %v235
    %v4505 = vpop.f32.mrb[0].mxu0
    %v4506 = vadd.f32 0.0, %v4505
    %v4507 = vpop.f32.mrb[0].mxu0
    %v4508 = vadd.f32 0.0, %v4507
    %4509 = vmatprep.mubr.f32.mxu0 0.0
    %4510 = vmatmul.mubr.f32.gmra.mrb[0].mxu0 %v238
    %v4511 = vpop.f32.mrb[0].mxu0
    %v4512 = vadd.f32 0.0, %v4511
    %v4513 = vpop.f32.mrb[0].mxu0
    %v4514 = vadd.f32 0.0, %v4513
    %4515 = vmatprep.mubr.f32.mxu0 0.0
    %4516 = vmatmul.mubr.f32.gmra.mrb[0].mxu0 %v241
    %v4517 = vpop.f32.mrb[0].mxu0
    %v4518 = vadd.f32 0.0, %v4517
    %v4519 = vpop.f32.mrb[0].mxu0
    %v4520 = vadd.f32 0.0, %v4519
    %4521 = vmatprep.mubr.f32.mxu0 0.0
    %4522 = vmatmul.mubr.f32.gmra.mrb[0].mxu0 %v244
    %v4523 = vpop.f32.mrb[0].mxu0
    %v4524 = vadd.f32 0.0, %v4523
    %v4525 = vpop.f32.mrb[0].mxu0
    %v4526 = vadd.f32 0.0, %v4525
    %4527 = vmatprep.mubr.f32.mxu0 0.0
    %4528 = vmatmul.mubr.f32.gmra.mrb[0].mxu0 %v247
    %v4529 = vpop.f32.mrb[0].mxu0
    %v4530 = vadd.f32 0.0, %v4529
    %v4531 = vpop.f32.mrb[0].mxu0
    %v4532 = vadd.f32 0.0, %v4531
    %4533 = vmatprep.mubr.f32.mxu0 0.0
    %4534 = vmatmul.mubr.f32.gmra.mrb[0].mxu0 %v250
    %v4535 = vpop.f32.mrb[0].mxu0
    %v4536 = vadd.f32 0.0, %v4535
    %v4537 = vpop.f32.mrb[0].mxu0
    %v4538 = vadd.f32 0.0, %v4537
    %4539 = vmatprep.mubr.f32.mxu0 0.0
    %4540 = vmatmul.mubr.f32.gmra.mrb[0].mxu0 %v253
    %v4541 = vpop.f32.mrb[0].mxu0
    %v4542 = vadd.f32 0.0, %v4541
    %v4543 = vpop.f32.mrb[0].mxu0
    %v4544 = vadd.f32 0.0, %v4543
    %4545 = vmatprep.mubr.f32.mxu0 0.0
    %4546 = vmatmul.mubr.f32.gmra.mrb[0].mxu0 %v256
    %v4547 = vpop.f32.mrb[0].mxu0
    %v4548 = vadd.f32 0.0, %v4547
    %v4549 = vpop.f32.mrb[0].mxu0
    %v4550 = vadd.f32 0.0, %v4549
    %4551 = vdwg.mxu0
    %4552 = vmatprep.subr.mxu0 %v174
    %4553 = vmatpush1.msra.mxu0 %v173
    %4554 = vmatprep.subr.mxu0 0.0
    %4555 = vmatpush1.msra.mxu0 0.0
    %4556 = vmatprep.subr.mxu0 0.0
    %4557 = vmatpush1.msra.mxu0 0.0
    %4558 = vmatprep.subr.mxu0 0.0
    %4559 = vmatpush1.msra.mxu0 0.0
    %4560 = vmatprep.subr.mxu0 0.0
    %4561 = vmatpush1.msra.mxu0 0.0
    %4562 = vmatprep.subr.mxu0 0.0
    %4563 = vmatpush1.msra.mxu0 0.0
    %4564 = vmatprep.subr.mxu0 0.0
    %4565 = vmatpush1.msra.mxu0 0.0
    %4566 = vmatprep.subr.mxu0 0.0
    %4567 = vmatpush1.msra.mxu0 0.0
    %4568 = vmatprep.subr.mxu0 0.0
    %4569 = vmatpush1.msra.mxu0 0.0
    %4570 = vmatprep.subr.mxu0 0.0
    %4571 = vmatpush1.msra.mxu0 0.0
    %4572 = vmatprep.subr.mxu0 0.0
    %4573 = vmatpush1.msra.mxu0 0.0
    %4574 = vmatprep.subr.mxu0 0.0
    %4575 = vmatpush1.msra.mxu0 0.0
    %4576 = vmatprep.subr.mxu0 0.0
    %4577 = vmatpush1.msra.mxu0 0.0
    %4578 = vmatprep.subr.mxu0 0.0
    %4579 = vmatpush1.msra.mxu0 0.0
    %4580 = vmatprep.subr.mxu0 0.0
    %4581 = vmatpush1.msra.mxu0 0.0
    %4582 = vmatprep.subr.mxu0 0.0
    %4583 = vmatpush1.msra.mxu0 0.0
    %4584 = vmatprep.subr.mxu0 0.0
    %4585 = vmatpush1.msra.mxu0 0.0
    %4586 = vmatprep.subr.mxu0 0.0
    %4587 = vmatpush1.msra.mxu0 0.0
    %4588 = vmatprep.subr.mxu0 0.0
    %4589 = vmatpush1.msra.mxu0 0.0
    %4590 = vmatprep.subr.mxu0 0.0
    %4591 = vmatpush1.msra.mxu0 0.0
    %4592 = vmatprep.subr.mxu0 0.0
    %4593 = vmatpush1.msra.mxu0 0.0
    %4594 = vmatprep.subr.mxu0 0.0
    %4595 = vmatpush1.msra.mxu0 0.0
    %4596 = vmatprep.subr.mxu0 0.0
    %4597 = vmatpush1.msra.mxu0 0.0
    %4598 = vmatprep.subr.mxu0 0.0
    %4599 = vmatpush1.msra.mxu0 0.0
    %4600 = vmatprep.subr.mxu0 0.0
    %4601 = vmatpush1.msra.mxu0 0.0
    %4602 = vmatprep.subr.mxu0 0.0
    %4603 = vmatpush1.msra.mxu0 0.0
    %4604 = vmatprep.subr.mxu0 0.0
    %4605 = vmatpush1.msra.mxu0 0.0
    %4606 = vmatprep.subr.mxu0 0.0
    %4607 = vmatpush1.msra.mxu0 0.0
    %4608 = vmatprep.subr.mxu0 0.0
    %4609 = vmatpush1.msra.mxu0 0.0
    %4610 = vmatprep.subr.mxu0 0.0
    %4611 = vmatpush1.msra.mxu0 0.0
    %4612 = vmatprep.subr.mxu0 0.0
    %4613 = vmatpush1.msra.mxu0 0.0
    %4614 = vmatprep.subr.mxu0 0.0
    %4615 = vmatpush1.msra.mxu0 0.0
    %4616 = vmatprep.mubr.f32.mxu0 0.0
    %4617 = vmatmul.mubr.f32.gmra.mrb[0].mxu0 %v235
    %v4618 = vpop.f32.mrb[0].mxu0
    %v4619 = vadd.f32 0.0, %v4618
    %v4620 = vpop.f32.mrb[0].mxu0
    %v4621 = vadd.f32 0.0, %v4620
    %4622 = vmatprep.mubr.f32.mxu0 0.0
    %4623 = vmatmul.mubr.f32.gmra.mrb[0].mxu0 %v238
    %v4624 = vpop.f32.mrb[0].mxu0
    %v4625 = vadd.f32 0.0, %v4624
    %v4626 = vpop.f32.mrb[0].mxu0
    %v4627 = vadd.f32 0.0, %v4626
    %4628 = vmatprep.mubr.f32.mxu0 0.0
    %4629 = vmatmul.mubr.f32.gmra.mrb[0].mxu0 %v241
    %v4630 = vpop.f32.mrb[0].mxu0
    %v4631 = vadd.f32 0.0, %v4630
    %v4632 = vpop.f32.mrb[0].mxu0
    %v4633 = vadd.f32 0.0, %v4632
    %4634 = vmatprep.mubr.f32.mxu0 0.0
    %4635 = vmatmul.mubr.f32.gmra.mrb[0].mxu0 %v244
    %v4636 = vpop.f32.mrb[0].mxu0
    %v4637 = vadd.f32 0.0, %v4636
    %v4638 = vpop.f32.mrb[0].mxu0
    %v4639 = vadd.f32 0.0, %v4638
    %4640 = vmatprep.mubr.f32.mxu0 0.0
    %4641 = vmatmul.mubr.f32.gmra.mrb[0].mxu0 %v247
    %v4642 = vpop.f32.mrb[0].mxu0
    %v4643 = vadd.f32 0.0, %v4642
    %v4644 = vpop.f32.mrb[0].mxu0
    %v4645 = vadd.f32 0.0, %v4644
    %4646 = vmatprep.mubr.f32.mxu0 0.0
    %4647 = vmatmul.mubr.f32.gmra.mrb[0].mxu0 %v250
    %v4648 = vpop.f32.mrb[0].mxu0
    %v4649 = vadd.f32 0.0, %v4648
    %v4650 = vpop.f32.mrb[0].mxu0
    %v4651 = vadd.f32 0.0, %v4650
    %4652 = vmatprep.mubr.f32.mxu0 0.0
    %4653 = vmatmul.mubr.f32.gmra.mrb[0].mxu0 %v253
    %v4654 = vpop.f32.mrb[0].mxu0
    %v4655 = vadd.f32 0.0, %v4654
    %v4656 = vpop.f32.mrb[0].mxu0
    %v4657 = vadd.f32 0.0, %v4656
    %4658 = vmatprep.mubr.f32.mxu0 0.0
    %4659 = vmatmul.mubr.f32.gmra.mrb[0].mxu0 %v256
    %v4660 = vpop.f32.mrb[0].mxu0
    %v4661 = vadd.f32 0.0, %v4660
    %v4662 = vpop.f32.mrb[0].mxu0
    %v4663 = vadd.f32 0.0, %v4662
    %4664 = vdwg.mxu0
    %4665 = vmatprep.subr.mxu0 %v176
    %4666 = vmatpush1.msra.mxu0 %v175
    %4667 = vmatprep.subr.mxu0 0.0
    %4668 = vmatpush1.msra.mxu0 0.0
    %4669 = vmatprep.subr.mxu0 0.0
    %4670 = vmatpush1.msra.mxu0 0.0
    %4671 = vmatprep.subr.mxu0 0.0
    %4672 = vmatpush1.msra.mxu0 0.0
    %4673 = vmatprep.subr.mxu0 0.0
    %4674 = vmatpush1.msra.mxu0 0.0
    %4675 = vmatprep.subr.mxu0 0.0
    %4676 = vmatpush1.msra.mxu0 0.0
    %4677 = vmatprep.subr.mxu0 0.0
    %4678 = vmatpush1.msra.mxu0 0.0
    %4679 = vmatprep.subr.mxu0 0.0
    %4680 = vmatpush1.msra.mxu0 0.0
    %4681 = vmatprep.subr.mxu0 0.0
    %4682 = vmatpush1.msra.mxu0 0.0
    %4683 = vmatprep.subr.mxu0 0.0
    %4684 = vmatpush1.msra.mxu0 0.0
    %4685 = vmatprep.subr.mxu0 0.0
    %4686 = vmatpush1.msra.mxu0 0.0
    %4687 = vmatprep.subr.mxu0 0.0
    %4688 = vmatpush1.msra.mxu0 0.0
    %4689 = vmatprep.subr.mxu0 0.0
    %4690 = vmatpush1.msra.mxu0 0.0
    %4691 = vmatprep.subr.mxu0 0.0
    %4692 = vmatpush1.msra.mxu0 0.0
    %4693 = vmatprep.subr.mxu0 0.0
    %4694 = vmatpush1.msra.mxu0 0.0
    %4695 = vmatprep.subr.mxu0 0.0
    %4696 = vmatpush1.msra.mxu0 0.0
    %4697 = vmatprep.subr.mxu0 0.0
    %4698 = vmatpush1.msra.mxu0 0.0
    %4699 = vmatprep.subr.mxu0 0.0
    %4700 = vmatpush1.msra.mxu0 0.0
    %4701 = vmatprep.subr.mxu0 0.0
    %4702 = vmatpush1.msra.mxu0 0.0
    %4703 = vmatprep.subr.mxu0 0.0
    %4704 = vmatpush1.msra.mxu0 0.0
    %4705 = vmatprep.subr.mxu0 0.0
    %4706 = vmatpush1.msra.mxu0 0.0
    %4707 = vmatprep.subr.mxu0 0.0
    %4708 = vmatpush1.msra.mxu0 0.0
    %4709 = vmatprep.subr.mxu0 0.0
    %4710 = vmatpush1.msra.mxu0 0.0
    %4711 = vmatprep.subr.mxu0 0.0
    %4712 = vmatpush1.msra.mxu0 0.0
    %4713 = vmatprep.subr.mxu0 0.0
    %4714 = vmatpush1.msra.mxu0 0.0
    %4715 = vmatprep.subr.mxu0 0.0
    %4716 = vmatpush1.msra.mxu0 0.0
    %4717 = vmatprep.subr.mxu0 0.0
    %4718 = vmatpush1.msra.mxu0 0.0
    %4719 = vmatprep.subr.mxu0 0.0
    %4720 = vmatpush1.msra.mxu0 0.0
    %4721 = vmatprep.subr.mxu0 0.0
    %4722 = vmatpush1.msra.mxu0 0.0
    %4723 = vmatprep.subr.mxu0 0.0
    %4724 = vmatpush1.msra.mxu0 0.0
    %4725 = vmatprep.subr.mxu0 0.0
    %4726 = vmatpush1.msra.mxu0 0.0
    %4727 = vmatprep.subr.mxu0 0.0
    %4728 = vmatpush1.msra.mxu0 0.0
    %4729 = vmatprep.mubr.f32.mxu0 0.0
    %4730 = vmatmul.mubr.f32.gmra.mrb[0].mxu0 %v235
    %v4731 = vpop.f32.mrb[0].mxu0
    %v4732 = vadd.f32 0.0, %v4731
    %v4733 = vpop.f32.mrb[0].mxu0
    %v4734 = vadd.f32 0.0, %v4733
    %4735 = vmatprep.mubr.f32.mxu0 0.0
    %4736 = vmatmul.mubr.f32.gmra.mrb[0].mxu0 %v238
    %v4737 = vpop.f32.mrb[0].mxu0
    %v4738 = vadd.f32 0.0, %v4737
    %v4739 = vpop.f32.mrb[0].mxu0
    %v4740 = vadd.f32 0.0, %v4739
    %4741 = vmatprep.mubr.f32.mxu0 0.0
    %4742 = vmatmul.mubr.f32.gmra.mrb[0].mxu0 %v241
    %v4743 = vpop.f32.mrb[0].mxu0
    %v4744 = vadd.f32 0.0, %v4743
    %v4745 = vpop.f32.mrb[0].mxu0
    %v4746 = vadd.f32 0.0, %v4745
    %4747 = vmatprep.mubr.f32.mxu0 0.0
    %4748 = vmatmul.mubr.f32.gmra.mrb[0].mxu0 %v244
    %v4749 = vpop.f32.mrb[0].mxu0
    %v4750 = vadd.f32 0.0, %v4749
    %v4751 = vpop.f32.mrb[0].mxu0
    %v4752 = vadd.f32 0.0, %v4751
    %4753 = vmatprep.mubr.f32.mxu0 0.0
    %4754 = vmatmul.mubr.f32.gmra.mrb[0].mxu0 %v247
    %v4755 = vpop.f32.mrb[0].mxu0
    %v4756 = vadd.f32 0.0, %v4755
    %v4757 = vpop.f32.mrb[0].mxu0
    %v4758 = vadd.f32 0.0, %v4757
    %4759 = vmatprep.mubr.f32.mxu0 0.0
    %4760 = vmatmul.mubr.f32.gmra.mrb[0].mxu0 %v250
    %v4761 = vpop.f32.mrb[0].mxu0
    %v4762 = vadd.f32 0.0, %v4761
    %v4763 = vpop.f32.mrb[0].mxu0
    %v4764 = vadd.f32 0.0, %v4763
    %4765 = vmatprep.mubr.f32.mxu0 0.0
    %4766 = vmatmul.mubr.f32.gmra.mrb[0].mxu0 %v253
    %v4767 = vpop.f32.mrb[0].mxu0
    %v4768 = vadd.f32 0.0, %v4767
    %v4769 = vpop.f32.mrb[0].mxu0
    %v4770 = vadd.f32 0.0, %v4769
    %4771 = vmatprep.mubr.f32.mxu0 0.0
    %4772 = vmatmul.mubr.f32.gmra.mrb[0].mxu0 %v256
    %v4773 = vpop.f32.mrb[0].mxu0
    %v4774 = vadd.f32 0.0, %v4773
    %v4775 = vpop.f32.mrb[0].mxu0
    %v4776 = vadd.f32 0.0, %v4775
    %4777 = vdwg.mxu0
    %4778 = vmatprep.subr.mxu0 %v178
    %4779 = vmatpush1.msra.mxu0 %v177
    %4780 = vmatprep.subr.mxu0 0.0
    %4781 = vmatpush1.msra.mxu0 0.0
    %4782 = vmatprep.subr.mxu0 0.0
    %4783 = vmatpush1.msra.mxu0 0.0
    %4784 = vmatprep.subr.mxu0 0.0
    %4785 = vmatpush1.msra.mxu0 0.0
    %4786 = vmatprep.subr.mxu0 0.0
    %4787 = vmatpush1.msra.mxu0 0.0
    %4788 = vmatprep.subr.mxu0 0.0
    %4789 = vmatpush1.msra.mxu0 0.0
    %4790 = vmatprep.subr.mxu0 0.0
    %4791 = vmatpush1.msra.mxu0 0.0
    %4792 = vmatprep.subr.mxu0 0.0
    %4793 = vmatpush1.msra.mxu0 0.0
    %4794 = vmatprep.subr.mxu0 0.0
    %4795 = vmatpush1.msra.mxu0 0.0
    %4796 = vmatprep.subr.mxu0 0.0
    %4797 = vmatpush1.msra.mxu0 0.0
    %4798 = vmatprep.subr.mxu0 0.0
    %4799 = vmatpush1.msra.mxu0 0.0
    %4800 = vmatprep.subr.mxu0 0.0
    %4801 = vmatpush1.msra.mxu0 0.0
    %4802 = vmatprep.subr.mxu0 0.0
    %4803 = vmatpush1.msra.mxu0 0.0
    %4804 = vmatprep.subr.mxu0 0.0
    %4805 = vmatpush1.msra.mxu0 0.0
    %4806 = vmatprep.subr.mxu0 0.0
    %4807 = vmatpush1.msra.mxu0 0.0
    %4808 = vmatprep.subr.mxu0 0.0
    %4809 = vmatpush1.msra.mxu0 0.0
    %4810 = vmatprep.subr.mxu0 0.0
    %4811 = vmatpush1.msra.mxu0 0.0
    %4812 = vmatprep.subr.mxu0 0.0
    %4813 = vmatpush1.msra.mxu0 0.0
    %4814 = vmatprep.subr.mxu0 0.0
    %4815 = vmatpush1.msra.mxu0 0.0
    %4816 = vmatprep.subr.mxu0 0.0
    %4817 = vmatpush1.msra.mxu0 0.0
    %4818 = vmatprep.subr.mxu0 0.0
    %4819 = vmatpush1.msra.mxu0 0.0
    %4820 = vmatprep.subr.mxu0 0.0
    %4821 = vmatpush1.msra.mxu0 0.0
    %4822 = vmatprep.subr.mxu0 0.0
    %4823 = vmatpush1.msra.mxu0 0.0
    %4824 = vmatprep.subr.mxu0 0.0
    %4825 = vmatpush1.msra.mxu0 0.0
    %4826 = vmatprep.subr.mxu0 0.0
    %4827 = vmatpush1.msra.mxu0 0.0
    %4828 = vmatprep.subr.mxu0 0.0
    %4829 = vmatpush1.msra.mxu0 0.0
    %4830 = vmatprep.subr.mxu0 0.0
    %4831 = vmatpush1.msra.mxu0 0.0
    %4832 = vmatprep.subr.mxu0 0.0
    %4833 = vmatpush1.msra.mxu0 0.0
    %4834 = vmatprep.subr.mxu0 0.0
    %4835 = vmatpush1.msra.mxu0 0.0
    %4836 = vmatprep.subr.mxu0 0.0
    %4837 = vmatpush1.msra.mxu0 0.0
    %4838 = vmatprep.subr.mxu0 0.0
    %4839 = vmatpush1.msra.mxu0 0.0
    %4840 = vmatprep.subr.mxu0 0.0
    %4841 = vmatpush1.msra.mxu0 0.0
    %4842 = vmatprep.mubr.f32.mxu0 0.0
    %4843 = vmatmul.mubr.f32.gmra.mrb[0].mxu0 %v235
    %v4844 = vpop.f32.mrb[0].mxu0
    %v4845 = vadd.f32 0.0, %v4844
    %v4846 = vpop.f32.mrb[0].mxu0
    %v4847 = vadd.f32 0.0, %v4846
    %4848 = vmatprep.mubr.f32.mxu0 0.0
    %4849 = vmatmul.mubr.f32.gmra.mrb[0].mxu0 %v238
    %v4850 = vpop.f32.mrb[0].mxu0
    %v4851 = vadd.f32 0.0, %v4850
    %v4852 = vpop.f32.mrb[0].mxu0
    %v4853 = vadd.f32 0.0, %v4852
    %4854 = vmatprep.mubr.f32.mxu0 0.0
    %4855 = vmatmul.mubr.f32.gmra.mrb[0].mxu0 %v241
    %v4856 = vpop.f32.mrb[0].mxu0
    %v4857 = vadd.f32 0.0, %v4856
    %v4858 = vpop.f32.mrb[0].mxu0
    %v4859 = vadd.f32 0.0, %v4858
    %4860 = vmatprep.mubr.f32.mxu0 0.0
    %4861 = vmatmul.mubr.f32.gmra.mrb[0].mxu0 %v244
    %v4862 = vpop.f32.mrb[0].mxu0
    %v4863 = vadd.f32 0.0, %v4862
    %v4864 = vpop.f32.mrb[0].mxu0
    %v4865 = vadd.f32 0.0, %v4864
    %4866 = vmatprep.mubr.f32.mxu0 0.0
    %4867 = vmatmul.mubr.f32.gmra.mrb[0].mxu0 %v247
    %v4868 = vpop.f32.mrb[0].mxu0
    %v4869 = vadd.f32 0.0, %v4868
    %v4870 = vpop.f32.mrb[0].mxu0
    %v4871 = vadd.f32 0.0, %v4870
    %4872 = vmatprep.mubr.f32.mxu0 0.0
    %4873 = vmatmul.mubr.f32.gmra.mrb[0].mxu0 %v250
    %v4874 = vpop.f32.mrb[0].mxu0
    %v4875 = vadd.f32 0.0, %v4874
    %v4876 = vpop.f32.mrb[0].mxu0
    %v4877 = vadd.f32 0.0, %v4876
    %4878 = vmatprep.mubr.f32.mxu0 0.0
    %4879 = vmatmul.mubr.f32.gmra.mrb[0].mxu0 %v253
    %v4880 = vpop.f32.mrb[0].mxu0
    %v4881 = vadd.f32 0.0, %v4880
    %v4882 = vpop.f32.mrb[0].mxu0
    %v4883 = vadd.f32 0.0, %v4882
    %4884 = vmatprep.mubr.f32.mxu0 0.0
    %4885 = vmatmul.mubr.f32.gmra.mrb[0].mxu0 %v256
    %v4886 = vpop.f32.mrb[0].mxu0
    %v4887 = vadd.f32 0.0, %v4886
    %v4888 = vpop.f32.mrb[0].mxu0
    %v4889 = vadd.f32 0.0, %v4888
    %4890 = vdwg.mxu0
    %4891 = vmatprep.subr.mxu0 %v180
    %4892 = vmatpush1.msra.mxu0 %v179
    %4893 = vmatprep.subr.mxu0 0.0
    %4894 = vmatpush1.msra.mxu0 0.0
    %4895 = vmatprep.subr.mxu0 0.0
    %4896 = vmatpush1.msra.mxu0 0.0
    %4897 = vmatprep.subr.mxu0 0.0
    %4898 = vmatpush1.msra.mxu0 0.0
    %4899 = vmatprep.subr.mxu0 0.0
    %4900 = vmatpush1.msra.mxu0 0.0
    %4901 = vmatprep.subr.mxu0 0.0
    %4902 = vmatpush1.msra.mxu0 0.0
    %4903 = vmatprep.subr.mxu0 0.0
    %4904 = vmatpush1.msra.mxu0 0.0
    %4905 = vmatprep.subr.mxu0 0.0
    %4906 = vmatpush1.msra.mxu0 0.0
    %4907 = vmatprep.subr.mxu0 0.0
    %4908 = vmatpush1.msra.mxu0 0.0
    %4909 = vmatprep.subr.mxu0 0.0
    %4910 = vmatpush1.msra.mxu0 0.0
    %4911 = vmatprep.subr.mxu0 0.0
    %4912 = vmatpush1.msra.mxu0 0.0
    %4913 = vmatprep.subr.mxu0 0.0
    %4914 = vmatpush1.msra.mxu0 0.0
    %4915 = vmatprep.subr.mxu0 0.0
    %4916 = vmatpush1.msra.mxu0 0.0
    %4917 = vmatprep.subr.mxu0 0.0
    %4918 = vmatpush1.msra.mxu0 0.0
    %4919 = vmatprep.subr.mxu0 0.0
    %4920 = vmatpush1.msra.mxu0 0.0
    %4921 = vmatprep.subr.mxu0 0.0
    %4922 = vmatpush1.msra.mxu0 0.0
    %4923 = vmatprep.subr.mxu0 0.0
    %4924 = vmatpush1.msra.mxu0 0.0
    %4925 = vmatprep.subr.mxu0 0.0
    %4926 = vmatpush1.msra.mxu0 0.0
    %4927 = vmatprep.subr.mxu0 0.0
    %4928 = vmatpush1.msra.mxu0 0.0
    %4929 = vmatprep.subr.mxu0 0.0
    %4930 = vmatpush1.msra.mxu0 0.0
    %4931 = vmatprep.subr.mxu0 0.0
    %4932 = vmatpush1.msra.mxu0 0.0
    %4933 = vmatprep.subr.mxu0 0.0
    %4934 = vmatpush1.msra.mxu0 0.0
    %4935 = vmatprep.subr.mxu0 0.0
    %4936 = vmatpush1.msra.mxu0 0.0
    %4937 = vmatprep.subr.mxu0 0.0
    %4938 = vmatpush1.msra.mxu0 0.0
    %4939 = vmatprep.subr.mxu0 0.0
    %4940 = vmatpush1.msra.mxu0 0.0
    %4941 = vmatprep.subr.mxu0 0.0
    %4942 = vmatpush1.msra.mxu0 0.0
    %4943 = vmatprep.subr.mxu0 0.0
    %4944 = vmatpush1.msra.mxu0 0.0
    %4945 = vmatprep.subr.mxu0 0.0
    %4946 = vmatpush1.msra.mxu0 0.0
    %4947 = vmatprep.subr.mxu0 0.0
    %4948 = vmatpush1.msra.mxu0 0.0
    %4949 = vmatprep.subr.mxu0 0.0
    %4950 = vmatpush1.msra.mxu0 0.0
    %4951 = vmatprep.subr.mxu0 0.0
    %4952 = vmatpush1.msra.mxu0 0.0
    %4953 = vmatprep.subr.mxu0 0.0
    %4954 = vmatpush1.msra.mxu0 0.0
    %4955 = vmatprep.mubr.f32.mxu0 0.0
    %4956 = vmatmul.mubr.f32.gmra.mrb[0].mxu0 %v235
    %v4957 = vpop.f32.mrb[0].mxu0
    %v4958 = vadd.f32 0.0, %v4957
    %v4959 = vpop.f32.mrb[0].mxu0
    %v4960 = vadd.f32 0.0, %v4959
    %4961 = vmatprep.mubr.f32.mxu0 0.0
    %4962 = vmatmul.mubr.f32.gmra.mrb[0].mxu0 %v238
    %v4963 = vpop.f32.mrb[0].mxu0
    %v4964 = vadd.f32 0.0, %v4963
    %v4965 = vpop.f32.mrb[0].mxu0
    %v4966 = vadd.f32 0.0, %v4965
    %4967 = vmatprep.mubr.f32.mxu0 0.0
    %4968 = vmatmul.mubr.f32.gmra.mrb[0].mxu0 %v241
    %v4969 = vpop.f32.mrb[0].mxu0
    %v4970 = vadd.f32 0.0, %v4969
    %v4971 = vpop.f32.mrb[0].mxu0
    %v4972 = vadd.f32 0.0, %v4971
    %4973 = vmatprep.mubr.f32.mxu0 0.0
    %4974 = vmatmul.mubr.f32.gmra.mrb[0].mxu0 %v244
    %v4975 = vpop.f32.mrb[0].mxu0
    %v4976 = vadd.f32 0.0, %v4975
    %v4977 = vpop.f32.mrb[0].mxu0
    %v4978 = vadd.f32 0.0, %v4977
    %4979 = vmatprep.mubr.f32.mxu0 0.0
    %4980 = vmatmul.mubr.f32.gmra.mrb[0].mxu0 %v247
    %v4981 = vpop.f32.mrb[0].mxu0
    %v4982 = vadd.f32 0.0, %v4981
    %v4983 = vpop.f32.mrb[0].mxu0
    %v4984 = vadd.f32 0.0, %v4983
    %4985 = vmatprep.mubr.f32.mxu0 0.0
    %4986 = vmatmul.mubr.f32.gmra.mrb[0].mxu0 %v250
    %v4987 = vpop.f32.mrb[0].mxu0
    %v4988 = vadd.f32 0.0, %v4987
    %v4989 = vpop.f32.mrb[0].mxu0
    %v4990 = vadd.f32 0.0, %v4989
    %4991 = vmatprep.mubr.f32.mxu0 0.0
    %4992 = vmatmul.mubr.f32.gmra.mrb[0].mxu0 %v253
    %v4993 = vpop.f32.mrb[0].mxu0
    %v4994 = vadd.f32 0.0, %v4993
    %v4995 = vpop.f32.mrb[0].mxu0
    %v4996 = vadd.f32 0.0, %v4995
    %4997 = vmatprep.mubr.f32.mxu0 0.0
    %4998 = vmatmul.mubr.f32.gmra.mrb[0].mxu0 %v256
    %v4999 = vpop.f32.mrb[0].mxu0
    %v5000 = vadd.f32 0.0, %v4999
    %v5001 = vpop.f32.mrb[0].mxu0
    %v5002 = vadd.f32 0.0, %v5001
    %5003 = vdwg.mxu0
    %5004 = vmatprep.subr.mxu0 %v182
    %5005 = vmatpush1.msra.mxu0 %v181
    %5006 = vmatprep.subr.mxu0 0.0
    %5007 = vmatpush1.msra.mxu0 0.0
    %5008 = vmatprep.subr.mxu0 0.0
    %5009 = vmatpush1.msra.mxu0 0.0
    %5010 = vmatprep.subr.mxu0 0.0
    %5011 = vmatpush1.msra.mxu0 0.0
    %5012 = vmatprep.subr.mxu0 0.0
    %5013 = vmatpush1.msra.mxu0 0.0
    %5014 = vmatprep.subr.mxu0 0.0
    %5015 = vmatpush1.msra.mxu0 0.0
    %5016 = vmatprep.subr.mxu0 0.0
    %5017 = vmatpush1.msra.mxu0 0.0
    %5018 = vmatprep.subr.mxu0 0.0
    %5019 = vmatpush1.msra.mxu0 0.0
    %5020 = vmatprep.subr.mxu0 0.0
    %5021 = vmatpush1.msra.mxu0 0.0
    %5022 = vmatprep.subr.mxu0 0.0
    %5023 = vmatpush1.msra.mxu0 0.0
    %5024 = vmatprep.subr.mxu0 0.0
    %5025 = vmatpush1.msra.mxu0 0.0
    %5026 = vmatprep.subr.mxu0 0.0
    %5027 = vmatpush1.msra.mxu0 0.0
    %5028 = vmatprep.subr.mxu0 0.0
    %5029 = vmatpush1.msra.mxu0 0.0
    %5030 = vmatprep.subr.mxu0 0.0
    %5031 = vmatpush1.msra.mxu0 0.0
    %5032 = vmatprep.subr.mxu0 0.0
    %5033 = vmatpush1.msra.mxu0 0.0
    %5034 = vmatprep.subr.mxu0 0.0
    %5035 = vmatpush1.msra.mxu0 0.0
    %5036 = vmatprep.subr.mxu0 0.0
    %5037 = vmatpush1.msra.mxu0 0.0
    %5038 = vmatprep.subr.mxu0 0.0
    %5039 = vmatpush1.msra.mxu0 0.0
    %5040 = vmatprep.subr.mxu0 0.0
    %5041 = vmatpush1.msra.mxu0 0.0
    %5042 = vmatprep.subr.mxu0 0.0
    %5043 = vmatpush1.msra.mxu0 0.0
    %5044 = vmatprep.subr.mxu0 0.0
    %5045 = vmatpush1.msra.mxu0 0.0
    %5046 = vmatprep.subr.mxu0 0.0
    %5047 = vmatpush1.msra.mxu0 0.0
    %5048 = vmatprep.subr.mxu0 0.0
    %5049 = vmatpush1.msra.mxu0 0.0
    %5050 = vmatprep.subr.mxu0 0.0
    %5051 = vmatpush1.msra.mxu0 0.0
    %5052 = vmatprep.subr.mxu0 0.0
    %5053 = vmatpush1.msra.mxu0 0.0
    %5054 = vmatprep.subr.mxu0 0.0
    %5055 = vmatpush1.msra.mxu0 0.0
    %5056 = vmatprep.subr.mxu0 0.0
    %5057 = vmatpush1.msra.mxu0 0.0
    %5058 = vmatprep.subr.mxu0 0.0
    %5059 = vmatpush1.msra.mxu0 0.0
    %5060 = vmatprep.subr.mxu0 0.0
    %5061 = vmatpush1.msra.mxu0 0.0
    %5062 = vmatprep.subr.mxu0 0.0
    %5063 = vmatpush1.msra.mxu0 0.0
    %5064 = vmatprep.subr.mxu0 0.0
    %5065 = vmatpush1.msra.mxu0 0.0
    %5066 = vmatprep.subr.mxu0 0.0
    %5067 = vmatpush1.msra.mxu0 0.0
    %5068 = vmatprep.mubr.f32.mxu0 0.0
    %5069 = vmatmul.mubr.f32.gmra.mrb[0].mxu0 %v235
    %v5070 = vpop.f32.mrb[0].mxu0
    %v5071 = vadd.f32 0.0, %v5070
    %v5072 = vpop.f32.mrb[0].mxu0
    %v5073 = vadd.f32 0.0, %v5072
    %5074 = vmatprep.mubr.f32.mxu0 0.0
    %5075 = vmatmul.mubr.f32.gmra.mrb[0].mxu0 %v238
    %v5076 = vpop.f32.mrb[0].mxu0
    %v5077 = vadd.f32 0.0, %v5076
    %v5078 = vpop.f32.mrb[0].mxu0
    %v5079 = vadd.f32 0.0, %v5078
    %5080 = vmatprep.mubr.f32.mxu0 0.0
    %5081 = vmatmul.mubr.f32.gmra.mrb[0].mxu0 %v241
    %v5082 = vpop.f32.mrb[0].mxu0
    %v5083 = vadd.f32 0.0, %v5082
    %v5084 = vpop.f32.mrb[0].mxu0
    %v5085 = vadd.f32 0.0, %v5084
    %5086 = vmatprep.mubr.f32.mxu0 0.0
    %5087 = vmatmul.mubr.f32.gmra.mrb[0].mxu0 %v244
    %v5088 = vpop.f32.mrb[0].mxu0
    %v5089 = vadd.f32 0.0, %v5088
    %v5090 = vpop.f32.mrb[0].mxu0
    %v5091 = vadd.f32 0.0, %v5090
    %5092 = vmatprep.mubr.f32.mxu0 0.0
    %5093 = vmatmul.mubr.f32.gmra.mrb[0].mxu0 %v247
    %v5094 = vpop.f32.mrb[0].mxu0
    %v5095 = vadd.f32 0.0, %v5094
    %v5096 = vpop.f32.mrb[0].mxu0
    %v5097 = vadd.f32 0.0, %v5096
    %5098 = vmatprep.mubr.f32.mxu0 0.0
    %5099 = vmatmul.mubr.f32.gmra.mrb[0].mxu0 %v250
    %v5100 = vpop.f32.mrb[0].mxu0
    %v5101 = vadd.f32 0.0, %v5100
    %v5102 = vpop.f32.mrb[0].mxu0
    %v5103 = vadd.f32 0.0, %v5102
    %5104 = vmatprep.mubr.f32.mxu0 0.0
    %5105 = vmatmul.mubr.f32.gmra.mrb[0].mxu0 %v253
    %v5106 = vpop.f32.mrb[0].mxu0
    %v5107 = vadd.f32 0.0, %v5106
    %v5108 = vpop.f32.mrb[0].mxu0
    %v5109 = vadd.f32 0.0, %v5108
    %5110 = vmatprep.mubr.f32.mxu0 0.0
    %5111 = vmatmul.mubr.f32.gmra.mrb[0].mxu0 %v256
    %v5112 = vpop.f32.mrb[0].mxu0
    %v5113 = vadd.f32 0.0, %v5112
    %v5114 = vpop.f32.mrb[0].mxu0
    %v5115 = vadd.f32 0.0, %v5114
    %5116 = vdwg.mxu0
    %5117 = vmatprep.subr.mxu0 %v184
    %5118 = vmatpush1.msra.mxu0 %v183
    %5119 = vmatprep.subr.mxu0 0.0
    %5120 = vmatpush1.msra.mxu0 0.0
    %5121 = vmatprep.subr.mxu0 0.0
    %5122 = vmatpush1.msra.mxu0 0.0
    %5123 = vmatprep.subr.mxu0 0.0
    %5124 = vmatpush1.msra.mxu0 0.0
    %5125 = vmatprep.subr.mxu0 0.0
    %5126 = vmatpush1.msra.mxu0 0.0
    %5127 = vmatprep.subr.mxu0 0.0
    %5128 = vmatpush1.msra.mxu0 0.0
    %5129 = vmatprep.subr.mxu0 0.0
    %5130 = vmatpush1.msra.mxu0 0.0
    %5131 = vmatprep.subr.mxu0 0.0
    %5132 = vmatpush1.msra.mxu0 0.0
    %5133 = vmatprep.subr.mxu0 0.0
    %5134 = vmatpush1.msra.mxu0 0.0
    %5135 = vmatprep.subr.mxu0 0.0
    %5136 = vmatpush1.msra.mxu0 0.0
    %5137 = vmatprep.subr.mxu0 0.0
    %5138 = vmatpush1.msra.mxu0 0.0
    %5139 = vmatprep.subr.mxu0 0.0
    %5140 = vmatpush1.msra.mxu0 0.0
    %5141 = vmatprep.subr.mxu0 0.0
    %5142 = vmatpush1.msra.mxu0 0.0
    %5143 = vmatprep.subr.mxu0 0.0
    %5144 = vmatpush1.msra.mxu0 0.0
    %5145 = vmatprep.subr.mxu0 0.0
    %5146 = vmatpush1.msra.mxu0 0.0
    %5147 = vmatprep.subr.mxu0 0.0
    %5148 = vmatpush1.msra.mxu0 0.0
    %5149 = vmatprep.subr.mxu0 0.0
    %5150 = vmatpush1.msra.mxu0 0.0
    %5151 = vmatprep.subr.mxu0 0.0
    %5152 = vmatpush1.msra.mxu0 0.0
    %5153 = vmatprep.subr.mxu0 0.0
    %5154 = vmatpush1.msra.mxu0 0.0
    %5155 = vmatprep.subr.mxu0 0.0
    %5156 = vmatpush1.msra.mxu0 0.0
    %5157 = vmatprep.subr.mxu0 0.0
    %5158 = vmatpush1.msra.mxu0 0.0
    %5159 = vmatprep.subr.mxu0 0.0
    %5160 = vmatpush1.msra.mxu0 0.0
    %5161 = vmatprep.subr.mxu0 0.0
    %5162 = vmatpush1.msra.mxu0 0.0
    %5163 = vmatprep.subr.mxu0 0.0
    %5164 = vmatpush1.msra.mxu0 0.0
    %5165 = vmatprep.subr.mxu0 0.0
    %5166 = vmatpush1.msra.mxu0 0.0
    %5167 = vmatprep.subr.mxu0 0.0
    %5168 = vmatpush1.msra.mxu0 0.0
    %5169 = vmatprep.subr.mxu0 0.0
    %5170 = vmatpush1.msra.mxu0 0.0
    %5171 = vmatprep.subr.mxu0 0.0
    %5172 = vmatpush1.msra.mxu0 0.0
    %5173 = vmatprep.subr.mxu0 0.0
    %5174 = vmatpush1.msra.mxu0 0.0
    %5175 = vmatprep.subr.mxu0 0.0
    %5176 = vmatpush1.msra.mxu0 0.0
    %5177 = vmatprep.subr.mxu0 0.0
    %5178 = vmatpush1.msra.mxu0 0.0
    %5179 = vmatprep.subr.mxu0 0.0
    %5180 = vmatpush1.msra.mxu0 0.0
    %5181 = vmatprep.mubr.f32.mxu0 0.0
    %5182 = vmatmul.mubr.f32.gmra.mrb[0].mxu0 %v235
    %v5183 = vpop.f32.mrb[0].mxu0
    %v5184 = vadd.f32 0.0, %v5183
    %v5185 = vpop.f32.mrb[0].mxu0
    %v5186 = vadd.f32 0.0, %v5185
    %5187 = vmatprep.mubr.f32.mxu0 0.0
    %5188 = vmatmul.mubr.f32.gmra.mrb[0].mxu0 %v238
    %v5189 = vpop.f32.mrb[0].mxu0
    %v5190 = vadd.f32 0.0, %v5189
    %v5191 = vpop.f32.mrb[0].mxu0
    %v5192 = vadd.f32 0.0, %v5191
    %5193 = vmatprep.mubr.f32.mxu0 0.0
    %5194 = vmatmul.mubr.f32.gmra.mrb[0].mxu0 %v241
    %v5195 = vpop.f32.mrb[0].mxu0
    %v5196 = vadd.f32 0.0, %v5195
    %v5197 = vpop.f32.mrb[0].mxu0
    %v5198 = vadd.f32 0.0, %v5197
    %5199 = vmatprep.mubr.f32.mxu0 0.0
    %5200 = vmatmul.mubr.f32.gmra.mrb[0].mxu0 %v244
    %v5201 = vpop.f32.mrb[0].mxu0
    %v5202 = vadd.f32 0.0, %v5201
    %v5203 = vpop.f32.mrb[0].mxu0
    %v5204 = vadd.f32 0.0, %v5203
    %5205 = vmatprep.mubr.f32.mxu0 0.0
    %5206 = vmatmul.mubr.f32.gmra.mrb[0].mxu0 %v247
    %v5207 = vpop.f32.mrb[0].mxu0
    %v5208 = vadd.f32 0.0, %v5207
    %v5209 = vpop.f32.mrb[0].mxu0
    %v5210 = vadd.f32 0.0, %v5209
    %5211 = vmatprep.mubr.f32.mxu0 0.0
    %5212 = vmatmul.mubr.f32.gmra.mrb[0].mxu0 %v250
    %v5213 = vpop.f32.mrb[0].mxu0
    %v5214 = vadd.f32 0.0, %v5213
    %v5215 = vpop.f32.mrb[0].mxu0
    %v5216 = vadd.f32 0.0, %v5215
    %5217 = vmatprep.mubr.f32.mxu0 0.0
    %5218 = vmatmul.mubr.f32.gmra.mrb[0].mxu0 %v253
    %v5219 = vpop.f32.mrb[0].mxu0
    %v5220 = vadd.f32 0.0, %v5219
    %v5221 = vpop.f32.mrb[0].mxu0
    %v5222 = vadd.f32 0.0, %v5221
    %5223 = vmatprep.mubr.f32.mxu0 0.0
    %5224 = vmatmul.mubr.f32.gmra.mrb[0].mxu0 %v256
    %v5225 = vpop.f32.mrb[0].mxu0
    %v5226 = vadd.f32 0.0, %v5225
    %v5227 = vpop.f32.mrb[0].mxu0
    %v5228 = vadd.f32 0.0, %v5227
    %5229 = vdwg.mxu0
    %5230 = vmatprep.subr.mxu0 %v186
    %5231 = vmatpush1.msra.mxu0 %v185
    %5232 = vmatprep.subr.mxu0 0.0
    %5233 = vmatpush1.msra.mxu0 0.0
    %5234 = vmatprep.subr.mxu0 0.0
    %5235 = vmatpush1.msra.mxu0 0.0
    %5236 = vmatprep.subr.mxu0 0.0
    %5237 = vmatpush1.msra.mxu0 0.0
    %5238 = vmatprep.subr.mxu0 0.0
    %5239 = vmatpush1.msra.mxu0 0.0
    %5240 = vmatprep.subr.mxu0 0.0
    %5241 = vmatpush1.msra.mxu0 0.0
    %5242 = vmatprep.subr.mxu0 0.0
    %5243 = vmatpush1.msra.mxu0 0.0
    %5244 = vmatprep.subr.mxu0 0.0
    %5245 = vmatpush1.msra.mxu0 0.0
    %5246 = vmatprep.subr.mxu0 0.0
    %5247 = vmatpush1.msra.mxu0 0.0
    %5248 = vmatprep.subr.mxu0 0.0
    %5249 = vmatpush1.msra.mxu0 0.0
    %5250 = vmatprep.subr.mxu0 0.0
    %5251 = vmatpush1.msra.mxu0 0.0
    %5252 = vmatprep.subr.mxu0 0.0
    %5253 = vmatpush1.msra.mxu0 0.0
    %5254 = vmatprep.subr.mxu0 0.0
    %5255 = vmatpush1.msra.mxu0 0.0
    %5256 = vmatprep.subr.mxu0 0.0
    %5257 = vmatpush1.msra.mxu0 0.0
    %5258 = vmatprep.subr.mxu0 0.0
    %5259 = vmatpush1.msra.mxu0 0.0
    %5260 = vmatprep.subr.mxu0 0.0
    %5261 = vmatpush1.msra.mxu0 0.0
    %5262 = vmatprep.subr.mxu0 0.0
    %5263 = vmatpush1.msra.mxu0 0.0
    %5264 = vmatprep.subr.mxu0 0.0
    %5265 = vmatpush1.msra.mxu0 0.0
    %5266 = vmatprep.subr.mxu0 0.0
    %5267 = vmatpush1.msra.mxu0 0.0
    %5268 = vmatprep.subr.mxu0 0.0
    %5269 = vmatpush1.msra.mxu0 0.0
    %5270 = vmatprep.subr.mxu0 0.0
    %5271 = vmatpush1.msra.mxu0 0.0
    %5272 = vmatprep.subr.mxu0 0.0
    %5273 = vmatpush1.msra.mxu0 0.0
    %5274 = vmatprep.subr.mxu0 0.0
    %5275 = vmatpush1.msra.mxu0 0.0
    %5276 = vmatprep.subr.mxu0 0.0
    %5277 = vmatpush1.msra.mxu0 0.0
    %5278 = vmatprep.subr.mxu0 0.0
    %5279 = vmatpush1.msra.mxu0 0.0
    %5280 = vmatprep.subr.mxu0 0.0
    %5281 = vmatpush1.msra.mxu0 0.0
    %5282 = vmatprep.subr.mxu0 0.0
    %5283 = vmatpush1.msra.mxu0 0.0
    %5284 = vmatprep.subr.mxu0 0.0
    %5285 = vmatpush1.msra.mxu0 0.0
    %5286 = vmatprep.subr.mxu0 0.0
    %5287 = vmatpush1.msra.mxu0 0.0
    %5288 = vmatprep.subr.mxu0 0.0
    %5289 = vmatpush1.msra.mxu0 0.0
    %5290 = vmatprep.subr.mxu0 0.0
    %5291 = vmatpush1.msra.mxu0 0.0
    %5292 = vmatprep.subr.mxu0 0.0
    %5293 = vmatpush1.msra.mxu0 0.0
    %5294 = vmatprep.mubr.f32.mxu0 0.0
    %5295 = vmatmul.mubr.f32.gmra.mrb[0].mxu0 %v235
    %v5296 = vpop.f32.mrb[0].mxu0
    %v5297 = vadd.f32 0.0, %v5296
    %v5298 = vpop.f32.mrb[0].mxu0
    %v5299 = vadd.f32 0.0, %v5298
    %5300 = vmatprep.mubr.f32.mxu0 0.0
    %5301 = vmatmul.mubr.f32.gmra.mrb[0].mxu0 %v238
    %v5302 = vpop.f32.mrb[0].mxu0
    %v5303 = vadd.f32 0.0, %v5302
    %v5304 = vpop.f32.mrb[0].mxu0
    %v5305 = vadd.f32 0.0, %v5304
    %5306 = vmatprep.mubr.f32.mxu0 0.0
    %5307 = vmatmul.mubr.f32.gmra.mrb[0].mxu0 %v241
    %v5308 = vpop.f32.mrb[0].mxu0
    %v5309 = vadd.f32 0.0, %v5308
    %v5310 = vpop.f32.mrb[0].mxu0
    %v5311 = vadd.f32 0.0, %v5310
    %5312 = vmatprep.mubr.f32.mxu0 0.0
    %5313 = vmatmul.mubr.f32.gmra.mrb[0].mxu0 %v244
    %v5314 = vpop.f32.mrb[0].mxu0
    %v5315 = vadd.f32 0.0, %v5314
    %v5316 = vpop.f32.mrb[0].mxu0
    %v5317 = vadd.f32 0.0, %v5316
    %5318 = vmatprep.mubr.f32.mxu0 0.0
    %5319 = vmatmul.mubr.f32.gmra.mrb[0].mxu0 %v247
    %v5320 = vpop.f32.mrb[0].mxu0
    %v5321 = vadd.f32 0.0, %v5320
    %v5322 = vpop.f32.mrb[0].mxu0
    %v5323 = vadd.f32 0.0, %v5322
    %5324 = vmatprep.mubr.f32.mxu0 0.0
    %5325 = vmatmul.mubr.f32.gmra.mrb[0].mxu0 %v250
    %v5326 = vpop.f32.mrb[0].mxu0
    %v5327 = vadd.f32 0.0, %v5326
    %v5328 = vpop.f32.mrb[0].mxu0
    %v5329 = vadd.f32 0.0, %v5328
    %5330 = vmatprep.mubr.f32.mxu0 0.0
    %5331 = vmatmul.mubr.f32.gmra.mrb[0].mxu0 %v253
    %v5332 = vpop.f32.mrb[0].mxu0
    %v5333 = vadd.f32 0.0, %v5332
    %v5334 = vpop.f32.mrb[0].mxu0
    %v5335 = vadd.f32 0.0, %v5334
    %5336 = vmatprep.mubr.f32.mxu0 0.0
    %5337 = vmatmul.mubr.f32.gmra.mrb[0].mxu0 %v256
    %v5338 = vpop.f32.mrb[0].mxu0
    %v5339 = vadd.f32 0.0, %v5338
    %v5340 = vpop.f32.mrb[0].mxu0
    %v5341 = vadd.f32 0.0, %v5340
    %5342 = vdwg.mxu0
    %5343 = vmatprep.subr.mxu0 %v188
    %5344 = vmatpush1.msra.mxu0 %v187
    %5345 = vmatprep.subr.mxu0 0.0
    %5346 = vmatpush1.msra.mxu0 0.0
    %5347 = vmatprep.subr.mxu0 0.0
    %5348 = vmatpush1.msra.mxu0 0.0
    %5349 = vmatprep.subr.mxu0 0.0
    %5350 = vmatpush1.msra.mxu0 0.0
    %5351 = vmatprep.subr.mxu0 0.0
    %5352 = vmatpush1.msra.mxu0 0.0
    %5353 = vmatprep.subr.mxu0 0.0
    %5354 = vmatpush1.msra.mxu0 0.0
    %5355 = vmatprep.subr.mxu0 0.0
    %5356 = vmatpush1.msra.mxu0 0.0
    %5357 = vmatprep.subr.mxu0 0.0
    %5358 = vmatpush1.msra.mxu0 0.0
    %5359 = vmatprep.subr.mxu0 0.0
    %5360 = vmatpush1.msra.mxu0 0.0
    %5361 = vmatprep.subr.mxu0 0.0
    %5362 = vmatpush1.msra.mxu0 0.0
    %5363 = vmatprep.subr.mxu0 0.0
    %5364 = vmatpush1.msra.mxu0 0.0
    %5365 = vmatprep.subr.mxu0 0.0
    %5366 = vmatpush1.msra.mxu0 0.0
    %5367 = vmatprep.subr.mxu0 0.0
    %5368 = vmatpush1.msra.mxu0 0.0
    %5369 = vmatprep.subr.mxu0 0.0
    %5370 = vmatpush1.msra.mxu0 0.0
    %5371 = vmatprep.subr.mxu0 0.0
    %5372 = vmatpush1.msra.mxu0 0.0
    %5373 = vmatprep.subr.mxu0 0.0
    %5374 = vmatpush1.msra.mxu0 0.0
    %5375 = vmatprep.subr.mxu0 0.0
    %5376 = vmatpush1.msra.mxu0 0.0
    %5377 = vmatprep.subr.mxu0 0.0
    %5378 = vmatpush1.msra.mxu0 0.0
    %5379 = vmatprep.subr.mxu0 0.0
    %5380 = vmatpush1.msra.mxu0 0.0
    %5381 = vmatprep.subr.mxu0 0.0
    %5382 = vmatpush1.msra.mxu0 0.0
    %5383 = vmatprep.subr.mxu0 0.0
    %5384 = vmatpush1.msra.mxu0 0.0
    %5385 = vmatprep.subr.mxu0 0.0
    %5386 = vmatpush1.msra.mxu0 0.0
    %5387 = vmatprep.subr.mxu0 0.0
    %5388 = vmatpush1.msra.mxu0 0.0
    %5389 = vmatprep.subr.mxu0 0.0
    %5390 = vmatpush1.msra.mxu0 0.0
    %5391 = vmatprep.subr.mxu0 0.0
    %5392 = vmatpush1.msra.mxu0 0.0
    %5393 = vmatprep.subr.mxu0 0.0
    %5394 = vmatpush1.msra.mxu0 0.0
    %5395 = vmatprep.subr.mxu0 0.0
    %5396 = vmatpush1.msra.mxu0 0.0
    %5397 = vmatprep.subr.mxu0 0.0
    %5398 = vmatpush1.msra.mxu0 0.0
    %5399 = vmatprep.subr.mxu0 0.0
    %5400 = vmatpush1.msra.mxu0 0.0
    %5401 = vmatprep.subr.mxu0 0.0
    %5402 = vmatpush1.msra.mxu0 0.0
    %5403 = vmatprep.subr.mxu0 0.0
    %5404 = vmatpush1.msra.mxu0 0.0
    %5405 = vmatprep.subr.mxu0 0.0
    %5406 = vmatpush1.msra.mxu0 0.0
    %5407 = vmatprep.mubr.f32.mxu0 0.0
    %5408 = vmatmul.mubr.f32.gmra.mrb[0].mxu0 %v235
    %v5409 = vpop.f32.mrb[0].mxu0
    %v5410 = vadd.f32 0.0, %v5409
    %v5411 = vpop.f32.mrb[0].mxu0
    %v5412 = vadd.f32 0.0, %v5411
    %5413 = vmatprep.mubr.f32.mxu0 0.0
    %5414 = vmatmul.mubr.f32.gmra.mrb[0].mxu0 %v238
    %v5415 = vpop.f32.mrb[0].mxu0
    %v5416 = vadd.f32 0.0, %v5415
    %v5417 = vpop.f32.mrb[0].mxu0
    %v5418 = vadd.f32 0.0, %v5417
    %5419 = vmatprep.mubr.f32.mxu0 0.0
    %5420 = vmatmul.mubr.f32.gmra.mrb[0].mxu0 %v241
    %v5421 = vpop.f32.mrb[0].mxu0
    %v5422 = vadd.f32 0.0, %v5421
    %v5423 = vpop.f32.mrb[0].mxu0
    %v5424 = vadd.f32 0.0, %v5423
    %5425 = vmatprep.mubr.f32.mxu0 0.0
    %5426 = vmatmul.mubr.f32.gmra.mrb[0].mxu0 %v244
    %v5427 = vpop.f32.mrb[0].mxu0
    %v5428 = vadd.f32 0.0, %v5427
    %v5429 = vpop.f32.mrb[0].mxu0
    %v5430 = vadd.f32 0.0, %v5429
    %5431 = vmatprep.mubr.f32.mxu0 0.0
    %5432 = vmatmul.mubr.f32.gmra.mrb[0].mxu0 %v247
    %v5433 = vpop.f32.mrb[0].mxu0
    %v5434 = vadd.f32 0.0, %v5433
    %v5435 = vpop.f32.mrb[0].mxu0
    %v5436 = vadd.f32 0.0, %v5435
    %5437 = vmatprep.mubr.f32.mxu0 0.0
    %5438 = vmatmul.mubr.f32.gmra.mrb[0].mxu0 %v250
    %v5439 = vpop.f32.mrb[0].mxu0
    %v5440 = vadd.f32 0.0, %v5439
    %v5441 = vpop.f32.mrb[0].mxu0
    %v5442 = vadd.f32 0.0, %v5441
    %5443 = vmatprep.mubr.f32.mxu0 0.0
    %5444 = vmatmul.mubr.f32.gmra.mrb[0].mxu0 %v253
    %v5445 = vpop.f32.mrb[0].mxu0
    %v5446 = vadd.f32 0.0, %v5445
    %v5447 = vpop.f32.mrb[0].mxu0
    %v5448 = vadd.f32 0.0, %v5447
    %5449 = vmatprep.mubr.f32.mxu0 0.0
    %5450 = vmatmul.mubr.f32.gmra.mrb[0].mxu0 %v256
    %v5451 = vpop.f32.mrb[0].mxu0
    %v5452 = vadd.f32 0.0, %v5451
    %v5453 = vpop.f32.mrb[0].mxu0
    %v5454 = vadd.f32 0.0, %v5453
    %5455 = vdwg.mxu0
    %5456 = vmatprep.subr.mxu0 %v190
    %5457 = vmatpush1.msra.mxu0 %v189
    %5458 = vmatprep.subr.mxu0 0.0
    %5459 = vmatpush1.msra.mxu0 0.0
    %5460 = vmatprep.subr.mxu0 0.0
    %5461 = vmatpush1.msra.mxu0 0.0
    %5462 = vmatprep.subr.mxu0 0.0
    %5463 = vmatpush1.msra.mxu0 0.0
    %5464 = vmatprep.subr.mxu0 0.0
    %5465 = vmatpush1.msra.mxu0 0.0
    %5466 = vmatprep.subr.mxu0 0.0
    %5467 = vmatpush1.msra.mxu0 0.0
    %5468 = vmatprep.subr.mxu0 0.0
    %5469 = vmatpush1.msra.mxu0 0.0
    %5470 = vmatprep.subr.mxu0 0.0
    %5471 = vmatpush1.msra.mxu0 0.0
    %5472 = vmatprep.subr.mxu0 0.0
    %5473 = vmatpush1.msra.mxu0 0.0
    %5474 = vmatprep.subr.mxu0 0.0
    %5475 = vmatpush1.msra.mxu0 0.0
    %5476 = vmatprep.subr.mxu0 0.0
    %5477 = vmatpush1.msra.mxu0 0.0
    %5478 = vmatprep.subr.mxu0 0.0
    %5479 = vmatpush1.msra.mxu0 0.0
    %5480 = vmatprep.subr.mxu0 0.0
    %5481 = vmatpush1.msra.mxu0 0.0
    %5482 = vmatprep.subr.mxu0 0.0
    %5483 = vmatpush1.msra.mxu0 0.0
    %5484 = vmatprep.subr.mxu0 0.0
    %5485 = vmatpush1.msra.mxu0 0.0
    %5486 = vmatprep.subr.mxu0 0.0
    %5487 = vmatpush1.msra.mxu0 0.0
    %5488 = vmatprep.subr.mxu0 0.0
    %5489 = vmatpush1.msra.mxu0 0.0
    %5490 = vmatprep.subr.mxu0 0.0
    %5491 = vmatpush1.msra.mxu0 0.0
    %5492 = vmatprep.subr.mxu0 0.0
    %5493 = vmatpush1.msra.mxu0 0.0
    %5494 = vmatprep.subr.mxu0 0.0
    %5495 = vmatpush1.msra.mxu0 0.0
    %5496 = vmatprep.subr.mxu0 0.0
    %5497 = vmatpush1.msra.mxu0 0.0
    %5498 = vmatprep.subr.mxu0 0.0
    %5499 = vmatpush1.msra.mxu0 0.0
    %5500 = vmatprep.subr.mxu0 0.0
    %5501 = vmatpush1.msra.mxu0 0.0
    %5502 = vmatprep.subr.mxu0 0.0
    %5503 = vmatpush1.msra.mxu0 0.0
    %5504 = vmatprep.subr.mxu0 0.0
    %5505 = vmatpush1.msra.mxu0 0.0
    %5506 = vmatprep.subr.mxu0 0.0
    %5507 = vmatpush1.msra.mxu0 0.0
    %5508 = vmatprep.subr.mxu0 0.0
    %5509 = vmatpush1.msra.mxu0 0.0
    %5510 = vmatprep.subr.mxu0 0.0
    %5511 = vmatpush1.msra.mxu0 0.0
    %5512 = vmatprep.subr.mxu0 0.0
    %5513 = vmatpush1.msra.mxu0 0.0
    %5514 = vmatprep.subr.mxu0 0.0
    %5515 = vmatpush1.msra.mxu0 0.0
    %5516 = vmatprep.subr.mxu0 0.0
    %5517 = vmatpush1.msra.mxu0 0.0
    %5518 = vmatprep.subr.mxu0 0.0
    %5519 = vmatpush1.msra.mxu0 0.0
    %5520 = vmatprep.mubr.f32.mxu0 0.0
    %5521 = vmatmul.mubr.f32.gmra.mrb[0].mxu0 %v235
    %v5522 = vpop.f32.mrb[0].mxu0
    %v5523 = vadd.f32 0.0, %v5522
    %v5524 = vpop.f32.mrb[0].mxu0
    %v5525 = vadd.f32 0.0, %v5524
    %5526 = vmatprep.mubr.f32.mxu0 0.0
    %5527 = vmatmul.mubr.f32.gmra.mrb[0].mxu0 %v238
    %v5528 = vpop.f32.mrb[0].mxu0
    %v5529 = vadd.f32 0.0, %v5528
    %v5530 = vpop.f32.mrb[0].mxu0
    %v5531 = vadd.f32 0.0, %v5530
    %5532 = vmatprep.mubr.f32.mxu0 0.0
    %5533 = vmatmul.mubr.f32.gmra.mrb[0].mxu0 %v241
    %v5534 = vpop.f32.mrb[0].mxu0
    %v5535 = vadd.f32 0.0, %v5534
    %v5536 = vpop.f32.mrb[0].mxu0
    %v5537 = vadd.f32 0.0, %v5536
    %5538 = vmatprep.mubr.f32.mxu0 0.0
    %5539 = vmatmul.mubr.f32.gmra.mrb[0].mxu0 %v244
    %v5540 = vpop.f32.mrb[0].mxu0
    %v5541 = vadd.f32 0.0, %v5540
    %v5542 = vpop.f32.mrb[0].mxu0
    %v5543 = vadd.f32 0.0, %v5542
    %5544 = vmatprep.mubr.f32.mxu0 0.0
    %5545 = vmatmul.mubr.f32.gmra.mrb[0].mxu0 %v247
    %v5546 = vpop.f32.mrb[0].mxu0
    %v5547 = vadd.f32 0.0, %v5546
    %v5548 = vpop.f32.mrb[0].mxu0
    %v5549 = vadd.f32 0.0, %v5548
    %5550 = vmatprep.mubr.f32.mxu0 0.0
    %5551 = vmatmul.mubr.f32.gmra.mrb[0].mxu0 %v250
    %v5552 = vpop.f32.mrb[0].mxu0
    %v5553 = vadd.f32 0.0, %v5552
    %v5554 = vpop.f32.mrb[0].mxu0
    %v5555 = vadd.f32 0.0, %v5554
    %5556 = vmatprep.mubr.f32.mxu0 0.0
    %5557 = vmatmul.mubr.f32.gmra.mrb[0].mxu0 %v253
    %v5558 = vpop.f32.mrb[0].mxu0
    %v5559 = vadd.f32 0.0, %v5558
    %v5560 = vpop.f32.mrb[0].mxu0
    %v5561 = vadd.f32 0.0, %v5560
    %5562 = vmatprep.mubr.f32.mxu0 0.0
    %5563 = vmatmul.mubr.f32.gmra.mrb[0].mxu0 %v256
    %v5564 = vpop.f32.mrb[0].mxu0
    %v5565 = vadd.f32 0.0, %v5564
    %v5566 = vpop.f32.mrb[0].mxu0
    %v5567 = vadd.f32 0.0, %v5566
    %5568 = vdwg.mxu0
    %5569 = vmatprep.subr.mxu0 %v192
    %5570 = vmatpush1.msra.mxu0 %v191
    %5571 = vmatprep.subr.mxu0 0.0
    %5572 = vmatpush1.msra.mxu0 0.0
    %5573 = vmatprep.subr.mxu0 0.0
    %5574 = vmatpush1.msra.mxu0 0.0
    %5575 = vmatprep.subr.mxu0 0.0
    %5576 = vmatpush1.msra.mxu0 0.0
    %5577 = vmatprep.subr.mxu0 0.0
    %5578 = vmatpush1.msra.mxu0 0.0
    %5579 = vmatprep.subr.mxu0 0.0
    %5580 = vmatpush1.msra.mxu0 0.0
    %5581 = vmatprep.subr.mxu0 0.0
    %5582 = vmatpush1.msra.mxu0 0.0
    %5583 = vmatprep.subr.mxu0 0.0
    %5584 = vmatpush1.msra.mxu0 0.0
    %5585 = vmatprep.subr.mxu0 0.0
    %5586 = vmatpush1.msra.mxu0 0.0
    %5587 = vmatprep.subr.mxu0 0.0
    %5588 = vmatpush1.msra.mxu0 0.0
    %5589 = vmatprep.subr.mxu0 0.0
    %5590 = vmatpush1.msra.mxu0 0.0
    %5591 = vmatprep.subr.mxu0 0.0
    %5592 = vmatpush1.msra.mxu0 0.0
    %5593 = vmatprep.subr.mxu0 0.0
    %5594 = vmatpush1.msra.mxu0 0.0
    %5595 = vmatprep.subr.mxu0 0.0
    %5596 = vmatpush1.msra.mxu0 0.0
    %5597 = vmatprep.subr.mxu0 0.0
    %5598 = vmatpush1.msra.mxu0 0.0
    %5599 = vmatprep.subr.mxu0 0.0
    %5600 = vmatpush1.msra.mxu0 0.0
    %5601 = vmatprep.subr.mxu0 0.0
    %5602 = vmatpush1.msra.mxu0 0.0
    %5603 = vmatprep.subr.mxu0 0.0
    %5604 = vmatpush1.msra.mxu0 0.0
    %5605 = vmatprep.subr.mxu0 0.0
    %5606 = vmatpush1.msra.mxu0 0.0
    %5607 = vmatprep.subr.mxu0 0.0
    %5608 = vmatpush1.msra.mxu0 0.0
    %5609 = vmatprep.subr.mxu0 0.0
    %5610 = vmatpush1.msra.mxu0 0.0
    %5611 = vmatprep.subr.mxu0 0.0
    %5612 = vmatpush1.msra.mxu0 0.0
    %5613 = vmatprep.subr.mxu0 0.0
    %5614 = vmatpush1.msra.mxu0 0.0
    %5615 = vmatprep.subr.mxu0 0.0
    %5616 = vmatpush1.msra.mxu0 0.0
    %5617 = vmatprep.subr.mxu0 0.0
    %5618 = vmatpush1.msra.mxu0 0.0
    %5619 = vmatprep.subr.mxu0 0.0
    %5620 = vmatpush1.msra.mxu0 0.0
    %5621 = vmatprep.subr.mxu0 0.0
    %5622 = vmatpush1.msra.mxu0 0.0
    %5623 = vmatprep.subr.mxu0 0.0
    %5624 = vmatpush1.msra.mxu0 0.0
    %5625 = vmatprep.subr.mxu0 0.0
    %5626 = vmatpush1.msra.mxu0 0.0
    %5627 = vmatprep.subr.mxu0 0.0
    %5628 = vmatpush1.msra.mxu0 0.0
    %5629 = vmatprep.subr.mxu0 0.0
    %5630 = vmatpush1.msra.mxu0 0.0
    %5631 = vmatprep.subr.mxu0 0.0
    %5632 = vmatpush1.msra.mxu0 0.0
    %5633 = vmatprep.mubr.f32.mxu0 0.0
    %5634 = vmatmul.mubr.f32.gmra.mrb[0].mxu0 %v235
    %v5635 = vpop.f32.mrb[0].mxu0
    %v5636 = vadd.f32 0.0, %v5635
    %v5637 = vpop.f32.mrb[0].mxu0
    %v5638 = vadd.f32 0.0, %v5637
    %5639 = vmatprep.mubr.f32.mxu0 0.0
    %5640 = vmatmul.mubr.f32.gmra.mrb[0].mxu0 %v238
    %v5641 = vpop.f32.mrb[0].mxu0
    %v5642 = vadd.f32 0.0, %v5641
    %v5643 = vpop.f32.mrb[0].mxu0
    %v5644 = vadd.f32 0.0, %v5643
    %5645 = vmatprep.mubr.f32.mxu0 0.0
    %5646 = vmatmul.mubr.f32.gmra.mrb[0].mxu0 %v241
    %v5647 = vpop.f32.mrb[0].mxu0
    %v5648 = vadd.f32 0.0, %v5647
    %v5649 = vpop.f32.mrb[0].mxu0
    %v5650 = vadd.f32 0.0, %v5649
    %5651 = vmatprep.mubr.f32.mxu0 0.0
    %5652 = vmatmul.mubr.f32.gmra.mrb[0].mxu0 %v244
    %v5653 = vpop.f32.mrb[0].mxu0
    %v5654 = vadd.f32 0.0, %v5653
    %v5655 = vpop.f32.mrb[0].mxu0
    %v5656 = vadd.f32 0.0, %v5655
    %5657 = vmatprep.mubr.f32.mxu0 0.0
    %5658 = vmatmul.mubr.f32.gmra.mrb[0].mxu0 %v247
    %v5659 = vpop.f32.mrb[0].mxu0
    %v5660 = vadd.f32 0.0, %v5659
    %v5661 = vpop.f32.mrb[0].mxu0
    %v5662 = vadd.f32 0.0, %v5661
    %5663 = vmatprep.mubr.f32.mxu0 0.0
    %5664 = vmatmul.mubr.f32.gmra.mrb[0].mxu0 %v250
    %v5665 = vpop.f32.mrb[0].mxu0
    %v5666 = vadd.f32 0.0, %v5665
    %v5667 = vpop.f32.mrb[0].mxu0
    %v5668 = vadd.f32 0.0, %v5667
    %5669 = vmatprep.mubr.f32.mxu0 0.0
    %5670 = vmatmul.mubr.f32.gmra.mrb[0].mxu0 %v253
    %v5671 = vpop.f32.mrb[0].mxu0
    %v5672 = vadd.f32 0.0, %v5671
    %v5673 = vpop.f32.mrb[0].mxu0
    %v5674 = vadd.f32 0.0, %v5673
    %5675 = vmatprep.mubr.f32.mxu0 0.0
    %5676 = vmatmul.mubr.f32.gmra.mrb[0].mxu0 %v256
    %v5677 = vpop.f32.mrb[0].mxu0
    %v5678 = vadd.f32 0.0, %v5677
    %v5679 = vpop.f32.mrb[0].mxu0
    %v5680 = vadd.f32 0.0, %v5679
    %5681 = vdwg.mxu0
    %5682 = vmatprep.subr.mxu0 %v194
    %5683 = vmatpush1.msra.mxu0 %v193
    %5684 = vmatprep.subr.mxu0 0.0
    %5685 = vmatpush1.msra.mxu0 0.0
    %5686 = vmatprep.subr.mxu0 0.0
    %5687 = vmatpush1.msra.mxu0 0.0
    %5688 = vmatprep.subr.mxu0 0.0
    %5689 = vmatpush1.msra.mxu0 0.0
    %5690 = vmatprep.subr.mxu0 0.0
    %5691 = vmatpush1.msra.mxu0 0.0
    %5692 = vmatprep.subr.mxu0 0.0
    %5693 = vmatpush1.msra.mxu0 0.0
    %5694 = vmatprep.subr.mxu0 0.0
    %5695 = vmatpush1.msra.mxu0 0.0
    %5696 = vmatprep.subr.mxu0 0.0
    %5697 = vmatpush1.msra.mxu0 0.0
    %5698 = vmatprep.subr.mxu0 0.0
    %5699 = vmatpush1.msra.mxu0 0.0
    %5700 = vmatprep.subr.mxu0 0.0
    %5701 = vmatpush1.msra.mxu0 0.0
    %5702 = vmatprep.subr.mxu0 0.0
    %5703 = vmatpush1.msra.mxu0 0.0
    %5704 = vmatprep.subr.mxu0 0.0
    %5705 = vmatpush1.msra.mxu0 0.0
    %5706 = vmatprep.subr.mxu0 0.0
    %5707 = vmatpush1.msra.mxu0 0.0
    %5708 = vmatprep.subr.mxu0 0.0
    %5709 = vmatpush1.msra.mxu0 0.0
    %5710 = vmatprep.subr.mxu0 0.0
    %5711 = vmatpush1.msra.mxu0 0.0
    %5712 = vmatprep.subr.mxu0 0.0
    %5713 = vmatpush1.msra.mxu0 0.0
    %5714 = vmatprep.subr.mxu0 0.0
    %5715 = vmatpush1.msra.mxu0 0.0
    %5716 = vmatprep.subr.mxu0 0.0
    %5717 = vmatpush1.msra.mxu0 0.0
    %5718 = vmatprep.subr.mxu0 0.0
    %5719 = vmatpush1.msra.mxu0 0.0
    %5720 = vmatprep.subr.mxu0 0.0
    %5721 = vmatpush1.msra.mxu0 0.0
    %5722 = vmatprep.subr.mxu0 0.0
    %5723 = vmatpush1.msra.mxu0 0.0
    %5724 = vmatprep.subr.mxu0 0.0
    %5725 = vmatpush1.msra.mxu0 0.0
    %5726 = vmatprep.subr.mxu0 0.0
    %5727 = vmatpush1.msra.mxu0 0.0
    %5728 = vmatprep.subr.mxu0 0.0
    %5729 = vmatpush1.msra.mxu0 0.0
    %5730 = vmatprep.subr.mxu0 0.0
    %5731 = vmatpush1.msra.mxu0 0.0
    %5732 = vmatprep.subr.mxu0 0.0
    %5733 = vmatpush1.msra.mxu0 0.0
    %5734 = vmatprep.subr.mxu0 0.0
    %5735 = vmatpush1.msra.mxu0 0.0
    %5736 = vmatprep.subr.mxu0 0.0
    %5737 = vmatpush1.msra.mxu0 0.0
    %5738 = vmatprep.subr.mxu0 0.0
    %5739 = vmatpush1.msra.mxu0 0.0
    %5740 = vmatprep.subr.mxu0 0.0
    %5741 = vmatpush1.msra.mxu0 0.0
    %5742 = vmatprep.subr.mxu0 0.0
    %5743 = vmatpush1.msra.mxu0 0.0
    %5744 = vmatprep.subr.mxu0 0.0
    %5745 = vmatpush1.msra.mxu0 0.0
    %5746 = vmatprep.mubr.f32.mxu0 0.0
    %5747 = vmatmul.mubr.f32.gmra.mrb[0].mxu0 %v235
    %v5748 = vpop.f32.mrb[0].mxu0
    %v5749 = vadd.f32 0.0, %v5748
    %v5750 = vpop.f32.mrb[0].mxu0
    %v5751 = vadd.f32 0.0, %v5750
    %5752 = vmatprep.mubr.f32.mxu0 0.0
    %5753 = vmatmul.mubr.f32.gmra.mrb[0].mxu0 %v238
    %v5754 = vpop.f32.mrb[0].mxu0
    %v5755 = vadd.f32 0.0, %v5754
    %v5756 = vpop.f32.mrb[0].mxu0
    %v5757 = vadd.f32 0.0, %v5756
    %5758 = vmatprep.mubr.f32.mxu0 0.0
    %5759 = vmatmul.mubr.f32.gmra.mrb[0].mxu0 %v241
    %v5760 = vpop.f32.mrb[0].mxu0
    %v5761 = vadd.f32 0.0, %v5760
    %v5762 = vpop.f32.mrb[0].mxu0
    %v5763 = vadd.f32 0.0, %v5762
    %5764 = vmatprep.mubr.f32.mxu0 0.0
    %5765 = vmatmul.mubr.f32.gmra.mrb[0].mxu0 %v244
    %v5766 = vpop.f32.mrb[0].mxu0
    %v5767 = vadd.f32 0.0, %v5766
    %v5768 = vpop.f32.mrb[0].mxu0
    %v5769 = vadd.f32 0.0, %v5768
    %5770 = vmatprep.mubr.f32.mxu0 0.0
    %5771 = vmatmul.mubr.f32.gmra.mrb[0].mxu0 %v247
    %v5772 = vpop.f32.mrb[0].mxu0
    %v5773 = vadd.f32 0.0, %v5772
    %v5774 = vpop.f32.mrb[0].mxu0
    %v5775 = vadd.f32 0.0, %v5774
    %5776 = vmatprep.mubr.f32.mxu0 0.0
    %5777 = vmatmul.mubr.f32.gmra.mrb[0].mxu0 %v250
    %v5778 = vpop.f32.mrb[0].mxu0
    %v5779 = vadd.f32 0.0, %v5778
    %v5780 = vpop.f32.mrb[0].mxu0
    %v5781 = vadd.f32 0.0, %v5780
    %5782 = vmatprep.mubr.f32.mxu0 0.0
    %5783 = vmatmul.mubr.f32.gmra.mrb[0].mxu0 %v253
    %v5784 = vpop.f32.mrb[0].mxu0
    %v5785 = vadd.f32 0.0, %v5784
    %v5786 = vpop.f32.mrb[0].mxu0
    %v5787 = vadd.f32 0.0, %v5786
    %5788 = vmatprep.mubr.f32.mxu0 0.0
    %5789 = vmatmul.mubr.f32.gmra.mrb[0].mxu0 %v256
    %v5790 = vpop.f32.mrb[0].mxu0
    %v5791 = vadd.f32 0.0, %v5790
    %v5792 = vpop.f32.mrb[0].mxu0
    %v5793 = vadd.f32 0.0, %v5792
    %5794 = vdwg.mxu0
    %5795 = vmatprep.subr.mxu0 %v196
    %5796 = vmatpush1.msra.mxu0 %v195
    %5797 = vmatprep.subr.mxu0 0.0
    %5798 = vmatpush1.msra.mxu0 0.0
    %5799 = vmatprep.subr.mxu0 0.0
    %5800 = vmatpush1.msra.mxu0 0.0
    %5801 = vmatprep.subr.mxu0 0.0
    %5802 = vmatpush1.msra.mxu0 0.0
    %5803 = vmatprep.subr.mxu0 0.0
    %5804 = vmatpush1.msra.mxu0 0.0
    %5805 = vmatprep.subr.mxu0 0.0
    %5806 = vmatpush1.msra.mxu0 0.0
    %5807 = vmatprep.subr.mxu0 0.0
    %5808 = vmatpush1.msra.mxu0 0.0
    %5809 = vmatprep.subr.mxu0 0.0
    %5810 = vmatpush1.msra.mxu0 0.0
    %5811 = vmatprep.subr.mxu0 0.0
    %5812 = vmatpush1.msra.mxu0 0.0
    %5813 = vmatprep.subr.mxu0 0.0
    %5814 = vmatpush1.msra.mxu0 0.0
    %5815 = vmatprep.subr.mxu0 0.0
    %5816 = vmatpush1.msra.mxu0 0.0
    %5817 = vmatprep.subr.mxu0 0.0
    %5818 = vmatpush1.msra.mxu0 0.0
    %5819 = vmatprep.subr.mxu0 0.0
    %5820 = vmatpush1.msra.mxu0 0.0
    %5821 = vmatprep.subr.mxu0 0.0
    %5822 = vmatpush1.msra.mxu0 0.0
    %5823 = vmatprep.subr.mxu0 0.0
    %5824 = vmatpush1.msra.mxu0 0.0
    %5825 = vmatprep.subr.mxu0 0.0
    %5826 = vmatpush1.msra.mxu0 0.0
    %5827 = vmatprep.subr.mxu0 0.0
    %5828 = vmatpush1.msra.mxu0 0.0
    %5829 = vmatprep.subr.mxu0 0.0
    %5830 = vmatpush1.msra.mxu0 0.0
    %5831 = vmatprep.subr.mxu0 0.0
    %5832 = vmatpush1.msra.mxu0 0.0
    %5833 = vmatprep.subr.mxu0 0.0
    %5834 = vmatpush1.msra.mxu0 0.0
    %5835 = vmatprep.subr.mxu0 0.0
    %5836 = vmatpush1.msra.mxu0 0.0
    %5837 = vmatprep.subr.mxu0 0.0
    %5838 = vmatpush1.msra.mxu0 0.0
    %5839 = vmatprep.subr.mxu0 0.0
    %5840 = vmatpush1.msra.mxu0 0.0
    %5841 = vmatprep.subr.mxu0 0.0
    %5842 = vmatpush1.msra.mxu0 0.0
    %5843 = vmatprep.subr.mxu0 0.0
    %5844 = vmatpush1.msra.mxu0 0.0
    %5845 = vmatprep.subr.mxu0 0.0
    %5846 = vmatpush1.msra.mxu0 0.0
    %5847 = vmatprep.subr.mxu0 0.0
    %5848 = vmatpush1.msra.mxu0 0.0
    %5849 = vmatprep.subr.mxu0 0.0
    %5850 = vmatpush1.msra.mxu0 0.0
    %5851 = vmatprep.subr.mxu0 0.0
    %5852 = vmatpush1.msra.mxu0 0.0
    %5853 = vmatprep.subr.mxu0 0.0
    %5854 = vmatpush1.msra.mxu0 0.0
    %5855 = vmatprep.subr.mxu0 0.0
    %5856 = vmatpush1.msra.mxu0 0.0
    %5857 = vmatprep.subr.mxu0 0.0
    %5858 = vmatpush1.msra.mxu0 0.0
    %5859 = vmatprep.mubr.f32.mxu0 0.0
    %5860 = vmatmul.mubr.f32.gmra.mrb[0].mxu0 %v235
    %v5861 = vpop.f32.mrb[0].mxu0
    %v5862 = vadd.f32 0.0, %v5861
    %v5863 = vpop.f32.mrb[0].mxu0
    %v5864 = vadd.f32 0.0, %v5863
    %5865 = vmatprep.mubr.f32.mxu0 0.0
    %5866 = vmatmul.mubr.f32.gmra.mrb[0].mxu0 %v238
    %v5867 = vpop.f32.mrb[0].mxu0
    %v5868 = vadd.f32 0.0, %v5867
    %v5869 = vpop.f32.mrb[0].mxu0
    %v5870 = vadd.f32 0.0, %v5869
    %5871 = vmatprep.mubr.f32.mxu0 0.0
    %5872 = vmatmul.mubr.f32.gmra.mrb[0].mxu0 %v241
    %v5873 = vpop.f32.mrb[0].mxu0
    %v5874 = vadd.f32 0.0, %v5873
    %v5875 = vpop.f32.mrb[0].mxu0
    %v5876 = vadd.f32 0.0, %v5875
    %5877 = vmatprep.mubr.f32.mxu0 0.0
    %5878 = vmatmul.mubr.f32.gmra.mrb[0].mxu0 %v244
    %v5879 = vpop.f32.mrb[0].mxu0
    %v5880 = vadd.f32 0.0, %v5879
    %v5881 = vpop.f32.mrb[0].mxu0
    %v5882 = vadd.f32 0.0, %v5881
    %5883 = vmatprep.mubr.f32.mxu0 0.0
    %5884 = vmatmul.mubr.f32.gmra.mrb[0].mxu0 %v247
    %v5885 = vpop.f32.mrb[0].mxu0
    %v5886 = vadd.f32 0.0, %v5885
    %v5887 = vpop.f32.mrb[0].mxu0
    %v5888 = vadd.f32 0.0, %v5887
    %5889 = vmatprep.mubr.f32.mxu0 0.0
    %5890 = vmatmul.mubr.f32.gmra.mrb[0].mxu0 %v250
    %v5891 = vpop.f32.mrb[0].mxu0
    %v5892 = vadd.f32 0.0, %v5891
    %v5893 = vpop.f32.mrb[0].mxu0
    %v5894 = vadd.f32 0.0, %v5893
    %5895 = vmatprep.mubr.f32.mxu0 0.0
    %5896 = vmatmul.mubr.f32.gmra.mrb[0].mxu0 %v253
    %v5897 = vpop.f32.mrb[0].mxu0
    %v5898 = vadd.f32 0.0, %v5897
    %v5899 = vpop.f32.mrb[0].mxu0
    %v5900 = vadd.f32 0.0, %v5899
    %5901 = vmatprep.mubr.f32.mxu0 0.0
    %5902 = vmatmul.mubr.f32.gmra.mrb[0].mxu0 %v256
    %v5903 = vpop.f32.mrb[0].mxu0
    %v5904 = vadd.f32 0.0, %v5903
    %v5905 = vpop.f32.mrb[0].mxu0
    %v5906 = vadd.f32 0.0, %v5905
    %5907 = vdwg.mxu0
    %5908 = vmatprep.subr.mxu0 %v198
    %5909 = vmatpush1.msra.mxu0 %v197
    %5910 = vmatprep.subr.mxu0 0.0
    %5911 = vmatpush1.msra.mxu0 0.0
    %5912 = vmatprep.subr.mxu0 0.0
    %5913 = vmatpush1.msra.mxu0 0.0
    %5914 = vmatprep.subr.mxu0 0.0
    %5915 = vmatpush1.msra.mxu0 0.0
    %5916 = vmatprep.subr.mxu0 0.0
    %5917 = vmatpush1.msra.mxu0 0.0
    %5918 = vmatprep.subr.mxu0 0.0
    %5919 = vmatpush1.msra.mxu0 0.0
    %5920 = vmatprep.subr.mxu0 0.0
    %5921 = vmatpush1.msra.mxu0 0.0
    %5922 = vmatprep.subr.mxu0 0.0
    %5923 = vmatpush1.msra.mxu0 0.0
    %5924 = vmatprep.subr.mxu0 0.0
    %5925 = vmatpush1.msra.mxu0 0.0
    %5926 = vmatprep.subr.mxu0 0.0
    %5927 = vmatpush1.msra.mxu0 0.0
    %5928 = vmatprep.subr.mxu0 0.0
    %5929 = vmatpush1.msra.mxu0 0.0
    %5930 = vmatprep.subr.mxu0 0.0
    %5931 = vmatpush1.msra.mxu0 0.0
    %5932 = vmatprep.subr.mxu0 0.0
    %5933 = vmatpush1.msra.mxu0 0.0
    %5934 = vmatprep.subr.mxu0 0.0
    %5935 = vmatpush1.msra.mxu0 0.0
    %5936 = vmatprep.subr.mxu0 0.0
    %5937 = vmatpush1.msra.mxu0 0.0
    %5938 = vmatprep.subr.mxu0 0.0
    %5939 = vmatpush1.msra.mxu0 0.0
    %5940 = vmatprep.subr.mxu0 0.0
    %5941 = vmatpush1.msra.mxu0 0.0
    %5942 = vmatprep.subr.mxu0 0.0
    %5943 = vmatpush1.msra.mxu0 0.0
    %5944 = vmatprep.subr.mxu0 0.0
    %5945 = vmatpush1.msra.mxu0 0.0
    %5946 = vmatprep.subr.mxu0 0.0
    %5947 = vmatpush1.msra.mxu0 0.0
    %5948 = vmatprep.subr.mxu0 0.0
    %5949 = vmatpush1.msra.mxu0 0.0
    %5950 = vmatprep.subr.mxu0 0.0
    %5951 = vmatpush1.msra.mxu0 0.0
    %5952 = vmatprep.subr.mxu0 0.0
    %5953 = vmatpush1.msra.mxu0 0.0
    %5954 = vmatprep.subr.mxu0 0.0
    %5955 = vmatpush1.msra.mxu0 0.0
    %5956 = vmatprep.subr.mxu0 0.0
    %5957 = vmatpush1.msra.mxu0 0.0
    %5958 = vmatprep.subr.mxu0 0.0
    %5959 = vmatpush1.msra.mxu0 0.0
    %5960 = vmatprep.subr.mxu0 0.0
    %5961 = vmatpush1.msra.mxu0 0.0
    %5962 = vmatprep.subr.mxu0 0.0
    %5963 = vmatpush1.msra.mxu0 0.0
    %5964 = vmatprep.subr.mxu0 0.0
    %5965 = vmatpush1.msra.mxu0 0.0
    %5966 = vmatprep.subr.mxu0 0.0
    %5967 = vmatpush1.msra.mxu0 0.0
    %5968 = vmatprep.subr.mxu0 0.0
    %5969 = vmatpush1.msra.mxu0 0.0
    %5970 = vmatprep.subr.mxu0 0.0
    %5971 = vmatpush1.msra.mxu0 0.0
    %5972 = vmatprep.mubr.f32.mxu0 0.0
    %5973 = vmatmul.mubr.f32.gmra.mrb[0].mxu0 %v235
    %v5974 = vpop.f32.mrb[0].mxu0
    %v5975 = vadd.f32 0.0, %v5974
    %v5976 = vpop.f32.mrb[0].mxu0
    %v5977 = vadd.f32 0.0, %v5976
    %5978 = vmatprep.mubr.f32.mxu0 0.0
    %5979 = vmatmul.mubr.f32.gmra.mrb[0].mxu0 %v238
    %v5980 = vpop.f32.mrb[0].mxu0
    %v5981 = vadd.f32 0.0, %v5980
    %v5982 = vpop.f32.mrb[0].mxu0
    %v5983 = vadd.f32 0.0, %v5982
    %5984 = vmatprep.mubr.f32.mxu0 0.0
    %5985 = vmatmul.mubr.f32.gmra.mrb[0].mxu0 %v241
    %v5986 = vpop.f32.mrb[0].mxu0
    %v5987 = vadd.f32 0.0, %v5986
    %v5988 = vpop.f32.mrb[0].mxu0
    %v5989 = vadd.f32 0.0, %v5988
    %5990 = vmatprep.mubr.f32.mxu0 0.0
    %5991 = vmatmul.mubr.f32.gmra.mrb[0].mxu0 %v244
    %v5992 = vpop.f32.mrb[0].mxu0
    %v5993 = vadd.f32 0.0, %v5992
    %v5994 = vpop.f32.mrb[0].mxu0
    %v5995 = vadd.f32 0.0, %v5994
    %5996 = vmatprep.mubr.f32.mxu0 0.0
    %5997 = vmatmul.mubr.f32.gmra.mrb[0].mxu0 %v247
    %v5998 = vpop.f32.mrb[0].mxu0
    %v5999 = vadd.f32 0.0, %v5998
    %v6000 = vpop.f32.mrb[0].mxu0
    %v6001 = vadd.f32 0.0, %v6000
    %6002 = vmatprep.mubr.f32.mxu0 0.0
    %6003 = vmatmul.mubr.f32.gmra.mrb[0].mxu0 %v250
    %v6004 = vpop.f32.mrb[0].mxu0
    %v6005 = vadd.f32 0.0, %v6004
    %v6006 = vpop.f32.mrb[0].mxu0
    %v6007 = vadd.f32 0.0, %v6006
    %6008 = vmatprep.mubr.f32.mxu0 0.0
    %6009 = vmatmul.mubr.f32.gmra.mrb[0].mxu0 %v253
    %v6010 = vpop.f32.mrb[0].mxu0
    %v6011 = vadd.f32 0.0, %v6010
    %v6012 = vpop.f32.mrb[0].mxu0
    %v6013 = vadd.f32 0.0, %v6012
    %6014 = vmatprep.mubr.f32.mxu0 0.0
    %6015 = vmatmul.mubr.f32.gmra.mrb[0].mxu0 %v256
    %v6016 = vpop.f32.mrb[0].mxu0
    %v6017 = vadd.f32 0.0, %v6016
    %v6018 = vpop.f32.mrb[0].mxu0
    %v6019 = vadd.f32 0.0, %v6018
    %6020 = vdwg.mxu0
    %6021 = vmatprep.subr.mxu0 %v200
    %6022 = vmatpush1.msra.mxu0 %v199
    %6023 = vmatprep.subr.mxu0 0.0
    %6024 = vmatpush1.msra.mxu0 0.0
    %6025 = vmatprep.subr.mxu0 0.0
    %6026 = vmatpush1.msra.mxu0 0.0
    %6027 = vmatprep.subr.mxu0 0.0
    %6028 = vmatpush1.msra.mxu0 0.0
    %6029 = vmatprep.subr.mxu0 0.0
    %6030 = vmatpush1.msra.mxu0 0.0
    %6031 = vmatprep.subr.mxu0 0.0
    %6032 = vmatpush1.msra.mxu0 0.0
    %6033 = vmatprep.subr.mxu0 0.0
    %6034 = vmatpush1.msra.mxu0 0.0
    %6035 = vmatprep.subr.mxu0 0.0
    %6036 = vmatpush1.msra.mxu0 0.0
    %6037 = vmatprep.subr.mxu0 0.0
    %6038 = vmatpush1.msra.mxu0 0.0
    %6039 = vmatprep.subr.mxu0 0.0
    %6040 = vmatpush1.msra.mxu0 0.0
    %6041 = vmatprep.subr.mxu0 0.0
    %6042 = vmatpush1.msra.mxu0 0.0
    %6043 = vmatprep.subr.mxu0 0.0
    %6044 = vmatpush1.msra.mxu0 0.0
    %6045 = vmatprep.subr.mxu0 0.0
    %6046 = vmatpush1.msra.mxu0 0.0
    %6047 = vmatprep.subr.mxu0 0.0
    %6048 = vmatpush1.msra.mxu0 0.0
    %6049 = vmatprep.subr.mxu0 0.0
    %6050 = vmatpush1.msra.mxu0 0.0
    %6051 = vmatprep.subr.mxu0 0.0
    %6052 = vmatpush1.msra.mxu0 0.0
    %6053 = vmatprep.subr.mxu0 0.0
    %6054 = vmatpush1.msra.mxu0 0.0
    %6055 = vmatprep.subr.mxu0 0.0
    %6056 = vmatpush1.msra.mxu0 0.0
    %6057 = vmatprep.subr.mxu0 0.0
    %6058 = vmatpush1.msra.mxu0 0.0
    %6059 = vmatprep.subr.mxu0 0.0
    %6060 = vmatpush1.msra.mxu0 0.0
    %6061 = vmatprep.subr.mxu0 0.0
    %6062 = vmatpush1.msra.mxu0 0.0
    %6063 = vmatprep.subr.mxu0 0.0
    %6064 = vmatpush1.msra.mxu0 0.0
    %6065 = vmatprep.subr.mxu0 0.0
    %6066 = vmatpush1.msra.mxu0 0.0
    %6067 = vmatprep.subr.mxu0 0.0
    %6068 = vmatpush1.msra.mxu0 0.0
    %6069 = vmatprep.subr.mxu0 0.0
    %6070 = vmatpush1.msra.mxu0 0.0
    %6071 = vmatprep.subr.mxu0 0.0
    %6072 = vmatpush1.msra.mxu0 0.0
    %6073 = vmatprep.subr.mxu0 0.0
    %6074 = vmatpush1.msra.mxu0 0.0
    %6075 = vmatprep.subr.mxu0 0.0
    %6076 = vmatpush1.msra.mxu0 0.0
    %6077 = vmatprep.subr.mxu0 0.0
    %6078 = vmatpush1.msra.mxu0 0.0
    %6079 = vmatprep.subr.mxu0 0.0
    %6080 = vmatpush1.msra.mxu0 0.0
    %6081 = vmatprep.subr.mxu0 0.0
    %6082 = vmatpush1.msra.mxu0 0.0
    %6083 = vmatprep.subr.mxu0 0.0
    %6084 = vmatpush1.msra.mxu0 0.0
    %6085 = vmatprep.mubr.f32.mxu0 0.0
    %6086 = vmatmul.mubr.f32.gmra.mrb[0].mxu0 %v235
    %v6087 = vpop.f32.mrb[0].mxu0
    %v6088 = vadd.f32 0.0, %v6087
    %v6089 = vpop.f32.mrb[0].mxu0
    %v6090 = vadd.f32 0.0, %v6089
    %6091 = vmatprep.mubr.f32.mxu0 0.0
    %6092 = vmatmul.mubr.f32.gmra.mrb[0].mxu0 %v238
    %v6093 = vpop.f32.mrb[0].mxu0
    %v6094 = vadd.f32 0.0, %v6093
    %v6095 = vpop.f32.mrb[0].mxu0
    %v6096 = vadd.f32 0.0, %v6095
    %6097 = vmatprep.mubr.f32.mxu0 0.0
    %6098 = vmatmul.mubr.f32.gmra.mrb[0].mxu0 %v241
    %v6099 = vpop.f32.mrb[0].mxu0
    %v6100 = vadd.f32 0.0, %v6099
    %v6101 = vpop.f32.mrb[0].mxu0
    %v6102 = vadd.f32 0.0, %v6101
    %6103 = vmatprep.mubr.f32.mxu0 0.0
    %6104 = vmatmul.mubr.f32.gmra.mrb[0].mxu0 %v244
    %v6105 = vpop.f32.mrb[0].mxu0
    %v6106 = vadd.f32 0.0, %v6105
    %v6107 = vpop.f32.mrb[0].mxu0
    %v6108 = vadd.f32 0.0, %v6107
    %6109 = vmatprep.mubr.f32.mxu0 0.0
    %6110 = vmatmul.mubr.f32.gmra.mrb[0].mxu0 %v247
    %v6111 = vpop.f32.mrb[0].mxu0
    %v6112 = vadd.f32 0.0, %v6111
    %v6113 = vpop.f32.mrb[0].mxu0
    %v6114 = vadd.f32 0.0, %v6113
    %6115 = vmatprep.mubr.f32.mxu0 0.0
    %6116 = vmatmul.mubr.f32.gmra.mrb[0].mxu0 %v250
    %v6117 = vpop.f32.mrb[0].mxu0
    %v6118 = vadd.f32 0.0, %v6117
    %v6119 = vpop.f32.mrb[0].mxu0
    %v6120 = vadd.f32 0.0, %v6119
    %6121 = vmatprep.mubr.f32.mxu0 0.0
    %6122 = vmatmul.mubr.f32.gmra.mrb[0].mxu0 %v253
    %v6123 = vpop.f32.mrb[0].mxu0
    %v6124 = vadd.f32 0.0, %v6123
    %v6125 = vpop.f32.mrb[0].mxu0
    %v6126 = vadd.f32 0.0, %v6125
    %6127 = vmatprep.mubr.f32.mxu0 0.0
    %6128 = vmatmul.mubr.f32.gmra.mrb[0].mxu0 %v256
    %v6129 = vpop.f32.mrb[0].mxu0
    %v6130 = vadd.f32 0.0, %v6129
    %v6131 = vpop.f32.mrb[0].mxu0
    %v6132 = vadd.f32 0.0, %v6131
    %6133 = vdwg.mxu0
    %6134 = vmatprep.subr.mxu0 %v202
    %6135 = vmatpush1.msra.mxu0 %v201
    %6136 = vmatprep.subr.mxu0 0.0
    %6137 = vmatpush1.msra.mxu0 0.0
    %6138 = vmatprep.subr.mxu0 0.0
    %6139 = vmatpush1.msra.mxu0 0.0
    %6140 = vmatprep.subr.mxu0 0.0
    %6141 = vmatpush1.msra.mxu0 0.0
    %6142 = vmatprep.subr.mxu0 0.0
    %6143 = vmatpush1.msra.mxu0 0.0
    %6144 = vmatprep.subr.mxu0 0.0
    %6145 = vmatpush1.msra.mxu0 0.0
    %6146 = vmatprep.subr.mxu0 0.0
    %6147 = vmatpush1.msra.mxu0 0.0
    %6148 = vmatprep.subr.mxu0 0.0
    %6149 = vmatpush1.msra.mxu0 0.0
    %6150 = vmatprep.subr.mxu0 0.0
    %6151 = vmatpush1.msra.mxu0 0.0
    %6152 = vmatprep.subr.mxu0 0.0
    %6153 = vmatpush1.msra.mxu0 0.0
    %6154 = vmatprep.subr.mxu0 0.0
    %6155 = vmatpush1.msra.mxu0 0.0
    %6156 = vmatprep.subr.mxu0 0.0
    %6157 = vmatpush1.msra.mxu0 0.0
    %6158 = vmatprep.subr.mxu0 0.0
    %6159 = vmatpush1.msra.mxu0 0.0
    %6160 = vmatprep.subr.mxu0 0.0
    %6161 = vmatpush1.msra.mxu0 0.0
    %6162 = vmatprep.subr.mxu0 0.0
    %6163 = vmatpush1.msra.mxu0 0.0
    %6164 = vmatprep.subr.mxu0 0.0
    %6165 = vmatpush1.msra.mxu0 0.0
    %6166 = vmatprep.subr.mxu0 0.0
    %6167 = vmatpush1.msra.mxu0 0.0
    %6168 = vmatprep.subr.mxu0 0.0
    %6169 = vmatpush1.msra.mxu0 0.0
    %6170 = vmatprep.subr.mxu0 0.0
    %6171 = vmatpush1.msra.mxu0 0.0
    %6172 = vmatprep.subr.mxu0 0.0
    %6173 = vmatpush1.msra.mxu0 0.0
    %6174 = vmatprep.subr.mxu0 0.0
    %6175 = vmatpush1.msra.mxu0 0.0
    %6176 = vmatprep.subr.mxu0 0.0
    %6177 = vmatpush1.msra.mxu0 0.0
    %6178 = vmatprep.subr.mxu0 0.0
    %6179 = vmatpush1.msra.mxu0 0.0
    %6180 = vmatprep.subr.mxu0 0.0
    %6181 = vmatpush1.msra.mxu0 0.0
    %6182 = vmatprep.subr.mxu0 0.0
    %6183 = vmatpush1.msra.mxu0 0.0
    %6184 = vmatprep.subr.mxu0 0.0
    %6185 = vmatpush1.msra.mxu0 0.0
    %6186 = vmatprep.subr.mxu0 0.0
    %6187 = vmatpush1.msra.mxu0 0.0
    %6188 = vmatprep.subr.mxu0 0.0
    %6189 = vmatpush1.msra.mxu0 0.0
    %6190 = vmatprep.subr.mxu0 0.0
    %6191 = vmatpush1.msra.mxu0 0.0
    %6192 = vmatprep.subr.mxu0 0.0
    %6193 = vmatpush1.msra.mxu0 0.0
    %6194 = vmatprep.subr.mxu0 0.0
    %6195 = vmatpush1.msra.mxu0 0.0
    %6196 = vmatprep.subr.mxu0 0.0
    %6197 = vmatpush1.msra.mxu0 0.0
    %6198 = vmatprep.mubr.f32.mxu0 0.0
    %6199 = vmatmul.mubr.f32.gmra.mrb[0].mxu0 %v235
    %v6200 = vpop.f32.mrb[0].mxu0
    %v6201 = vadd.f32 0.0, %v6200
    %v6202 = vpop.f32.mrb[0].mxu0
    %v6203 = vadd.f32 0.0, %v6202
    %6204 = vmatprep.mubr.f32.mxu0 0.0
    %6205 = vmatmul.mubr.f32.gmra.mrb[0].mxu0 %v238
    %v6206 = vpop.f32.mrb[0].mxu0
    %v6207 = vadd.f32 0.0, %v6206
    %v6208 = vpop.f32.mrb[0].mxu0
    %v6209 = vadd.f32 0.0, %v6208
    %6210 = vmatprep.mubr.f32.mxu0 0.0
    %6211 = vmatmul.mubr.f32.gmra.mrb[0].mxu0 %v241
    %v6212 = vpop.f32.mrb[0].mxu0
    %v6213 = vadd.f32 0.0, %v6212
    %v6214 = vpop.f32.mrb[0].mxu0
    %v6215 = vadd.f32 0.0, %v6214
    %6216 = vmatprep.mubr.f32.mxu0 0.0
    %6217 = vmatmul.mubr.f32.gmra.mrb[0].mxu0 %v244
    %v6218 = vpop.f32.mrb[0].mxu0
    %v6219 = vadd.f32 0.0, %v6218
    %v6220 = vpop.f32.mrb[0].mxu0
    %v6221 = vadd.f32 0.0, %v6220
    %6222 = vmatprep.mubr.f32.mxu0 0.0
    %6223 = vmatmul.mubr.f32.gmra.mrb[0].mxu0 %v247
    %v6224 = vpop.f32.mrb[0].mxu0
    %v6225 = vadd.f32 0.0, %v6224
    %v6226 = vpop.f32.mrb[0].mxu0
    %v6227 = vadd.f32 0.0, %v6226
    %6228 = vmatprep.mubr.f32.mxu0 0.0
    %6229 = vmatmul.mubr.f32.gmra.mrb[0].mxu0 %v250
    %v6230 = vpop.f32.mrb[0].mxu0
    %v6231 = vadd.f32 0.0, %v6230
    %v6232 = vpop.f32.mrb[0].mxu0
    %v6233 = vadd.f32 0.0, %v6232
    %6234 = vmatprep.mubr.f32.mxu0 0.0
    %6235 = vmatmul.mubr.f32.gmra.mrb[0].mxu0 %v253
    %v6236 = vpop.f32.mrb[0].mxu0
    %v6237 = vadd.f32 0.0, %v6236
    %v6238 = vpop.f32.mrb[0].mxu0
    %v6239 = vadd.f32 0.0, %v6238
    %6240 = vmatprep.mubr.f32.mxu0 0.0
    %6241 = vmatmul.mubr.f32.gmra.mrb[0].mxu0 %v256
    %v6242 = vpop.f32.mrb[0].mxu0
    %v6243 = vadd.f32 0.0, %v6242
    %v6244 = vpop.f32.mrb[0].mxu0
    %v6245 = vadd.f32 0.0, %v6244
    %6246 = vdwg.mxu0
    %6247 = vmatprep.subr.mxu0 %v204
    %6248 = vmatpush1.msra.mxu0 %v203
    %6249 = vmatprep.subr.mxu0 0.0
    %6250 = vmatpush1.msra.mxu0 0.0
    %6251 = vmatprep.subr.mxu0 0.0
    %6252 = vmatpush1.msra.mxu0 0.0
    %6253 = vmatprep.subr.mxu0 0.0
    %6254 = vmatpush1.msra.mxu0 0.0
    %6255 = vmatprep.subr.mxu0 0.0
    %6256 = vmatpush1.msra.mxu0 0.0
    %6257 = vmatprep.subr.mxu0 0.0
    %6258 = vmatpush1.msra.mxu0 0.0
    %6259 = vmatprep.subr.mxu0 0.0
    %6260 = vmatpush1.msra.mxu0 0.0
    %6261 = vmatprep.subr.mxu0 0.0
    %6262 = vmatpush1.msra.mxu0 0.0
    %6263 = vmatprep.subr.mxu0 0.0
    %6264 = vmatpush1.msra.mxu0 0.0
    %6265 = vmatprep.subr.mxu0 0.0
    %6266 = vmatpush1.msra.mxu0 0.0
    %6267 = vmatprep.subr.mxu0 0.0
    %6268 = vmatpush1.msra.mxu0 0.0
    %6269 = vmatprep.subr.mxu0 0.0
    %6270 = vmatpush1.msra.mxu0 0.0
    %6271 = vmatprep.subr.mxu0 0.0
    %6272 = vmatpush1.msra.mxu0 0.0
    %6273 = vmatprep.subr.mxu0 0.0
    %6274 = vmatpush1.msra.mxu0 0.0
    %6275 = vmatprep.subr.mxu0 0.0
    %6276 = vmatpush1.msra.mxu0 0.0
    %6277 = vmatprep.subr.mxu0 0.0
    %6278 = vmatpush1.msra.mxu0 0.0
    %6279 = vmatprep.subr.mxu0 0.0
    %6280 = vmatpush1.msra.mxu0 0.0
    %6281 = vmatprep.subr.mxu0 0.0
    %6282 = vmatpush1.msra.mxu0 0.0
    %6283 = vmatprep.subr.mxu0 0.0
    %6284 = vmatpush1.msra.mxu0 0.0
    %6285 = vmatprep.subr.mxu0 0.0
    %6286 = vmatpush1.msra.mxu0 0.0
    %6287 = vmatprep.subr.mxu0 0.0
    %6288 = vmatpush1.msra.mxu0 0.0
    %6289 = vmatprep.subr.mxu0 0.0
    %6290 = vmatpush1.msra.mxu0 0.0
    %6291 = vmatprep.subr.mxu0 0.0
    %6292 = vmatpush1.msra.mxu0 0.0
    %6293 = vmatprep.subr.mxu0 0.0
    %6294 = vmatpush1.msra.mxu0 0.0
    %6295 = vmatprep.subr.mxu0 0.0
    %6296 = vmatpush1.msra.mxu0 0.0
    %6297 = vmatprep.subr.mxu0 0.0
    %6298 = vmatpush1.msra.mxu0 0.0
    %6299 = vmatprep.subr.mxu0 0.0
    %6300 = vmatpush1.msra.mxu0 0.0
    %6301 = vmatprep.subr.mxu0 0.0
    %6302 = vmatpush1.msra.mxu0 0.0
    %6303 = vmatprep.subr.mxu0 0.0
    %6304 = vmatpush1.msra.mxu0 0.0
    %6305 = vmatprep.subr.mxu0 0.0
    %6306 = vmatpush1.msra.mxu0 0.0
    %6307 = vmatprep.subr.mxu0 0.0
    %6308 = vmatpush1.msra.mxu0 0.0
    %6309 = vmatprep.subr.mxu0 0.0
    %6310 = vmatpush1.msra.mxu0 0.0
    %6311 = vmatprep.mubr.f32.mxu0 0.0
    %6312 = vmatmul.mubr.f32.gmra.mrb[0].mxu0 %v235
    %v6313 = vpop.f32.mrb[0].mxu0
    %v6314 = vadd.f32 0.0, %v6313
    %v6315 = vpop.f32.mrb[0].mxu0
    %v6316 = vadd.f32 0.0, %v6315
    %6317 = vmatprep.mubr.f32.mxu0 0.0
    %6318 = vmatmul.mubr.f32.gmra.mrb[0].mxu0 %v238
    %v6319 = vpop.f32.mrb[0].mxu0
    %v6320 = vadd.f32 0.0, %v6319
    %v6321 = vpop.f32.mrb[0].mxu0
    %v6322 = vadd.f32 0.0, %v6321
    %6323 = vmatprep.mubr.f32.mxu0 0.0
    %6324 = vmatmul.mubr.f32.gmra.mrb[0].mxu0 %v241
    %v6325 = vpop.f32.mrb[0].mxu0
    %v6326 = vadd.f32 0.0, %v6325
    %v6327 = vpop.f32.mrb[0].mxu0
    %v6328 = vadd.f32 0.0, %v6327
    %6329 = vmatprep.mubr.f32.mxu0 0.0
    %6330 = vmatmul.mubr.f32.gmra.mrb[0].mxu0 %v244
    %v6331 = vpop.f32.mrb[0].mxu0
    %v6332 = vadd.f32 0.0, %v6331
    %v6333 = vpop.f32.mrb[0].mxu0
    %v6334 = vadd.f32 0.0, %v6333
    %6335 = vmatprep.mubr.f32.mxu0 0.0
    %6336 = vmatmul.mubr.f32.gmra.mrb[0].mxu0 %v247
    %v6337 = vpop.f32.mrb[0].mxu0
    %v6338 = vadd.f32 0.0, %v6337
    %v6339 = vpop.f32.mrb[0].mxu0
    %v6340 = vadd.f32 0.0, %v6339
    %6341 = vmatprep.mubr.f32.mxu0 0.0
    %6342 = vmatmul.mubr.f32.gmra.mrb[0].mxu0 %v250
    %v6343 = vpop.f32.mrb[0].mxu0
    %v6344 = vadd.f32 0.0, %v6343
    %v6345 = vpop.f32.mrb[0].mxu0
    %v6346 = vadd.f32 0.0, %v6345
    %6347 = vmatprep.mubr.f32.mxu0 0.0
    %6348 = vmatmul.mubr.f32.gmra.mrb[0].mxu0 %v253
    %v6349 = vpop.f32.mrb[0].mxu0
    %v6350 = vadd.f32 0.0, %v6349
    %v6351 = vpop.f32.mrb[0].mxu0
    %v6352 = vadd.f32 0.0, %v6351
    %6353 = vmatprep.mubr.f32.mxu0 0.0
    %6354 = vmatmul.mubr.f32.gmra.mrb[0].mxu0 %v256
    %v6355 = vpop.f32.mrb[0].mxu0
    %v6356 = vadd.f32 0.0, %v6355
    %v6357 = vpop.f32.mrb[0].mxu0
    %v6358 = vadd.f32 0.0, %v6357
    %6359 = vdwg.mxu0
    %6360 = vmatprep.subr.mxu0 %v206
    %6361 = vmatpush1.msra.mxu0 %v205
    %6362 = vmatprep.subr.mxu0 0.0
    %6363 = vmatpush1.msra.mxu0 0.0
    %6364 = vmatprep.subr.mxu0 0.0
    %6365 = vmatpush1.msra.mxu0 0.0
    %6366 = vmatprep.subr.mxu0 0.0
    %6367 = vmatpush1.msra.mxu0 0.0
    %6368 = vmatprep.subr.mxu0 0.0
    %6369 = vmatpush1.msra.mxu0 0.0
    %6370 = vmatprep.subr.mxu0 0.0
    %6371 = vmatpush1.msra.mxu0 0.0
    %6372 = vmatprep.subr.mxu0 0.0
    %6373 = vmatpush1.msra.mxu0 0.0
    %6374 = vmatprep.subr.mxu0 0.0
    %6375 = vmatpush1.msra.mxu0 0.0
    %6376 = vmatprep.subr.mxu0 0.0
    %6377 = vmatpush1.msra.mxu0 0.0
    %6378 = vmatprep.subr.mxu0 0.0
    %6379 = vmatpush1.msra.mxu0 0.0
    %6380 = vmatprep.subr.mxu0 0.0
    %6381 = vmatpush1.msra.mxu0 0.0
    %6382 = vmatprep.subr.mxu0 0.0
    %6383 = vmatpush1.msra.mxu0 0.0
    %6384 = vmatprep.subr.mxu0 0.0
    %6385 = vmatpush1.msra.mxu0 0.0
    %6386 = vmatprep.subr.mxu0 0.0
    %6387 = vmatpush1.msra.mxu0 0.0
    %6388 = vmatprep.subr.mxu0 0.0
    %6389 = vmatpush1.msra.mxu0 0.0
    %6390 = vmatprep.subr.mxu0 0.0
    %6391 = vmatpush1.msra.mxu0 0.0
    %6392 = vmatprep.subr.mxu0 0.0
    %6393 = vmatpush1.msra.mxu0 0.0
    %6394 = vmatprep.subr.mxu0 0.0
    %6395 = vmatpush1.msra.mxu0 0.0
    %6396 = vmatprep.subr.mxu0 0.0
    %6397 = vmatpush1.msra.mxu0 0.0
    %6398 = vmatprep.subr.mxu0 0.0
    %6399 = vmatpush1.msra.mxu0 0.0
    %6400 = vmatprep.subr.mxu0 0.0
    %6401 = vmatpush1.msra.mxu0 0.0
    %6402 = vmatprep.subr.mxu0 0.0
    %6403 = vmatpush1.msra.mxu0 0.0
    %6404 = vmatprep.subr.mxu0 0.0
    %6405 = vmatpush1.msra.mxu0 0.0
    %6406 = vmatprep.subr.mxu0 0.0
    %6407 = vmatpush1.msra.mxu0 0.0
    %6408 = vmatprep.subr.mxu0 0.0
    %6409 = vmatpush1.msra.mxu0 0.0
    %6410 = vmatprep.subr.mxu0 0.0
    %6411 = vmatpush1.msra.mxu0 0.0
    %6412 = vmatprep.subr.mxu0 0.0
    %6413 = vmatpush1.msra.mxu0 0.0
    %6414 = vmatprep.subr.mxu0 0.0
    %6415 = vmatpush1.msra.mxu0 0.0
    %6416 = vmatprep.subr.mxu0 0.0
    %6417 = vmatpush1.msra.mxu0 0.0
    %6418 = vmatprep.subr.mxu0 0.0
    %6419 = vmatpush1.msra.mxu0 0.0
    %6420 = vmatprep.subr.mxu0 0.0
    %6421 = vmatpush1.msra.mxu0 0.0
    %6422 = vmatprep.subr.mxu0 0.0
    %6423 = vmatpush1.msra.mxu0 0.0
    %6424 = vmatprep.mubr.f32.mxu0 0.0
    %6425 = vmatmul.mubr.f32.gmra.mrb[0].mxu0 %v235
    %v6426 = vpop.f32.mrb[0].mxu0
    %v6427 = vadd.f32 0.0, %v6426
    %v6428 = vpop.f32.mrb[0].mxu0
    %v6429 = vadd.f32 0.0, %v6428
    %6430 = vmatprep.mubr.f32.mxu0 0.0
    %6431 = vmatmul.mubr.f32.gmra.mrb[0].mxu0 %v238
    %v6432 = vpop.f32.mrb[0].mxu0
    %v6433 = vadd.f32 0.0, %v6432
    %v6434 = vpop.f32.mrb[0].mxu0
    %v6435 = vadd.f32 0.0, %v6434
    %6436 = vmatprep.mubr.f32.mxu0 0.0
    %6437 = vmatmul.mubr.f32.gmra.mrb[0].mxu0 %v241
    %v6438 = vpop.f32.mrb[0].mxu0
    %v6439 = vadd.f32 0.0, %v6438
    %v6440 = vpop.f32.mrb[0].mxu0
    %v6441 = vadd.f32 0.0, %v6440
    %6442 = vmatprep.mubr.f32.mxu0 0.0
    %6443 = vmatmul.mubr.f32.gmra.mrb[0].mxu0 %v244
    %v6444 = vpop.f32.mrb[0].mxu0
    %v6445 = vadd.f32 0.0, %v6444
    %v6446 = vpop.f32.mrb[0].mxu0
    %v6447 = vadd.f32 0.0, %v6446
    %6448 = vmatprep.mubr.f32.mxu0 0.0
    %6449 = vmatmul.mubr.f32.gmra.mrb[0].mxu0 %v247
    %v6450 = vpop.f32.mrb[0].mxu0
    %v6451 = vadd.f32 0.0, %v6450
    %v6452 = vpop.f32.mrb[0].mxu0
    %v6453 = vadd.f32 0.0, %v6452
    %6454 = vmatprep.mubr.f32.mxu0 0.0
    %6455 = vmatmul.mubr.f32.gmra.mrb[0].mxu0 %v250
    %v6456 = vpop.f32.mrb[0].mxu0
    %v6457 = vadd.f32 0.0, %v6456
    %v6458 = vpop.f32.mrb[0].mxu0
    %v6459 = vadd.f32 0.0, %v6458
    %6460 = vmatprep.mubr.f32.mxu0 0.0
    %6461 = vmatmul.mubr.f32.gmra.mrb[0].mxu0 %v253
    %v6462 = vpop.f32.mrb[0].mxu0
    %v6463 = vadd.f32 0.0, %v6462
    %v6464 = vpop.f32.mrb[0].mxu0
    %v6465 = vadd.f32 0.0, %v6464
    %6466 = vmatprep.mubr.f32.mxu0 0.0
    %6467 = vmatmul.mubr.f32.gmra.mrb[0].mxu0 %v256
    %v6468 = vpop.f32.mrb[0].mxu0
    %v6469 = vadd.f32 0.0, %v6468
    %v6470 = vpop.f32.mrb[0].mxu0
    %v6471 = vadd.f32 0.0, %v6470
    %6472 = vdwg.mxu0
    %6473 = vmatprep.subr.mxu0 %v208
    %6474 = vmatpush1.msra.mxu0 %v207
    %6475 = vmatprep.subr.mxu0 0.0
    %6476 = vmatpush1.msra.mxu0 0.0
    %6477 = vmatprep.subr.mxu0 0.0
    %6478 = vmatpush1.msra.mxu0 0.0
    %6479 = vmatprep.subr.mxu0 0.0
    %6480 = vmatpush1.msra.mxu0 0.0
    %6481 = vmatprep.subr.mxu0 0.0
    %6482 = vmatpush1.msra.mxu0 0.0
    %6483 = vmatprep.subr.mxu0 0.0
    %6484 = vmatpush1.msra.mxu0 0.0
    %6485 = vmatprep.subr.mxu0 0.0
    %6486 = vmatpush1.msra.mxu0 0.0
    %6487 = vmatprep.subr.mxu0 0.0
    %6488 = vmatpush1.msra.mxu0 0.0
    %6489 = vmatprep.subr.mxu0 0.0
    %6490 = vmatpush1.msra.mxu0 0.0
    %6491 = vmatprep.subr.mxu0 0.0
    %6492 = vmatpush1.msra.mxu0 0.0
    %6493 = vmatprep.subr.mxu0 0.0
    %6494 = vmatpush1.msra.mxu0 0.0
    %6495 = vmatprep.subr.mxu0 0.0
    %6496 = vmatpush1.msra.mxu0 0.0
    %6497 = vmatprep.subr.mxu0 0.0
    %6498 = vmatpush1.msra.mxu0 0.0
    %6499 = vmatprep.subr.mxu0 0.0
    %6500 = vmatpush1.msra.mxu0 0.0
    %6501 = vmatprep.subr.mxu0 0.0
    %6502 = vmatpush1.msra.mxu0 0.0
    %6503 = vmatprep.subr.mxu0 0.0
    %6504 = vmatpush1.msra.mxu0 0.0
    %6505 = vmatprep.subr.mxu0 0.0
    %6506 = vmatpush1.msra.mxu0 0.0
    %6507 = vmatprep.subr.mxu0 0.0
    %6508 = vmatpush1.msra.mxu0 0.0
    %6509 = vmatprep.subr.mxu0 0.0
    %6510 = vmatpush1.msra.mxu0 0.0
    %6511 = vmatprep.subr.mxu0 0.0
    %6512 = vmatpush1.msra.mxu0 0.0
    %6513 = vmatprep.subr.mxu0 0.0
    %6514 = vmatpush1.msra.mxu0 0.0
    %6515 = vmatprep.subr.mxu0 0.0
    %6516 = vmatpush1.msra.mxu0 0.0
    %6517 = vmatprep.subr.mxu0 0.0
    %6518 = vmatpush1.msra.mxu0 0.0
    %6519 = vmatprep.subr.mxu0 0.0
    %6520 = vmatpush1.msra.mxu0 0.0
    %6521 = vmatprep.subr.mxu0 0.0
    %6522 = vmatpush1.msra.mxu0 0.0
    %6523 = vmatprep.subr.mxu0 0.0
    %6524 = vmatpush1.msra.mxu0 0.0
    %6525 = vmatprep.subr.mxu0 0.0
    %6526 = vmatpush1.msra.mxu0 0.0
    %6527 = vmatprep.subr.mxu0 0.0
    %6528 = vmatpush1.msra.mxu0 0.0
    %6529 = vmatprep.subr.mxu0 0.0
    %6530 = vmatpush1.msra.mxu0 0.0
    %6531 = vmatprep.subr.mxu0 0.0
    %6532 = vmatpush1.msra.mxu0 0.0
    %6533 = vmatprep.subr.mxu0 0.0
    %6534 = vmatpush1.msra.mxu0 0.0
    %6535 = vmatprep.subr.mxu0 0.0
    %6536 = vmatpush1.msra.mxu0 0.0
    %6537 = vmatprep.mubr.f32.mxu0 0.0
    %6538 = vmatmul.mubr.f32.gmra.mrb[0].mxu0 %v235
    %v6539 = vpop.f32.mrb[0].mxu0
    %v6540 = vadd.f32 0.0, %v6539
    %v6541 = vpop.f32.mrb[0].mxu0
    %v6542 = vadd.f32 0.0, %v6541
    %6543 = vmatprep.mubr.f32.mxu0 0.0
    %6544 = vmatmul.mubr.f32.gmra.mrb[0].mxu0 %v238
    %v6545 = vpop.f32.mrb[0].mxu0
    %v6546 = vadd.f32 0.0, %v6545
    %v6547 = vpop.f32.mrb[0].mxu0
    %v6548 = vadd.f32 0.0, %v6547
    %6549 = vmatprep.mubr.f32.mxu0 0.0
    %6550 = vmatmul.mubr.f32.gmra.mrb[0].mxu0 %v241
    %v6551 = vpop.f32.mrb[0].mxu0
    %v6552 = vadd.f32 0.0, %v6551
    %v6553 = vpop.f32.mrb[0].mxu0
    %v6554 = vadd.f32 0.0, %v6553
    %6555 = vmatprep.mubr.f32.mxu0 0.0
    %6556 = vmatmul.mubr.f32.gmra.mrb[0].mxu0 %v244
    %v6557 = vpop.f32.mrb[0].mxu0
    %v6558 = vadd.f32 0.0, %v6557
    %v6559 = vpop.f32.mrb[0].mxu0
    %v6560 = vadd.f32 0.0, %v6559
    %6561 = vmatprep.mubr.f32.mxu0 0.0
    %6562 = vmatmul.mubr.f32.gmra.mrb[0].mxu0 %v247
    %v6563 = vpop.f32.mrb[0].mxu0
    %v6564 = vadd.f32 0.0, %v6563
    %v6565 = vpop.f32.mrb[0].mxu0
    %v6566 = vadd.f32 0.0, %v6565
    %6567 = vmatprep.mubr.f32.mxu0 0.0
    %6568 = vmatmul.mubr.f32.gmra.mrb[0].mxu0 %v250
    %v6569 = vpop.f32.mrb[0].mxu0
    %v6570 = vadd.f32 0.0, %v6569
    %v6571 = vpop.f32.mrb[0].mxu0
    %v6572 = vadd.f32 0.0, %v6571
    %6573 = vmatprep.mubr.f32.mxu0 0.0
    %6574 = vmatmul.mubr.f32.gmra.mrb[0].mxu0 %v253
    %v6575 = vpop.f32.mrb[0].mxu0
    %v6576 = vadd.f32 0.0, %v6575
    %v6577 = vpop.f32.mrb[0].mxu0
    %v6578 = vadd.f32 0.0, %v6577
    %6579 = vmatprep.mubr.f32.mxu0 0.0
    %6580 = vmatmul.mubr.f32.gmra.mrb[0].mxu0 %v256
    %v6581 = vpop.f32.mrb[0].mxu0
    %v6582 = vadd.f32 0.0, %v6581
    %v6583 = vpop.f32.mrb[0].mxu0
    %v6584 = vadd.f32 0.0, %v6583
    %6585 = vdwg.mxu0
    %6586 = vmatprep.subr.mxu0 %v210
    %6587 = vmatpush1.msra.mxu0 %v209
    %6588 = vmatprep.subr.mxu0 0.0
    %6589 = vmatpush1.msra.mxu0 0.0
    %6590 = vmatprep.subr.mxu0 0.0
    %6591 = vmatpush1.msra.mxu0 0.0
    %6592 = vmatprep.subr.mxu0 0.0
    %6593 = vmatpush1.msra.mxu0 0.0
    %6594 = vmatprep.subr.mxu0 0.0
    %6595 = vmatpush1.msra.mxu0 0.0
    %6596 = vmatprep.subr.mxu0 0.0
    %6597 = vmatpush1.msra.mxu0 0.0
    %6598 = vmatprep.subr.mxu0 0.0
    %6599 = vmatpush1.msra.mxu0 0.0
    %6600 = vmatprep.subr.mxu0 0.0
    %6601 = vmatpush1.msra.mxu0 0.0
    %6602 = vmatprep.subr.mxu0 0.0
    %6603 = vmatpush1.msra.mxu0 0.0
    %6604 = vmatprep.subr.mxu0 0.0
    %6605 = vmatpush1.msra.mxu0 0.0
    %6606 = vmatprep.subr.mxu0 0.0
    %6607 = vmatpush1.msra.mxu0 0.0
    %6608 = vmatprep.subr.mxu0 0.0
    %6609 = vmatpush1.msra.mxu0 0.0
    %6610 = vmatprep.subr.mxu0 0.0
    %6611 = vmatpush1.msra.mxu0 0.0
    %6612 = vmatprep.subr.mxu0 0.0
    %6613 = vmatpush1.msra.mxu0 0.0
    %6614 = vmatprep.subr.mxu0 0.0
    %6615 = vmatpush1.msra.mxu0 0.0
    %6616 = vmatprep.subr.mxu0 0.0
    %6617 = vmatpush1.msra.mxu0 0.0
    %6618 = vmatprep.subr.mxu0 0.0
    %6619 = vmatpush1.msra.mxu0 0.0
    %6620 = vmatprep.subr.mxu0 0.0
    %6621 = vmatpush1.msra.mxu0 0.0
    %6622 = vmatprep.subr.mxu0 0.0
    %6623 = vmatpush1.msra.mxu0 0.0
    %6624 = vmatprep.subr.mxu0 0.0
    %6625 = vmatpush1.msra.mxu0 0.0
    %6626 = vmatprep.subr.mxu0 0.0
    %6627 = vmatpush1.msra.mxu0 0.0
    %6628 = vmatprep.subr.mxu0 0.0
    %6629 = vmatpush1.msra.mxu0 0.0
    %6630 = vmatprep.subr.mxu0 0.0
    %6631 = vmatpush1.msra.mxu0 0.0
    %6632 = vmatprep.subr.mxu0 0.0
    %6633 = vmatpush1.msra.mxu0 0.0
    %6634 = vmatprep.subr.mxu0 0.0
    %6635 = vmatpush1.msra.mxu0 0.0
    %6636 = vmatprep.subr.mxu0 0.0
    %6637 = vmatpush1.msra.mxu0 0.0
    %6638 = vmatprep.subr.mxu0 0.0
    %6639 = vmatpush1.msra.mxu0 0.0
    %6640 = vmatprep.subr.mxu0 0.0
    %6641 = vmatpush1.msra.mxu0 0.0
    %6642 = vmatprep.subr.mxu0 0.0
    %6643 = vmatpush1.msra.mxu0 0.0
    %6644 = vmatprep.subr.mxu0 0.0
    %6645 = vmatpush1.msra.mxu0 0.0
    %6646 = vmatprep.subr.mxu0 0.0
    %6647 = vmatpush1.msra.mxu0 0.0
    %6648 = vmatprep.subr.mxu0 0.0
    %6649 = vmatpush1.msra.mxu0 0.0
    %6650 = vmatprep.mubr.f32.mxu0 0.0
    %6651 = vmatmul.mubr.f32.gmra.mrb[0].mxu0 %v235
    %v6652 = vpop.f32.mrb[0].mxu0
    %v6653 = vadd.f32 0.0, %v6652
    %v6654 = vpop.f32.mrb[0].mxu0
    %v6655 = vadd.f32 0.0, %v6654
    %6656 = vmatprep.mubr.f32.mxu0 0.0
    %6657 = vmatmul.mubr.f32.gmra.mrb[0].mxu0 %v238
    %v6658 = vpop.f32.mrb[0].mxu0
    %v6659 = vadd.f32 0.0, %v6658
    %v6660 = vpop.f32.mrb[0].mxu0
    %v6661 = vadd.f32 0.0, %v6660
    %6662 = vmatprep.mubr.f32.mxu0 0.0
    %6663 = vmatmul.mubr.f32.gmra.mrb[0].mxu0 %v241
    %v6664 = vpop.f32.mrb[0].mxu0
    %v6665 = vadd.f32 0.0, %v6664
    %v6666 = vpop.f32.mrb[0].mxu0
    %v6667 = vadd.f32 0.0, %v6666
    %6668 = vmatprep.mubr.f32.mxu0 0.0
    %6669 = vmatmul.mubr.f32.gmra.mrb[0].mxu0 %v244
    %v6670 = vpop.f32.mrb[0].mxu0
    %v6671 = vadd.f32 0.0, %v6670
    %v6672 = vpop.f32.mrb[0].mxu0
    %v6673 = vadd.f32 0.0, %v6672
    %6674 = vmatprep.mubr.f32.mxu0 0.0
    %6675 = vmatmul.mubr.f32.gmra.mrb[0].mxu0 %v247
    %v6676 = vpop.f32.mrb[0].mxu0
    %v6677 = vadd.f32 0.0, %v6676
    %v6678 = vpop.f32.mrb[0].mxu0
    %v6679 = vadd.f32 0.0, %v6678
    %6680 = vmatprep.mubr.f32.mxu0 0.0
    %6681 = vmatmul.mubr.f32.gmra.mrb[0].mxu0 %v250
    %v6682 = vpop.f32.mrb[0].mxu0
    %v6683 = vadd.f32 0.0, %v6682
    %v6684 = vpop.f32.mrb[0].mxu0
    %v6685 = vadd.f32 0.0, %v6684
    %6686 = vmatprep.mubr.f32.mxu0 0.0
    %6687 = vmatmul.mubr.f32.gmra.mrb[0].mxu0 %v253
    %v6688 = vpop.f32.mrb[0].mxu0
    %v6689 = vadd.f32 0.0, %v6688
    %v6690 = vpop.f32.mrb[0].mxu0
    %v6691 = vadd.f32 0.0, %v6690
    %6692 = vmatprep.mubr.f32.mxu0 0.0
    %6693 = vmatmul.mubr.f32.gmra.mrb[0].mxu0 %v256
    %v6694 = vpop.f32.mrb[0].mxu0
    %v6695 = vadd.f32 0.0, %v6694
    %v6696 = vpop.f32.mrb[0].mxu0
    %v6697 = vadd.f32 0.0, %v6696
    %6698 = vdwg.mxu0
    %6699 = vmatprep.subr.mxu0 %v212
    %6700 = vmatpush1.msra.mxu0 %v211
    %6701 = vmatprep.subr.mxu0 0.0
    %6702 = vmatpush1.msra.mxu0 0.0
    %6703 = vmatprep.subr.mxu0 0.0
    %6704 = vmatpush1.msra.mxu0 0.0
    %6705 = vmatprep.subr.mxu0 0.0
    %6706 = vmatpush1.msra.mxu0 0.0
    %6707 = vmatprep.subr.mxu0 0.0
    %6708 = vmatpush1.msra.mxu0 0.0
    %6709 = vmatprep.subr.mxu0 0.0
    %6710 = vmatpush1.msra.mxu0 0.0
    %6711 = vmatprep.subr.mxu0 0.0
    %6712 = vmatpush1.msra.mxu0 0.0
    %6713 = vmatprep.subr.mxu0 0.0
    %6714 = vmatpush1.msra.mxu0 0.0
    %6715 = vmatprep.subr.mxu0 0.0
    %6716 = vmatpush1.msra.mxu0 0.0
    %6717 = vmatprep.subr.mxu0 0.0
    %6718 = vmatpush1.msra.mxu0 0.0
    %6719 = vmatprep.subr.mxu0 0.0
    %6720 = vmatpush1.msra.mxu0 0.0
    %6721 = vmatprep.subr.mxu0 0.0
    %6722 = vmatpush1.msra.mxu0 0.0
    %6723 = vmatprep.subr.mxu0 0.0
    %6724 = vmatpush1.msra.mxu0 0.0
    %6725 = vmatprep.subr.mxu0 0.0
    %6726 = vmatpush1.msra.mxu0 0.0
    %6727 = vmatprep.subr.mxu0 0.0
    %6728 = vmatpush1.msra.mxu0 0.0
    %6729 = vmatprep.subr.mxu0 0.0
    %6730 = vmatpush1.msra.mxu0 0.0
    %6731 = vmatprep.subr.mxu0 0.0
    %6732 = vmatpush1.msra.mxu0 0.0
    %6733 = vmatprep.subr.mxu0 0.0
    %6734 = vmatpush1.msra.mxu0 0.0
    %6735 = vmatprep.subr.mxu0 0.0
    %6736 = vmatpush1.msra.mxu0 0.0
    %6737 = vmatprep.subr.mxu0 0.0
    %6738 = vmatpush1.msra.mxu0 0.0
    %6739 = vmatprep.subr.mxu0 0.0
    %6740 = vmatpush1.msra.mxu0 0.0
    %6741 = vmatprep.subr.mxu0 0.0
    %6742 = vmatpush1.msra.mxu0 0.0
    %6743 = vmatprep.subr.mxu0 0.0
    %6744 = vmatpush1.msra.mxu0 0.0
    %6745 = vmatprep.subr.mxu0 0.0
    %6746 = vmatpush1.msra.mxu0 0.0
    %6747 = vmatprep.subr.mxu0 0.0
    %6748 = vmatpush1.msra.mxu0 0.0
    %6749 = vmatprep.subr.mxu0 0.0
    %6750 = vmatpush1.msra.mxu0 0.0
    %6751 = vmatprep.subr.mxu0 0.0
    %6752 = vmatpush1.msra.mxu0 0.0
    %6753 = vmatprep.subr.mxu0 0.0
    %6754 = vmatpush1.msra.mxu0 0.0
    %6755 = vmatprep.subr.mxu0 0.0
    %6756 = vmatpush1.msra.mxu0 0.0
    %6757 = vmatprep.subr.mxu0 0.0
    %6758 = vmatpush1.msra.mxu0 0.0
    %6759 = vmatprep.subr.mxu0 0.0
    %6760 = vmatpush1.msra.mxu0 0.0
    %6761 = vmatprep.subr.mxu0 0.0
    %6762 = vmatpush1.msra.mxu0 0.0
    %6763 = vmatprep.mubr.f32.mxu0 0.0
    %6764 = vmatmul.mubr.f32.gmra.mrb[0].mxu0 %v235
    %v6765 = vpop.f32.mrb[0].mxu0
    %v6766 = vadd.f32 0.0, %v6765
    %v6767 = vpop.f32.mrb[0].mxu0
    %v6768 = vadd.f32 0.0, %v6767
    %6769 = vmatprep.mubr.f32.mxu0 0.0
    %6770 = vmatmul.mubr.f32.gmra.mrb[0].mxu0 %v238
    %v6771 = vpop.f32.mrb[0].mxu0
    %v6772 = vadd.f32 0.0, %v6771
    %v6773 = vpop.f32.mrb[0].mxu0
    %v6774 = vadd.f32 0.0, %v6773
    %6775 = vmatprep.mubr.f32.mxu0 0.0
    %6776 = vmatmul.mubr.f32.gmra.mrb[0].mxu0 %v241
    %v6777 = vpop.f32.mrb[0].mxu0
    %v6778 = vadd.f32 0.0, %v6777
    %v6779 = vpop.f32.mrb[0].mxu0
    %v6780 = vadd.f32 0.0, %v6779
    %6781 = vmatprep.mubr.f32.mxu0 0.0
    %6782 = vmatmul.mubr.f32.gmra.mrb[0].mxu0 %v244
    %v6783 = vpop.f32.mrb[0].mxu0
    %v6784 = vadd.f32 0.0, %v6783
    %v6785 = vpop.f32.mrb[0].mxu0
    %v6786 = vadd.f32 0.0, %v6785
    %6787 = vmatprep.mubr.f32.mxu0 0.0
    %6788 = vmatmul.mubr.f32.gmra.mrb[0].mxu0 %v247
    %v6789 = vpop.f32.mrb[0].mxu0
    %v6790 = vadd.f32 0.0, %v6789
    %v6791 = vpop.f32.mrb[0].mxu0
    %v6792 = vadd.f32 0.0, %v6791
    %6793 = vmatprep.mubr.f32.mxu0 0.0
    %6794 = vmatmul.mubr.f32.gmra.mrb[0].mxu0 %v250
    %v6795 = vpop.f32.mrb[0].mxu0
    %v6796 = vadd.f32 0.0, %v6795
    %v6797 = vpop.f32.mrb[0].mxu0
    %v6798 = vadd.f32 0.0, %v6797
    %6799 = vmatprep.mubr.f32.mxu0 0.0
    %6800 = vmatmul.mubr.f32.gmra.mrb[0].mxu0 %v253
    %v6801 = vpop.f32.mrb[0].mxu0
    %v6802 = vadd.f32 0.0, %v6801
    %v6803 = vpop.f32.mrb[0].mxu0
    %v6804 = vadd.f32 0.0, %v6803
    %6805 = vmatprep.mubr.f32.mxu0 0.0
    %6806 = vmatmul.mubr.f32.gmra.mrb[0].mxu0 %v256
    %v6807 = vpop.f32.mrb[0].mxu0
    %v6808 = vadd.f32 0.0, %v6807
    %v6809 = vpop.f32.mrb[0].mxu0
    %v6810 = vadd.f32 0.0, %v6809
    %6811 = vdwg.mxu0
    %6812 = vmatprep.subr.mxu0 %v214
    %6813 = vmatpush1.msra.mxu0 %v213
    %6814 = vmatprep.subr.mxu0 0.0
    %6815 = vmatpush1.msra.mxu0 0.0
    %6816 = vmatprep.subr.mxu0 0.0
    %6817 = vmatpush1.msra.mxu0 0.0
    %6818 = vmatprep.subr.mxu0 0.0
    %6819 = vmatpush1.msra.mxu0 0.0
    %6820 = vmatprep.subr.mxu0 0.0
    %6821 = vmatpush1.msra.mxu0 0.0
    %6822 = vmatprep.subr.mxu0 0.0
    %6823 = vmatpush1.msra.mxu0 0.0
    %6824 = vmatprep.subr.mxu0 0.0
    %6825 = vmatpush1.msra.mxu0 0.0
    %6826 = vmatprep.subr.mxu0 0.0
    %6827 = vmatpush1.msra.mxu0 0.0
    %6828 = vmatprep.subr.mxu0 0.0
    %6829 = vmatpush1.msra.mxu0 0.0
    %6830 = vmatprep.subr.mxu0 0.0
    %6831 = vmatpush1.msra.mxu0 0.0
    %6832 = vmatprep.subr.mxu0 0.0
    %6833 = vmatpush1.msra.mxu0 0.0
    %6834 = vmatprep.subr.mxu0 0.0
    %6835 = vmatpush1.msra.mxu0 0.0
    %6836 = vmatprep.subr.mxu0 0.0
    %6837 = vmatpush1.msra.mxu0 0.0
    %6838 = vmatprep.subr.mxu0 0.0
    %6839 = vmatpush1.msra.mxu0 0.0
    %6840 = vmatprep.subr.mxu0 0.0
    %6841 = vmatpush1.msra.mxu0 0.0
    %6842 = vmatprep.subr.mxu0 0.0
    %6843 = vmatpush1.msra.mxu0 0.0
    %6844 = vmatprep.subr.mxu0 0.0
    %6845 = vmatpush1.msra.mxu0 0.0
    %6846 = vmatprep.subr.mxu0 0.0
    %6847 = vmatpush1.msra.mxu0 0.0
    %6848 = vmatprep.subr.mxu0 0.0
    %6849 = vmatpush1.msra.mxu0 0.0
    %6850 = vmatprep.subr.mxu0 0.0
    %6851 = vmatpush1.msra.mxu0 0.0
    %6852 = vmatprep.subr.mxu0 0.0
    %6853 = vmatpush1.msra.mxu0 0.0
    %6854 = vmatprep.subr.mxu0 0.0
    %6855 = vmatpush1.msra.mxu0 0.0
    %6856 = vmatprep.subr.mxu0 0.0
    %6857 = vmatpush1.msra.mxu0 0.0
    %6858 = vmatprep.subr.mxu0 0.0
    %6859 = vmatpush1.msra.mxu0 0.0
    %6860 = vmatprep.subr.mxu0 0.0
    %6861 = vmatpush1.msra.mxu0 0.0
    %6862 = vmatprep.subr.mxu0 0.0
    %6863 = vmatpush1.msra.mxu0 0.0
    %6864 = vmatprep.subr.mxu0 0.0
    %6865 = vmatpush1.msra.mxu0 0.0
    %6866 = vmatprep.subr.mxu0 0.0
    %6867 = vmatpush1.msra.mxu0 0.0
    %6868 = vmatprep.subr.mxu0 0.0
    %6869 = vmatpush1.msra.mxu0 0.0
    %6870 = vmatprep.subr.mxu0 0.0
    %6871 = vmatpush1.msra.mxu0 0.0
    %6872 = vmatprep.subr.mxu0 0.0
    %6873 = vmatpush1.msra.mxu0 0.0
    %6874 = vmatprep.subr.mxu0 0.0
    %6875 = vmatpush1.msra.mxu0 0.0
    %6876 = vmatprep.mubr.f32.mxu0 0.0
    %6877 = vmatmul.mubr.f32.gmra.mrb[0].mxu0 %v235
    %v6878 = vpop.f32.mrb[0].mxu0
    %v6879 = vadd.f32 0.0, %v6878
    %v6880 = vpop.f32.mrb[0].mxu0
    %v6881 = vadd.f32 0.0, %v6880
    %6882 = vmatprep.mubr.f32.mxu0 0.0
    %6883 = vmatmul.mubr.f32.gmra.mrb[0].mxu0 %v238
    %v6884 = vpop.f32.mrb[0].mxu0
    %v6885 = vadd.f32 0.0, %v6884
    %v6886 = vpop.f32.mrb[0].mxu0
    %v6887 = vadd.f32 0.0, %v6886
    %6888 = vmatprep.mubr.f32.mxu0 0.0
    %6889 = vmatmul.mubr.f32.gmra.mrb[0].mxu0 %v241
    %v6890 = vpop.f32.mrb[0].mxu0
    %v6891 = vadd.f32 0.0, %v6890
    %v6892 = vpop.f32.mrb[0].mxu0
    %v6893 = vadd.f32 0.0, %v6892
    %6894 = vmatprep.mubr.f32.mxu0 0.0
    %6895 = vmatmul.mubr.f32.gmra.mrb[0].mxu0 %v244
    %v6896 = vpop.f32.mrb[0].mxu0
    %v6897 = vadd.f32 0.0, %v6896
    %v6898 = vpop.f32.mrb[0].mxu0
    %v6899 = vadd.f32 0.0, %v6898
    %6900 = vmatprep.mubr.f32.mxu0 0.0
    %6901 = vmatmul.mubr.f32.gmra.mrb[0].mxu0 %v247
    %v6902 = vpop.f32.mrb[0].mxu0
    %v6903 = vadd.f32 0.0, %v6902
    %v6904 = vpop.f32.mrb[0].mxu0
    %v6905 = vadd.f32 0.0, %v6904
    %6906 = vmatprep.mubr.f32.mxu0 0.0
    %6907 = vmatmul.mubr.f32.gmra.mrb[0].mxu0 %v250
    %v6908 = vpop.f32.mrb[0].mxu0
    %v6909 = vadd.f32 0.0, %v6908
    %v6910 = vpop.f32.mrb[0].mxu0
    %v6911 = vadd.f32 0.0, %v6910
    %6912 = vmatprep.mubr.f32.mxu0 0.0
    %6913 = vmatmul.mubr.f32.gmra.mrb[0].mxu0 %v253
    %v6914 = vpop.f32.mrb[0].mxu0
    %v6915 = vadd.f32 0.0, %v6914
    %v6916 = vpop.f32.mrb[0].mxu0
    %v6917 = vadd.f32 0.0, %v6916
    %6918 = vmatprep.mubr.f32.mxu0 0.0
    %6919 = vmatmul.mubr.f32.gmra.mrb[0].mxu0 %v256
    %v6920 = vpop.f32.mrb[0].mxu0
    %v6921 = vadd.f32 0.0, %v6920
    %v6922 = vpop.f32.mrb[0].mxu0
    %v6923 = vadd.f32 0.0, %v6922
    %6924 = vdwg.mxu0
    %6925 = vmatprep.subr.mxu0 %v216
    %6926 = vmatpush1.msra.mxu0 %v215
    %6927 = vmatprep.subr.mxu0 0.0
    %6928 = vmatpush1.msra.mxu0 0.0
    %6929 = vmatprep.subr.mxu0 0.0
    %6930 = vmatpush1.msra.mxu0 0.0
    %6931 = vmatprep.subr.mxu0 0.0
    %6932 = vmatpush1.msra.mxu0 0.0
    %6933 = vmatprep.subr.mxu0 0.0
    %6934 = vmatpush1.msra.mxu0 0.0
    %6935 = vmatprep.subr.mxu0 0.0
    %6936 = vmatpush1.msra.mxu0 0.0
    %6937 = vmatprep.subr.mxu0 0.0
    %6938 = vmatpush1.msra.mxu0 0.0
    %6939 = vmatprep.subr.mxu0 0.0
    %6940 = vmatpush1.msra.mxu0 0.0
    %6941 = vmatprep.subr.mxu0 0.0
    %6942 = vmatpush1.msra.mxu0 0.0
    %6943 = vmatprep.subr.mxu0 0.0
    %6944 = vmatpush1.msra.mxu0 0.0
    %6945 = vmatprep.subr.mxu0 0.0
    %6946 = vmatpush1.msra.mxu0 0.0
    %6947 = vmatprep.subr.mxu0 0.0
    %6948 = vmatpush1.msra.mxu0 0.0
    %6949 = vmatprep.subr.mxu0 0.0
    %6950 = vmatpush1.msra.mxu0 0.0
    %6951 = vmatprep.subr.mxu0 0.0
    %6952 = vmatpush1.msra.mxu0 0.0
    %6953 = vmatprep.subr.mxu0 0.0
    %6954 = vmatpush1.msra.mxu0 0.0
    %6955 = vmatprep.subr.mxu0 0.0
    %6956 = vmatpush1.msra.mxu0 0.0
    %6957 = vmatprep.subr.mxu0 0.0
    %6958 = vmatpush1.msra.mxu0 0.0
    %6959 = vmatprep.subr.mxu0 0.0
    %6960 = vmatpush1.msra.mxu0 0.0
    %6961 = vmatprep.subr.mxu0 0.0
    %6962 = vmatpush1.msra.mxu0 0.0
    %6963 = vmatprep.subr.mxu0 0.0
    %6964 = vmatpush1.msra.mxu0 0.0
    %6965 = vmatprep.subr.mxu0 0.0
    %6966 = vmatpush1.msra.mxu0 0.0
    %6967 = vmatprep.subr.mxu0 0.0
    %6968 = vmatpush1.msra.mxu0 0.0
    %6969 = vmatprep.subr.mxu0 0.0
    %6970 = vmatpush1.msra.mxu0 0.0
    %6971 = vmatprep.subr.mxu0 0.0
    %6972 = vmatpush1.msra.mxu0 0.0
    %6973 = vmatprep.subr.mxu0 0.0
    %6974 = vmatpush1.msra.mxu0 0.0
    %6975 = vmatprep.subr.mxu0 0.0
    %6976 = vmatpush1.msra.mxu0 0.0
    %6977 = vmatprep.subr.mxu0 0.0
    %6978 = vmatpush1.msra.mxu0 0.0
    %6979 = vmatprep.subr.mxu0 0.0
    %6980 = vmatpush1.msra.mxu0 0.0
    %6981 = vmatprep.subr.mxu0 0.0
    %6982 = vmatpush1.msra.mxu0 0.0
    %6983 = vmatprep.subr.mxu0 0.0
    %6984 = vmatpush1.msra.mxu0 0.0
    %6985 = vmatprep.subr.mxu0 0.0
    %6986 = vmatpush1.msra.mxu0 0.0
    %6987 = vmatprep.subr.mxu0 0.0
    %6988 = vmatpush1.msra.mxu0 0.0
    %6989 = vmatprep.mubr.f32.mxu0 0.0
    %6990 = vmatmul.mubr.f32.gmra.mrb[0].mxu0 %v235
    %v6991 = vpop.f32.mrb[0].mxu0
    %v6992 = vadd.f32 0.0, %v6991
    %v6993 = vpop.f32.mrb[0].mxu0
    %v6994 = vadd.f32 0.0, %v6993
    %6995 = vmatprep.mubr.f32.mxu0 0.0
    %6996 = vmatmul.mubr.f32.gmra.mrb[0].mxu0 %v238
    %v6997 = vpop.f32.mrb[0].mxu0
    %v6998 = vadd.f32 0.0, %v6997
    %v6999 = vpop.f32.mrb[0].mxu0
    %v7000 = vadd.f32 0.0, %v6999
    %7001 = vmatprep.mubr.f32.mxu0 0.0
    %7002 = vmatmul.mubr.f32.gmra.mrb[0].mxu0 %v241
    %v7003 = vpop.f32.mrb[0].mxu0
    %v7004 = vadd.f32 0.0, %v7003
    %v7005 = vpop.f32.mrb[0].mxu0
    %v7006 = vadd.f32 0.0, %v7005
    %7007 = vmatprep.mubr.f32.mxu0 0.0
    %7008 = vmatmul.mubr.f32.gmra.mrb[0].mxu0 %v244
    %v7009 = vpop.f32.mrb[0].mxu0
    %v7010 = vadd.f32 0.0, %v7009
    %v7011 = vpop.f32.mrb[0].mxu0
    %v7012 = vadd.f32 0.0, %v7011
    %7013 = vmatprep.mubr.f32.mxu0 0.0
    %7014 = vmatmul.mubr.f32.gmra.mrb[0].mxu0 %v247
    %v7015 = vpop.f32.mrb[0].mxu0
    %v7016 = vadd.f32 0.0, %v7015
    %v7017 = vpop.f32.mrb[0].mxu0
    %v7018 = vadd.f32 0.0, %v7017
    %7019 = vmatprep.mubr.f32.mxu0 0.0
    %7020 = vmatmul.mubr.f32.gmra.mrb[0].mxu0 %v250
    %v7021 = vpop.f32.mrb[0].mxu0
    %v7022 = vadd.f32 0.0, %v7021
    %v7023 = vpop.f32.mrb[0].mxu0
    %v7024 = vadd.f32 0.0, %v7023
    %7025 = vmatprep.mubr.f32.mxu0 0.0
    %7026 = vmatmul.mubr.f32.gmra.mrb[0].mxu0 %v253
    %v7027 = vpop.f32.mrb[0].mxu0
    %v7028 = vadd.f32 0.0, %v7027
    %v7029 = vpop.f32.mrb[0].mxu0
    %v7030 = vadd.f32 0.0, %v7029
    %7031 = vmatprep.mubr.f32.mxu0 0.0
    %7032 = vmatmul.mubr.f32.gmra.mrb[0].mxu0 %v256
    %v7033 = vpop.f32.mrb[0].mxu0
    %v7034 = vadd.f32 0.0, %v7033
    %v7035 = vpop.f32.mrb[0].mxu0
    %v7036 = vadd.f32 0.0, %v7035
    %7037 = vdwg.mxu0
    %7038 = vmatprep.subr.mxu0 %v218
    %7039 = vmatpush1.msra.mxu0 %v217
    %7040 = vmatprep.subr.mxu0 0.0
    %7041 = vmatpush1.msra.mxu0 0.0
    %7042 = vmatprep.subr.mxu0 0.0
    %7043 = vmatpush1.msra.mxu0 0.0
    %7044 = vmatprep.subr.mxu0 0.0
    %7045 = vmatpush1.msra.mxu0 0.0
    %7046 = vmatprep.subr.mxu0 0.0
    %7047 = vmatpush1.msra.mxu0 0.0
    %7048 = vmatprep.subr.mxu0 0.0
    %7049 = vmatpush1.msra.mxu0 0.0
    %7050 = vmatprep.subr.mxu0 0.0
    %7051 = vmatpush1.msra.mxu0 0.0
    %7052 = vmatprep.subr.mxu0 0.0
    %7053 = vmatpush1.msra.mxu0 0.0
    %7054 = vmatprep.subr.mxu0 0.0
    %7055 = vmatpush1.msra.mxu0 0.0
    %7056 = vmatprep.subr.mxu0 0.0
    %7057 = vmatpush1.msra.mxu0 0.0
    %7058 = vmatprep.subr.mxu0 0.0
    %7059 = vmatpush1.msra.mxu0 0.0
    %7060 = vmatprep.subr.mxu0 0.0
    %7061 = vmatpush1.msra.mxu0 0.0
    %7062 = vmatprep.subr.mxu0 0.0
    %7063 = vmatpush1.msra.mxu0 0.0
    %7064 = vmatprep.subr.mxu0 0.0
    %7065 = vmatpush1.msra.mxu0 0.0
    %7066 = vmatprep.subr.mxu0 0.0
    %7067 = vmatpush1.msra.mxu0 0.0
    %7068 = vmatprep.subr.mxu0 0.0
    %7069 = vmatpush1.msra.mxu0 0.0
    %7070 = vmatprep.subr.mxu0 0.0
    %7071 = vmatpush1.msra.mxu0 0.0
    %7072 = vmatprep.subr.mxu0 0.0
    %7073 = vmatpush1.msra.mxu0 0.0
    %7074 = vmatprep.subr.mxu0 0.0
    %7075 = vmatpush1.msra.mxu0 0.0
    %7076 = vmatprep.subr.mxu0 0.0
    %7077 = vmatpush1.msra.mxu0 0.0
    %7078 = vmatprep.subr.mxu0 0.0
    %7079 = vmatpush1.msra.mxu0 0.0
    %7080 = vmatprep.subr.mxu0 0.0
    %7081 = vmatpush1.msra.mxu0 0.0
    %7082 = vmatprep.subr.mxu0 0.0
    %7083 = vmatpush1.msra.mxu0 0.0
    %7084 = vmatprep.subr.mxu0 0.0
    %7085 = vmatpush1.msra.mxu0 0.0
    %7086 = vmatprep.subr.mxu0 0.0
    %7087 = vmatpush1.msra.mxu0 0.0
    %7088 = vmatprep.subr.mxu0 0.0
    %7089 = vmatpush1.msra.mxu0 0.0
    %7090 = vmatprep.subr.mxu0 0.0
    %7091 = vmatpush1.msra.mxu0 0.0
    %7092 = vmatprep.subr.mxu0 0.0
    %7093 = vmatpush1.msra.mxu0 0.0
    %7094 = vmatprep.subr.mxu0 0.0
    %7095 = vmatpush1.msra.mxu0 0.0
    %7096 = vmatprep.subr.mxu0 0.0
    %7097 = vmatpush1.msra.mxu0 0.0
    %7098 = vmatprep.subr.mxu0 0.0
    %7099 = vmatpush1.msra.mxu0 0.0
    %7100 = vmatprep.subr.mxu0 0.0
    %7101 = vmatpush1.msra.mxu0 0.0
    %7102 = vmatprep.mubr.f32.mxu0 0.0
    %7103 = vmatmul.mubr.f32.gmra.mrb[0].mxu0 %v235
    %v7104 = vpop.f32.mrb[0].mxu0
    %v7105 = vadd.f32 0.0, %v7104
    %v7106 = vpop.f32.mrb[0].mxu0
    %v7107 = vadd.f32 0.0, %v7106
    %7108 = vmatprep.mubr.f32.mxu0 0.0
    %7109 = vmatmul.mubr.f32.gmra.mrb[0].mxu0 %v238
    %v7110 = vpop.f32.mrb[0].mxu0
    %v7111 = vadd.f32 0.0, %v7110
    %v7112 = vpop.f32.mrb[0].mxu0
    %v7113 = vadd.f32 0.0, %v7112
    %7114 = vmatprep.mubr.f32.mxu0 0.0
    %7115 = vmatmul.mubr.f32.gmra.mrb[0].mxu0 %v241
    %v7116 = vpop.f32.mrb[0].mxu0
    %v7117 = vadd.f32 0.0, %v7116
    %v7118 = vpop.f32.mrb[0].mxu0
    %v7119 = vadd.f32 0.0, %v7118
    %7120 = vmatprep.mubr.f32.mxu0 0.0
    %7121 = vmatmul.mubr.f32.gmra.mrb[0].mxu0 %v244
    %v7122 = vpop.f32.mrb[0].mxu0
    %v7123 = vadd.f32 0.0, %v7122
    %v7124 = vpop.f32.mrb[0].mxu0
    %v7125 = vadd.f32 0.0, %v7124
    %7126 = vmatprep.mubr.f32.mxu0 0.0
    %7127 = vmatmul.mubr.f32.gmra.mrb[0].mxu0 %v247
    %v7128 = vpop.f32.mrb[0].mxu0
    %v7129 = vadd.f32 0.0, %v7128
    %v7130 = vpop.f32.mrb[0].mxu0
    %v7131 = vadd.f32 0.0, %v7130
    %7132 = vmatprep.mubr.f32.mxu0 0.0
    %7133 = vmatmul.mubr.f32.gmra.mrb[0].mxu0 %v250
    %v7134 = vpop.f32.mrb[0].mxu0
    %v7135 = vadd.f32 0.0, %v7134
    %v7136 = vpop.f32.mrb[0].mxu0
    %v7137 = vadd.f32 0.0, %v7136
    %7138 = vmatprep.mubr.f32.mxu0 0.0
    %7139 = vmatmul.mubr.f32.gmra.mrb[0].mxu0 %v253
    %v7140 = vpop.f32.mrb[0].mxu0
    %v7141 = vadd.f32 0.0, %v7140
    %v7142 = vpop.f32.mrb[0].mxu0
    %v7143 = vadd.f32 0.0, %v7142
    %7144 = vmatprep.mubr.f32.mxu0 0.0
    %7145 = vmatmul.mubr.f32.gmra.mrb[0].mxu0 %v256
    %v7146 = vpop.f32.mrb[0].mxu0
    %v7147 = vadd.f32 0.0, %v7146
    %v7148 = vpop.f32.mrb[0].mxu0
    %v7149 = vadd.f32 0.0, %v7148
    %7150 = vdwg.mxu0
    %7151 = vmatprep.subr.mxu0 %v220
    %7152 = vmatpush1.msra.mxu0 %v219
    %7153 = vmatprep.subr.mxu0 0.0
    %7154 = vmatpush1.msra.mxu0 0.0
    %7155 = vmatprep.subr.mxu0 0.0
    %7156 = vmatpush1.msra.mxu0 0.0
    %7157 = vmatprep.subr.mxu0 0.0
    %7158 = vmatpush1.msra.mxu0 0.0
    %7159 = vmatprep.subr.mxu0 0.0
    %7160 = vmatpush1.msra.mxu0 0.0
    %7161 = vmatprep.subr.mxu0 0.0
    %7162 = vmatpush1.msra.mxu0 0.0
    %7163 = vmatprep.subr.mxu0 0.0
    %7164 = vmatpush1.msra.mxu0 0.0
    %7165 = vmatprep.subr.mxu0 0.0
    %7166 = vmatpush1.msra.mxu0 0.0
    %7167 = vmatprep.subr.mxu0 0.0
    %7168 = vmatpush1.msra.mxu0 0.0
    %7169 = vmatprep.subr.mxu0 0.0
    %7170 = vmatpush1.msra.mxu0 0.0
    %7171 = vmatprep.subr.mxu0 0.0
    %7172 = vmatpush1.msra.mxu0 0.0
    %7173 = vmatprep.subr.mxu0 0.0
    %7174 = vmatpush1.msra.mxu0 0.0
    %7175 = vmatprep.subr.mxu0 0.0
    %7176 = vmatpush1.msra.mxu0 0.0
    %7177 = vmatprep.subr.mxu0 0.0
    %7178 = vmatpush1.msra.mxu0 0.0
    %7179 = vmatprep.subr.mxu0 0.0
    %7180 = vmatpush1.msra.mxu0 0.0
    %7181 = vmatprep.subr.mxu0 0.0
    %7182 = vmatpush1.msra.mxu0 0.0
    %7183 = vmatprep.subr.mxu0 0.0
    %7184 = vmatpush1.msra.mxu0 0.0
    %7185 = vmatprep.subr.mxu0 0.0
    %7186 = vmatpush1.msra.mxu0 0.0
    %7187 = vmatprep.subr.mxu0 0.0
    %7188 = vmatpush1.msra.mxu0 0.0
    %7189 = vmatprep.subr.mxu0 0.0
    %7190 = vmatpush1.msra.mxu0 0.0
    %7191 = vmatprep.subr.mxu0 0.0
    %7192 = vmatpush1.msra.mxu0 0.0
    %7193 = vmatprep.subr.mxu0 0.0
    %7194 = vmatpush1.msra.mxu0 0.0
    %7195 = vmatprep.subr.mxu0 0.0
    %7196 = vmatpush1.msra.mxu0 0.0
    %7197 = vmatprep.subr.mxu0 0.0
    %7198 = vmatpush1.msra.mxu0 0.0
    %7199 = vmatprep.subr.mxu0 0.0
    %7200 = vmatpush1.msra.mxu0 0.0
    %7201 = vmatprep.subr.mxu0 0.0
    %7202 = vmatpush1.msra.mxu0 0.0
    %7203 = vmatprep.subr.mxu0 0.0
    %7204 = vmatpush1.msra.mxu0 0.0
    %7205 = vmatprep.subr.mxu0 0.0
    %7206 = vmatpush1.msra.mxu0 0.0
    %7207 = vmatprep.subr.mxu0 0.0
    %7208 = vmatpush1.msra.mxu0 0.0
    %7209 = vmatprep.subr.mxu0 0.0
    %7210 = vmatpush1.msra.mxu0 0.0
    %7211 = vmatprep.subr.mxu0 0.0
    %7212 = vmatpush1.msra.mxu0 0.0
    %7213 = vmatprep.subr.mxu0 0.0
    %7214 = vmatpush1.msra.mxu0 0.0
    %7215 = vmatprep.mubr.f32.mxu0 0.0
    %7216 = vmatmul.mubr.f32.gmra.mrb[0].mxu0 %v235
    %v7217 = vpop.f32.mrb[0].mxu0
    %v7218 = vadd.f32 0.0, %v7217
    %v7219 = vpop.f32.mrb[0].mxu0
    %v7220 = vadd.f32 0.0, %v7219
    %7221 = vmatprep.mubr.f32.mxu0 0.0
    %7222 = vmatmul.mubr.f32.gmra.mrb[0].mxu0 %v238
    %v7223 = vpop.f32.mrb[0].mxu0
    %v7224 = vadd.f32 0.0, %v7223
    %v7225 = vpop.f32.mrb[0].mxu0
    %v7226 = vadd.f32 0.0, %v7225
    %7227 = vmatprep.mubr.f32.mxu0 0.0
    %7228 = vmatmul.mubr.f32.gmra.mrb[0].mxu0 %v241
    %v7229 = vpop.f32.mrb[0].mxu0
    %v7230 = vadd.f32 0.0, %v7229
    %v7231 = vpop.f32.mrb[0].mxu0
    %v7232 = vadd.f32 0.0, %v7231
    %7233 = vmatprep.mubr.f32.mxu0 0.0
    %7234 = vmatmul.mubr.f32.gmra.mrb[0].mxu0 %v244
    %v7235 = vpop.f32.mrb[0].mxu0
    %v7236 = vadd.f32 0.0, %v7235
    %v7237 = vpop.f32.mrb[0].mxu0
    %v7238 = vadd.f32 0.0, %v7237
    %7239 = vmatprep.mubr.f32.mxu0 0.0
    %7240 = vmatmul.mubr.f32.gmra.mrb[0].mxu0 %v247
    %v7241 = vpop.f32.mrb[0].mxu0
    %v7242 = vadd.f32 0.0, %v7241
    %v7243 = vpop.f32.mrb[0].mxu0
    %v7244 = vadd.f32 0.0, %v7243
    %7245 = vmatprep.mubr.f32.mxu0 0.0
    %7246 = vmatmul.mubr.f32.gmra.mrb[0].mxu0 %v250
    %v7247 = vpop.f32.mrb[0].mxu0
    %v7248 = vadd.f32 0.0, %v7247
    %v7249 = vpop.f32.mrb[0].mxu0
    %v7250 = vadd.f32 0.0, %v7249
    %7251 = vmatprep.mubr.f32.mxu0 0.0
    %7252 = vmatmul.mubr.f32.gmra.mrb[0].mxu0 %v253
    %v7253 = vpop.f32.mrb[0].mxu0
    %v7254 = vadd.f32 0.0, %v7253
    %v7255 = vpop.f32.mrb[0].mxu0
    %v7256 = vadd.f32 0.0, %v7255
    %7257 = vmatprep.mubr.f32.mxu0 0.0
    %7258 = vmatmul.mubr.f32.gmra.mrb[0].mxu0 %v256
    %v7259 = vpop.f32.mrb[0].mxu0
    %v7260 = vadd.f32 0.0, %v7259
    %v7261 = vpop.f32.mrb[0].mxu0
    %v7262 = vadd.f32 0.0, %v7261
    %7263 = vdwg.mxu0
    %7264 = vmatprep.subr.mxu0 %v222
    %7265 = vmatpush1.msra.mxu0 %v221
    %7266 = vmatprep.subr.mxu0 0.0
    %7267 = vmatpush1.msra.mxu0 0.0
    %7268 = vmatprep.subr.mxu0 0.0
    %7269 = vmatpush1.msra.mxu0 0.0
    %7270 = vmatprep.subr.mxu0 0.0
    %7271 = vmatpush1.msra.mxu0 0.0
    %7272 = vmatprep.subr.mxu0 0.0
    %7273 = vmatpush1.msra.mxu0 0.0
    %7274 = vmatprep.subr.mxu0 0.0
    %7275 = vmatpush1.msra.mxu0 0.0
    %7276 = vmatprep.subr.mxu0 0.0
    %7277 = vmatpush1.msra.mxu0 0.0
    %7278 = vmatprep.subr.mxu0 0.0
    %7279 = vmatpush1.msra.mxu0 0.0
    %7280 = vmatprep.subr.mxu0 0.0
    %7281 = vmatpush1.msra.mxu0 0.0
    %7282 = vmatprep.subr.mxu0 0.0
    %7283 = vmatpush1.msra.mxu0 0.0
    %7284 = vmatprep.subr.mxu0 0.0
    %7285 = vmatpush1.msra.mxu0 0.0
    %7286 = vmatprep.subr.mxu0 0.0
    %7287 = vmatpush1.msra.mxu0 0.0
    %7288 = vmatprep.subr.mxu0 0.0
    %7289 = vmatpush1.msra.mxu0 0.0
    %7290 = vmatprep.subr.mxu0 0.0
    %7291 = vmatpush1.msra.mxu0 0.0
    %7292 = vmatprep.subr.mxu0 0.0
    %7293 = vmatpush1.msra.mxu0 0.0
    %7294 = vmatprep.subr.mxu0 0.0
    %7295 = vmatpush1.msra.mxu0 0.0
    %7296 = vmatprep.subr.mxu0 0.0
    %7297 = vmatpush1.msra.mxu0 0.0
    %7298 = vmatprep.subr.mxu0 0.0
    %7299 = vmatpush1.msra.mxu0 0.0
    %7300 = vmatprep.subr.mxu0 0.0
    %7301 = vmatpush1.msra.mxu0 0.0
    %7302 = vmatprep.subr.mxu0 0.0
    %7303 = vmatpush1.msra.mxu0 0.0
    %7304 = vmatprep.subr.mxu0 0.0
    %7305 = vmatpush1.msra.mxu0 0.0
    %7306 = vmatprep.subr.mxu0 0.0
    %7307 = vmatpush1.msra.mxu0 0.0
    %7308 = vmatprep.subr.mxu0 0.0
    %7309 = vmatpush1.msra.mxu0 0.0
    %7310 = vmatprep.subr.mxu0 0.0
    %7311 = vmatpush1.msra.mxu0 0.0
    %7312 = vmatprep.subr.mxu0 0.0
    %7313 = vmatpush1.msra.mxu0 0.0
    %7314 = vmatprep.subr.mxu0 0.0
    %7315 = vmatpush1.msra.mxu0 0.0
    %7316 = vmatprep.subr.mxu0 0.0
    %7317 = vmatpush1.msra.mxu0 0.0
    %7318 = vmatprep.subr.mxu0 0.0
    %7319 = vmatpush1.msra.mxu0 0.0
    %7320 = vmatprep.subr.mxu0 0.0
    %7321 = vmatpush1.msra.mxu0 0.0
    %7322 = vmatprep.subr.mxu0 0.0
    %7323 = vmatpush1.msra.mxu0 0.0
    %7324 = vmatprep.subr.mxu0 0.0
    %7325 = vmatpush1.msra.mxu0 0.0
    %7326 = vmatprep.subr.mxu0 0.0
    %7327 = vmatpush1.msra.mxu0 0.0
    %7328 = vmatprep.mubr.f32.mxu0 0.0
    %7329 = vmatmul.mubr.f32.gmra.mrb[0].mxu0 %v235
    %v7330 = vpop.f32.mrb[0].mxu0
    %v7331 = vadd.f32 0.0, %v7330
    %v7332 = vpop.f32.mrb[0].mxu0
    %v7333 = vadd.f32 0.0, %v7332
    %7334 = vmatprep.mubr.f32.mxu0 0.0
    %7335 = vmatmul.mubr.f32.gmra.mrb[0].mxu0 %v238
    %v7336 = vpop.f32.mrb[0].mxu0
    %v7337 = vadd.f32 0.0, %v7336
    %v7338 = vpop.f32.mrb[0].mxu0
    %v7339 = vadd.f32 0.0, %v7338
    %7340 = vmatprep.mubr.f32.mxu0 0.0
    %7341 = vmatmul.mubr.f32.gmra.mrb[0].mxu0 %v241
    %v7342 = vpop.f32.mrb[0].mxu0
    %v7343 = vadd.f32 0.0, %v7342
    %v7344 = vpop.f32.mrb[0].mxu0
    %v7345 = vadd.f32 0.0, %v7344
    %7346 = vmatprep.mubr.f32.mxu0 0.0
    %7347 = vmatmul.mubr.f32.gmra.mrb[0].mxu0 %v244
    %v7348 = vpop.f32.mrb[0].mxu0
    %v7349 = vadd.f32 0.0, %v7348
    %v7350 = vpop.f32.mrb[0].mxu0
    %v7351 = vadd.f32 0.0, %v7350
    %7352 = vmatprep.mubr.f32.mxu0 0.0
    %7353 = vmatmul.mubr.f32.gmra.mrb[0].mxu0 %v247
    %v7354 = vpop.f32.mrb[0].mxu0
    %v7355 = vadd.f32 0.0, %v7354
    %v7356 = vpop.f32.mrb[0].mxu0
    %v7357 = vadd.f32 0.0, %v7356
    %7358 = vmatprep.mubr.f32.mxu0 0.0
    %7359 = vmatmul.mubr.f32.gmra.mrb[0].mxu0 %v250
    %v7360 = vpop.f32.mrb[0].mxu0
    %v7361 = vadd.f32 0.0, %v7360
    %v7362 = vpop.f32.mrb[0].mxu0
    %v7363 = vadd.f32 0.0, %v7362
    %7364 = vmatprep.mubr.f32.mxu0 0.0
    %7365 = vmatmul.mubr.f32.gmra.mrb[0].mxu0 %v253
    %v7366 = vpop.f32.mrb[0].mxu0
    %v7367 = vadd.f32 0.0, %v7366
    %v7368 = vpop.f32.mrb[0].mxu0
    %v7369 = vadd.f32 0.0, %v7368
    %7370 = vmatprep.mubr.f32.mxu0 0.0
    %7371 = vmatmul.mubr.f32.gmra.mrb[0].mxu0 %v256
    %v7372 = vpop.f32.mrb[0].mxu0
    %v7373 = vadd.f32 0.0, %v7372
    %v7374 = vpop.f32.mrb[0].mxu0
    %v7375 = vadd.f32 0.0, %v7374
    %7376 = vdwg.mxu0
    %7377 = vmatprep.subr.mxu0 %v224
    %7378 = vmatpush1.msra.mxu0 %v223
    %7379 = vmatprep.subr.mxu0 0.0
    %7380 = vmatpush1.msra.mxu0 0.0
    %7381 = vmatprep.subr.mxu0 0.0
    %7382 = vmatpush1.msra.mxu0 0.0
    %7383 = vmatprep.subr.mxu0 0.0
    %7384 = vmatpush1.msra.mxu0 0.0
    %7385 = vmatprep.subr.mxu0 0.0
    %7386 = vmatpush1.msra.mxu0 0.0
    %7387 = vmatprep.subr.mxu0 0.0
    %7388 = vmatpush1.msra.mxu0 0.0
    %7389 = vmatprep.subr.mxu0 0.0
    %7390 = vmatpush1.msra.mxu0 0.0
    %7391 = vmatprep.subr.mxu0 0.0
    %7392 = vmatpush1.msra.mxu0 0.0
    %7393 = vmatprep.subr.mxu0 0.0
    %7394 = vmatpush1.msra.mxu0 0.0
    %7395 = vmatprep.subr.mxu0 0.0
    %7396 = vmatpush1.msra.mxu0 0.0
    %7397 = vmatprep.subr.mxu0 0.0
    %7398 = vmatpush1.msra.mxu0 0.0
    %7399 = vmatprep.subr.mxu0 0.0
    %7400 = vmatpush1.msra.mxu0 0.0
    %7401 = vmatprep.subr.mxu0 0.0
    %7402 = vmatpush1.msra.mxu0 0.0
    %7403 = vmatprep.subr.mxu0 0.0
    %7404 = vmatpush1.msra.mxu0 0.0
    %7405 = vmatprep.subr.mxu0 0.0
    %7406 = vmatpush1.msra.mxu0 0.0
    %7407 = vmatprep.subr.mxu0 0.0
    %7408 = vmatpush1.msra.mxu0 0.0
    %7409 = vmatprep.subr.mxu0 0.0
    %7410 = vmatpush1.msra.mxu0 0.0
    %7411 = vmatprep.subr.mxu0 0.0
    %7412 = vmatpush1.msra.mxu0 0.0
    %7413 = vmatprep.subr.mxu0 0.0
    %7414 = vmatpush1.msra.mxu0 0.0
    %7415 = vmatprep.subr.mxu0 0.0
    %7416 = vmatpush1.msra.mxu0 0.0
    %7417 = vmatprep.subr.mxu0 0.0
    %7418 = vmatpush1.msra.mxu0 0.0
    %7419 = vmatprep.subr.mxu0 0.0
    %7420 = vmatpush1.msra.mxu0 0.0
    %7421 = vmatprep.subr.mxu0 0.0
    %7422 = vmatpush1.msra.mxu0 0.0
    %7423 = vmatprep.subr.mxu0 0.0
    %7424 = vmatpush1.msra.mxu0 0.0
    %7425 = vmatprep.subr.mxu0 0.0
    %7426 = vmatpush1.msra.mxu0 0.0
    %7427 = vmatprep.subr.mxu0 0.0
    %7428 = vmatpush1.msra.mxu0 0.0
    %7429 = vmatprep.subr.mxu0 0.0
    %7430 = vmatpush1.msra.mxu0 0.0
    %7431 = vmatprep.subr.mxu0 0.0
    %7432 = vmatpush1.msra.mxu0 0.0
    %7433 = vmatprep.subr.mxu0 0.0
    %7434 = vmatpush1.msra.mxu0 0.0
    %7435 = vmatprep.subr.mxu0 0.0
    %7436 = vmatpush1.msra.mxu0 0.0
    %7437 = vmatprep.subr.mxu0 0.0
    %7438 = vmatpush1.msra.mxu0 0.0
    %7439 = vmatprep.subr.mxu0 0.0
    %7440 = vmatpush1.msra.mxu0 0.0
    %7441 = vmatprep.mubr.f32.mxu0 0.0
    %7442 = vmatmul.mubr.f32.gmra.mrb[0].mxu0 %v235
    %v7443 = vpop.f32.mrb[0].mxu0
    %v7444 = vadd.f32 0.0, %v7443
    %v7445 = vpop.f32.mrb[0].mxu0
    %v7446 = vadd.f32 0.0, %v7445
    %7447 = vmatprep.mubr.f32.mxu0 0.0
    %7448 = vmatmul.mubr.f32.gmra.mrb[0].mxu0 %v238
    %v7449 = vpop.f32.mrb[0].mxu0
    %v7450 = vadd.f32 0.0, %v7449
    %v7451 = vpop.f32.mrb[0].mxu0
    %v7452 = vadd.f32 0.0, %v7451
    %7453 = vmatprep.mubr.f32.mxu0 0.0
    %7454 = vmatmul.mubr.f32.gmra.mrb[0].mxu0 %v241
    %v7455 = vpop.f32.mrb[0].mxu0
    %v7456 = vadd.f32 0.0, %v7455
    %v7457 = vpop.f32.mrb[0].mxu0
    %v7458 = vadd.f32 0.0, %v7457
    %7459 = vmatprep.mubr.f32.mxu0 0.0
    %7460 = vmatmul.mubr.f32.gmra.mrb[0].mxu0 %v244
    %v7461 = vpop.f32.mrb[0].mxu0
    %v7462 = vadd.f32 0.0, %v7461
    %v7463 = vpop.f32.mrb[0].mxu0
    %v7464 = vadd.f32 0.0, %v7463
    %7465 = vmatprep.mubr.f32.mxu0 0.0
    %7466 = vmatmul.mubr.f32.gmra.mrb[0].mxu0 %v247
    %v7467 = vpop.f32.mrb[0].mxu0
    %v7468 = vadd.f32 0.0, %v7467
    %v7469 = vpop.f32.mrb[0].mxu0
    %v7470 = vadd.f32 0.0, %v7469
    %7471 = vmatprep.mubr.f32.mxu0 0.0
    %7472 = vmatmul.mubr.f32.gmra.mrb[0].mxu0 %v250
    %v7473 = vpop.f32.mrb[0].mxu0
    %v7474 = vadd.f32 0.0, %v7473
    %v7475 = vpop.f32.mrb[0].mxu0
    %v7476 = vadd.f32 0.0, %v7475
    %7477 = vmatprep.mubr.f32.mxu0 0.0
    %7478 = vmatmul.mubr.f32.gmra.mrb[0].mxu0 %v253
    %v7479 = vpop.f32.mrb[0].mxu0
    %v7480 = vadd.f32 0.0, %v7479
    %v7481 = vpop.f32.mrb[0].mxu0
    %v7482 = vadd.f32 0.0, %v7481
    %7483 = vmatprep.mubr.f32.mxu0 0.0
    %7484 = vmatmul.mubr.f32.gmra.mrb[0].mxu0 %v256
    %v7485 = vpop.f32.mrb[0].mxu0
    %v7486 = vadd.f32 0.0, %v7485
    %v7487 = vpop.f32.mrb[0].mxu0
    %v7488 = vadd.f32 0.0, %v7487
    %7489 = vdwg.mxu0
    %v7490 = vadd.f32 %v325, %v351
    %v7491 = vadd.f32 %v327, %v462
    %v7492 = vadd.f32 %v438, %v464
    %v7493 = vadd.f32 %v440, %v575
    %v7494 = vadd.f32 %v551, %v577
    %v7495 = vadd.f32 %v553, %v688
    %v7496 = vadd.f32 %v664, %v690
    %v7497 = vadd.f32 %v666, %v801
    %v7498 = vadd.f32 %v777, %v803
    %v7499 = vadd.f32 %v779, %v914
    %v7500 = vadd.f32 %v890, %v916
    %v7501 = vadd.f32 %v892, %v1027
    %v7502 = vadd.f32 %v1003, %v1029
    %v7503 = vadd.f32 %v1005, %v1140
    %v7504 = vadd.f32 %v1116, %v1142
    %v7505 = vadd.f32 %v1118, %v1253
    %v7506 = vadd.f32 %v1229, %v1255
    %v7507 = vadd.f32 %v1231, %v1366
    %v7508 = vadd.f32 %v1342, %v1368
    %v7509 = vadd.f32 %v1344, %v1479
    %v7510 = vadd.f32 %v1455, %v1481
    %v7511 = vadd.f32 %v1457, %v1592
    %v7512 = vadd.f32 %v1568, %v1594
    %v7513 = vadd.f32 %v1570, %v1705
    %v7514 = vadd.f32 %v1681, %v1707
    %v7515 = vadd.f32 %v1683, %v1818
    %v7516 = vadd.f32 %v1794, %v1820
    %v7517 = vadd.f32 %v1796, %v1931
    %v7518 = vadd.f32 %v1907, %v1933
    %v7519 = vadd.f32 %v1909, %v2044
    %v7520 = vadd.f32 %v2020, %v2046
    %v7521 = vadd.f32 %v2022, %v2157
    %v7522 = vadd.f32 %v2133, %v2159
    %v7523 = vadd.f32 %v2135, %v2270
    %v7524 = vadd.f32 %v2246, %v2272
    %v7525 = vadd.f32 %v2248, %v2383
    %v7526 = vadd.f32 %v2359, %v2385
    %v7527 = vadd.f32 %v2361, %v2496
    %v7528 = vadd.f32 %v2472, %v2498
    %v7529 = vadd.f32 %v2474, %v2609
    %v7530 = vadd.f32 %v2585, %v2611
    %v7531 = vadd.f32 %v2587, %v2722
    %v7532 = vadd.f32 %v2698, %v2724
    %v7533 = vadd.f32 %v2700, %v2835
    %v7534 = vadd.f32 %v2811, %v2837
    %v7535 = vadd.f32 %v2813, %v2948
    %v7536 = vadd.f32 %v2924, %v2950
    %v7537 = vadd.f32 %v2926, %v3061
    %v7538 = vadd.f32 %v3037, %v3063
    %v7539 = vadd.f32 %v3039, %v3174
    %v7540 = vadd.f32 %v3150, %v3176
    %v7541 = vadd.f32 %v3152, %v3287
    %v7542 = vadd.f32 %v3263, %v3289
    %v7543 = vadd.f32 %v3265, %v3400
    %v7544 = vadd.f32 %v3376, %v3402
    %v7545 = vadd.f32 %v3378, %v3513
    %v7546 = vadd.f32 %v3489, %v3515
    %v7547 = vadd.f32 %v3491, %v3626
    %v7548 = vadd.f32 %v3602, %v3628
    %v7549 = vadd.f32 %v3604, %v3739
    %v7550 = vadd.f32 %v3715, %v3741
    %v7551 = vadd.f32 %v3717, %v3852
    %v7552 = vadd.f32 %v3828, %v3854
    %v7553 = vadd.f32 %v3830, %v3965
    %v7554 = vadd.f32 %v3941, %v3967
    %v7555 = vadd.f32 %v3943, %v4078
    %v7556 = vadd.f32 %v4054, %v4080
    %v7557 = vadd.f32 %v4056, %v4191
    %v7558 = vadd.f32 %v4167, %v4193
    %v7559 = vadd.f32 %v4169, %v4304
    %v7560 = vadd.f32 %v4280, %v4306
    %v7561 = vadd.f32 %v4282, %v4417
    %v7562 = vadd.f32 %v4393, %v4419
    %v7563 = vadd.f32 %v4395, %v4530
    %v7564 = vadd.f32 %v4506, %v4532
    %v7565 = vadd.f32 %v4508, %v4643
    %v7566 = vadd.f32 %v4619, %v4645
    %v7567 = vadd.f32 %v4621, %v4756
    %v7568 = vadd.f32 %v4732, %v4758
    %v7569 = vadd.f32 %v4734, %v4869
    %v7570 = vadd.f32 %v4845, %v4871
    %v7571 = vadd.f32 %v4847, %v4982
    %v7572 = vadd.f32 %v4958, %v4984
    %v7573 = vadd.f32 %v4960, %v5095
    %v7574 = vadd.f32 %v5071, %v5097
    %v7575 = vadd.f32 %v5073, %v5208
    %v7576 = vadd.f32 %v5184, %v5210
    %v7577 = vadd.f32 %v5186, %v5321
    %v7578 = vadd.f32 %v5297, %v5323
    %v7579 = vadd.f32 %v5299, %v5434
    %v7580 = vadd.f32 %v5410, %v5436
    %v7581 = vadd.f32 %v5412, %v5547
    %v7582 = vadd.f32 %v5523, %v5549
    %v7583 = vadd.f32 %v5525, %v5660
    %v7584 = vadd.f32 %v5636, %v5662
    %v7585 = vadd.f32 %v5638, %v5773
    %v7586 = vadd.f32 %v5749, %v5775
    %v7587 = vadd.f32 %v5751, %v5886
    %v7588 = vadd.f32 %v5862, %v5888
    %v7589 = vadd.f32 %v5864, %v5999
    %v7590 = vadd.f32 %v5975, %v6001
    %v7591 = vadd.f32 %v5977, %v6112
    %v7592 = vadd.f32 %v6088, %v6114
    %v7593 = vadd.f32 %v6090, %v6225
    %v7594 = vadd.f32 %v6201, %v6227
    %v7595 = vadd.f32 %v6203, %v6338
    %v7596 = vadd.f32 %v6314, %v6340
    %v7597 = vadd.f32 %v6316, %v6451
    %v7598 = vadd.f32 %v6427, %v6453
    %v7599 = vadd.f32 %v6429, %v6564
    %v7600 = vadd.f32 %v6540, %v6566
    %v7601 = vadd.f32 %v6542, %v6677
    %v7602 = vadd.f32 %v6653, %v6679
    %v7603 = vadd.f32 %v6655, %v6790
    %v7604 = vadd.f32 %v6766, %v6792
    %v7605 = vadd.f32 %v6768, %v6903
    %v7606 = vadd.f32 %v6879, %v6905
    %v7607 = vadd.f32 %v6881, %v7016
    %v7608 = vadd.f32 %v6992, %v7018
    %v7609 = vadd.f32 %v6994, %v7129
    %v7610 = vadd.f32 %v7105, %v7131
    %v7611 = vadd.f32 %v7107, %v7242
    %v7612 = vadd.f32 %v7218, %v7244
    %v7613 = vadd.f32 %v7220, %v7355
    %v7614 = vadd.f32 %v7331, %v7357
    %v7615 = vadd.f32 %v7333, %v7468
    %v7616 = vadd.f32 %v7444, %v7470
    %v7617 = vadd.f32 %v331, %v357
    %v7618 = vadd.f32 %v333, %v468
    %v7619 = vadd.f32 %v444, %v470
    %v7620 = vadd.f32 %v446, %v581
    %v7621 = vadd.f32 %v557, %v583
    %v7622 = vadd.f32 %v559, %v694
    %v7623 = vadd.f32 %v670, %v696
    %v7624 = vadd.f32 %v672, %v807
    %v7625 = vadd.f32 %v783, %v809
    %v7626 = vadd.f32 %v785, %v920
    %v7627 = vadd.f32 %v896, %v922
    %v7628 = vadd.f32 %v898, %v1033
    %v7629 = vadd.f32 %v1009, %v1035
    %v7630 = vadd.f32 %v1011, %v1146
    %v7631 = vadd.f32 %v1122, %v1148
    %v7632 = vadd.f32 %v1124, %v1259
    %v7633 = vadd.f32 %v1235, %v1261
    %v7634 = vadd.f32 %v1237, %v1372
    %v7635 = vadd.f32 %v1348, %v1374
    %v7636 = vadd.f32 %v1350, %v1485
    %v7637 = vadd.f32 %v1461, %v1487
    %v7638 = vadd.f32 %v1463, %v1598
    %v7639 = vadd.f32 %v1574, %v1600
    %v7640 = vadd.f32 %v1576, %v1711
    %v7641 = vadd.f32 %v1687, %v1713
    %v7642 = vadd.f32 %v1689, %v1824
    %v7643 = vadd.f32 %v1800, %v1826
    %v7644 = vadd.f32 %v1802, %v1937
    %v7645 = vadd.f32 %v1913, %v1939
    %v7646 = vadd.f32 %v1915, %v2050
    %v7647 = vadd.f32 %v2026, %v2052
    %v7648 = vadd.f32 %v2028, %v2163
    %v7649 = vadd.f32 %v2139, %v2165
    %v7650 = vadd.f32 %v2141, %v2276
    %v7651 = vadd.f32 %v2252, %v2278
    %v7652 = vadd.f32 %v2254, %v2389
    %v7653 = vadd.f32 %v2365, %v2391
    %v7654 = vadd.f32 %v2367, %v2502
    %v7655 = vadd.f32 %v2478, %v2504
    %v7656 = vadd.f32 %v2480, %v2615
    %v7657 = vadd.f32 %v2591, %v2617
    %v7658 = vadd.f32 %v2593, %v2728
    %v7659 = vadd.f32 %v2704, %v2730
    %v7660 = vadd.f32 %v2706, %v2841
    %v7661 = vadd.f32 %v2817, %v2843
    %v7662 = vadd.f32 %v2819, %v2954
    %v7663 = vadd.f32 %v2930, %v2956
    %v7664 = vadd.f32 %v2932, %v3067
    %v7665 = vadd.f32 %v3043, %v3069
    %v7666 = vadd.f32 %v3045, %v3180
    %v7667 = vadd.f32 %v3156, %v3182
    %v7668 = vadd.f32 %v3158, %v3293
    %v7669 = vadd.f32 %v3269, %v3295
    %v7670 = vadd.f32 %v3271, %v3406
    %v7671 = vadd.f32 %v3382, %v3408
    %v7672 = vadd.f32 %v3384, %v3519
    %v7673 = vadd.f32 %v3495, %v3521
    %v7674 = vadd.f32 %v3497, %v3632
    %v7675 = vadd.f32 %v3608, %v3634
    %v7676 = vadd.f32 %v3610, %v3745
    %v7677 = vadd.f32 %v3721, %v3747
    %v7678 = vadd.f32 %v3723, %v3858
    %v7679 = vadd.f32 %v3834, %v3860
    %v7680 = vadd.f32 %v3836, %v3971
    %v7681 = vadd.f32 %v3947, %v3973
    %v7682 = vadd.f32 %v3949, %v4084
    %v7683 = vadd.f32 %v4060, %v4086
    %v7684 = vadd.f32 %v4062, %v4197
    %v7685 = vadd.f32 %v4173, %v4199
    %v7686 = vadd.f32 %v4175, %v4310
    %v7687 = vadd.f32 %v4286, %v4312
    %v7688 = vadd.f32 %v4288, %v4423
    %v7689 = vadd.f32 %v4399, %v4425
    %v7690 = vadd.f32 %v4401, %v4536
    %v7691 = vadd.f32 %v4512, %v4538
    %v7692 = vadd.f32 %v4514, %v4649
    %v7693 = vadd.f32 %v4625, %v4651
    %v7694 = vadd.f32 %v4627, %v4762
    %v7695 = vadd.f32 %v4738, %v4764
    %v7696 = vadd.f32 %v4740, %v4875
    %v7697 = vadd.f32 %v4851, %v4877
    %v7698 = vadd.f32 %v4853, %v4988
    %v7699 = vadd.f32 %v4964, %v4990
    %v7700 = vadd.f32 %v4966, %v5101
    %v7701 = vadd.f32 %v5077, %v5103
    %v7702 = vadd.f32 %v5079, %v5214
    %v7703 = vadd.f32 %v5190, %v5216
    %v7704 = vadd.f32 %v5192, %v5327
    %v7705 = vadd.f32 %v5303, %v5329
    %v7706 = vadd.f32 %v5305, %v5440
    %v7707 = vadd.f32 %v5416, %v5442
    %v7708 = vadd.f32 %v5418, %v5553
    %v7709 = vadd.f32 %v5529, %v5555
    %v7710 = vadd.f32 %v5531, %v5666
    %v7711 = vadd.f32 %v5642, %v5668
    %v7712 = vadd.f32 %v5644, %v5779
    %v7713 = vadd.f32 %v5755, %v5781
    %v7714 = vadd.f32 %v5757, %v5892
    %v7715 = vadd.f32 %v5868, %v5894
    %v7716 = vadd.f32 %v5870, %v6005
    %v7717 = vadd.f32 %v5981, %v6007
    %v7718 = vadd.f32 %v5983, %v6118
    %v7719 = vadd.f32 %v6094, %v6120
    %v7720 = vadd.f32 %v6096, %v6231
    %v7721 = vadd.f32 %v6207, %v6233
    %v7722 = vadd.f32 %v6209, %v6344
    %v7723 = vadd.f32 %v6320, %v6346
    %v7724 = vadd.f32 %v6322, %v6457
    %v7725 = vadd.f32 %v6433, %v6459
    %v7726 = vadd.f32 %v6435, %v6570
    %v7727 = vadd.f32 %v6546, %v6572
    %v7728 = vadd.f32 %v6548, %v6683
    %v7729 = vadd.f32 %v6659, %v6685
    %v7730 = vadd.f32 %v6661, %v6796
    %v7731 = vadd.f32 %v6772, %v6798
    %v7732 = vadd.f32 %v6774, %v6909
    %v7733 = vadd.f32 %v6885, %v6911
    %v7734 = vadd.f32 %v6887, %v7022
    %v7735 = vadd.f32 %v6998, %v7024
    %v7736 = vadd.f32 %v7000, %v7135
    %v7737 = vadd.f32 %v7111, %v7137
    %v7738 = vadd.f32 %v7113, %v7248
    %v7739 = vadd.f32 %v7224, %v7250
    %v7740 = vadd.f32 %v7226, %v7361
    %v7741 = vadd.f32 %v7337, %v7363
    %v7742 = vadd.f32 %v7339, %v7474
    %v7743 = vadd.f32 %v7450, %v7476
    %v7744 = vadd.f32 %v337, %v363
    %v7745 = vadd.f32 %v339, %v474
    %v7746 = vadd.f32 %v450, %v476
    %v7747 = vadd.f32 %v452, %v587
    %v7748 = vadd.f32 %v563, %v589
    %v7749 = vadd.f32 %v565, %v700
    %v7750 = vadd.f32 %v676, %v702
    %v7751 = vadd.f32 %v678, %v813
    %v7752 = vadd.f32 %v789, %v815
    %v7753 = vadd.f32 %v791, %v926
    %v7754 = vadd.f32 %v902, %v928
    %v7755 = vadd.f32 %v904, %v1039
    %v7756 = vadd.f32 %v1015, %v1041
    %v7757 = vadd.f32 %v1017, %v1152
    %v7758 = vadd.f32 %v1128, %v1154
    %v7759 = vadd.f32 %v1130, %v1265
    %v7760 = vadd.f32 %v1241, %v1267
    %v7761 = vadd.f32 %v1243, %v1378
    %v7762 = vadd.f32 %v1354, %v1380
    %v7763 = vadd.f32 %v1356, %v1491
    %v7764 = vadd.f32 %v1467, %v1493
    %v7765 = vadd.f32 %v1469, %v1604
    %v7766 = vadd.f32 %v1580, %v1606
    %v7767 = vadd.f32 %v1582, %v1717
    %v7768 = vadd.f32 %v1693, %v1719
    %v7769 = vadd.f32 %v1695, %v1830
    %v7770 = vadd.f32 %v1806, %v1832
    %v7771 = vadd.f32 %v1808, %v1943
    %v7772 = vadd.f32 %v1919, %v1945
    %v7773 = vadd.f32 %v1921, %v2056
    %v7774 = vadd.f32 %v2032, %v2058
    %v7775 = vadd.f32 %v2034, %v2169
    %v7776 = vadd.f32 %v2145, %v2171
    %v7777 = vadd.f32 %v2147, %v2282
    %v7778 = vadd.f32 %v2258, %v2284
    %v7779 = vadd.f32 %v2260, %v2395
    %v7780 = vadd.f32 %v2371, %v2397
    %v7781 = vadd.f32 %v2373, %v2508
    %v7782 = vadd.f32 %v2484, %v2510
    %v7783 = vadd.f32 %v2486, %v2621
    %v7784 = vadd.f32 %v2597, %v2623
    %v7785 = vadd.f32 %v2599, %v2734
    %v7786 = vadd.f32 %v2710, %v2736
    %v7787 = vadd.f32 %v2712, %v2847
    %v7788 = vadd.f32 %v2823, %v2849
    %v7789 = vadd.f32 %v2825, %v2960
    %v7790 = vadd.f32 %v2936, %v2962
    %v7791 = vadd.f32 %v2938, %v3073
    %v7792 = vadd.f32 %v3049, %v3075
    %v7793 = vadd.f32 %v3051, %v3186
    %v7794 = vadd.f32 %v3162, %v3188
    %v7795 = vadd.f32 %v3164, %v3299
    %v7796 = vadd.f32 %v3275, %v3301
    %v7797 = vadd.f32 %v3277, %v3412
    %v7798 = vadd.f32 %v3388, %v3414
    %v7799 = vadd.f32 %v3390, %v3525
    %v7800 = vadd.f32 %v3501, %v3527
    %v7801 = vadd.f32 %v3503, %v3638
    %v7802 = vadd.f32 %v3614, %v3640
    %v7803 = vadd.f32 %v3616, %v3751
    %v7804 = vadd.f32 %v3727, %v3753
    %v7805 = vadd.f32 %v3729, %v3864
    %v7806 = vadd.f32 %v3840, %v3866
    %v7807 = vadd.f32 %v3842, %v3977
    %v7808 = vadd.f32 %v3953, %v3979
    %v7809 = vadd.f32 %v3955, %v4090
    %v7810 = vadd.f32 %v4066, %v4092
    %v7811 = vadd.f32 %v4068, %v4203
    %v7812 = vadd.f32 %v4179, %v4205
    %v7813 = vadd.f32 %v4181, %v4316
    %v7814 = vadd.f32 %v4292, %v4318
    %v7815 = vadd.f32 %v4294, %v4429
    %v7816 = vadd.f32 %v4405, %v4431
    %v7817 = vadd.f32 %v4407, %v4542
    %v7818 = vadd.f32 %v4518, %v4544
    %v7819 = vadd.f32 %v4520, %v4655
    %v7820 = vadd.f32 %v4631, %v4657
    %v7821 = vadd.f32 %v4633, %v4768
    %v7822 = vadd.f32 %v4744, %v4770
    %v7823 = vadd.f32 %v4746, %v4881
    %v7824 = vadd.f32 %v4857, %v4883
    %v7825 = vadd.f32 %v4859, %v4994
    %v7826 = vadd.f32 %v4970, %v4996
    %v7827 = vadd.f32 %v4972, %v5107
    %v7828 = vadd.f32 %v5083, %v5109
    %v7829 = vadd.f32 %v5085, %v5220
    %v7830 = vadd.f32 %v5196, %v5222
    %v7831 = vadd.f32 %v5198, %v5333
    %v7832 = vadd.f32 %v5309, %v5335
    %v7833 = vadd.f32 %v5311, %v5446
    %v7834 = vadd.f32 %v5422, %v5448
    %v7835 = vadd.f32 %v5424, %v5559
    %v7836 = vadd.f32 %v5535, %v5561
    %v7837 = vadd.f32 %v5537, %v5672
    %v7838 = vadd.f32 %v5648, %v5674
    %v7839 = vadd.f32 %v5650, %v5785
    %v7840 = vadd.f32 %v5761, %v5787
    %v7841 = vadd.f32 %v5763, %v5898
    %v7842 = vadd.f32 %v5874, %v5900
    %v7843 = vadd.f32 %v5876, %v6011
    %v7844 = vadd.f32 %v5987, %v6013
    %v7845 = vadd.f32 %v5989, %v6124
    %v7846 = vadd.f32 %v6100, %v6126
    %v7847 = vadd.f32 %v6102, %v6237
    %v7848 = vadd.f32 %v6213, %v6239
    %v7849 = vadd.f32 %v6215, %v6350
    %v7850 = vadd.f32 %v6326, %v6352
    %v7851 = vadd.f32 %v6328, %v6463
    %v7852 = vadd.f32 %v6439, %v6465
    %v7853 = vadd.f32 %v6441, %v6576
    %v7854 = vadd.f32 %v6552, %v6578
    %v7855 = vadd.f32 %v6554, %v6689
    %v7856 = vadd.f32 %v6665, %v6691
    %v7857 = vadd.f32 %v6667, %v6802
    %v7858 = vadd.f32 %v6778, %v6804
    %v7859 = vadd.f32 %v6780, %v6915
    %v7860 = vadd.f32 %v6891, %v6917
    %v7861 = vadd.f32 %v6893, %v7028
    %v7862 = vadd.f32 %v7004, %v7030
    %v7863 = vadd.f32 %v7006, %v7141
    %v7864 = vadd.f32 %v7117, %v7143
    %v7865 = vadd.f32 %v7119, %v7254
    %v7866 = vadd.f32 %v7230, %v7256
    %v7867 = vadd.f32 %v7232, %v7367
    %v7868 = vadd.f32 %v7343, %v7369
    %v7869 = vadd.f32 %v7345, %v7480
    %v7870 = vadd.f32 %v7456, %v7482
    %v7871 = vadd.f32 %v343, %v369
    %v7872 = vadd.f32 %v345, %v480
    %v7873 = vadd.f32 %v456, %v482
    %v7874 = vadd.f32 %v458, %v593
    %v7875 = vadd.f32 %v569, %v595
    %v7876 = vadd.f32 %v571, %v706
    %v7877 = vadd.f32 %v682, %v708
    %v7878 = vadd.f32 %v684, %v819
    %v7879 = vadd.f32 %v795, %v821
    %v7880 = vadd.f32 %v797, %v932
    %v7881 = vadd.f32 %v908, %v934
    %v7882 = vadd.f32 %v910, %v1045
    %v7883 = vadd.f32 %v1021, %v1047
    %v7884 = vadd.f32 %v1023, %v1158
    %v7885 = vadd.f32 %v1134, %v1160
    %v7886 = vadd.f32 %v1136, %v1271
    %v7887 = vadd.f32 %v1247, %v1273
    %v7888 = vadd.f32 %v1249, %v1384
    %v7889 = vadd.f32 %v1360, %v1386
    %v7890 = vadd.f32 %v1362, %v1497
    %v7891 = vadd.f32 %v1473, %v1499
    %v7892 = vadd.f32 %v1475, %v1610
    %v7893 = vadd.f32 %v1586, %v1612
    %v7894 = vadd.f32 %v1588, %v1723
    %v7895 = vadd.f32 %v1699, %v1725
    %v7896 = vadd.f32 %v1701, %v1836
    %v7897 = vadd.f32 %v1812, %v1838
    %v7898 = vadd.f32 %v1814, %v1949
    %v7899 = vadd.f32 %v1925, %v1951
    %v7900 = vadd.f32 %v1927, %v2062
    %v7901 = vadd.f32 %v2038, %v2064
    %v7902 = vadd.f32 %v2040, %v2175
    %v7903 = vadd.f32 %v2151, %v2177
    %v7904 = vadd.f32 %v2153, %v2288
    %v7905 = vadd.f32 %v2264, %v2290
    %v7906 = vadd.f32 %v2266, %v2401
    %v7907 = vadd.f32 %v2377, %v2403
    %v7908 = vadd.f32 %v2379, %v2514
    %v7909 = vadd.f32 %v2490, %v2516
    %v7910 = vadd.f32 %v2492, %v2627
    %v7911 = vadd.f32 %v2603, %v2629
    %v7912 = vadd.f32 %v2605, %v2740
    %v7913 = vadd.f32 %v2716, %v2742
    %v7914 = vadd.f32 %v2718, %v2853
    %v7915 = vadd.f32 %v2829, %v2855
    %v7916 = vadd.f32 %v2831, %v2966
    %v7917 = vadd.f32 %v2942, %v2968
    %v7918 = vadd.f32 %v2944, %v3079
    %v7919 = vadd.f32 %v3055, %v3081
    %v7920 = vadd.f32 %v3057, %v3192
    %v7921 = vadd.f32 %v3168, %v3194
    %v7922 = vadd.f32 %v3170, %v3305
    %v7923 = vadd.f32 %v3281, %v3307
    %v7924 = vadd.f32 %v3283, %v3418
    %v7925 = vadd.f32 %v3394, %v3420
    %v7926 = vadd.f32 %v3396, %v3531
    %v7927 = vadd.f32 %v3507, %v3533
    %v7928 = vadd.f32 %v3509, %v3644
    %v7929 = vadd.f32 %v3620, %v3646
    %v7930 = vadd.f32 %v3622, %v3757
    %v7931 = vadd.f32 %v3733, %v3759
    %v7932 = vadd.f32 %v3735, %v3870
    %v7933 = vadd.f32 %v3846, %v3872
    %v7934 = vadd.f32 %v3848, %v3983
    %v7935 = vadd.f32 %v3959, %v3985
    %v7936 = vadd.f32 %v3961, %v4096
    %v7937 = vadd.f32 %v4072, %v4098
    %v7938 = vadd.f32 %v4074, %v4209
    %v7939 = vadd.f32 %v4185, %v4211
    %v7940 = vadd.f32 %v4187, %v4322
    %v7941 = vadd.f32 %v4298, %v4324
    %v7942 = vadd.f32 %v4300, %v4435
    %v7943 = vadd.f32 %v4411, %v4437
    %v7944 = vadd.f32 %v4413, %v4548
    %v7945 = vadd.f32 %v4524, %v4550
    %v7946 = vadd.f32 %v4526, %v4661
    %v7947 = vadd.f32 %v4637, %v4663
    %v7948 = vadd.f32 %v4639, %v4774
    %v7949 = vadd.f32 %v4750, %v4776
    %v7950 = vadd.f32 %v4752, %v4887
    %v7951 = vadd.f32 %v4863, %v4889
    %v7952 = vadd.f32 %v4865, %v5000
    %v7953 = vadd.f32 %v4976, %v5002
    %v7954 = vadd.f32 %v4978, %v5113
    %v7955 = vadd.f32 %v5089, %v5115
    %v7956 = vadd.f32 %v5091, %v5226
    %v7957 = vadd.f32 %v5202, %v5228
    %v7958 = vadd.f32 %v5204, %v5339
    %v7959 = vadd.f32 %v5315, %v5341
    %v7960 = vadd.f32 %v5317, %v5452
    %v7961 = vadd.f32 %v5428, %v5454
    %v7962 = vadd.f32 %v5430, %v5565
    %v7963 = vadd.f32 %v5541, %v5567
    %v7964 = vadd.f32 %v5543, %v5678
    %v7965 = vadd.f32 %v5654, %v5680
    %v7966 = vadd.f32 %v5656, %v5791
    %v7967 = vadd.f32 %v5767, %v5793
    %v7968 = vadd.f32 %v5769, %v5904
    %v7969 = vadd.f32 %v5880, %v5906
    %v7970 = vadd.f32 %v5882, %v6017
    %v7971 = vadd.f32 %v5993, %v6019
    %v7972 = vadd.f32 %v5995, %v6130
    %v7973 = vadd.f32 %v6106, %v6132
    %v7974 = vadd.f32 %v6108, %v6243
    %v7975 = vadd.f32 %v6219, %v6245
    %v7976 = vadd.f32 %v6221, %v6356
    %v7977 = vadd.f32 %v6332, %v6358
    %v7978 = vadd.f32 %v6334, %v6469
    %v7979 = vadd.f32 %v6445, %v6471
    %v7980 = vadd.f32 %v6447, %v6582
    %v7981 = vadd.f32 %v6558, %v6584
    %v7982 = vadd.f32 %v6560, %v6695
    %v7983 = vadd.f32 %v6671, %v6697
    %v7984 = vadd.f32 %v6673, %v6808
    %v7985 = vadd.f32 %v6784, %v6810
    %v7986 = vadd.f32 %v6786, %v6921
    %v7987 = vadd.f32 %v6897, %v6923
    %v7988 = vadd.f32 %v6899, %v7034
    %v7989 = vadd.f32 %v7010, %v7036
    %v7990 = vadd.f32 %v7012, %v7147
    %v7991 = vadd.f32 %v7123, %v7149
    %v7992 = vadd.f32 %v7125, %v7260
    %v7993 = vadd.f32 %v7236, %v7262
    %v7994 = vadd.f32 %v7238, %v7373
    %v7995 = vadd.f32 %v7349, %v7375
    %v7996 = vadd.f32 %v7351, %v7486
    %v7997 = vadd.f32 %v7462, %v7488
    %v7998 = vmax.f32 %v7490, %v7553
    %v7999 = vmax.f32 %v7491, %v7554
    %v8000 = vmax.f32 %v7492, %v7555
    %v8001 = vmax.f32 %v7493, %v7556
    %v8002 = vmax.f32 %v7494, %v7557
    %v8003 = vmax.f32 %v7495, %v7558
    %v8004 = vmax.f32 %v7496, %v7559
    %v8005 = vmax.f32 %v7497, %v7560
    %v8006 = vmax.f32 %v7498, %v7561
    %v8007 = vmax.f32 %v7499, %v7562
    %v8008 = vmax.f32 %v7500, %v7563
    %v8009 = vmax.f32 %v7501, %v7564
    %v8010 = vmax.f32 %v7502, %v7565
    %v8011 = vmax.f32 %v7503, %v7566
    %v8012 = vmax.f32 %v7504, %v7567
    %v8013 = vmax.f32 %v7505, %v7568
    %v8014 = vmax.f32 %v7506, %v7569
    %v8015 = vmax.f32 %v7507, %v7570
    %v8016 = vmax.f32 %v7508, %v7571
    %v8017 = vmax.f32 %v7509, %v7572
    %v8018 = vmax.f32 %v7510, %v7573
    %v8019 = vmax.f32 %v7511, %v7574
    %v8020 = vmax.f32 %v7512, %v7575
    %v8021 = vmax.f32 %v7513, %v7576
    %v8022 = vmax.f32 %v7514, %v7577
    %v8023 = vmax.f32 %v7515, %v7578
    %v8024 = vmax.f32 %v7516, %v7579
    %v8025 = vmax.f32 %v7517, %v7580
    %v8026 = vmax.f32 %v7518, %v7581
    %v8027 = vmax.f32 %v7519, %v7582
    %v8028 = vmax.f32 %v7520, %v7583
    %v8029 = vmax.f32 %v7521, %v7584
    %v8030 = vmax.f32 %v7522, %v7585
    %v8031 = vmax.f32 %v7523, %v7586
    %v8032 = vmax.f32 %v7524, %v7587
    %v8033 = vmax.f32 %v7525, %v7588
    %v8034 = vmax.f32 %v7526, %v7589
    %v8035 = vmax.f32 %v7527, %v7590
    %v8036 = vmax.f32 %v7528, %v7591
    %v8037 = vmax.f32 %v7529, %v7592
    %v8038 = vmax.f32 %v7530, %v7593
    %v8039 = vmax.f32 %v7531, %v7594
    %v8040 = vmax.f32 %v7532, %v7595
    %v8041 = vmax.f32 %v7533, %v7596
    %v8042 = vmax.f32 %v7534, %v7597
    %v8043 = vmax.f32 %v7535, %v7598
    %v8044 = vmax.f32 %v7536, %v7599
    %v8045 = vmax.f32 %v7537, %v7600
    %v8046 = vmax.f32 %v7538, %v7601
    %v8047 = vmax.f32 %v7539, %v7602
    %v8048 = vmax.f32 %v7540, %v7603
    %v8049 = vmax.f32 %v7541, %v7604
    %v8050 = vmax.f32 %v7542, %v7605
    %v8051 = vmax.f32 %v7543, %v7606
    %v8052 = vmax.f32 %v7544, %v7607
    %v8053 = vmax.f32 %v7545, %v7608
    %v8054 = vmax.f32 %v7546, %v7609
    %v8055 = vmax.f32 %v7547, %v7610
    %v8056 = vmax.f32 %v7548, %v7611
    %v8057 = vmax.f32 %v7549, %v7612
    %v8058 = vmax.f32 %v7550, %v7613
    %v8059 = vmax.f32 %v7551, %v7614
    %v8060 = vmax.f32 %v7552, %v7615
    %v8061 = vmax.f32 %v7553, %v7616
    %v8062 = vmax.f32 %v7617, %v7680
    %v8063 = vmax.f32 %v7618, %v7681
    %v8064 = vmax.f32 %v7619, %v7682
    %v8065 = vmax.f32 %v7620, %v7683
    %v8066 = vmax.f32 %v7621, %v7684
    %v8067 = vmax.f32 %v7622, %v7685
    %v8068 = vmax.f32 %v7623, %v7686
    %v8069 = vmax.f32 %v7624, %v7687
    %v8070 = vmax.f32 %v7625, %v7688
    %v8071 = vmax.f32 %v7626, %v7689
    %v8072 = vmax.f32 %v7627, %v7690
    %v8073 = vmax.f32 %v7628, %v7691
    %v8074 = vmax.f32 %v7629, %v7692
    %v8075 = vmax.f32 %v7630, %v7693
    %v8076 = vmax.f32 %v7631, %v7694
    %v8077 = vmax.f32 %v7632, %v7695
    %v8078 = vmax.f32 %v7633, %v7696
    %v8079 = vmax.f32 %v7634, %v7697
    %v8080 = vmax.f32 %v7635, %v7698
    %v8081 = vmax.f32 %v7636, %v7699
    %v8082 = vmax.f32 %v7637, %v7700
    %v8083 = vmax.f32 %v7638, %v7701
    %v8084 = vmax.f32 %v7639, %v7702
    %v8085 = vmax.f32 %v7640, %v7703
    %v8086 = vmax.f32 %v7641, %v7704
    %v8087 = vmax.f32 %v7642, %v7705
    %v8088 = vmax.f32 %v7643, %v7706
    %v8089 = vmax.f32 %v7644, %v7707
    %v8090 = vmax.f32 %v7645, %v7708
    %v8091 = vmax.f32 %v7646, %v7709
    %v8092 = vmax.f32 %v7647, %v7710
    %v8093 = vmax.f32 %v7648, %v7711
    %v8094 = vmax.f32 %v7649, %v7712
    %v8095 = vmax.f32 %v7650, %v7713
    %v8096 = vmax.f32 %v7651, %v7714
    %v8097 = vmax.f32 %v7652, %v7715
    %v8098 = vmax.f32 %v7653, %v7716
    %v8099 = vmax.f32 %v7654, %v7717
    %v8100 = vmax.f32 %v7655, %v7718
    %v8101 = vmax.f32 %v7656, %v7719
    %v8102 = vmax.f32 %v7657, %v7720
    %v8103 = vmax.f32 %v7658, %v7721
    %v8104 = vmax.f32 %v7659, %v7722
    %v8105 = vmax.f32 %v7660, %v7723
    %v8106 = vmax.f32 %v7661, %v7724
    %v8107 = vmax.f32 %v7662, %v7725
    %v8108 = vmax.f32 %v7663, %v7726
    %v8109 = vmax.f32 %v7664, %v7727
    %v8110 = vmax.f32 %v7665, %v7728
    %v8111 = vmax.f32 %v7666, %v7729
    %v8112 = vmax.f32 %v7667, %v7730
    %v8113 = vmax.f32 %v7668, %v7731
    %v8114 = vmax.f32 %v7669, %v7732
    %v8115 = vmax.f32 %v7670, %v7733
    %v8116 = vmax.f32 %v7671, %v7734
    %v8117 = vmax.f32 %v7672, %v7735
    %v8118 = vmax.f32 %v7673, %v7736
    %v8119 = vmax.f32 %v7674, %v7737
    %v8120 = vmax.f32 %v7675, %v7738
    %v8121 = vmax.f32 %v7676, %v7739
    %v8122 = vmax.f32 %v7677, %v7740
    %v8123 = vmax.f32 %v7678, %v7741
    %v8124 = vmax.f32 %v7679, %v7742
    %v8125 = vmax.f32 %v7680, %v7743
    %v8126 = vmax.f32 %v7744, %v7807
    %v8127 = vmax.f32 %v7745, %v7808
    %v8128 = vmax.f32 %v7746, %v7809
    %v8129 = vmax.f32 %v7747, %v7810
    %v8130 = vmax.f32 %v7748, %v7811
    %v8131 = vmax.f32 %v7749, %v7812
    %v8132 = vmax.f32 %v7750, %v7813
    %v8133 = vmax.f32 %v7751, %v7814
    %v8134 = vmax.f32 %v7752, %v7815
    %v8135 = vmax.f32 %v7753, %v7816
    %v8136 = vmax.f32 %v7754, %v7817
    %v8137 = vmax.f32 %v7755, %v7818
    %v8138 = vmax.f32 %v7756, %v7819
    %v8139 = vmax.f32 %v7757, %v7820
    %v8140 = vmax.f32 %v7758, %v7821
    %v8141 = vmax.f32 %v7759, %v7822
    %v8142 = vmax.f32 %v7760, %v7823
    %v8143 = vmax.f32 %v7761, %v7824
    %v8144 = vmax.f32 %v7762, %v7825
    %v8145 = vmax.f32 %v7763, %v7826
    %v8146 = vmax.f32 %v7764, %v7827
    %v8147 = vmax.f32 %v7765, %v7828
    %v8148 = vmax.f32 %v7766, %v7829
    %v8149 = vmax.f32 %v7767, %v7830
    %v8150 = vmax.f32 %v7768, %v7831
    %v8151 = vmax.f32 %v7769, %v7832
    %v8152 = vmax.f32 %v7770, %v7833
    %v8153 = vmax.f32 %v7771, %v7834
    %v8154 = vmax.f32 %v7772, %v7835
    %v8155 = vmax.f32 %v7773, %v7836
    %v8156 = vmax.f32 %v7774, %v7837
    %v8157 = vmax.f32 %v7775, %v7838
    %v8158 = vmax.f32 %v7776, %v7839
    %v8159 = vmax.f32 %v7777, %v7840
    %v8160 = vmax.f32 %v7778, %v7841
    %v8161 = vmax.f32 %v7779, %v7842
    %v8162 = vmax.f32 %v7780, %v7843
    %v8163 = vmax.f32 %v7781, %v7844
    %v8164 = vmax.f32 %v7782, %v7845
    %v8165 = vmax.f32 %v7783, %v7846
    %v8166 = vmax.f32 %v7784, %v7847
    %v8167 = vmax.f32 %v7785, %v7848
    %v8168 = vmax.f32 %v7786, %v7849
    %v8169 = vmax.f32 %v7787, %v7850
    %v8170 = vmax.f32 %v7788, %v7851
    %v8171 = vmax.f32 %v7789, %v7852
    %v8172 = vmax.f32 %v7790, %v7853
    %v8173 = vmax.f32 %v7791, %v7854
    %v8174 = vmax.f32 %v7792, %v7855
    %v8175 = vmax.f32 %v7793, %v7856
    %v8176 = vmax.f32 %v7794, %v7857
    %v8177 = vmax.f32 %v7795, %v7858
    %v8178 = vmax.f32 %v7796, %v7859
    %v8179 = vmax.f32 %v7797, %v7860
    %v8180 = vmax.f32 %v7798, %v7861
    %v8181 = vmax.f32 %v7799, %v7862
    %v8182 = vmax.f32 %v7800, %v7863
    %v8183 = vmax.f32 %v7801, %v7864
    %v8184 = vmax.f32 %v7802, %v7865
    %v8185 = vmax.f32 %v7803, %v7866
    %v8186 = vmax.f32 %v7804, %v7867
    %v8187 = vmax.f32 %v7805, %v7868
    %v8188 = vmax.f32 %v7806, %v7869
    %v8189 = vmax.f32 %v7807, %v7870
    %v8190 = vmax.f32 %v7871, %v7934
    %v8191 = vmax.f32 %v7872, %v7935
    %v8192 = vmax.f32 %v7873, %v7936
    %v8193 = vmax.f32 %v7874, %v7937
    %v8194 = vmax.f32 %v7875, %v7938
    %v8195 = vmax.f32 %v7876, %v7939
    %v8196 = vmax.f32 %v7877, %v7940
    %v8197 = vmax.f32 %v7878, %v7941
    %v8198 = vmax.f32 %v7879, %v7942
    %v8199 = vmax.f32 %v7880, %v7943
    %v8200 = vmax.f32 %v7881, %v7944
    %v8201 = vmax.f32 %v7882, %v7945
    %v8202 = vmax.f32 %v7883, %v7946
    %v8203 = vmax.f32 %v7884, %v7947
    %v8204 = vmax.f32 %v7885, %v7948
    %v8205 = vmax.f32 %v7886, %v7949
    %v8206 = vmax.f32 %v7887, %v7950
    %v8207 = vmax.f32 %v7888, %v7951
    %v8208 = vmax.f32 %v7889, %v7952
    %v8209 = vmax.f32 %v7890, %v7953
    %v8210 = vmax.f32 %v7891, %v7954
    %v8211 = vmax.f32 %v7892, %v7955
    %v8212 = vmax.f32 %v7893, %v7956
    %v8213 = vmax.f32 %v7894, %v7957
    %v8214 = vmax.f32 %v7895, %v7958
    %v8215 = vmax.f32 %v7896, %v7959
    %v8216 = vmax.f32 %v7897, %v7960
    %v8217 = vmax.f32 %v7898, %v7961
    %v8218 = vmax.f32 %v7899, %v7962
    %v8219 = vmax.f32 %v7900, %v7963
    %v8220 = vmax.f32 %v7901, %v7964
    %v8221 = vmax.f32 %v7902, %v7965
    %v8222 = vmax.f32 %v7903, %v7966
    %v8223 = vmax.f32 %v7904, %v7967
    %v8224 = vmax.f32 %v7905, %v7968
    %v8225 = vmax.f32 %v7906, %v7969
    %v8226 = vmax.f32 %v7907, %v7970
    %v8227 = vmax.f32 %v7908, %v7971
    %v8228 = vmax.f32 %v7909, %v7972
    %v8229 = vmax.f32 %v7910, %v7973
    %v8230 = vmax.f32 %v7911, %v7974
    %v8231 = vmax.f32 %v7912, %v7975
    %v8232 = vmax.f32 %v7913, %v7976
    %v8233 = vmax.f32 %v7914, %v7977
    %v8234 = vmax.f32 %v7915, %v7978
    %v8235 = vmax.f32 %v7916, %v7979
    %v8236 = vmax.f32 %v7917, %v7980
    %v8237 = vmax.f32 %v7918, %v7981
    %v8238 = vmax.f32 %v7919, %v7982
    %v8239 = vmax.f32 %v7920, %v7983
    %v8240 = vmax.f32 %v7921, %v7984
    %v8241 = vmax.f32 %v7922, %v7985
    %v8242 = vmax.f32 %v7923, %v7986
    %v8243 = vmax.f32 %v7924, %v7987
    %v8244 = vmax.f32 %v7925, %v7988
    %v8245 = vmax.f32 %v7926, %v7989
    %v8246 = vmax.f32 %v7927, %v7990
    %v8247 = vmax.f32 %v7928, %v7991
    %v8248 = vmax.f32 %v7929, %v7992
    %v8249 = vmax.f32 %v7930, %v7993
    %v8250 = vmax.f32 %v7931, %v7994
    %v8251 = vmax.f32 %v7932, %v7995
    %v8252 = vmax.f32 %v7933, %v7996
    %v8253 = vmax.f32 %v7934, %v7997
    %v8254 = vmax.f32 %v7998, %v8030
    %v8255 = vmax.f32 %v7999, %v8031
    %v8256 = vmax.f32 %v8000, %v8032
    %v8257 = vmax.f32 %v8001, %v8033
    %v8258 = vmax.f32 %v8002, %v8034
    %v8259 = vmax.f32 %v8003, %v8035
    %v8260 = vmax.f32 %v8004, %v8036
    %v8261 = vmax.f32 %v8005, %v8037
    %v8262 = vmax.f32 %v8006, %v8038
    %v8263 = vmax.f32 %v8007, %v8039
    %v8264 = vmax.f32 %v8008, %v8040
    %v8265 = vmax.f32 %v8009, %v8041
    %v8266 = vmax.f32 %v8010, %v8042
    %v8267 = vmax.f32 %v8011, %v8043
    %v8268 = vmax.f32 %v8012, %v8044
    %v8269 = vmax.f32 %v8013, %v8045
    %v8270 = vmax.f32 %v8014, %v8046
    %v8271 = vmax.f32 %v8015, %v8047
    %v8272 = vmax.f32 %v8016, %v8048
    %v8273 = vmax.f32 %v8017, %v8049
    %v8274 = vmax.f32 %v8018, %v8050
    %v8275 = vmax.f32 %v8019, %v8051
    %v8276 = vmax.f32 %v8020, %v8052
    %v8277 = vmax.f32 %v8021, %v8053
    %v8278 = vmax.f32 %v8022, %v8054
    %v8279 = vmax.f32 %v8023, %v8055
    %v8280 = vmax.f32 %v8024, %v8056
    %v8281 = vmax.f32 %v8025, %v8057
    %v8282 = vmax.f32 %v8026, %v8058
    %v8283 = vmax.f32 %v8027, %v8059
    %v8284 = vmax.f32 %v8028, %v8060
    %v8285 = vmax.f32 %v8029, %v8061
    %v8286 = vmax.f32 %v8062, %v8094
    %v8287 = vmax.f32 %v8063, %v8095
    %v8288 = vmax.f32 %v8064, %v8096
    %v8289 = vmax.f32 %v8065, %v8097
    %v8290 = vmax.f32 %v8066, %v8098
    %v8291 = vmax.f32 %v8067, %v8099
    %v8292 = vmax.f32 %v8068, %v8100
    %v8293 = vmax.f32 %v8069, %v8101
    %v8294 = vmax.f32 %v8070, %v8102
    %v8295 = vmax.f32 %v8071, %v8103
    %v8296 = vmax.f32 %v8072, %v8104
    %v8297 = vmax.f32 %v8073, %v8105
    %v8298 = vmax.f32 %v8074, %v8106
    %v8299 = vmax.f32 %v8075, %v8107
    %v8300 = vmax.f32 %v8076, %v8108
    %v8301 = vmax.f32 %v8077, %v8109
    %v8302 = vmax.f32 %v8078, %v8110
    %v8303 = vmax.f32 %v8079, %v8111
    %v8304 = vmax.f32 %v8080, %v8112
    %v8305 = vmax.f32 %v8081, %v8113
    %v8306 = vmax.f32 %v8082, %v8114
    %v8307 = vmax.f32 %v8083, %v8115
    %v8308 = vmax.f32 %v8084, %v8116
    %v8309 = vmax.f32 %v8085, %v8117
    %v8310 = vmax.f32 %v8086, %v8118
    %v8311 = vmax.f32 %v8087, %v8119
    %v8312 = vmax.f32 %v8088, %v8120
    %v8313 = vmax.f32 %v8089, %v8121
    %v8314 = vmax.f32 %v8090, %v8122
    %v8315 = vmax.f32 %v8091, %v8123
    %v8316 = vmax.f32 %v8092, %v8124
    %v8317 = vmax.f32 %v8093, %v8125
    %v8318 = vmax.f32 %v8126, %v8158
    %v8319 = vmax.f32 %v8127, %v8159
    %v8320 = vmax.f32 %v8128, %v8160
    %v8321 = vmax.f32 %v8129, %v8161
    %v8322 = vmax.f32 %v8130, %v8162
    %v8323 = vmax.f32 %v8131, %v8163
    %v8324 = vmax.f32 %v8132, %v8164
    %v8325 = vmax.f32 %v8133, %v8165
    %v8326 = vmax.f32 %v8134, %v8166
    %v8327 = vmax.f32 %v8135, %v8167
    %v8328 = vmax.f32 %v8136, %v8168
    %v8329 = vmax.f32 %v8137, %v8169
    %v8330 = vmax.f32 %v8138, %v8170
    %v8331 = vmax.f32 %v8139, %v8171
    %v8332 = vmax.f32 %v8140, %v8172
    %v8333 = vmax.f32 %v8141, %v8173
    %v8334 = vmax.f32 %v8142, %v8174
    %v8335 = vmax.f32 %v8143, %v8175
    %v8336 = vmax.f32 %v8144, %v8176
    %v8337 = vmax.f32 %v8145, %v8177
    %v8338 = vmax.f32 %v8146, %v8178
    %v8339 = vmax.f32 %v8147, %v8179
    %v8340 = vmax.f32 %v8148, %v8180
    %v8341 = vmax.f32 %v8149, %v8181
    %v8342 = vmax.f32 %v8150, %v8182
    %v8343 = vmax.f32 %v8151, %v8183
    %v8344 = vmax.f32 %v8152, %v8184
    %v8345 = vmax.f32 %v8153, %v8185
    %v8346 = vmax.f32 %v8154, %v8186
    %v8347 = vmax.f32 %v8155, %v8187
    %v8348 = vmax.f32 %v8156, %v8188
    %v8349 = vmax.f32 %v8157, %v8189
    %v8350 = vmax.f32 %v8190, %v8222
    %v8351 = vmax.f32 %v8191, %v8223
    %v8352 = vmax.f32 %v8192, %v8224
    %v8353 = vmax.f32 %v8193, %v8225
    %v8354 = vmax.f32 %v8194, %v8226
    %v8355 = vmax.f32 %v8195, %v8227
    %v8356 = vmax.f32 %v8196, %v8228
    %v8357 = vmax.f32 %v8197, %v8229
    %v8358 = vmax.f32 %v8198, %v8230
    %v8359 = vmax.f32 %v8199, %v8231
    %v8360 = vmax.f32 %v8200, %v8232
    %v8361 = vmax.f32 %v8201, %v8233
    %v8362 = vmax.f32 %v8202, %v8234
    %v8363 = vmax.f32 %v8203, %v8235
    %v8364 = vmax.f32 %v8204, %v8236
    %v8365 = vmax.f32 %v8205, %v8237
    %v8366 = vmax.f32 %v8206, %v8238
    %v8367 = vmax.f32 %v8207, %v8239
    %v8368 = vmax.f32 %v8208, %v8240
    %v8369 = vmax.f32 %v8209, %v8241
    %v8370 = vmax.f32 %v8210, %v8242
    %v8371 = vmax.f32 %v8211, %v8243
    %v8372 = vmax.f32 %v8212, %v8244
    %v8373 = vmax.f32 %v8213, %v8245
    %v8374 = vmax.f32 %v8214, %v8246
    %v8375 = vmax.f32 %v8215, %v8247
    %v8376 = vmax.f32 %v8216, %v8248
    %v8377 = vmax.f32 %v8217, %v8249
    %v8378 = vmax.f32 %v8218, %v8250
    %v8379 = vmax.f32 %v8219, %v8251
    %v8380 = vmax.f32 %v8220, %v8252
    %v8381 = vmax.f32 %v8221, %v8253
    %v8382 = vmax.f32 %v8254, %v8270
    %v8383 = vmax.f32 %v8255, %v8271
    %v8384 = vmax.f32 %v8256, %v8272
    %v8385 = vmax.f32 %v8257, %v8273
    %v8386 = vmax.f32 %v8258, %v8274
    %v8387 = vmax.f32 %v8259, %v8275
    %v8388 = vmax.f32 %v8260, %v8276
    %v8389 = vmax.f32 %v8261, %v8277
    %v8390 = vmax.f32 %v8262, %v8278
    %v8391 = vmax.f32 %v8263, %v8279
    %v8392 = vmax.f32 %v8264, %v8280
    %v8393 = vmax.f32 %v8265, %v8281
    %v8394 = vmax.f32 %v8266, %v8282
    %v8395 = vmax.f32 %v8267, %v8283
    %v8396 = vmax.f32 %v8268, %v8284
    %v8397 = vmax.f32 %v8269, %v8285
    %v8398 = vmax.f32 %v8286, %v8302
    %v8399 = vmax.f32 %v8287, %v8303
    %v8400 = vmax.f32 %v8288, %v8304
    %v8401 = vmax.f32 %v8289, %v8305
    %v8402 = vmax.f32 %v8290, %v8306
    %v8403 = vmax.f32 %v8291, %v8307
    %v8404 = vmax.f32 %v8292, %v8308
    %v8405 = vmax.f32 %v8293, %v8309
    %v8406 = vmax.f32 %v8294, %v8310
    %v8407 = vmax.f32 %v8295, %v8311
    %v8408 = vmax.f32 %v8296, %v8312
    %v8409 = vmax.f32 %v8297, %v8313
    %v8410 = vmax.f32 %v8298, %v8314
    %v8411 = vmax.f32 %v8299, %v8315
    %v8412 = vmax.f32 %v8300, %v8316
    %v8413 = vmax.f32 %v8301, %v8317
    %v8414 = vmax.f32 %v8318, %v8334
    %v8415 = vmax.f32 %v8319, %v8335
    %v8416 = vmax.f32 %v8320, %v8336
    %v8417 = vmax.f32 %v8321, %v8337
    %v8418 = vmax.f32 %v8322, %v8338
    %v8419 = vmax.f32 %v8323, %v8339
    %v8420 = vmax.f32 %v8324, %v8340
    %v8421 = vmax.f32 %v8325, %v8341
    %v8422 = vmax.f32 %v8326, %v8342
    %v8423 = vmax.f32 %v8327, %v8343
    %v8424 = vmax.f32 %v8328, %v8344
    %v8425 = vmax.f32 %v8329, %v8345
    %v8426 = vmax.f32 %v8330, %v8346
    %v8427 = vmax.f32 %v8331, %v8347
    %v8428 = vmax.f32 %v8332, %v8348
    %v8429 = vmax.f32 %v8333, %v8349
    %v8430 = vmax.f32 %v8350, %v8366
    %v8431 = vmax.f32 %v8351, %v8367
    %v8432 = vmax.f32 %v8352, %v8368
    %v8433 = vmax.f32 %v8353, %v8369
    %v8434 = vmax.f32 %v8354, %v8370
    %v8435 = vmax.f32 %v8355, %v8371
    %v8436 = vmax.f32 %v8356, %v8372
    %v8437 = vmax.f32 %v8357, %v8373
    %v8438 = vmax.f32 %v8358, %v8374
    %v8439 = vmax.f32 %v8359, %v8375
    %v8440 = vmax.f32 %v8360, %v8376
    %v8441 = vmax.f32 %v8361, %v8377
    %v8442 = vmax.f32 %v8362, %v8378
    %v8443 = vmax.f32 %v8363, %v8379
    %v8444 = vmax.f32 %v8364, %v8380
    %v8445 = vmax.f32 %v8365, %v8381
    %v8446 = vmax.f32 %v8382, %v8390
    %v8447 = vmax.f32 %v8383, %v8391
    %v8448 = vmax.f32 %v8384, %v8392
    %v8449 = vmax.f32 %v8385, %v8393
    %v8450 = vmax.f32 %v8386, %v8394
    %v8451 = vmax.f32 %v8387, %v8395
    %v8452 = vmax.f32 %v8388, %v8396
    %v8453 = vmax.f32 %v8389, %v8397
    %v8454 = vmax.f32 %v8398, %v8406
    %v8455 = vmax.f32 %v8399, %v8407
    %v8456 = vmax.f32 %v8400, %v8408
    %v8457 = vmax.f32 %v8401, %v8409
    %v8458 = vmax.f32 %v8402, %v8410
    %v8459 = vmax.f32 %v8403, %v8411
    %v8460 = vmax.f32 %v8404, %v8412
    %v8461 = vmax.f32 %v8405, %v8413
    %v8462 = vmax.f32 %v8414, %v8422
    %v8463 = vmax.f32 %v8415, %v8423
    %v8464 = vmax.f32 %v8416, %v8424
    %v8465 = vmax.f32 %v8417, %v8425
    %v8466 = vmax.f32 %v8418, %v8426
    %v8467 = vmax.f32 %v8419, %v8427
    %v8468 = vmax.f32 %v8420, %v8428
    %v8469 = vmax.f32 %v8421, %v8429
    %v8470 = vmax.f32 %v8430, %v8438
    %v8471 = vmax.f32 %v8431, %v8439
    %v8472 = vmax.f32 %v8432, %v8440
    %v8473 = vmax.f32 %v8433, %v8441
    %v8474 = vmax.f32 %v8434, %v8442
    %v8475 = vmax.f32 %v8435, %v8443
    %v8476 = vmax.f32 %v8436, %v8444
    %v8477 = vmax.f32 %v8437, %v8445
    %v8478 = vmax.f32 %v8446, %v8450
    %v8479 = vmax.f32 %v8447, %v8451
    %v8480 = vmax.f32 %v8448, %v8452
    %v8481 = vmax.f32 %v8449, %v8453
    %v8482 = vmax.f32 %v8454, %v8458
    %v8483 = vmax.f32 %v8455, %v8459
    %v8484 = vmax.f32 %v8456, %v8460
    %v8485 = vmax.f32 %v8457, %v8461
    %v8486 = vmax.f32 %v8462, %v8466
    %v8487 = vmax.f32 %v8463, %v8467
    %v8488 = vmax.f32 %v8464, %v8468
    %v8489 = vmax.f32 %v8465, %v8469
    %v8490 = vmax.f32 %v8470, %v8474
    %v8491 = vmax.f32 %v8471, %v8475
    %v8492 = vmax.f32 %v8472, %v8476
    %v8493 = vmax.f32 %v8473, %v8477
    %v8494 = vmax.f32 %v8478, %v8480
    %v8495 = vmax.f32 %v8479, %v8481
    %v8496 = vmax.f32 %v8482, %v8484
    %v8497 = vmax.f32 %v8483, %v8485
    %v8498 = vmax.f32 %v8486, %v8488
    %v8499 = vmax.f32 %v8487, %v8489
    %v8500 = vmax.f32 %v8490, %v8492
    %v8501 = vmax.f32 %v8491, %v8493
    %v8502 = vmax.f32 %v8494, %v8495
    %v8503 = vmax.f32 %v8496, %v8497
    %v8504 = vmax.f32 %v8498, %v8499
    %v8505 = vmax.f32 %v8500, %v8501
    %v8506 = vmax.f32 %v8502, %v349
    %v8507 = vmax.f32 %v8503, %v355
    %v8508 = vmax.f32 %v8504, %v361
    %v8509 = vmax.f32 %v8505, %v367
    %v8510 = vmax.f32 %v8506, %v7446
    %v8511 = vmax.f32 %v8507, %v7452
    %v8512 = vmax.f32 %v8508, %v7458
    %v8513 = vmax.f32 %v8509, %v7464
    %v8514 = vld [vmem:[%s2] sm:$0xff]
    %v8515 = vld [vmem:[%s2 + $0x8] sm:$0xff]
    %v8516 = vld [vmem:[%s2 + $0x10] sm:$0xff]
    %v8517 = vld [vmem:[%s2 + $0x18] sm:$0xff]
    %8519 = vset.pattern.permute.xlu0 0
    %8520 = vperm.xlu0 %8519, %v8514
    %v8521 = vpop.permute.xlu0 %8520
    %8524 = vset.pattern.permute.xlu0 0
    %8525 = vperm.xlu0 %8524, %v8515
    %v8526 = vpop.permute.xlu0 %8525
    %8529 = vset.pattern.permute.xlu0 0
    %8530 = vperm.xlu0 %8529, %v8516
    %v8531 = vpop.permute.xlu0 %8530
    %8534 = vset.pattern.permute.xlu0 0
    %8535 = vperm.xlu0 %8534, %v8517
    %v8536 = vpop.permute.xlu0 %8535
    %v8538 = vadd.f32 %v8510, %v8521
    %v8539 = vadd.f32 %v8511, %v8526
    %v8540 = vadd.f32 %v8512, %v8531
    %v8541 = vadd.f32 %v8513, %v8536
    %v8542 = vmax.f32 %v8538, 0.0
    %v8543 = vmax.f32 %v8539, 0.0
    %v8544 = vmax.f32 %v8540, 0.0
    %v8545 = vmax.f32 %v8541, 0.0
    %v8546 = vld [vmem:[%s3] sm:$0xff]
    %v8547 = vld [vmem:[%s3 + $0x8] sm:$0xff]
    %v8548 = vld [vmem:[%s3 + $0x10] sm:$0xff]
    %v8549 = vld [vmem:[%s3 + $0x18] sm:$0xff]
    %v8550 = vld [vmem:[%s3 + $0x20] sm:$0xff]
    %v8551 = vld [vmem:[%s3 + $0x28] sm:$0xff]
    %v8552 = vld [vmem:[%s3 + $0x30] sm:$0xff]
    %v8553 = vld [vmem:[%s3 + $0x38] sm:$0xff]
    %v8554 = vld [vmem:[%s3 + $0x40] sm:$0xff]
    %v8555 = vld [vmem:[%s3 + $0x48] sm:$0xff]
    %v8556 = vld [vmem:[%s3 + $0x50] sm:$0xff]
    %v8557 = vld [vmem:[%s3 + $0x58] sm:$0xff]
    %v8558 = vld [vmem:[%s3 + $0x60] sm:$0xff]
    %v8559 = vld [vmem:[%s3 + $0x68] sm:$0xff]
    %v8560 = vld [vmem:[%s3 + $0x70] sm:$0xff]
    %v8561 = vld [vmem:[%s3 + $0x78] sm:$0xff]
    %vm8562 = vcmask 261120
    %v8564 = vsel %vm8562, %v8546, 0
    %v8567 = vsel %vm8562, %v8547, 0
    %v8570 = vsel %vm8562, %v8548, 0
    %v8573 = vsel %vm8562, %v8549, 0
    %v8576 = vsel %vm8562, %v8550, 0
    %v8579 = vsel %vm8562, %v8551, 0
    %v8582 = vsel %vm8562, %v8552, 0
    %v8585 = vsel %vm8562, %v8553, 0
    %v8588 = vsel %vm8562, %v8554, 0
    %v8591 = vsel %vm8562, %v8555, 0
    %v8594 = vsel %vm8562, %v8556, 0
    %v8597 = vsel %vm8562, %v8557, 0
    %v8600 = vsel %vm8562, %v8558, 0
    %v8603 = vsel %vm8562, %v8559, 0
    %v8606 = vsel %vm8562, %v8560, 0
    %v8609 = vsel %vm8562, %v8561, 0
    %8611 = vmatprep.subr.mxu0 0.0
    %8612 = vmatpush1.msra.mxu0 %v8542
    %8613 = vmatprep.subr.mxu0 0.0
    %8614 = vmatpush1.msra.mxu0 %v8543
    %8615 = vmatprep.subr.mxu0 0.0
    %8616 = vmatpush1.msra.mxu0 %v8544
    %8617 = vmatprep.subr.mxu0 0.0
    %8618 = vmatpush1.msra.mxu0 %v8545
    %8619 = vmatprep.subr.mxu0 0.0
    %8620 = vmatpush1.msra.mxu0 0.0
    %8621 = vmatprep.subr.mxu0 0.0
    %8622 = vmatpush1.msra.mxu0 0.0
    %8623 = vmatprep.subr.mxu0 0.0
    %8624 = vmatpush1.msra.mxu0 0.0
    %8625 = vmatprep.subr.mxu0 0.0
    %8626 = vmatpush1.msra.mxu0 0.0
    %8627 = vmatprep.subr.mxu0 0.0
    %8628 = vmatpush1.msra.mxu0 0.0
    %8629 = vmatprep.subr.mxu0 0.0
    %8630 = vmatpush1.msra.mxu0 0.0
    %8631 = vmatprep.subr.mxu0 0.0
    %8632 = vmatpush1.msra.mxu0 0.0
    %8633 = vmatprep.subr.mxu0 0.0
    %8634 = vmatpush1.msra.mxu0 0.0
    %8635 = vmatprep.subr.mxu0 0.0
    %8636 = vmatpush1.msra.mxu0 0.0
    %8637 = vmatprep.subr.mxu0 0.0
    %8638 = vmatpush1.msra.mxu0 0.0
    %8639 = vmatprep.subr.mxu0 0.0
    %8640 = vmatpush1.msra.mxu0 0.0
    %8641 = vmatprep.subr.mxu0 0.0
    %8642 = vmatpush1.msra.mxu0 0.0
    %8643 = vmatprep.subr.mxu0 0.0
    %8644 = vmatpush1.msra.mxu0 0.0
    %8645 = vmatprep.subr.mxu0 0.0
    %8646 = vmatpush1.msra.mxu0 0.0
    %8647 = vmatprep.subr.mxu0 0.0
    %8648 = vmatpush1.msra.mxu0 0.0
    %8649 = vmatprep.subr.mxu0 0.0
    %8650 = vmatpush1.msra.mxu0 0.0
    %8651 = vmatprep.subr.mxu0 0.0
    %8652 = vmatpush1.msra.mxu0 0.0
    %8653 = vmatprep.subr.mxu0 0.0
    %8654 = vmatpush1.msra.mxu0 0.0
    %8655 = vmatprep.subr.mxu0 0.0
    %8656 = vmatpush1.msra.mxu0 0.0
    %8657 = vmatprep.subr.mxu0 0.0
    %8658 = vmatpush1.msra.mxu0 0.0
    %8659 = vmatprep.subr.mxu0 0.0
    %8660 = vmatpush1.msra.mxu0 0.0
    %8661 = vmatprep.subr.mxu0 0.0
    %8662 = vmatpush1.msra.mxu0 0.0
    %8663 = vmatprep.subr.mxu0 0.0
    %8664 = vmatpush1.msra.mxu0 0.0
    %8665 = vmatprep.subr.mxu0 0.0
    %8666 = vmatpush1.msra.mxu0 0.0
    %8667 = vmatprep.subr.mxu0 0.0
    %8668 = vmatpush1.msra.mxu0 0.0
    %8669 = vmatprep.subr.mxu0 0.0
    %8670 = vmatpush1.msra.mxu0 0.0
    %8671 = vmatprep.subr.mxu0 0.0
    %8672 = vmatpush1.msra.mxu0 0.0
    %8673 = vmatprep.subr.mxu0 0.0
    %8674 = vmatpush1.msra.mxu0 0.0
    %8675 = vmatprep.mubr.f32.mxu0 0.0
    %8676 = vmatmul.mubr.f32.gmra.mrb[0].mxu0 %v8564
    %v8677 = vpop.f32.mrb[0].mxu0
    %v8678 = vadd.f32 0.0, %v8677
    %v8679 = vpop.f32.mrb[0].mxu0
    %8680 = vmatprep.mubr.f32.mxu0 0.0
    %8681 = vmatmul.mubr.f32.gmra.mrb[0].mxu0 %v8567
    %v8682 = vpop.f32.mrb[0].mxu0
    %v8683 = vadd.f32 0.0, %v8682
    %v8684 = vpop.f32.mrb[0].mxu0
    %8685 = vmatprep.mubr.f32.mxu0 0.0
    %8686 = vmatmul.mubr.f32.gmra.mrb[0].mxu0 %v8570
    %v8687 = vpop.f32.mrb[0].mxu0
    %v8688 = vadd.f32 0.0, %v8687
    %v8689 = vpop.f32.mrb[0].mxu0
    %8690 = vmatprep.mubr.f32.mxu0 0.0
    %8691 = vmatmul.mubr.f32.gmra.mrb[0].mxu0 %v8573
    %v8692 = vpop.f32.mrb[0].mxu0
    %v8693 = vadd.f32 0.0, %v8692
    %v8694 = vpop.f32.mrb[0].mxu0
    %8695 = vmatprep.mubr.f32.mxu0 0.0
    %8696 = vmatmul.mubr.f32.gmra.mrb[0].mxu0 %v8576
    %v8697 = vpop.f32.mrb[0].mxu0
    %v8698 = vadd.f32 0.0, %v8697
    %v8699 = vpop.f32.mrb[0].mxu0
    %8700 = vmatprep.mubr.f32.mxu0 0.0
    %8701 = vmatmul.mubr.f32.gmra.mrb[0].mxu0 %v8579
    %v8702 = vpop.f32.mrb[0].mxu0
    %v8703 = vadd.f32 0.0, %v8702
    %v8704 = vpop.f32.mrb[0].mxu0
    %8705 = vmatprep.mubr.f32.mxu0 0.0
    %8706 = vmatmul.mubr.f32.gmra.mrb[0].mxu0 %v8582
    %v8707 = vpop.f32.mrb[0].mxu0
    %v8708 = vadd.f32 0.0, %v8707
    %v8709 = vpop.f32.mrb[0].mxu0
    %8710 = vmatprep.mubr.f32.mxu0 0.0
    %8711 = vmatmul.mubr.f32.gmra.mrb[0].mxu0 %v8585
    %v8712 = vpop.f32.mrb[0].mxu0
    %v8713 = vadd.f32 0.0, %v8712
    %v8714 = vpop.f32.mrb[0].mxu0
    %8715 = vmatprep.mubr.f32.mxu0 0.0
    %8716 = vmatmul.mubr.f32.gmra.mrb[0].mxu0 %v8588
    %v8717 = vpop.f32.mrb[0].mxu0
    %v8718 = vadd.f32 0.0, %v8717
    %v8719 = vpop.f32.mrb[0].mxu0
    %8720 = vmatprep.mubr.f32.mxu0 0.0
    %8721 = vmatmul.mubr.f32.gmra.mrb[0].mxu0 %v8591
    %v8722 = vpop.f32.mrb[0].mxu0
    %v8723 = vadd.f32 0.0, %v8722
    %v8724 = vpop.f32.mrb[0].mxu0
    %8725 = vmatprep.mubr.f32.mxu0 0.0
    %8726 = vmatmul.mubr.f32.gmra.mrb[0].mxu0 %v8594
    %v8727 = vpop.f32.mrb[0].mxu0
    %v8728 = vadd.f32 0.0, %v8727
    %v8729 = vpop.f32.mrb[0].mxu0
    %8730 = vmatprep.mubr.f32.mxu0 0.0
    %8731 = vmatmul.mubr.f32.gmra.mrb[0].mxu0 %v8597
    %v8732 = vpop.f32.mrb[0].mxu0
    %v8733 = vadd.f32 0.0, %v8732
    %v8734 = vpop.f32.mrb[0].mxu0
    %8735 = vmatprep.mubr.f32.mxu0 0.0
    %8736 = vmatmul.mubr.f32.gmra.mrb[0].mxu0 %v8600
    %v8737 = vpop.f32.mrb[0].mxu0
    %v8738 = vadd.f32 0.0, %v8737
    %v8739 = vpop.f32.mrb[0].mxu0
    %8740 = vmatprep.mubr.f32.mxu0 0.0
    %8741 = vmatmul.mubr.f32.gmra.mrb[0].mxu0 %v8603
    %v8742 = vpop.f32.mrb[0].mxu0
    %v8743 = vadd.f32 0.0, %v8742
    %v8744 = vpop.f32.mrb[0].mxu0
    %8745 = vmatprep.mubr.f32.mxu0 0.0
    %8746 = vmatmul.mubr.f32.gmra.mrb[0].mxu0 %v8606
    %v8747 = vpop.f32.mrb[0].mxu0
    %v8748 = vadd.f32 0.0, %v8747
    %v8749 = vpop.f32.mrb[0].mxu0
    %8750 = vmatprep.mubr.f32.mxu0 0.0
    %8751 = vmatmul.mubr.f32.gmra.mrb[0].mxu0 %v8609
    %v8752 = vpop.f32.mrb[0].mxu0
    %v8753 = vadd.f32 0.0, %v8752
    %v8754 = vpop.f32.mrb[0].mxu0
    %8755 = vdwg.mxu0
    %v8756 = vmax.f32 %v8678, %v8718
    %v8757 = vmax.f32 %v8683, %v8723
    %v8758 = vmax.f32 %v8688, %v8728
    %v8759 = vmax.f32 %v8693, %v8733
    %v8760 = vmax.f32 %v8698, %v8738
    %v8761 = vmax.f32 %v8703, %v8743
    %v8762 = vmax.f32 %v8708, %v8748
    %v8763 = vmax.f32 %v8713, %v8753
    %v8764 = vld [vmem:[%s4] sm:$0xff]
    %v8765 = vld [vmem:[%s4 + $0x8] sm:$0xff]
    %v8766 = vld [vmem:[%s4 + $0x10] sm:$0xff]
    %v8767 = vld [vmem:[%s4 + $0x18] sm:$0xff]
    %v8768 = vld [vmem:[%s4 + $0x20] sm:$0xff]
    %v8769 = vld [vmem:[%s4 + $0x28] sm:$0xff]
    %v8770 = vld [vmem:[%s4 + $0x30] sm:$0xff]
    %v8771 = vld [vmem:[%s4 + $0x38] sm:$0xff]
    %8773 = vset.pattern.permute.xlu0 0
    %8774 = vperm.xlu0 %8773, %v8764
    %v8775 = vpop.permute.xlu0 %8774
    %8778 = vset.pattern.permute.xlu0 0
    %8779 = vperm.xlu0 %8778, %v8765
    %v8780 = vpop.permute.xlu0 %8779
    %8783 = vset.pattern.permute.xlu0 0
    %8784 = vperm.xlu0 %8783, %v8766
    %v8785 = vpop.permute.xlu0 %8784
    %8788 = vset.pattern.permute.xlu0 0
    %8789 = vperm.xlu0 %8788, %v8767
    %v8790 = vpop.permute.xlu0 %8789
    %8793 = vset.pattern.permute.xlu0 0
    %8794 = vperm.xlu0 %8793, %v8768
    %v8795 = vpop.permute.xlu0 %8794
    %8798 = vset.pattern.permute.xlu0 0
    %8799 = vperm.xlu0 %8798, %v8769
    %v8800 = vpop.permute.xlu0 %8799
    %8803 = vset.pattern.permute.xlu0 0
    %8804 = vperm.xlu0 %8803, %v8770
    %v8805 = vpop.permute.xlu0 %8804
    %8808 = vset.pattern.permute.xlu0 0
    %8809 = vperm.xlu0 %8808, %v8771
    %v8810 = vpop.permute.xlu0 %8809
    %v8812 = vadd.f32 %v8756, %v8775
    %v8813 = vadd.f32 %v8757, %v8780
    %v8814 = vadd.f32 %v8758, %v8785
    %v8815 = vadd.f32 %v8759, %v8790
    %v8816 = vadd.f32 %v8760, %v8795
    %v8817 = vadd.f32 %v8761, %v8800
    %v8818 = vadd.f32 %v8762, %v8805
    %v8819 = vadd.f32 %v8763, %v8810
    %v8820 = vmax.f32 %v8812, 0.0
    %v8821 = vmax.f32 %v8813, 0.0
    %v8822 = vmax.f32 %v8814, 0.0
    %v8823 = vmax.f32 %v8815, 0.0
    %v8824 = vmax.f32 %v8816, 0.0
    %v8825 = vmax.f32 %v8817, 0.0
    %v8826 = vmax.f32 %v8818, 0.0
    %v8827 = vmax.f32 %v8819, 0.0
    %8828 = vst [vmem:[#allocation5] sm:$0xff] %v8820
    %8829 = vst [vmem:[#allocation5 + $0x8] sm:$0xff] %v8821
    %8830 = vst [vmem:[#allocation5 + $0x10] sm:$0xff] %v8822
    %8831 = vst [vmem:[#allocation5 + $0x18] sm:$0xff] %v8823
    %8832 = vst [vmem:[#allocation5 + $0x20] sm:$0xff] %v8824
    %8833 = vst [vmem:[#allocation5 + $0x28] sm:$0xff] %v8825
    %8834 = vst [vmem:[#allocation5 + $0x30] sm:$0xff] %v8826
    %8835 = vst [vmem:[#allocation5 + $0x38] sm:$0xff] %v8827
    // Predicated region
    $region26: #{tpu_custom_call.1} parent=1 // pred_check
      _
    $region27: #{tpu_custom_call.1} parent=1 // pred_check_branch
      %8837 = sbr.rel (0) target = $region29
    $region28: #{tpu_custom_call.1} parent=1 // pred_region
      %s8839 = ssub.s32 1024, 1024
      %8840 = vsyncadd [#allocation4], %s8839
      %s8841 = sshll.u32 [#allocation5], 4
      %s8842 = int_to_ptr.vmem [resolvable:$true] %s8841
      %8847 = dma.vmem_to_hbm [thread:$0]  %s8842, 1024, %s5, [#allocation4], 128, 128, 8
    $region29: #{tpu_custom_call.1} parent=1 // pred_fallthru
      _
    // Predicated region
    $region30: #{tpu_custom_call.1} parent=1 // pred_check
      _
    $region31: #{tpu_custom_call.1} parent=1 // pred_check_branch
      %8849 = sbr.rel (0) target = $region33
    $region32: #{tpu_custom_call.1} parent=1 // pred_region
      %8850 = dma.done [#allocation4], 1024
    $region33: #{tpu_custom_call.1} parent=1 // pred_fallthru
      _
    %8851 = vsyncpa [#allocation3], 1
    %8852 = vsyncpa [#allocation4], 1

</llo_original>
